<compile_context>
chip_gen: v7x
topology: tpu7x:2x2x1
jax: 0.10.0
libtpu: 0.0.40
codegen_flags: <defaults>
</compile_context>

<pallas_src>
from functools import partial

import jax
import jax.numpy as jnp
from jax.experimental import pallas as pl
from jax.experimental.pallas import tpu as pltpu


# ---------------------------------------------------------------------------
# small helpers
# ---------------------------------------------------------------------------

def _round_up(v, m):
    return (v + m - 1) // m * m


def _largest_div_tile(total, cap):
    """Largest multiple of 128 that divides `total` and is <= cap (total must be %128==0)."""
    best = 128
    t = 128
    while t <= cap:
        if total % t == 0:
            best = t
        t += 128
    return best


def _pick_channel_tile(C):
    for cand in (512, 384, 256, 128):
        if C % cand == 0:
            return cand
    return C


# ---------------------------------------------------------------------------
# Tiled matmul (1x1 conv) kernels
# ---------------------------------------------------------------------------

def _mm_kernel(x_ref, w_ref, o_ref, acc_ref):
    @pl.when(pl.program_id(2) == 0)
    def _():
        acc_ref[...] = jnp.zeros_like(acc_ref)

    acc_ref[...] += jnp.dot(x_ref[...], w_ref[...],
                            preferred_element_type=jnp.float32)

    @pl.when(pl.program_id(2) == pl.num_programs(2) - 1)
    def _():
        o_ref[...] = acc_ref[...].astype(o_ref.dtype)


def _mm_bias_kernel(x_ref, w_ref, b_ref, o_ref, acc_ref):
    @pl.when(pl.program_id(2) == 0)
    def _():
        acc_ref[...] = jnp.zeros_like(acc_ref)

    acc_ref[...] += jnp.dot(x_ref[...], w_ref[...],
                            preferred_element_type=jnp.float32)

    @pl.when(pl.program_id(2) == pl.num_programs(2) - 1)
    def _():
        o_ref[...] = (acc_ref[...] + b_ref[...].astype(jnp.float32)).astype(o_ref.dtype)


def matmul(x, w, bias=None, *, out_dtype=jnp.float32, compute_dtype=jnp.float32,
           tm=256, tn=256, tk=512):
    """x: (M, K), w: (K, N), bias: (N,)|(1,N)|None -> (M, N) in out_dtype.

    Tiled with a f32 VMEM accumulator over the K axis; operands cast to compute_dtype
    (bf16 halves HBM traffic and uses the MXU's native precision).
    """
    M, K = x.shape
    Kw, N = w.shape
    assert K == Kw

    tm_ = min(tm, _round_up(M, 8))
    Mp = _round_up(M, tm_)

    if K <= tk:
        Kp, tk_ = K, K
    else:
        Kp = _round_up(K, 128)
        tk_ = _largest_div_tile(Kp, tk)

    if N <= tn:
        Np, tn_ = N, N
    else:
        Np = _round_up(N, 128)
        tn_ = _largest_div_tile(Np, tn)

    xp = x.astype(compute_dtype)
    wp = w.astype(compute_dtype)
    if (Mp, Kp) != (M, K):
        xp = jnp.pad(xp, ((0, Mp - M), (0, Kp - K)))
    if (Kp, Np) != (K, N):
        wp = jnp.pad(wp, ((0, Kp - K), (0, Np - N)))

    grid = (Mp // tm_, Np // tn_, Kp // tk_)
    x_spec = pl.BlockSpec((tm_, tk_), lambda i, j, k: (i, k))
    w_spec = pl.BlockSpec((tk_, tn_), lambda i, j, k: (k, j))
    o_spec = pl.BlockSpec((tm_, tn_), lambda i, j, k: (i, j))
    scratch = [pltpu.VMEM((tm_, tn_), jnp.float32)]
    cparams = pltpu.CompilerParams(
        dimension_semantics=("parallel", "parallel", "arbitrary"))

    if bias is None:
        out = pl.pallas_call(
            _mm_kernel,
            out_shape=jax.ShapeDtypeStruct((Mp, Np), out_dtype),
            grid=grid,
            in_specs=[x_spec, w_spec],
            out_specs=o_spec,
            scratch_shapes=scratch,
            compiler_params=cparams,
        )(xp, wp)
    else:
        b = bias.astype(jnp.float32).reshape(1, N)
        if Np != N:
            b = jnp.pad(b, ((0, 0), (0, Np - N)))
        b_spec = pl.BlockSpec((1, tn_), lambda i, j, k: (0, j))
        out = pl.pallas_call(
            _mm_bias_kernel,
            out_shape=jax.ShapeDtypeStruct((Mp, Np), out_dtype),
            grid=grid,
            in_specs=[x_spec, w_spec, b_spec],
            out_specs=o_spec,
            scratch_shapes=scratch,
            compiler_params=cparams,
        )(xp, wp, b)

    if (Mp, Np) != (M, N):
        out = out[:M, :N]
    return out


# ---------------------------------------------------------------------------
# Depthwise KxK "same" conv kernel (padding done in VMEM scratch, weights hoisted)
# ---------------------------------------------------------------------------

def _dwconv_kernel(x_ref, w_ref, o_ref, xpad_ref, *, K, H, W):
    pad = K // 2
    # Zero the padded scratch (cheap VMEM write), then place the tile interior.
    xpad_ref[...] = jnp.zeros_like(xpad_ref)
    xpad_ref[pad:pad + H, pad:pad + W, :] = x_ref[0].astype(jnp.float32)

    w = w_ref[...].astype(jnp.float32)          # hoist all K*K taps once
    C = o_ref.shape[-1]
    acc = jnp.zeros((H, W, C), jnp.float32)
    for kh in range(K):
        for kw in range(K):
            tap = w[kh * K + kw:kh * K + kw + 1, :]        # (1, C)
            acc = acc + xpad_ref[kh:kh + H, kw:kw + W, :] * tap
    o_ref[0] = acc.astype(o_ref.dtype)


def dwconv_same(x_nhwc, w_kkc, K, *, out_dtype=jnp.float32):
    """x: (B,H,W,C) NHWC, w: (K,K,C) per-channel taps -> (B,H,W,C)."""
    B, H, W_, C = x_nhwc.shape
    pad = K // 2
    Hp, Wp = H + 2 * pad, W_ + 2 * pad
    w2 = w_kkc.reshape(K * K, C)
    tc = _pick_channel_tile(C)
    # TODO(synk): for very large H*W*C also tile spatially with a K//2 row halo.
    kern = partial(_dwconv_kernel, K=K, H=H, W=W_)
    return pl.pallas_call(
        kern,
        out_shape=jax.ShapeDtypeStruct((B, H, W_, C), out_dtype),
        grid=(B, C // tc),
        in_specs=[pl.BlockSpec((1, H, W_, tc), lambda b, c: (b, 0, 0, c)),
                  pl.BlockSpec((K * K, tc), lambda b, c: (0, c))],
        out_specs=pl.BlockSpec((1, H, W_, tc), lambda b, c: (b, 0, 0, c)),
        scratch_shapes=[pltpu.VMEM((Hp, Wp, tc), jnp.float32)],
        compiler_params=pltpu.CompilerParams(
            dimension_semantics=("parallel", "parallel")),
    )(x_nhwc, w2)


# ---------------------------------------------------------------------------
# ReLU linear attention kernel: all multi-scale heads of one batch per grid step,
# reading each scale tensor directly (no HBM concat / slicing / transposes),
# denominator folded into the MXU via a ones column, single lane-dense store.
# ---------------------------------------------------------------------------

def _lin_att_kernel(*refs, dim, heads, eps, approx):
    o_ref = refs[-1]
    x_refs = refs[:-1]
    HW = o_ref.shape[1]
    ones = jnp.ones((HW, 1), jnp.float32)

    outs = []
    for x_ref in x_refs:
        x = x_ref[0].astype(jnp.float32)                    # (HW, 3*heads*dim)
        for h in range(heads):
            b0 = h * 3 * dim
            q = jnp.maximum(x[:, b0:b0 + dim], 0.0)         # (HW, dim)
            k = jnp.maximum(x[:, b0 + dim:b0 + 2 * dim], 0.0)
            v = x[:, b0 + 2 * dim:b0 + 3 * dim]
            vp = jnp.concatenate([v, ones], axis=-1)        # (HW, dim+1)
            kv = jnp.dot(k.T, vp, preferred_element_type=jnp.float32)   # (dim, dim+1)
            nd = jnp.dot(q, kv, preferred_element_type=jnp.float32)     # (HW, dim+1)
            num = nd[:, :dim]
            den = nd[:, dim:dim + 1]
            outs.append(num * pl.reciprocal(den + eps, approx=approx))
    o_ref[0] = jnp.concatenate(outs, axis=-1).astype(o_ref.dtype)


def linear_attention_fused(xs, *, dim, heads, eps, approx, out_dtype):
    """xs: list of (B, HW, 3*heads*dim) scale tensors -> (B, HW, len(xs)*heads*dim)."""
    B, HW, C3 = xs[0].shape
    out_c = len(xs) * heads * dim
    in_specs = [pl.BlockSpec((1, HW, C3), lambda b: (b, 0, 0)) for _ in xs]
    out_spec = pl.BlockSpec((1, HW, out_c), lambda b: (b, 0, 0))
    return pl.pallas_call(
        partial(_lin_att_kernel, dim=dim, heads=heads, eps=eps, approx=approx),
        out_shape=jax.ShapeDtypeStruct((B, HW, out_c), out_dtype),
        grid=(B,),
        in_specs=in_specs,
        out_specs=out_spec,
        compiler_params=pltpu.CompilerParams(dimension_semantics=("parallel",)),
    )(*xs)


# ---------------------------------------------------------------------------
# Parameter setup (deterministic, synthetic) + glue
# ---------------------------------------------------------------------------

def make_divisible(v, divisor=8, min_value=1):
    if min_value is None:
        min_value = divisor
    new_v = max(min_value, int(v + divisor / 2) // divisor * divisor)
    if new_v < 0.9 * v:
        new_v += divisor
    return new_v


def block_diag_from_groups(wg):
    """(G, dout, din) per-group weights -> block-diagonal (G*dout, G*din)."""
    # TODO(synk): for large head counts fuse the grouped 1x1 into the depthwise kernel
    #             instead of a dense block-diagonal matmul.
    G, do, di = wg.shape
    W = jnp.zeros((G * do, G * di), jnp.float32)
    for g in range(G):
        W = W.at[g * do:(g + 1) * do, g * di:(g + 1) * di].set(wg[g])
    return W


def make_params(key, in_ch, out_ch, dim, heads, scales):
    total_dim = heads * dim
    ks = jax.random.split(key, 4 + 2 * len(scales) + 4)
    p = {}
    # qkv: Conv2d(in_ch, 3*total_dim, 1, bias=False) -> weight (Cout, Cin)
    p['qkv_w'] = 0.1 * jax.random.normal(ks[0], (3 * total_dim, in_ch), jnp.float32)
    # aggreg per scale: depthwise KxK (K,K,C); grouped 1x1 as (G, dim, dim), G = 3*heads
    p['agg_dw_w'] = []
    p['agg_pw_w'] = []
    for i, s in enumerate(scales):
        p['agg_dw_w'].append(
            0.1 * jax.random.normal(ks[1 + 2 * i], (s, s, 3 * total_dim), jnp.float32))
        p['agg_pw_w'].append(
            0.1 * jax.random.normal(ks[2 + 2 * i], (3 * heads, dim, dim), jnp.float32))
    base = 1 + 2 * len(scales)
    # proj: Conv2d(total_dim*(1+len(scales)), out_ch, 1, bias=False) + BatchNorm2d(out_ch) (eval)
    p['proj_w'] = 0.1 * jax.random.normal(
        ks[base], (out_ch, total_dim * (1 + len(scales))), jnp.float32)
    p['bn_gamma'] = 1.0 + 0.1 * jax.random.normal(ks[base + 1], (out_ch,), jnp.float32)
    p['bn_beta'] = 0.1 * jax.random.normal(ks[base + 2], (out_ch,), jnp.float32)
    p['bn_mean'] = 0.1 * jax.random.normal(ks[base + 3], (out_ch,), jnp.float32)
    p['bn_var'] = jax.nn.softplus(
        jax.random.normal(jax.random.fold_in(key, 99), (out_ch,), jnp.float32)) + 0.5
    return p


def flexible_lite_mla_forward(x_nchw, params, *, dim, heads, scales, eps=1e-15,
                              compute_dtype=jnp.float32):
    B, Cin, H, W = x_nchw.shape
    total_dim = heads * dim
    C3 = 3 * total_dim
    HW = H * W
    approx = (compute_dtype == jnp.bfloat16)

    # NCHW -> flattened channel-last (B*H*W, Cin)
    x = jnp.transpose(x_nchw, (0, 2, 3, 1)).reshape(B * HW, Cin)

    # ---- qkv 1x1 conv (no bias, no norm/act; flex in-channels = identity at width_mult=1.0)
    qkv = matmul(x, params['qkv_w'].T,
                 out_dtype=compute_dtype, compute_dtype=compute_dtype)   # (B*HW, C3)
    qkv_nhwc = qkv.reshape(B, H, W, C3)

    # ---- multi-scale aggregation: depthwise KxK + grouped 1x1 (groups = 3*heads)
    att_inputs = [qkv.reshape(B, HW, C3)]
    for si, s in enumerate(scales):
        dw = dwconv_same(qkv_nhwc, params['agg_dw_w'][si], s, out_dtype=compute_dtype)
        Wbd = block_diag_from_groups(params['agg_pw_w'][si])             # (C3, C3)
        pw = matmul(dw.reshape(B * HW, C3), Wbd.T,
                    out_dtype=compute_dtype, compute_dtype=compute_dtype)
        att_inputs.append(pw.reshape(B, HW, C3))

    # ---- relu linear attention over all multi-scale heads (fused layout, no concat)
    att = linear_attention_fused(att_inputs, dim=dim, heads=heads, eps=eps,
                                 approx=approx, out_dtype=compute_dtype)  # (B, HW, NM*dim)

    # ---- proj 1x1 conv + BatchNorm2d (eval mode; BN folded into weight/bias)
    scale = params['bn_gamma'] / jnp.sqrt(params['bn_var'] + 1e-5)
    shift = params['bn_beta'] - params['bn_mean'] * scale
    Wp = params['proj_w'] * scale[:, None]                               # (out_ch, NM*dim)
    n_ms_ch = (1 + len(scales)) * total_dim
    out = matmul(att.reshape(B * HW, n_ms_ch), Wp.T, bias=shift,
                 out_dtype=jnp.float32, compute_dtype=compute_dtype)     # (B*HW, out_ch)

    out_ch = Wp.shape[0]
    return out.reshape(B, H, W, out_ch).transpose(0, 3, 1, 2)            # back to NCHW


# ---------------------------------------------------------------------------
# Pure-JAX reference (mirrors the PyTorch forward) for correctness checking
# ---------------------------------------------------------------------------

def reference_forward(x_nchw, params, *, dim, heads, scales, eps=1e-15):
    B, Cin, H, W = x_nchw.shape
    total_dim = heads * dim
    C3 = 3 * total_dim
    x = x_nchw.astype(jnp.float32)
    qkv = jnp.einsum('bchw,oc->bohw', x, params['qkv_w'])
    ms = [qkv]
    for si, s in enumerate(scales):
        wd = params['agg_dw_w'][si]
        wdw = jnp.transpose(wd, (2, 0, 1))[:, None, :, :]                # (C,1,K,K)
        dw = jax.lax.conv_general_dilated(
            qkv, wdw, window_strides=(1, 1), padding='SAME',
            feature_group_count=C3,
            dimension_numbers=('NCHW', 'OIHW', 'NCHW'))
        Wbd = block_diag_from_groups(params['agg_pw_w'][si])
        ms.append(jnp.einsum('bchw,oc->bohw', dw, Wbd))
    msq = jnp.concatenate(ms, axis=1)
    qkv_r = msq.reshape(B, -1, 3 * dim, H * W)
    qkv_r = jnp.swapaxes(qkv_r, -1, -2)
    q = jax.nn.relu(qkv_r[..., :dim])
    k = jax.nn.relu(qkv_r[..., dim:2 * dim])
    v = qkv_r[..., 2 * dim:]
    vpad = jnp.concatenate([v, jnp.ones(v.shape[:-1] + (1,), v.dtype)], axis=-1)
    kv = jnp.einsum('bnld,bnle->bnde', k, vpad)
    out = jnp.einsum('bnld,bnde->bnle', q, kv)
    out = out[..., :-1] / (out[..., -1:] + eps)
    out = jnp.swapaxes(out, -1, -2).reshape(B, -1, H, W)
    scale = params['bn_gamma'] / jnp.sqrt(params['bn_var'] + 1e-5)
    shift = params['bn_beta'] - params['bn_mean'] * scale
    y = jnp.einsum('bchw,oc->bohw', out, params['proj_w'])
    return y * scale[None, :, None, None] + shift[None, :, None, None]


# ---------------------------------------------------------------------------

if __name__ == "__main__":
    key = jax.random.PRNGKey(0)
    B, Cin, H, W = 2, 16, 16, 16
    dim = 8                                    # module default
    heads_ratio = 1.0
    heads = int(Cin // dim * heads_ratio)      # = 2, total_dim = 16
    out_ch = 16
    scales = (5,)

    kx, kp = jax.random.split(key)
    x = jax.random.normal(kx, (B, Cin, H, W), jnp.float32)
    params = make_params(kp, Cin, out_ch, dim, heads, scales)

    ref = reference_forward(x, params, dim=dim, heads=heads, scales=scales)

    # --- f32 path (tight check) ---
    fwd_f32 = jax.jit(partial(flexible_lite_mla_forward, dim=dim, heads=heads,
                              scales=scales, compute_dtype=jnp.float32))
    out_f32 = jax.block_until_ready(fwd_f32(x, params))
    assert out_f32.shape == (B, out_ch, H, W), out_f32.shape
    err_f32 = float(jnp.max(jnp.abs(out_f32 - ref)))
    assert jnp.allclose(out_f32, ref, rtol=1e-3, atol=1e-3), f"f32 max abs err = {err_f32}"

    # --- bf16 MXU path (mixed precision; loose check) ---
    fwd_bf16 = jax.jit(partial(flexible_lite_mla_forward, dim=dim, heads=heads,
                               scales=scales, compute_dtype=jnp.bfloat16))
    out_bf16 = jax.block_until_ready(fwd_bf16(x, params))
    assert out_bf16.shape == (B, out_ch, H, W), out_bf16.shape
    err_bf16 = float(jnp.max(jnp.abs(out_bf16.astype(jnp.float32) - ref)))
    assert jnp.allclose(out_bf16.astype(jnp.float32), ref, rtol=1e-1, atol=1e-1), \
        f"bf16 max abs err = {err_bf16}"

    print("KERNEL_OK")
</pallas_src>

<mosaic_0001>
module attributes {stable_mosaic.version = 11 : i64} {
  func.func @_dwconv_kernel(%arg0: i32, %arg1: i32, %arg2: memref<1x16x16x48xf32, #tpu.memory_space<vmem>>, %arg3: memref<25x48xf32, #tpu.memory_space<vmem>>, %arg4: memref<1x16x16x48xf32, #tpu.memory_space<vmem>>, %arg5: memref<20x20x48xf32, #tpu.memory_space<vmem>>) attributes {dimension_semantics = [#tpu.dimension_semantics<parallel>, #tpu.dimension_semantics<parallel>], iteration_bounds = array<i64: 2, 1>, scalar_prefetch = 0 : i64, scratch_operands = 1 : i64, tpu.core_type = #tpu.core_type<tc>, window_params = [{transform_indices = @transform_0, window_bounds = array<i64: 1, 16, 16, 48>}, {transform_indices = @transform_1, window_bounds = array<i64: 25, 48>}, {transform_indices = @transform_2, window_bounds = array<i64: 1, 16, 16, 48>}]} {
    %cst = arith.constant 0.000000e+00 : f32
    %0 = vector.broadcast %cst : f32 to vector<20x20x48xf32>
    %c0 = arith.constant 0 : index
    %c0_0 = arith.constant 0 : index
    %c0_1 = arith.constant 0 : index
    %1 = vector.load %arg5[%c0, %c0_0, %c0_1] : memref<20x20x48xf32, #tpu.memory_space<vmem>>, vector<20x20x48xf32>
    tpu.vector_store %arg5[%c0, %c0_0, %c0_1], %0 {strides = array<i32>} : memref<20x20x48xf32, #tpu.memory_space<vmem>>, vector<20x20x48xf32>,
    %c0_2 = arith.constant 0 : index
    %c0_3 = arith.constant 0 : index
    %c0_4 = arith.constant 0 : index
    %c0_5 = arith.constant 0 : index
    %2 = vector.load %arg2[%c0_2, %c0_3, %c0_4, %c0_5] : memref<1x16x16x48xf32, #tpu.memory_space<vmem>>, vector<1x16x16x48xf32>
    %3 = vector.shape_cast %2 : vector<1x16x16x48xf32> to vector<16x16x48xf32>
    %c2 = arith.constant 2 : index
    %c2_6 = arith.constant 2 : index
    %c0_7 = arith.constant 0 : index
    %4 = vector.load %arg5[%c2, %c2_6, %c0_7] : memref<20x20x48xf32, #tpu.memory_space<vmem>>, vector<16x16x48xf32>
    tpu.vector_store %arg5[%c2, %c2_6, %c0_7], %3 {strides = array<i32>} : memref<20x20x48xf32, #tpu.memory_space<vmem>>, vector<16x16x48xf32>,
    %c0_8 = arith.constant 0 : index
    %c0_9 = arith.constant 0 : index
    %5 = vector.load %arg3[%c0_8, %c0_9] : memref<25x48xf32, #tpu.memory_space<vmem>>, vector<25x48xf32>
    %cst_10 = arith.constant 0.000000e+00 : f32
    %6 = vector.broadcast %cst_10 : f32 to vector<16x16x48xf32>
    %7 = vector.extract_strided_slice %5 {offsets = [0, 0], sizes = [1, 48], strides = [1, 1]} : vector<25x48xf32> to vector<1x48xf32>
    %c0_11 = arith.constant 0 : index
    %c0_12 = arith.constant 0 : index
    %c0_13 = arith.constant 0 : index
    %8 = vector.load %arg5[%c0_11, %c0_12, %c0_13] : memref<20x20x48xf32, #tpu.memory_space<vmem>>, vector<16x16x48xf32>
    %9 = vector.shape_cast %7 : vector<1x48xf32> to vector<1x1x48xf32>
    %10 = vector.broadcast %9 : vector<1x1x48xf32> to vector<16x16x48xf32>
    %11 = arith.mulf %8, %10 : vector<16x16x48xf32>
    %12 = arith.addf %6, %11 : vector<16x16x48xf32>
    %13 = vector.extract_strided_slice %5 {offsets = [1, 0], sizes = [1, 48], strides = [1, 1]} : vector<25x48xf32> to vector<1x48xf32>
    %c0_14 = arith.constant 0 : index
    %c1 = arith.constant 1 : index
    %c0_15 = arith.constant 0 : index
    %14 = vector.load %arg5[%c0_14, %c1, %c0_15] : memref<20x20x48xf32, #tpu.memory_space<vmem>>, vector<16x16x48xf32>
    %15 = vector.shape_cast %13 : vector<1x48xf32> to vector<1x1x48xf32>
    %16 = vector.broadcast %15 : vector<1x1x48xf32> to vector<16x16x48xf32>
    %17 = arith.mulf %14, %16 : vector<16x16x48xf32>
    %18 = arith.addf %12, %17 : vector<16x16x48xf32>
    %19 = vector.extract_strided_slice %5 {offsets = [2, 0], sizes = [1, 48], strides = [1, 1]} : vector<25x48xf32> to vector<1x48xf32>
    %c0_16 = arith.constant 0 : index
    %c2_17 = arith.constant 2 : index
    %c0_18 = arith.constant 0 : index
    %20 = vector.load %arg5[%c0_16, %c2_17, %c0_18] : memref<20x20x48xf32, #tpu.memory_space<vmem>>, vector<16x16x48xf32>
    %21 = vector.shape_cast %19 : vector<1x48xf32> to vector<1x1x48xf32>
    %22 = vector.broadcast %21 : vector<1x1x48xf32> to vector<16x16x48xf32>
    %23 = arith.mulf %20, %22 : vector<16x16x48xf32>
    %24 = arith.addf %18, %23 : vector<16x16x48xf32>
    %25 = vector.extract_strided_slice %5 {offsets = [3, 0], sizes = [1, 48], strides = [1, 1]} : vector<25x48xf32> to vector<1x48xf32>
    %c0_19 = arith.constant 0 : index
    %c3 = arith.constant 3 : index
    %c0_20 = arith.constant 0 : index
    %26 = vector.load %arg5[%c0_19, %c3, %c0_20] : memref<20x20x48xf32, #tpu.memory_space<vmem>>, vector<16x16x48xf32>
    %27 = vector.shape_cast %25 : vector<1x48xf32> to vector<1x1x48xf32>
    %28 = vector.broadcast %27 : vector<1x1x48xf32> to vector<16x16x48xf32>
    %29 = arith.mulf %26, %28 : vector<16x16x48xf32>
    %30 = arith.addf %24, %29 : vector<16x16x48xf32>
    %31 = vector.extract_strided_slice %5 {offsets = [4, 0], sizes = [1, 48], strides = [1, 1]} : vector<25x48xf32> to vector<1x48xf32>
    %c0_21 = arith.constant 0 : index
    %c4 = arith.constant 4 : index
    %c0_22 = arith.constant 0 : index
    %32 = vector.load %arg5[%c0_21, %c4, %c0_22] : memref<20x20x48xf32, #tpu.memory_space<vmem>>, vector<16x16x48xf32>
    %33 = vector.shape_cast %31 : vector<1x48xf32> to vector<1x1x48xf32>
    %34 = vector.broadcast %33 : vector<1x1x48xf32> to vector<16x16x48xf32>
    %35 = arith.mulf %32, %34 : vector<16x16x48xf32>
    %36 = arith.addf %30, %35 : vector<16x16x48xf32>
    %37 = vector.extract_strided_slice %5 {offsets = [5, 0], sizes = [1, 48], strides = [1, 1]} : vector<25x48xf32> to vector<1x48xf32>
    %c1_23 = arith.constant 1 : index
    %c0_24 = arith.constant 0 : index
    %c0_25 = arith.constant 0 : index
    %38 = vector.load %arg5[%c1_23, %c0_24, %c0_25] : memref<20x20x48xf32, #tpu.memory_space<vmem>>, vector<16x16x48xf32>
    %39 = vector.shape_cast %37 : vector<1x48xf32> to vector<1x1x48xf32>
    %40 = vector.broadcast %39 : vector<1x1x48xf32> to vector<16x16x48xf32>
    %41 = arith.mulf %38, %40 : vector<16x16x48xf32>
    %42 = arith.addf %36, %41 : vector<16x16x48xf32>
    %43 = vector.extract_strided_slice %5 {offsets = [6, 0], sizes = [1, 48], strides = [1, 1]} : vector<25x48xf32> to vector<1x48xf32>
    %c1_26 = arith.constant 1 : index
    %c1_27 = arith.constant 1 : index
    %c0_28 = arith.constant 0 : index
    %44 = vector.load %arg5[%c1_26, %c1_27, %c0_28] : memref<20x20x48xf32, #tpu.memory_space<vmem>>, vector<16x16x48xf32>
    %45 = vector.shape_cast %43 : vector<1x48xf32> to vector<1x1x48xf32>
    %46 = vector.broadcast %45 : vector<1x1x48xf32> to vector<16x16x48xf32>
    %47 = arith.mulf %44, %46 : vector<16x16x48xf32>
    %48 = arith.addf %42, %47 : vector<16x16x48xf32>
    %49 = vector.extract_strided_slice %5 {offsets = [7, 0], sizes = [1, 48], strides = [1, 1]} : vector<25x48xf32> to vector<1x48xf32>
    %c1_29 = arith.constant 1 : index
    %c2_30 = arith.constant 2 : index
    %c0_31 = arith.constant 0 : index
    %50 = vector.load %arg5[%c1_29, %c2_30, %c0_31] : memref<20x20x48xf32, #tpu.memory_space<vmem>>, vector<16x16x48xf32>
    %51 = vector.shape_cast %49 : vector<1x48xf32> to vector<1x1x48xf32>
    %52 = vector.broadcast %51 : vector<1x1x48xf32> to vector<16x16x48xf32>
    %53 = arith.mulf %50, %52 : vector<16x16x48xf32>
    %54 = arith.addf %48, %53 : vector<16x16x48xf32>
    %55 = vector.extract_strided_slice %5 {offsets = [8, 0], sizes = [1, 48], strides = [1, 1]} : vector<25x48xf32> to vector<1x48xf32>
    %c1_32 = arith.constant 1 : index
    %c3_33 = arith.constant 3 : index
    %c0_34 = arith.constant 0 : index
    %56 = vector.load %arg5[%c1_32, %c3_33, %c0_34] : memref<20x20x48xf32, #tpu.memory_space<vmem>>, vector<16x16x48xf32>
    %57 = vector.shape_cast %55 : vector<1x48xf32> to vector<1x1x48xf32>
    %58 = vector.broadcast %57 : vector<1x1x48xf32> to vector<16x16x48xf32>
    %59 = arith.mulf %56, %58 : vector<16x16x48xf32>
    %60 = arith.addf %54, %59 : vector<16x16x48xf32>
    %61 = vector.extract_strided_slice %5 {offsets = [9, 0], sizes = [1, 48], strides = [1, 1]} : vector<25x48xf32> to vector<1x48xf32>
    %c1_35 = arith.constant 1 : index
    %c4_36 = arith.constant 4 : index
    %c0_37 = arith.constant 0 : index
    %62 = vector.load %arg5[%c1_35, %c4_36, %c0_37] : memref<20x20x48xf32, #tpu.memory_space<vmem>>, vector<16x16x48xf32>
    %63 = vector.shape_cast %61 : vector<1x48xf32> to vector<1x1x48xf32>
    %64 = vector.broadcast %63 : vector<1x1x48xf32> to vector<16x16x48xf32>
    %65 = arith.mulf %62, %64 : vector<16x16x48xf32>
    %66 = arith.addf %60, %65 : vector<16x16x48xf32>
    %67 = vector.extract_strided_slice %5 {offsets = [10, 0], sizes = [1, 48], strides = [1, 1]} : vector<25x48xf32> to vector<1x48xf32>
    %c2_38 = arith.constant 2 : index
    %c0_39 = arith.constant 0 : index
    %c0_40 = arith.constant 0 : index
    %68 = vector.load %arg5[%c2_38, %c0_39, %c0_40] : memref<20x20x48xf32, #tpu.memory_space<vmem>>, vector<16x16x48xf32>
    %69 = vector.shape_cast %67 : vector<1x48xf32> to vector<1x1x48xf32>
    %70 = vector.broadcast %69 : vector<1x1x48xf32> to vector<16x16x48xf32>
    %71 = arith.mulf %68, %70 : vector<16x16x48xf32>
    %72 = arith.addf %66, %71 : vector<16x16x48xf32>
    %73 = vector.extract_strided_slice %5 {offsets = [11, 0], sizes = [1, 48], strides = [1, 1]} : vector<25x48xf32> to vector<1x48xf32>
    %c2_41 = arith.constant 2 : index
    %c1_42 = arith.constant 1 : index
    %c0_43 = arith.constant 0 : index
    %74 = vector.load %arg5[%c2_41, %c1_42, %c0_43] : memref<20x20x48xf32, #tpu.memory_space<vmem>>, vector<16x16x48xf32>
    %75 = vector.shape_cast %73 : vector<1x48xf32> to vector<1x1x48xf32>
    %76 = vector.broadcast %75 : vector<1x1x48xf32> to vector<16x16x48xf32>
    %77 = arith.mulf %74, %76 : vector<16x16x48xf32>
    %78 = arith.addf %72, %77 : vector<16x16x48xf32>
    %79 = vector.extract_strided_slice %5 {offsets = [12, 0], sizes = [1, 48], strides = [1, 1]} : vector<25x48xf32> to vector<1x48xf32>
    %c2_44 = arith.constant 2 : index
    %c2_45 = arith.constant 2 : index
    %c0_46 = arith.constant 0 : index
    %80 = vector.load %arg5[%c2_44, %c2_45, %c0_46] : memref<20x20x48xf32, #tpu.memory_space<vmem>>, vector<16x16x48xf32>
    %81 = vector.shape_cast %79 : vector<1x48xf32> to vector<1x1x48xf32>
    %82 = vector.broadcast %81 : vector<1x1x48xf32> to vector<16x16x48xf32>
    %83 = arith.mulf %80, %82 : vector<16x16x48xf32>
    %84 = arith.addf %78, %83 : vector<16x16x48xf32>
    %85 = vector.extract_strided_slice %5 {offsets = [13, 0], sizes = [1, 48], strides = [1, 1]} : vector<25x48xf32> to vector<1x48xf32>
    %c2_47 = arith.constant 2 : index
    %c3_48 = arith.constant 3 : index
    %c0_49 = arith.constant 0 : index
    %86 = vector.load %arg5[%c2_47, %c3_48, %c0_49] : memref<20x20x48xf32, #tpu.memory_space<vmem>>, vector<16x16x48xf32>
    %87 = vector.shape_cast %85 : vector<1x48xf32> to vector<1x1x48xf32>
    %88 = vector.broadcast %87 : vector<1x1x48xf32> to vector<16x16x48xf32>
    %89 = arith.mulf %86, %88 : vector<16x16x48xf32>
    %90 = arith.addf %84, %89 : vector<16x16x48xf32>
    %91 = vector.extract_strided_slice %5 {offsets = [14, 0], sizes = [1, 48], strides = [1, 1]} : vector<25x48xf32> to vector<1x48xf32>
    %c2_50 = arith.constant 2 : index
    %c4_51 = arith.constant 4 : index
    %c0_52 = arith.constant 0 : index
    %92 = vector.load %arg5[%c2_50, %c4_51, %c0_52] : memref<20x20x48xf32, #tpu.memory_space<vmem>>, vector<16x16x48xf32>
    %93 = vector.shape_cast %91 : vector<1x48xf32> to vector<1x1x48xf32>
    %94 = vector.broadcast %93 : vector<1x1x48xf32> to vector<16x16x48xf32>
    %95 = arith.mulf %92, %94 : vector<16x16x48xf32>
    %96 = arith.addf %90, %95 : vector<16x16x48xf32>
    %97 = vector.extract_strided_slice %5 {offsets = [15, 0], sizes = [1, 48], strides = [1, 1]} : vector<25x48xf32> to vector<1x48xf32>
    %c3_53 = arith.constant 3 : index
    %c0_54 = arith.constant 0 : index
    %c0_55 = arith.constant 0 : index
    %98 = vector.load %arg5[%c3_53, %c0_54, %c0_55] : memref<20x20x48xf32, #tpu.memory_space<vmem>>, vector<16x16x48xf32>
    %99 = vector.shape_cast %97 : vector<1x48xf32> to vector<1x1x48xf32>
    %100 = vector.broadcast %99 : vector<1x1x48xf32> to vector<16x16x48xf32>
    %101 = arith.mulf %98, %100 : vector<16x16x48xf32>
    %102 = arith.addf %96, %101 : vector<16x16x48xf32>
    %103 = vector.extract_strided_slice %5 {offsets = [16, 0], sizes = [1, 48], strides = [1, 1]} : vector<25x48xf32> to vector<1x48xf32>
    %c3_56 = arith.constant 3 : index
    %c1_57 = arith.constant 1 : index
    %c0_58 = arith.constant 0 : index
    %104 = vector.load %arg5[%c3_56, %c1_57, %c0_58] : memref<20x20x48xf32, #tpu.memory_space<vmem>>, vector<16x16x48xf32>
    %105 = vector.shape_cast %103 : vector<1x48xf32> to vector<1x1x48xf32>
    %106 = vector.broadcast %105 : vector<1x1x48xf32> to vector<16x16x48xf32>
    %107 = arith.mulf %104, %106 : vector<16x16x48xf32>
    %108 = arith.addf %102, %107 : vector<16x16x48xf32>
    %109 = vector.extract_strided_slice %5 {offsets = [17, 0], sizes = [1, 48], strides = [1, 1]} : vector<25x48xf32> to vector<1x48xf32>
    %c3_59 = arith.constant 3 : index
    %c2_60 = arith.constant 2 : index
    %c0_61 = arith.constant 0 : index
    %110 = vector.load %arg5[%c3_59, %c2_60, %c0_61] : memref<20x20x48xf32, #tpu.memory_space<vmem>>, vector<16x16x48xf32>
    %111 = vector.shape_cast %109 : vector<1x48xf32> to vector<1x1x48xf32>
    %112 = vector.broadcast %111 : vector<1x1x48xf32> to vector<16x16x48xf32>
    %113 = arith.mulf %110, %112 : vector<16x16x48xf32>
    %114 = arith.addf %108, %113 : vector<16x16x48xf32>
    %115 = vector.extract_strided_slice %5 {offsets = [18, 0], sizes = [1, 48], strides = [1, 1]} : vector<25x48xf32> to vector<1x48xf32>
    %c3_62 = arith.constant 3 : index
    %c3_63 = arith.constant 3 : index
    %c0_64 = arith.constant 0 : index
    %116 = vector.load %arg5[%c3_62, %c3_63, %c0_64] : memref<20x20x48xf32, #tpu.memory_space<vmem>>, vector<16x16x48xf32>
    %117 = vector.shape_cast %115 : vector<1x48xf32> to vector<1x1x48xf32>
    %118 = vector.broadcast %117 : vector<1x1x48xf32> to vector<16x16x48xf32>
    %119 = arith.mulf %116, %118 : vector<16x16x48xf32>
    %120 = arith.addf %114, %119 : vector<16x16x48xf32>
    %121 = vector.extract_strided_slice %5 {offsets = [19, 0], sizes = [1, 48], strides = [1, 1]} : vector<25x48xf32> to vector<1x48xf32>
    %c3_65 = arith.constant 3 : index
    %c4_66 = arith.constant 4 : index
    %c0_67 = arith.constant 0 : index
    %122 = vector.load %arg5[%c3_65, %c4_66, %c0_67] : memref<20x20x48xf32, #tpu.memory_space<vmem>>, vector<16x16x48xf32>
    %123 = vector.shape_cast %121 : vector<1x48xf32> to vector<1x1x48xf32>
    %124 = vector.broadcast %123 : vector<1x1x48xf32> to vector<16x16x48xf32>
    %125 = arith.mulf %122, %124 : vector<16x16x48xf32>
    %126 = arith.addf %120, %125 : vector<16x16x48xf32>
    %127 = vector.extract_strided_slice %5 {offsets = [20, 0], sizes = [1, 48], strides = [1, 1]} : vector<25x48xf32> to vector<1x48xf32>
    %c4_68 = arith.constant 4 : index
    %c0_69 = arith.constant 0 : index
    %c0_70 = arith.constant 0 : index
    %128 = vector.load %arg5[%c4_68, %c0_69, %c0_70] : memref<20x20x48xf32, #tpu.memory_space<vmem>>, vector<16x16x48xf32>
    %129 = vector.shape_cast %127 : vector<1x48xf32> to vector<1x1x48xf32>
    %130 = vector.broadcast %129 : vector<1x1x48xf32> to vector<16x16x48xf32>
    %131 = arith.mulf %128, %130 : vector<16x16x48xf32>
    %132 = arith.addf %126, %131 : vector<16x16x48xf32>
    %133 = vector.extract_strided_slice %5 {offsets = [21, 0], sizes = [1, 48], strides = [1, 1]} : vector<25x48xf32> to vector<1x48xf32>
    %c4_71 = arith.constant 4 : index
    %c1_72 = arith.constant 1 : index
    %c0_73 = arith.constant 0 : index
    %134 = vector.load %arg5[%c4_71, %c1_72, %c0_73] : memref<20x20x48xf32, #tpu.memory_space<vmem>>, vector<16x16x48xf32>
    %135 = vector.shape_cast %133 : vector<1x48xf32> to vector<1x1x48xf32>
    %136 = vector.broadcast %135 : vector<1x1x48xf32> to vector<16x16x48xf32>
    %137 = arith.mulf %134, %136 : vector<16x16x48xf32>
    %138 = arith.addf %132, %137 : vector<16x16x48xf32>
    %139 = vector.extract_strided_slice %5 {offsets = [22, 0], sizes = [1, 48], strides = [1, 1]} : vector<25x48xf32> to vector<1x48xf32>
    %c4_74 = arith.constant 4 : index
    %c2_75 = arith.constant 2 : index
    %c0_76 = arith.constant 0 : index
    %140 = vector.load %arg5[%c4_74, %c2_75, %c0_76] : memref<20x20x48xf32, #tpu.memory_space<vmem>>, vector<16x16x48xf32>
    %141 = vector.shape_cast %139 : vector<1x48xf32> to vector<1x1x48xf32>
    %142 = vector.broadcast %141 : vector<1x1x48xf32> to vector<16x16x48xf32>
    %143 = arith.mulf %140, %142 : vector<16x16x48xf32>
    %144 = arith.addf %138, %143 : vector<16x16x48xf32>
    %145 = vector.extract_strided_slice %5 {offsets = [23, 0], sizes = [1, 48], strides = [1, 1]} : vector<25x48xf32> to vector<1x48xf32>
    %c4_77 = arith.constant 4 : index
    %c3_78 = arith.constant 3 : index
    %c0_79 = arith.constant 0 : index
    %146 = vector.load %arg5[%c4_77, %c3_78, %c0_79] : memref<20x20x48xf32, #tpu.memory_space<vmem>>, vector<16x16x48xf32>
    %147 = vector.shape_cast %145 : vector<1x48xf32> to vector<1x1x48xf32>
    %148 = vector.broadcast %147 : vector<1x1x48xf32> to vector<16x16x48xf32>
    %149 = arith.mulf %146, %148 : vector<16x16x48xf32>
    %150 = arith.addf %144, %149 : vector<16x16x48xf32>
    %151 = vector.extract_strided_slice %5 {offsets = [24, 0], sizes = [1, 48], strides = [1, 1]} : vector<25x48xf32> to vector<1x48xf32>
    %c4_80 = arith.constant 4 : index
    %c4_81 = arith.constant 4 : index
    %c0_82 = arith.constant 0 : index
    %152 = vector.load %arg5[%c4_80, %c4_81, %c0_82] : memref<20x20x48xf32, #tpu.memory_space<vmem>>, vector<16x16x48xf32>
    %153 = vector.shape_cast %151 : vector<1x48xf32> to vector<1x1x48xf32>
    %154 = vector.broadcast %153 : vector<1x1x48xf32> to vector<16x16x48xf32>
    %155 = arith.mulf %152, %154 : vector<16x16x48xf32>
    %156 = arith.addf %150, %155 : vector<16x16x48xf32>
    %c0_83 = arith.constant 0 : index
    %c0_84 = arith.constant 0 : index
    %c0_85 = arith.constant 0 : index
    %c0_86 = arith.constant 0 : index
    %157 = vector.load %arg4[%c0_83, %c0_84, %c0_85, %c0_86] : memref<1x16x16x48xf32, #tpu.memory_space<vmem>>, vector<1x16x16x48xf32>
    %158 = vector.shape_cast %157 : vector<1x16x16x48xf32> to vector<16x16x48xf32>
    %159 = vector.shape_cast %156 : vector<16x16x48xf32> to vector<1x16x16x48xf32>
    tpu.vector_store %arg4[%c0_83, %c0_84, %c0_85, %c0_86], %159 {strides = array<i32>} : memref<1x16x16x48xf32, #tpu.memory_space<vmem>>, vector<1x16x16x48xf32>,
    return
  }
  func.func @transform_0(%arg0: i32, %arg1: i32) -> (i32, i32, i32, i32) {
    %c0_i32 = arith.constant 0 : i32
    %c0_i32_0 = arith.constant 0 : i32
    %c0_i32_1 = arith.constant 0 : i32
    return %arg0, %c0_i32, %c0_i32_0, %arg1 : i32, i32, i32, i32
  }
  func.func @transform_1(%arg0: i32, %arg1: i32) -> (i32, i32) {
    %c0_i32 = arith.constant 0 : i32
    %c0_i32_0 = arith.constant 0 : i32
    return %c0_i32, %arg1 : i32, i32
  }
  func.func @transform_2(%arg0: i32, %arg1: i32) -> (i32, i32, i32, i32) {
    %c0_i32 = arith.constant 0 : i32
    %c0_i32_0 = arith.constant 0 : i32
    %c0_i32_1 = arith.constant 0 : i32
    return %arg0, %c0_i32, %c0_i32_0, %arg1 : i32, i32, i32, i32
  }
}

module attributes {stable_mosaic.version = 11 : i64} {
  func.func @_mm_kernel(%arg0: i32, %arg1: i32, %arg2: i32, %arg3: memref<256x16xf32, #tpu.memory_space<vmem>>, %arg4: memref<16x48xf32, #tpu.memory_space<vmem>>, %arg5: memref<256x48xf32, #tpu.memory_space<vmem>>, %arg6: memref<256x48xf32, #tpu.memory_space<vmem>>) attributes {dimension_semantics = [#tpu.dimension_semantics<parallel>, #tpu.dimension_semantics<parallel>, #tpu.dimension_semantics<arbitrary>], iteration_bounds = array<i64: 2, 1, 1>, scalar_prefetch = 0 : i64, scratch_operands = 1 : i64, tpu.core_type = #tpu.core_type<tc>, window_params = [{transform_indices = @transform_0, window_bounds = array<i64: 256, 16>}, {transform_indices = @transform_1, window_bounds = array<i64: 16, 48>}, {transform_indices = @transform_2, window_bounds = array<i64: 256, 48>}]} {
    %c0_i32 = arith.constant 0 : i32
    %0 = arith.cmpi eq, %arg2, %c0_i32 : i32
    %1 = arith.extui %0 : i1 to i32
    %c0_i32_0 = arith.constant 0 : i32
    %2 = arith.cmpi ne, %1, %c0_i32_0 : i32
    scf.if %2 {
      %cst_10 = arith.constant 0.000000e+00 : f32
      %12 = vector.broadcast %cst_10 : f32 to vector<256x48xf32>
      %c0_11 = arith.constant 0 : index
      %c0_12 = arith.constant 0 : index
      %13 = vector.load %arg6[%c0_11, %c0_12] : memref<256x48xf32, #tpu.memory_space<vmem>>, vector<256x48xf32>
      tpu.vector_store %arg6[%c0_11, %c0_12], %12 {strides = array<i32>} : memref<256x48xf32, #tpu.memory_space<vmem>>, vector<256x48xf32>,
    } else {
    }
    %c0 = arith.constant 0 : index
    %c0_1 = arith.constant 0 : index
    %3 = vector.load %arg6[%c0, %c0_1] : memref<256x48xf32, #tpu.memory_space<vmem>>, vector<256x48xf32>
    %c0_2 = arith.constant 0 : index
    %c0_3 = arith.constant 0 : index
    %4 = vector.load %arg3[%c0_2, %c0_3] : memref<256x16xf32, #tpu.memory_space<vmem>>, vector<256x16xf32>
    %c0_4 = arith.constant 0 : index
    %c0_5 = arith.constant 0 : index
    %5 = vector.load %arg4[%c0_4, %c0_5] : memref<16x48xf32, #tpu.memory_space<vmem>>, vector<16x48xf32>
    %cst = arith.constant dense<0.000000e+00> : vector<256x48xf32>
    %6 = tpu.matmul %4, %5, %cst {dimension_numbers = #tpu.dot_dimension_numbers<[1], [0], [0], [1], [0, 0, 1, 1], [], []>} : vector<256x16xf32>, vector<16x48xf32>, vector<256x48xf32> -> vector<256x48xf32>
    %7 = arith.addf %3, %6 : vector<256x48xf32>
    %c0_6 = arith.constant 0 : index
    %c0_7 = arith.constant 0 : index
    %8 = vector.load %arg6[%c0_6, %c0_7] : memref<256x48xf32, #tpu.memory_space<vmem>>, vector<256x48xf32>
    tpu.vector_store %arg6[%c0_6, %c0_7], %7 {strides = array<i32>} : memref<256x48xf32, #tpu.memory_space<vmem>>, vector<256x48xf32>,
    %c0_i32_8 = arith.constant 0 : i32
    %9 = arith.cmpi eq, %arg2, %c0_i32_8 : i32
    %10 = arith.extui %9 : i1 to i32
    %c0_i32_9 = arith.constant 0 : i32
    %11 = arith.cmpi ne, %10, %c0_i32_9 : i32
    scf.if %11 {
      %c0_10 = arith.constant 0 : index
      %c0_11 = arith.constant 0 : index
      %12 = vector.load %arg6[%c0_10, %c0_11] : memref<256x48xf32, #tpu.memory_space<vmem>>, vector<256x48xf32>
      %c0_12 = arith.constant 0 : index
      %c0_13 = arith.constant 0 : index
      %13 = vector.load %arg5[%c0_12, %c0_13] : memref<256x48xf32, #tpu.memory_space<vmem>>, vector<256x48xf32>
      tpu.vector_store %arg5[%c0_12, %c0_13], %12 {strides = array<i32>} : memref<256x48xf32, #tpu.memory_space<vmem>>, vector<256x48xf32>,
    } else {
    }
    return
  }
  func.func @transform_0(%arg0: i32, %arg1: i32, %arg2: i32) -> (i32, i32) {
    %c0_i32 = arith.constant 0 : i32
    return %arg0, %arg2 : i32, i32
  }
  func.func @transform_1(%arg0: i32, %arg1: i32, %arg2: i32) -> (i32, i32) {
    %c0_i32 = arith.constant 0 : i32
    return %arg2, %arg1 : i32, i32
  }
  func.func @transform_2(%arg0: i32, %arg1: i32, %arg2: i32) -> (i32, i32) {
    %c0_i32 = arith.constant 0 : i32
    return %arg0, %arg1 : i32, i32
  }
}

module attributes {stable_mosaic.version = 11 : i64} {
  func.func @_mm_kernel(%arg0: i32, %arg1: i32, %arg2: i32, %arg3: memref<256x48xf32, #tpu.memory_space<vmem>>, %arg4: memref<48x48xf32, #tpu.memory_space<vmem>>, %arg5: memref<256x48xf32, #tpu.memory_space<vmem>>, %arg6: memref<256x48xf32, #tpu.memory_space<vmem>>) attributes {dimension_semantics = [#tpu.dimension_semantics<parallel>, #tpu.dimension_semantics<parallel>, #tpu.dimension_semantics<arbitrary>], iteration_bounds = array<i64: 2, 1, 1>, scalar_prefetch = 0 : i64, scratch_operands = 1 : i64, tpu.core_type = #tpu.core_type<tc>, window_params = [{transform_indices = @transform_0, window_bounds = array<i64: 256, 48>}, {transform_indices = @transform_1, window_bounds = array<i64: 48, 48>}, {transform_indices = @transform_2, window_bounds = array<i64: 256, 48>}]} {
    %c0_i32 = arith.constant 0 : i32
    %0 = arith.cmpi eq, %arg2, %c0_i32 : i32
    %1 = arith.extui %0 : i1 to i32
    %c0_i32_0 = arith.constant 0 : i32
    %2 = arith.cmpi ne, %1, %c0_i32_0 : i32
    scf.if %2 {
      %cst_10 = arith.constant 0.000000e+00 : f32
      %12 = vector.broadcast %cst_10 : f32 to vector<256x48xf32>
      %c0_11 = arith.constant 0 : index
      %c0_12 = arith.constant 0 : index
      %13 = vector.load %arg6[%c0_11, %c0_12] : memref<256x48xf32, #tpu.memory_space<vmem>>, vector<256x48xf32>
      tpu.vector_store %arg6[%c0_11, %c0_12], %12 {strides = array<i32>} : memref<256x48xf32, #tpu.memory_space<vmem>>, vector<256x48xf32>,
    } else {
    }
    %c0 = arith.constant 0 : index
    %c0_1 = arith.constant 0 : index
    %3 = vector.load %arg6[%c0, %c0_1] : memref<256x48xf32, #tpu.memory_space<vmem>>, vector<256x48xf32>
    %c0_2 = arith.constant 0 : index
    %c0_3 = arith.constant 0 : index
    %4 = vector.load %arg3[%c0_2, %c0_3] : memref<256x48xf32, #tpu.memory_space<vmem>>, vector<256x48xf32>
    %c0_4 = arith.constant 0 : index
    %c0_5 = arith.constant 0 : index
    %5 = vector.load %arg4[%c0_4, %c0_5] : memref<48x48xf32, #tpu.memory_space<vmem>>, vector<48x48xf32>
    %cst = arith.constant dense<0.000000e+00> : vector<256x48xf32>
    %6 = tpu.matmul %4, %5, %cst {dimension_numbers = #tpu.dot_dimension_numbers<[1], [0], [0], [1], [0, 0, 1, 1], [], []>} : vector<256x48xf32>, vector<48x48xf32>, vector<256x48xf32> -> vector<256x48xf32>
    %7 = arith.addf %3, %6 : vector<256x48xf32>
    %c0_6 = arith.constant 0 : index
    %c0_7 = arith.constant 0 : index
    %8 = vector.load %arg6[%c0_6, %c0_7] : memref<256x48xf32, #tpu.memory_space<vmem>>, vector<256x48xf32>
    tpu.vector_store %arg6[%c0_6, %c0_7], %7 {strides = array<i32>} : memref<256x48xf32, #tpu.memory_space<vmem>>, vector<256x48xf32>,
    %c0_i32_8 = arith.constant 0 : i32
    %9 = arith.cmpi eq, %arg2, %c0_i32_8 : i32
    %10 = arith.extui %9 : i1 to i32
    %c0_i32_9 = arith.constant 0 : i32
    %11 = arith.cmpi ne, %10, %c0_i32_9 : i32
    scf.if %11 {
      %c0_10 = arith.constant 0 : index
      %c0_11 = arith.constant 0 : index
      %12 = vector.load %arg6[%c0_10, %c0_11] : memref<256x48xf32, #tpu.memory_space<vmem>>, vector<256x48xf32>
      %c0_12 = arith.constant 0 : index
      %c0_13 = arith.constant 0 : index
      %13 = vector.load %arg5[%c0_12, %c0_13] : memref<256x48xf32, #tpu.memory_space<vmem>>, vector<256x48xf32>
      tpu.vector_store %arg5[%c0_12, %c0_13], %12 {strides = array<i32>} : memref<256x48xf32, #tpu.memory_space<vmem>>, vector<256x48xf32>,
    } else {
    }
    return
  }
  func.func @transform_0(%arg0: i32, %arg1: i32, %arg2: i32) -> (i32, i32) {
    %c0_i32 = arith.constant 0 : i32
    return %arg0, %arg2 : i32, i32
  }
  func.func @transform_1(%arg0: i32, %arg1: i32, %arg2: i32) -> (i32, i32) {
    %c0_i32 = arith.constant 0 : i32
    return %arg2, %arg1 : i32, i32
  }
  func.func @transform_2(%arg0: i32, %arg1: i32, %arg2: i32) -> (i32, i32) {
    %c0_i32 = arith.constant 0 : i32
    return %arg0, %arg1 : i32, i32
  }
}

module attributes {stable_mosaic.version = 11 : i64} {
  func.func @_lin_att_kernel(%arg0: i32, %arg1: memref<1x256x48xf32, #tpu.memory_space<vmem>>, %arg2: memref<1x256x48xf32, #tpu.memory_space<vmem>>, %arg3: memref<1x256x32xf32, #tpu.memory_space<vmem>>) attributes {dimension_semantics = [#tpu.dimension_semantics<parallel>], iteration_bounds = array<i64: 2>, scalar_prefetch = 0 : i64, scratch_operands = 0 : i64, tpu.core_type = #tpu.core_type<tc>, window_params = [{transform_indices = @transform_0, window_bounds = array<i64: 1, 256, 48>}, {transform_indices = @transform_1, window_bounds = array<i64: 1, 256, 48>}, {transform_indices = @transform_2, window_bounds = array<i64: 1, 256, 32>}]} {
    %cst = arith.constant 1.000000e+00 : f32
    %0 = vector.broadcast %cst : f32 to vector<256x1xf32>
    %c0 = arith.constant 0 : index
    %c0_0 = arith.constant 0 : index
    %c0_1 = arith.constant 0 : index
    %1 = vector.load %arg1[%c0, %c0_0, %c0_1] : memref<1x256x48xf32, #tpu.memory_space<vmem>>, vector<1x256x48xf32>
    %2 = vector.shape_cast %1 : vector<1x256x48xf32> to vector<256x48xf32>
    %3 = vector.extract_strided_slice %2 {offsets = [0, 0], sizes = [256, 8], strides = [1, 1]} : vector<256x48xf32> to vector<256x8xf32>
    %cst_2 = arith.constant 0.000000e+00 : f32
    %4 = vector.broadcast %cst_2 : f32 to vector<256x8xf32>
    %5 = arith.maximumf %3, %4 : vector<256x8xf32>
    %6 = vector.extract_strided_slice %2 {offsets = [0, 8], sizes = [256, 8], strides = [1, 1]} : vector<256x48xf32> to vector<256x8xf32>
    %cst_3 = arith.constant 0.000000e+00 : f32
    %7 = vector.broadcast %cst_3 : f32 to vector<256x8xf32>
    %8 = arith.maximumf %6, %7 : vector<256x8xf32>
    %9 = vector.extract_strided_slice %2 {offsets = [0, 16], sizes = [256, 8], strides = [1, 1]} : vector<256x48xf32> to vector<256x8xf32>
    %10 = tpu.concatenate %9, %0 in 1 : vector<256x8xf32>, vector<256x1xf32> -> vector<256x9xf32>
    %11 = tpu.transpose %8, [1, 0] : vector<256x8xf32> -> vector<8x256xf32>
    %cst_4 = arith.constant dense<0.000000e+00> : vector<8x9xf32>
    %12 = tpu.matmul %11, %10, %cst_4 {dimension_numbers = #tpu.dot_dimension_numbers<[1], [0], [0], [1], [0, 0, 1, 1], [], []>} : vector<8x256xf32>, vector<256x9xf32>, vector<8x9xf32> -> vector<8x9xf32>
    %cst_5 = arith.constant dense<0.000000e+00> : vector<256x9xf32>
    %13 = tpu.matmul %5, %12, %cst_5 {dimension_numbers = #tpu.dot_dimension_numbers<[1], [0], [0], [1], [0, 0, 1, 1], [], []>} : vector<256x8xf32>, vector<8x9xf32>, vector<256x9xf32> -> vector<256x9xf32>
    %14 = vector.extract_strided_slice %13 {offsets = [0, 0], sizes = [256, 8], strides = [1, 1]} : vector<256x9xf32> to vector<256x8xf32>
    %15 = vector.extract_strided_slice %13 {offsets = [0, 8], sizes = [256, 1], strides = [1, 1]} : vector<256x9xf32> to vector<256x1xf32>
    %cst_6 = arith.constant 1.000000e-15 : f32
    %16 = vector.broadcast %cst_6 : f32 to vector<256x1xf32>
    %17 = arith.addf %15, %16 : vector<256x1xf32>
    %18 = tpu.reciprocal %17 : vector<256x1xf32> -> vector<256x1xf32>
    %19 = vector.broadcast %18 : vector<256x1xf32> to vector<256x8xf32>
    %20 = arith.mulf %14, %19 : vector<256x8xf32>
    %21 = vector.extract_strided_slice %2 {offsets = [0, 24], sizes = [256, 8], strides = [1, 1]} : vector<256x48xf32> to vector<256x8xf32>
    %cst_7 = arith.constant 0.000000e+00 : f32
    %22 = vector.broadcast %cst_7 : f32 to vector<256x8xf32>
    %23 = arith.maximumf %21, %22 : vector<256x8xf32>
    %24 = vector.extract_strided_slice %2 {offsets = [0, 32], sizes = [256, 8], strides = [1, 1]} : vector<256x48xf32> to vector<256x8xf32>
    %cst_8 = arith.constant 0.000000e+00 : f32
    %25 = vector.broadcast %cst_8 : f32 to vector<256x8xf32>
    %26 = arith.maximumf %24, %25 : vector<256x8xf32>
    %27 = vector.extract_strided_slice %2 {offsets = [0, 40], sizes = [256, 8], strides = [1, 1]} : vector<256x48xf32> to vector<256x8xf32>
    %28 = tpu.concatenate %27, %0 in 1 : vector<256x8xf32>, vector<256x1xf32> -> vector<256x9xf32>
    %29 = tpu.transpose %26, [1, 0] : vector<256x8xf32> -> vector<8x256xf32>
    %cst_9 = arith.constant dense<0.000000e+00> : vector<8x9xf32>
    %30 = tpu.matmul %29, %28, %cst_9 {dimension_numbers = #tpu.dot_dimension_numbers<[1], [0], [0], [1], [0, 0, 1, 1], [], []>} : vector<8x256xf32>, vector<256x9xf32>, vector<8x9xf32> -> vector<8x9xf32>
    %cst_10 = arith.constant dense<0.000000e+00> : vector<256x9xf32>
    %31 = tpu.matmul %23, %30, %cst_10 {dimension_numbers = #tpu.dot_dimension_numbers<[1], [0], [0], [1], [0, 0, 1, 1], [], []>} : vector<256x8xf32>, vector<8x9xf32>, vector<256x9xf32> -> vector<256x9xf32>
    %32 = vector.extract_strided_slice %31 {offsets = [0, 0], sizes = [256, 8], strides = [1, 1]} : vector<256x9xf32> to vector<256x8xf32>
    %33 = vector.extract_strided_slice %31 {offsets = [0, 8], sizes = [256, 1], strides = [1, 1]} : vector<256x9xf32> to vector<256x1xf32>
    %cst_11 = arith.constant 1.000000e-15 : f32
    %34 = vector.broadcast %cst_11 : f32 to vector<256x1xf32>
    %35 = arith.addf %33, %34 : vector<256x1xf32>
    %36 = tpu.reciprocal %35 : vector<256x1xf32> -> vector<256x1xf32>
    %37 = vector.broadcast %36 : vector<256x1xf32> to vector<256x8xf32>
    %38 = arith.mulf %32, %37 : vector<256x8xf32>
    %c0_12 = arith.constant 0 : index
    %c0_13 = arith.constant 0 : index
    %c0_14 = arith.constant 0 : index
    %39 = vector.load %arg2[%c0_12, %c0_13, %c0_14] : memref<1x256x48xf32, #tpu.memory_space<vmem>>, vector<1x256x48xf32>
    %40 = vector.shape_cast %39 : vector<1x256x48xf32> to vector<256x48xf32>
    %41 = vector.extract_strided_slice %40 {offsets = [0, 0], sizes = [256, 8], strides = [1, 1]} : vector<256x48xf32> to vector<256x8xf32>
    %cst_15 = arith.constant 0.000000e+00 : f32
    %42 = vector.broadcast %cst_15 : f32 to vector<256x8xf32>
    %43 = arith.maximumf %41, %42 : vector<256x8xf32>
    %44 = vector.extract_strided_slice %40 {offsets = [0, 8], sizes = [256, 8], strides = [1, 1]} : vector<256x48xf32> to vector<256x8xf32>
    %cst_16 = arith.constant 0.000000e+00 : f32
    %45 = vector.broadcast %cst_16 : f32 to vector<256x8xf32>
    %46 = arith.maximumf %44, %45 : vector<256x8xf32>
    %47 = vector.extract_strided_slice %40 {offsets = [0, 16], sizes = [256, 8], strides = [1, 1]} : vector<256x48xf32> to vector<256x8xf32>
    %48 = tpu.concatenate %47, %0 in 1 : vector<256x8xf32>, vector<256x1xf32> -> vector<256x9xf32>
    %49 = tpu.transpose %46, [1, 0] : vector<256x8xf32> -> vector<8x256xf32>
    %cst_17 = arith.constant dense<0.000000e+00> : vector<8x9xf32>
    %50 = tpu.matmul %49, %48, %cst_17 {dimension_numbers = #tpu.dot_dimension_numbers<[1], [0], [0], [1], [0, 0, 1, 1], [], []>} : vector<8x256xf32>, vector<256x9xf32>, vector<8x9xf32> -> vector<8x9xf32>
    %cst_18 = arith.constant dense<0.000000e+00> : vector<256x9xf32>
    %51 = tpu.matmul %43, %50, %cst_18 {dimension_numbers = #tpu.dot_dimension_numbers<[1], [0], [0], [1], [0, 0, 1, 1], [], []>} : vector<256x8xf32>, vector<8x9xf32>, vector<256x9xf32> -> vector<256x9xf32>
    %52 = vector.extract_strided_slice %51 {offsets = [0, 0], sizes = [256, 8], strides = [1, 1]} : vector<256x9xf32> to vector<256x8xf32>
    %53 = vector.extract_strided_slice %51 {offsets = [0, 8], sizes = [256, 1], strides = [1, 1]} : vector<256x9xf32> to vector<256x1xf32>
    %cst_19 = arith.constant 1.000000e-15 : f32
    %54 = vector.broadcast %cst_19 : f32 to vector<256x1xf32>
    %55 = arith.addf %53, %54 : vector<256x1xf32>
    %56 = tpu.reciprocal %55 : vector<256x1xf32> -> vector<256x1xf32>
    %57 = vector.broadcast %56 : vector<256x1xf32> to vector<256x8xf32>
    %58 = arith.mulf %52, %57 : vector<256x8xf32>
    %59 = vector.extract_strided_slice %40 {offsets = [0, 24], sizes = [256, 8], strides = [1, 1]} : vector<256x48xf32> to vector<256x8xf32>
    %cst_20 = arith.constant 0.000000e+00 : f32
    %60 = vector.broadcast %cst_20 : f32 to vector<256x8xf32>
    %61 = arith.maximumf %59, %60 : vector<256x8xf32>
    %62 = vector.extract_strided_slice %40 {offsets = [0, 32], sizes = [256, 8], strides = [1, 1]} : vector<256x48xf32> to vector<256x8xf32>
    %cst_21 = arith.constant 0.000000e+00 : f32
    %63 = vector.broadcast %cst_21 : f32 to vector<256x8xf32>
    %64 = arith.maximumf %62, %63 : vector<256x8xf32>
    %65 = vector.extract_strided_slice %40 {offsets = [0, 40], sizes = [256, 8], strides = [1, 1]} : vector<256x48xf32> to vector<256x8xf32>
    %66 = tpu.concatenate %65, %0 in 1 : vector<256x8xf32>, vector<256x1xf32> -> vector<256x9xf32>
    %67 = tpu.transpose %64, [1, 0] : vector<256x8xf32> -> vector<8x256xf32>
    %cst_22 = arith.constant dense<0.000000e+00> : vector<8x9xf32>
    %68 = tpu.matmul %67, %66, %cst_22 {dimension_numbers = #tpu.dot_dimension_numbers<[1], [0], [0], [1], [0, 0, 1, 1], [], []>} : vector<8x256xf32>, vector<256x9xf32>, vector<8x9xf32> -> vector<8x9xf32>
    %cst_23 = arith.constant dense<0.000000e+00> : vector<256x9xf32>
    %69 = tpu.matmul %61, %68, %cst_23 {dimension_numbers = #tpu.dot_dimension_numbers<[1], [0], [0], [1], [0, 0, 1, 1], [], []>} : vector<256x8xf32>, vector<8x9xf32>, vector<256x9xf32> -> vector<256x9xf32>
    %70 = vector.extract_strided_slice %69 {offsets = [0, 0], sizes = [256, 8], strides = [1, 1]} : vector<256x9xf32> to vector<256x8xf32>
    %71 = vector.extract_strided_slice %69 {offsets = [0, 8], sizes = [256, 1], strides = [1, 1]} : vector<256x9xf32> to vector<256x1xf32>
    %cst_24 = arith.constant 1.000000e-15 : f32
    %72 = vector.broadcast %cst_24 : f32 to vector<256x1xf32>
    %73 = arith.addf %71, %72 : vector<256x1xf32>
    %74 = tpu.reciprocal %73 : vector<256x1xf32> -> vector<256x1xf32>
    %75 = vector.broadcast %74 : vector<256x1xf32> to vector<256x8xf32>
    %76 = arith.mulf %70, %75 : vector<256x8xf32>
    %77 = tpu.concatenate %20, %38, %58, %76 in 1 : vector<256x8xf32>, vector<256x8xf32>, vector<256x8xf32>, vector<256x8xf32> -> vector<256x32xf32>
    %c0_25 = arith.constant 0 : index
    %c0_26 = arith.constant 0 : index
    %c0_27 = arith.constant 0 : index
    %78 = vector.load %arg3[%c0_25, %c0_26, %c0_27] : memref<1x256x32xf32, #tpu.memory_space<vmem>>, vector<1x256x32xf32>
    %79 = vector.shape_cast %78 : vector<1x256x32xf32> to vector<256x32xf32>
    %80 = vector.shape_cast %77 : vector<256x32xf32> to vector<1x256x32xf32>
    tpu.vector_store %arg3[%c0_25, %c0_26, %c0_27], %80 {strides = array<i32>} : memref<1x256x32xf32, #tpu.memory_space<vmem>>, vector<1x256x32xf32>,
    return
  }
  func.func @transform_0(%arg0: i32) -> (i32, i32, i32) {
    %c0_i32 = arith.constant 0 : i32
    %c0_i32_0 = arith.constant 0 : i32
    %c0_i32_1 = arith.constant 0 : i32
    return %arg0, %c0_i32, %c0_i32_0 : i32, i32, i32
  }
  func.func @transform_1(%arg0: i32) -> (i32, i32, i32) {
    %c0_i32 = arith.constant 0 : i32
    %c0_i32_0 = arith.constant 0 : i32
    %c0_i32_1 = arith.constant 0 : i32
    return %arg0, %c0_i32, %c0_i32_0 : i32, i32, i32
  }
  func.func @transform_2(%arg0: i32) -> (i32, i32, i32) {
    %c0_i32 = arith.constant 0 : i32
    %c0_i32_0 = arith.constant 0 : i32
    %c0_i32_1 = arith.constant 0 : i32
    return %arg0, %c0_i32, %c0_i32_0 : i32, i32, i32
  }
}

module attributes {stable_mosaic.version = 11 : i64} {
  func.func @_mm_bias_kernel(%arg0: i32, %arg1: i32, %arg2: i32, %arg3: memref<256x32xf32, #tpu.memory_space<vmem>>, %arg4: memref<32x16xf32, #tpu.memory_space<vmem>>, %arg5: memref<1x16xf32, #tpu.memory_space<vmem>>, %arg6: memref<256x16xf32, #tpu.memory_space<vmem>>, %arg7: memref<256x16xf32, #tpu.memory_space<vmem>>) attributes {dimension_semantics = [#tpu.dimension_semantics<parallel>, #tpu.dimension_semantics<parallel>, #tpu.dimension_semantics<arbitrary>], iteration_bounds = array<i64: 2, 1, 1>, scalar_prefetch = 0 : i64, scratch_operands = 1 : i64, tpu.core_type = #tpu.core_type<tc>, window_params = [{transform_indices = @transform_0, window_bounds = array<i64: 256, 32>}, {transform_indices = @transform_1, window_bounds = array<i64: 32, 16>}, {transform_indices = @transform_2, window_bounds = array<i64: 1, 16>}, {transform_indices = @transform_3, window_bounds = array<i64: 256, 16>}]} {
    %c0_i32 = arith.constant 0 : i32
    %0 = arith.cmpi eq, %arg2, %c0_i32 : i32
    %1 = arith.extui %0 : i1 to i32
    %c0_i32_0 = arith.constant 0 : i32
    %2 = arith.cmpi ne, %1, %c0_i32_0 : i32
    scf.if %2 {
      %cst_10 = arith.constant 0.000000e+00 : f32
      %12 = vector.broadcast %cst_10 : f32 to vector<256x16xf32>
      %c0_11 = arith.constant 0 : index
      %c0_12 = arith.constant 0 : index
      %13 = vector.load %arg7[%c0_11, %c0_12] : memref<256x16xf32, #tpu.memory_space<vmem>>, vector<256x16xf32>
      tpu.vector_store %arg7[%c0_11, %c0_12], %12 {strides = array<i32>} : memref<256x16xf32, #tpu.memory_space<vmem>>, vector<256x16xf32>,
    } else {
    }
    %c0 = arith.constant 0 : index
    %c0_1 = arith.constant 0 : index
    %3 = vector.load %arg7[%c0, %c0_1] : memref<256x16xf32, #tpu.memory_space<vmem>>, vector<256x16xf32>
    %c0_2 = arith.constant 0 : index
    %c0_3 = arith.constant 0 : index
    %4 = vector.load %arg3[%c0_2, %c0_3] : memref<256x32xf32, #tpu.memory_space<vmem>>, vector<256x32xf32>
    %c0_4 = arith.constant 0 : index
    %c0_5 = arith.constant 0 : index
    %5 = vector.load %arg4[%c0_4, %c0_5] : memref<32x16xf32, #tpu.memory_space<vmem>>, vector<32x16xf32>
    %cst = arith.constant dense<0.000000e+00> : vector<256x16xf32>
    %6 = tpu.matmul %4, %5, %cst {dimension_numbers = #tpu.dot_dimension_numbers<[1], [0], [0], [1], [0, 0, 1, 1], [], []>} : vector<256x32xf32>, vector<32x16xf32>, vector<256x16xf32> -> vector<256x16xf32>
    %7 = arith.addf %3, %6 : vector<256x16xf32>
    %c0_6 = arith.constant 0 : index
    %c0_7 = arith.constant 0 : index
    %8 = vector.load %arg7[%c0_6, %c0_7] : memref<256x16xf32, #tpu.memory_space<vmem>>, vector<256x16xf32>
    tpu.vector_store %arg7[%c0_6, %c0_7], %7 {strides = array<i32>} : memref<256x16xf32, #tpu.memory_space<vmem>>, vector<256x16xf32>,
    %c0_i32_8 = arith.constant 0 : i32
    %9 = arith.cmpi eq, %arg2, %c0_i32_8 : i32
    %10 = arith.extui %9 : i1 to i32
    %c0_i32_9 = arith.constant 0 : i32
    %11 = arith.cmpi ne, %10, %c0_i32_9 : i32
    scf.if %11 {
      %c0_10 = arith.constant 0 : index
      %c0_11 = arith.constant 0 : index
      %12 = vector.load %arg7[%c0_10, %c0_11] : memref<256x16xf32, #tpu.memory_space<vmem>>, vector<256x16xf32>
      %c0_12 = arith.constant 0 : index
      %c0_13 = arith.constant 0 : index
      %13 = vector.load %arg5[%c0_12, %c0_13] : memref<1x16xf32, #tpu.memory_space<vmem>>, vector<1x16xf32>
      %14 = vector.broadcast %13 : vector<1x16xf32> to vector<256x16xf32>
      %15 = arith.addf %12, %14 : vector<256x16xf32>
      %c0_14 = arith.constant 0 : index
      %c0_15 = arith.constant 0 : index
      %16 = vector.load %arg6[%c0_14, %c0_15] : memref<256x16xf32, #tpu.memory_space<vmem>>, vector<256x16xf32>
      tpu.vector_store %arg6[%c0_14, %c0_15], %15 {strides = array<i32>} : memref<256x16xf32, #tpu.memory_space<vmem>>, vector<256x16xf32>,
    } else {
    }
    return
  }
  func.func @transform_0(%arg0: i32, %arg1: i32, %arg2: i32) -> (i32, i32) {
    %c0_i32 = arith.constant 0 : i32
    return %arg0, %arg2 : i32, i32
  }
  func.func @transform_1(%arg0: i32, %arg1: i32, %arg2: i32) -> (i32, i32) {
    %c0_i32 = arith.constant 0 : i32
    return %arg2, %arg1 : i32, i32
  }
  func.func @transform_2(%arg0: i32, %arg1: i32, %arg2: i32) -> (i32, i32) {
    %c0_i32 = arith.constant 0 : i32
    %c0_i32_0 = arith.constant 0 : i32
    return %c0_i32, %arg1 : i32, i32
  }
  func.func @transform_3(%arg0: i32, %arg1: i32, %arg2: i32) -> (i32, i32) {
    %c0_i32 = arith.constant 0 : i32
    return %arg0, %arg1 : i32, i32
  }
}

</mosaic_0001>

<llo_original>
// kernel: flexible_lite_mla_forward.7
$region0: #{flexible_lite_mla_forward.7}
  #allocation0 [shape = 'u32[]', space=smem, size = 0x4, offset = 0x4, fixed_abs, tag = 'smem constant byte address 0x4 - core index']
  #allocation1 [shape = 'u32[144,128]{1,0:T(1,128)}', space=vmem, size = 0x12000, scoped, tag = 'internal scratch']
  #allocation2 [shape = 'f32[256,48]{1,0:T(8,128)}', space=vmem, size = 0x20000, scoped, tag = 'scratch operand']
  %s0 = inlined_call_operand.vmem [shape: f32[512,48], index: 0, kind: input, shape index: {}]
  %s1 = inlined_call_operand.vmem [shape: f32[48,48], index: 1, kind: input, shape index: {}]
  %s2 = inlined_call_operand.vmem [shape: f32[512,48], index: 2, kind: output, shape index: {}]
  %s3 = sld [smem:[#allocation0]]
  $region49: #{flexible_lite_mla_forward.7} parent=0
    _
  %s5 = ssub.s32 1, %s3
  %s6 = scalar_select 0, %s5, %s3
  loop: start=0, step=1, limit=4
  $region2: #{flexible_lite_mla_forward.7} parent=0 // loop_pre_header
    _
  $region3: #{flexible_lite_mla_forward.7} parent=0 // loop_header
    %s8 = sphi 0, %s12
    %p9 = scmp.ge.s32.totalorder %s8, 4
    %s15 = sphi 0, %s34
    %s16 = sphi 0, %s30
    %s17 = sphi 0, %s26
    %s18 = sphi 0, %s15
    %s19 = sphi 0, %s16
    %s20 = sphi 0, %s17
    %s21 = sphi 0, %s18
    %s22 = sphi 0, %s19
    %s23 = sphi 0, %s20
    %s39 = sphi 0, %s41
    %s42 = sphi 0, %s39
    %s43 = sphi 0, %s42
    %s59 = sphi 0, %s43
    %s67 = sphi 0, %s69
    %s70 = sphi 0, %s67
    %s71 = sphi 0, %s70
    %s87 = sphi 0, %s71
    %s95 = sphi 0, %s97
    %s98 = sphi 0, %s95
    %s99 = sphi 0, %s98
    %s115 = sphi 0, %s99
  $region4: #{flexible_lite_mla_forward.7} parent=0 // loop_header_branch
    %11 = sbr.rel (%p9) target = $region8
  $region5: #{flexible_lite_mla_forward.7} parent=0 // loop_body
    %s13 = ssub.s32 %s8, 1
    %s14 = ssub.s32 %s8, 2
    %s24 = sadd.s32 1, %s17
    %p25 = scmp.ge.s32.totalorder %s24, 1
    %s26 = scalar_select %p25, 0, %s24
    %s27 = sadd.s32 1, %s16
    %s28 = scalar_select %p25, %s27, %s16
    %p29 = scmp.ge.s32.totalorder %s28, 1
    %s30 = scalar_select %p29, 0, %s28
    %s31 = sadd.s32 1, %s15
    %s32 = scalar_select %p29, %s31, %s15
    %p33 = scmp.ge.s32.totalorder %s32, 2
    %s34 = scalar_select %p33, 0, %s32
    %s35 = ssub.s32 %s15, %s34
    %s36 = ssub.s32 %s17, %s26
    %s37 = sor.u32 %s35, %s36
    %p38 = scmp.eq.s32.totalorder %s37, 0
    %s40 = sadd.s32 %s39, 1
    %s41 = scalar_select %p38, %s39, %s40
    %p44 = pneg %p38
    %p45 = scmp.eq.s32.totalorder %s8, 1
    %p46 = por %p44, %p45
    %p47 = scmp.ne.s32.totalorder %s39, %s42
    %p48 = scmp.eq.s32.totalorder %s8, 0
    %p49 = por %p47, %p48
    %p50 = scmp.ne.s32.totalorder %s39, %s42
    %p51 = scmp.eq.s32.totalorder %s13, 1
    %p52 = por %p50, %p51
    %p53 = scmp.ne.s32.totalorder %s42, %s43
    %p54 = scmp.eq.s32.totalorder %s13, 0
    %p55 = por %p53, %p54
    %p56 = scmp.ne.s32.totalorder %s42, %s43
    %p57 = scmp.eq.s32.totalorder %s14, 1
    %p58 = por %p56, %p57
    %p60 = scmp.ne.s32.totalorder %s43, %s59
    %p61 = scmp.eq.s32.totalorder %s14, 0
    %p62 = por %p60, %p61
    %s63 = ssub.s32 %s17, %s26
    %s64 = ssub.s32 %s16, %s30
    %s65 = sor.u32 %s63, %s64
    %p66 = scmp.eq.s32.totalorder %s65, 0
    %s68 = sadd.s32 %s67, 1
    %s69 = scalar_select %p66, %s67, %s68
    %p72 = pneg %p66
    %p73 = scmp.eq.s32.totalorder %s8, 1
    %p74 = por %p72, %p73
    %p75 = scmp.ne.s32.totalorder %s67, %s70
    %p76 = scmp.eq.s32.totalorder %s8, 0
    %p77 = por %p75, %p76
    %p78 = scmp.ne.s32.totalorder %s67, %s70
    %p79 = scmp.eq.s32.totalorder %s13, 1
    %p80 = por %p78, %p79
    %p81 = scmp.ne.s32.totalorder %s70, %s71
    %p82 = scmp.eq.s32.totalorder %s13, 0
    %p83 = por %p81, %p82
    %p84 = scmp.ne.s32.totalorder %s70, %s71
    %p85 = scmp.eq.s32.totalorder %s14, 1
    %p86 = por %p84, %p85
    %p88 = scmp.ne.s32.totalorder %s71, %s87
    %p89 = scmp.eq.s32.totalorder %s14, 0
    %p90 = por %p88, %p89
    %s91 = ssub.s32 %s15, %s34
    %s92 = ssub.s32 %s16, %s30
    %s93 = sor.u32 %s91, %s92
    %p94 = scmp.eq.s32.totalorder %s93, 0
    %s96 = sadd.s32 %s95, 1
    %s97 = scalar_select %p94, %s95, %s96
    %p100 = pneg %p94
    %p101 = scmp.eq.s32.totalorder %s8, 1
    %p102 = por %p100, %p101
    %p103 = scmp.ne.s32.totalorder %s95, %s98
    %p104 = scmp.eq.s32.totalorder %s8, 0
    %p105 = por %p103, %p104
    %p106 = scmp.ne.s32.totalorder %s95, %s98
    %p107 = scmp.eq.s32.totalorder %s13, 1
    %p108 = por %p106, %p107
    %p109 = scmp.ne.s32.totalorder %s98, %s99
    %p110 = scmp.eq.s32.totalorder %s13, 0
    %p111 = por %p109, %p110
    %p112 = scmp.ne.s32.totalorder %s98, %s99
    %p113 = scmp.eq.s32.totalorder %s14, 1
    %p114 = por %p112, %p113
    %p116 = scmp.ne.s32.totalorder %s99, %s115
    %p117 = scmp.eq.s32.totalorder %s14, 0
    %p118 = por %p116, %p117
    %p119 = scmp.le.s32.totalorder 1, %s8
    %p120 = scmp.lt.s32.totalorder %s8, 3
    %p121 = pnand %p119, %p120
    %p122 = pneg %p121
    // Predicated region
    $region9: #{flexible_lite_mla_forward.7} parent=5 // pred_check
      _
    $region10: #{flexible_lite_mla_forward.7} parent=5 // pred_check_branch
      %124 = sbr.rel (%p121) target = $region12
    $region11: #{flexible_lite_mla_forward.7} parent=5 // pred_region
      %s125 = ssub.s32 %s8, 1
      // Predicated region
      $region13: #{flexible_lite_mla_forward.7} parent=11 // pred_check
        %p126 = pneg %p83
      $region14: #{flexible_lite_mla_forward.7} parent=11 // pred_check_branch
        %128 = sbr.rel (%p126) target = $region16
      $region15: #{flexible_lite_mla_forward.7} parent=11 // pred_region
        %s129 = smul.u32 6, %s20
        %p130 = scmp.lt.s32.totalorder %s129, 5
        %s131 = scalar_select %p130, %s129, 5
        %p132 = scmp.lt.s32.totalorder %s19, 0
        %s133 = scalar_select %p132, %s19, 0
        %s134 = sadd.s32 %s133, %s131
        %s135 = smul.addr %s134, 8
        %s136 = scalar_lea.vmem %s1, %s135
        %s137 = smul.u32 6, %s20
      $region16: #{flexible_lite_mla_forward.7} parent=11 // pred_fallthru
        _
    $region12: #{flexible_lite_mla_forward.7} parent=5 // pred_fallthru
      _
    %p138 = scmp.lt.s32.totalorder %s8, 2
    // Predicated region
    $region17: #{flexible_lite_mla_forward.7} parent=5 // pred_check
      %p139 = pneg %p138
    $region18: #{flexible_lite_mla_forward.7} parent=5 // pred_check_branch
      %141 = sbr.rel (%p139) target = $region20
    $region19: #{flexible_lite_mla_forward.7} parent=5 // pred_region
      // Predicated region
      $region21: #{flexible_lite_mla_forward.7} parent=19 // pred_check
        %p142 = pneg %p49
      $region22: #{flexible_lite_mla_forward.7} parent=19 // pred_check_branch
        %144 = sbr.rel (%p142) target = $region24
      $region23: #{flexible_lite_mla_forward.7} parent=19 // pred_region
        %s145 = smul.u32 32, %s15
        %p146 = scmp.lt.s32.totalorder %s145, 63
        %s147 = scalar_select %p146, %s145, 63
        %p148 = scmp.lt.s32.totalorder %s17, 0
        %s149 = scalar_select %p148, %s17, 0
        %s150 = sadd.s32 %s149, %s147
        %s151 = smul.addr %s150, 8
        %s152 = scalar_lea.vmem %s0, %s151
        %s153 = smul.u32 32, %s15
      $region24: #{flexible_lite_mla_forward.7} parent=19 // pred_fallthru
        _
    $region20: #{flexible_lite_mla_forward.7} parent=5 // pred_fallthru
      _
    %p154 = scmp.le.s32.totalorder 1, %s8
    %p155 = scmp.lt.s32.totalorder %s8, 3
    %p156 = pnand %p154, %p155
    %p157 = pneg %p156
    // Predicated region
    $region25: #{flexible_lite_mla_forward.7} parent=5 // pred_check
      _
    $region26: #{flexible_lite_mla_forward.7} parent=5 // pred_check_branch
      %159 = sbr.rel (%p156) target = $region28
    $region27: #{flexible_lite_mla_forward.7} parent=5 // pred_region
      %s160 = ssub.s32 %s8, 1
      %s161 = smul.u32 32, %s18
      %p162 = scmp.lt.s32.totalorder %s161, 63
      %s163 = scalar_select %p162, %s161, 63
      %p164 = scmp.lt.s32.totalorder %s20, 0
      %s165 = scalar_select %p164, %s20, 0
      %s166 = sadd.s32 %s165, %s163
      %s167 = smul.addr %s166, 8
      %s168 = scalar_lea.vmem %s0, %s167
      %p169 = pneg %p55
      %p170 = pneg %p52
      %s171 = smul.u32 6, %s20
      %p172 = scmp.lt.s32.totalorder %s171, 5
      %s173 = scalar_select %p172, %s171, 5
      %p174 = scmp.lt.s32.totalorder %s19, 0
      %s175 = scalar_select %p174, %s19, 0
      %s176 = sadd.s32 %s175, %s173
      %s177 = smul.addr %s176, 8
      %s178 = scalar_lea.vmem %s1, %s177
      %p179 = pneg %p83
      %p180 = pneg %p80
      %p181 = pneg %p111
      %p182 = pneg %p108
      %s183 = smul.u32 32, %s18
      %p184 = scmp.lt.s32.totalorder %s183, 63
      %s185 = scalar_select %p184, %s183, 63
      %p186 = scmp.lt.s32.totalorder %s19, 0
      %s187 = scalar_select %p186, %s19, 0
      %s188 = sadd.s32 %s187, %s185
      %s189 = smul.addr %s188, 8
      %s190 = scalar_lea.vmem %s2, %s189
      %s191 = smul.u32 32, %s18
      %p192 = scmp.lt.s32.totalorder %s191, 63
      %s193 = scalar_select %p192, %s191, 63
      %p194 = scmp.lt.s32.totalorder %s20, 0
      %s195 = scalar_select %p194, %s20, 0
      %s196 = sadd.s32 %s195, %s193
      %s197 = smul.addr %s196, 8
      %s198 = scalar_lea.vmem %s0, %s197
      %s199 = smul.u32 32, %s18
      %s200 = smul.u32 6, %s20
      %p201 = scmp.lt.s32.totalorder %s200, 5
      %s202 = scalar_select %p201, %s200, 5
      %p203 = scmp.lt.s32.totalorder %s19, 0
      %s204 = scalar_select %p203, %s19, 0
      %s205 = sadd.s32 %s204, %s202
      %s206 = smul.addr %s205, 8
      %s207 = scalar_lea.vmem %s1, %s206
      %s208 = smul.u32 6, %s20
      %s209 = smul.u32 32, %s18
      %p210 = scmp.lt.s32.totalorder %s209, 63
      %s211 = scalar_select %p210, %s209, 63
      %p212 = scmp.lt.s32.totalorder %s19, 0
      %s213 = scalar_select %p212, %s19, 0
      %s214 = sadd.s32 %s213, %s211
      %s215 = smul.addr %s214, 8
      %s216 = scalar_lea.vmem %s2, %s215
      %s217 = smul.u32 32, %s18
      %p218 = scmp.eq.s32.totalorder %s20, 0
      // Predicated region
      $region29: #{flexible_lite_mla_forward.7} parent=27 // pred_check
        %p219 = pneg %p218
      $region30: #{flexible_lite_mla_forward.7} parent=27 // pred_check_branch
        %221 = sbr.rel (%p219) target = $region32
      $region31: #{flexible_lite_mla_forward.7} parent=27 // pred_region
        %vm222 = vcmask 392192
        %223 = vst.msk [vmem:[#allocation2] sm:$0xff] %vm222, 0.0
        %224 = vst.msk [vmem:[#allocation2 + $0x8] sm:$0xff] %vm222, 0.0
        %225 = vst.msk [vmem:[#allocation2 + $0x10] sm:$0xff] %vm222, 0.0
        %226 = vst.msk [vmem:[#allocation2 + $0x18] sm:$0xff] %vm222, 0.0
        %227 = vst.msk [vmem:[#allocation2 + $0x20] sm:$0xff] %vm222, 0.0
        %228 = vst.msk [vmem:[#allocation2 + $0x28] sm:$0xff] %vm222, 0.0
        %229 = vst.msk [vmem:[#allocation2 + $0x30] sm:$0xff] %vm222, 0.0
        %230 = vst.msk [vmem:[#allocation2 + $0x38] sm:$0xff] %vm222, 0.0
        %231 = vst.msk [vmem:[#allocation2 + $0x40] sm:$0xff] %vm222, 0.0
        %232 = vst.msk [vmem:[#allocation2 + $0x48] sm:$0xff] %vm222, 0.0
        %233 = vst.msk [vmem:[#allocation2 + $0x50] sm:$0xff] %vm222, 0.0
        %234 = vst.msk [vmem:[#allocation2 + $0x58] sm:$0xff] %vm222, 0.0
        %235 = vst.msk [vmem:[#allocation2 + $0x60] sm:$0xff] %vm222, 0.0
        %236 = vst.msk [vmem:[#allocation2 + $0x68] sm:$0xff] %vm222, 0.0
        %237 = vst.msk [vmem:[#allocation2 + $0x70] sm:$0xff] %vm222, 0.0
        %238 = vst.msk [vmem:[#allocation2 + $0x78] sm:$0xff] %vm222, 0.0
        %239 = vst.msk [vmem:[#allocation2 + $0x80] sm:$0xff] %vm222, 0.0
        %240 = vst.msk [vmem:[#allocation2 + $0x88] sm:$0xff] %vm222, 0.0
        %241 = vst.msk [vmem:[#allocation2 + $0x90] sm:$0xff] %vm222, 0.0
        %242 = vst.msk [vmem:[#allocation2 + $0x98] sm:$0xff] %vm222, 0.0
        %243 = vst.msk [vmem:[#allocation2 + $0xa0] sm:$0xff] %vm222, 0.0
        %244 = vst.msk [vmem:[#allocation2 + $0xa8] sm:$0xff] %vm222, 0.0
        %245 = vst.msk [vmem:[#allocation2 + $0xb0] sm:$0xff] %vm222, 0.0
        %246 = vst.msk [vmem:[#allocation2 + $0xb8] sm:$0xff] %vm222, 0.0
        %247 = vst.msk [vmem:[#allocation2 + $0xc0] sm:$0xff] %vm222, 0.0
        %248 = vst.msk [vmem:[#allocation2 + $0xc8] sm:$0xff] %vm222, 0.0
        %249 = vst.msk [vmem:[#allocation2 + $0xd0] sm:$0xff] %vm222, 0.0
        %250 = vst.msk [vmem:[#allocation2 + $0xd8] sm:$0xff] %vm222, 0.0
        %251 = vst.msk [vmem:[#allocation2 + $0xe0] sm:$0xff] %vm222, 0.0
        %252 = vst.msk [vmem:[#allocation2 + $0xe8] sm:$0xff] %vm222, 0.0
        %253 = vst.msk [vmem:[#allocation2 + $0xf0] sm:$0xff] %vm222, 0.0
        %254 = vst.msk [vmem:[#allocation2 + $0xf8] sm:$0xff] %vm222, 0.0
      $region32: #{flexible_lite_mla_forward.7} parent=27 // pred_fallthru
        _
      %v255 = vld [vmem:[#allocation2] sm:$0xff]
      %v256 = vld [vmem:[#allocation2 + $0x8] sm:$0xff]
      %v257 = vld [vmem:[#allocation2 + $0x10] sm:$0xff]
      %v258 = vld [vmem:[#allocation2 + $0x18] sm:$0xff]
      %v259 = vld [vmem:[#allocation2 + $0x20] sm:$0xff]
      %v260 = vld [vmem:[#allocation2 + $0x28] sm:$0xff]
      %v261 = vld [vmem:[#allocation2 + $0x30] sm:$0xff]
      %v262 = vld [vmem:[#allocation2 + $0x38] sm:$0xff]
      %v263 = vld [vmem:[#allocation2 + $0x40] sm:$0xff]
      %v264 = vld [vmem:[#allocation2 + $0x48] sm:$0xff]
      %v265 = vld [vmem:[#allocation2 + $0x50] sm:$0xff]
      %v266 = vld [vmem:[#allocation2 + $0x58] sm:$0xff]
      %v267 = vld [vmem:[#allocation2 + $0x60] sm:$0xff]
      %v268 = vld [vmem:[#allocation2 + $0x68] sm:$0xff]
      %v269 = vld [vmem:[#allocation2 + $0x70] sm:$0xff]
      %v270 = vld [vmem:[#allocation2 + $0x78] sm:$0xff]
      %v271 = vld [vmem:[#allocation2 + $0x80] sm:$0xff]
      %v272 = vld [vmem:[#allocation2 + $0x88] sm:$0xff]
      %v273 = vld [vmem:[#allocation2 + $0x90] sm:$0xff]
      %v274 = vld [vmem:[#allocation2 + $0x98] sm:$0xff]
      %v275 = vld [vmem:[#allocation2 + $0xa0] sm:$0xff]
      %v276 = vld [vmem:[#allocation2 + $0xa8] sm:$0xff]
      %v277 = vld [vmem:[#allocation2 + $0xb0] sm:$0xff]
      %v278 = vld [vmem:[#allocation2 + $0xb8] sm:$0xff]
      %v279 = vld [vmem:[#allocation2 + $0xc0] sm:$0xff]
      %v280 = vld [vmem:[#allocation2 + $0xc8] sm:$0xff]
      %v281 = vld [vmem:[#allocation2 + $0xd0] sm:$0xff]
      %v282 = vld [vmem:[#allocation2 + $0xd8] sm:$0xff]
      %v283 = vld [vmem:[#allocation2 + $0xe0] sm:$0xff]
      %v284 = vld [vmem:[#allocation2 + $0xe8] sm:$0xff]
      %v285 = vld [vmem:[#allocation2 + $0xf0] sm:$0xff]
      %v286 = vld [vmem:[#allocation2 + $0xf8] sm:$0xff]
      %v287 = vld [vmem:[%s198] sm:$0xff]
      %v288 = vld [vmem:[%s198 + $0x8] sm:$0xff]
      %v289 = vld [vmem:[%s198 + $0x10] sm:$0xff]
      %v290 = vld [vmem:[%s198 + $0x18] sm:$0xff]
      %v291 = vld [vmem:[%s198 + $0x20] sm:$0xff]
      %v292 = vld [vmem:[%s198 + $0x28] sm:$0xff]
      %v293 = vld [vmem:[%s198 + $0x30] sm:$0xff]
      %v294 = vld [vmem:[%s198 + $0x38] sm:$0xff]
      %v295 = vld [vmem:[%s198 + $0x40] sm:$0xff]
      %v296 = vld [vmem:[%s198 + $0x48] sm:$0xff]
      %v297 = vld [vmem:[%s198 + $0x50] sm:$0xff]
      %v298 = vld [vmem:[%s198 + $0x58] sm:$0xff]
      %v299 = vld [vmem:[%s198 + $0x60] sm:$0xff]
      %v300 = vld [vmem:[%s198 + $0x68] sm:$0xff]
      %v301 = vld [vmem:[%s198 + $0x70] sm:$0xff]
      %v302 = vld [vmem:[%s198 + $0x78] sm:$0xff]
      %v303 = vld [vmem:[%s198 + $0x80] sm:$0xff]
      %v304 = vld [vmem:[%s198 + $0x88] sm:$0xff]
      %v305 = vld [vmem:[%s198 + $0x90] sm:$0xff]
      %v306 = vld [vmem:[%s198 + $0x98] sm:$0xff]
      %v307 = vld [vmem:[%s198 + $0xa0] sm:$0xff]
      %v308 = vld [vmem:[%s198 + $0xa8] sm:$0xff]
      %v309 = vld [vmem:[%s198 + $0xb0] sm:$0xff]
      %v310 = vld [vmem:[%s198 + $0xb8] sm:$0xff]
      %v311 = vld [vmem:[%s198 + $0xc0] sm:$0xff]
      %v312 = vld [vmem:[%s198 + $0xc8] sm:$0xff]
      %v313 = vld [vmem:[%s198 + $0xd0] sm:$0xff]
      %v314 = vld [vmem:[%s198 + $0xd8] sm:$0xff]
      %v315 = vld [vmem:[%s198 + $0xe0] sm:$0xff]
      %v316 = vld [vmem:[%s198 + $0xe8] sm:$0xff]
      %v317 = vld [vmem:[%s198 + $0xf0] sm:$0xff]
      %v318 = vld [vmem:[%s198 + $0xf8] sm:$0xff]
      %v319 = vld [vmem:[%s207] sm:$0xff]
      %v320 = vld [vmem:[%s207 + $0x8] sm:$0xff]
      %v321 = vld [vmem:[%s207 + $0x10] sm:$0xff]
      %v322 = vld [vmem:[%s207 + $0x18] sm:$0xff]
      %v323 = vld [vmem:[%s207 + $0x20] sm:$0xff]
      %v324 = vld [vmem:[%s207 + $0x28] sm:$0xff]
      %vm325 = vcmask 392192
      %v327 = vsel %vm325, %v287, 0
      %v330 = vsel %vm325, %v288, 0
      %v333 = vsel %vm325, %v289, 0
      %v336 = vsel %vm325, %v290, 0
      %v339 = vsel %vm325, %v291, 0
      %v342 = vsel %vm325, %v292, 0
      %v345 = vsel %vm325, %v293, 0
      %v348 = vsel %vm325, %v294, 0
      %v351 = vsel %vm325, %v295, 0
      %v354 = vsel %vm325, %v296, 0
      %v357 = vsel %vm325, %v297, 0
      %v360 = vsel %vm325, %v298, 0
      %v363 = vsel %vm325, %v299, 0
      %v366 = vsel %vm325, %v300, 0
      %v369 = vsel %vm325, %v301, 0
      %v372 = vsel %vm325, %v302, 0
      %v375 = vsel %vm325, %v303, 0
      %v378 = vsel %vm325, %v304, 0
      %v381 = vsel %vm325, %v305, 0
      %v384 = vsel %vm325, %v306, 0
      %v387 = vsel %vm325, %v307, 0
      %v390 = vsel %vm325, %v308, 0
      %v393 = vsel %vm325, %v309, 0
      %v396 = vsel %vm325, %v310, 0
      %v399 = vsel %vm325, %v311, 0
      %v402 = vsel %vm325, %v312, 0
      %v405 = vsel %vm325, %v313, 0
      %v408 = vsel %vm325, %v314, 0
      %v411 = vsel %vm325, %v315, 0
      %v414 = vsel %vm325, %v316, 0
      %v417 = vsel %vm325, %v317, 0
      %v420 = vsel %vm325, %v318, 0
      %422 = vmatprep.subr.mxu0 0.0
      %423 = vmatpush1.msra.mxu0 %v319
      %424 = vmatprep.subr.mxu0 0.0
      %425 = vmatpush1.msra.mxu0 %v320
      %426 = vmatprep.subr.mxu0 0.0
      %427 = vmatpush1.msra.mxu0 %v321
      %428 = vmatprep.subr.mxu0 0.0
      %429 = vmatpush1.msra.mxu0 %v322
      %430 = vmatprep.subr.mxu0 0.0
      %431 = vmatpush1.msra.mxu0 %v323
      %432 = vmatprep.subr.mxu0 0.0
      %433 = vmatpush1.msra.mxu0 %v324
      %434 = vmatprep.subr.mxu0 0.0
      %435 = vmatpush1.msra.mxu0 0.0
      %436 = vmatprep.subr.mxu0 0.0
      %437 = vmatpush1.msra.mxu0 0.0
      %438 = vmatprep.subr.mxu0 0.0
      %439 = vmatpush1.msra.mxu0 0.0
      %440 = vmatprep.subr.mxu0 0.0
      %441 = vmatpush1.msra.mxu0 0.0
      %442 = vmatprep.subr.mxu0 0.0
      %443 = vmatpush1.msra.mxu0 0.0
      %444 = vmatprep.subr.mxu0 0.0
      %445 = vmatpush1.msra.mxu0 0.0
      %446 = vmatprep.subr.mxu0 0.0
      %447 = vmatpush1.msra.mxu0 0.0
      %448 = vmatprep.subr.mxu0 0.0
      %449 = vmatpush1.msra.mxu0 0.0
      %450 = vmatprep.subr.mxu0 0.0
      %451 = vmatpush1.msra.mxu0 0.0
      %452 = vmatprep.subr.mxu0 0.0
      %453 = vmatpush1.msra.mxu0 0.0
      %454 = vmatprep.subr.mxu0 0.0
      %455 = vmatpush1.msra.mxu0 0.0
      %456 = vmatprep.subr.mxu0 0.0
      %457 = vmatpush1.msra.mxu0 0.0
      %458 = vmatprep.subr.mxu0 0.0
      %459 = vmatpush1.msra.mxu0 0.0
      %460 = vmatprep.subr.mxu0 0.0
      %461 = vmatpush1.msra.mxu0 0.0
      %462 = vmatprep.subr.mxu0 0.0
      %463 = vmatpush1.msra.mxu0 0.0
      %464 = vmatprep.subr.mxu0 0.0
      %465 = vmatpush1.msra.mxu0 0.0
      %466 = vmatprep.subr.mxu0 0.0
      %467 = vmatpush1.msra.mxu0 0.0
      %468 = vmatprep.subr.mxu0 0.0
      %469 = vmatpush1.msra.mxu0 0.0
      %470 = vmatprep.subr.mxu0 0.0
      %471 = vmatpush1.msra.mxu0 0.0
      %472 = vmatprep.subr.mxu0 0.0
      %473 = vmatpush1.msra.mxu0 0.0
      %474 = vmatprep.subr.mxu0 0.0
      %475 = vmatpush1.msra.mxu0 0.0
      %476 = vmatprep.subr.mxu0 0.0
      %477 = vmatpush1.msra.mxu0 0.0
      %478 = vmatprep.subr.mxu0 0.0
      %479 = vmatpush1.msra.mxu0 0.0
      %480 = vmatprep.subr.mxu0 0.0
      %481 = vmatpush1.msra.mxu0 0.0
      %482 = vmatprep.subr.mxu0 0.0
      %483 = vmatpush1.msra.mxu0 0.0
      %484 = vmatprep.subr.mxu0 0.0
      %485 = vmatpush1.msra.mxu0 0.0
      %486 = vmatprep.mubr.f32.mxu0 0.0
      %487 = vmatmul.mubr.f32.gmra.mrb[0].mxu0 %v327
      %v488 = vpop.f32.mrb[0].mxu0
      %v489 = vadd.f32 0.0, %v488
      %v490 = vpop.f32.mrb[0].mxu0
      %491 = vmatprep.mubr.f32.mxu0 0.0
      %492 = vmatmul.mubr.f32.gmra.mrb[0].mxu0 %v330
      %v493 = vpop.f32.mrb[0].mxu0
      %v494 = vadd.f32 0.0, %v493
      %v495 = vpop.f32.mrb[0].mxu0
      %496 = vmatprep.mubr.f32.mxu0 0.0
      %497 = vmatmul.mubr.f32.gmra.mrb[0].mxu0 %v333
      %v498 = vpop.f32.mrb[0].mxu0
      %v499 = vadd.f32 0.0, %v498
      %v500 = vpop.f32.mrb[0].mxu0
      %501 = vmatprep.mubr.f32.mxu0 0.0
      %502 = vmatmul.mubr.f32.gmra.mrb[0].mxu0 %v336
      %v503 = vpop.f32.mrb[0].mxu0
      %v504 = vadd.f32 0.0, %v503
      %v505 = vpop.f32.mrb[0].mxu0
      %506 = vmatprep.mubr.f32.mxu0 0.0
      %507 = vmatmul.mubr.f32.gmra.mrb[0].mxu0 %v339
      %v508 = vpop.f32.mrb[0].mxu0
      %v509 = vadd.f32 0.0, %v508
      %v510 = vpop.f32.mrb[0].mxu0
      %511 = vmatprep.mubr.f32.mxu0 0.0
      %512 = vmatmul.mubr.f32.gmra.mrb[0].mxu0 %v342
      %v513 = vpop.f32.mrb[0].mxu0
      %v514 = vadd.f32 0.0, %v513
      %v515 = vpop.f32.mrb[0].mxu0
      %516 = vmatprep.mubr.f32.mxu0 0.0
      %517 = vmatmul.mubr.f32.gmra.mrb[0].mxu0 %v345
      %v518 = vpop.f32.mrb[0].mxu0
      %v519 = vadd.f32 0.0, %v518
      %v520 = vpop.f32.mrb[0].mxu0
      %521 = vmatprep.mubr.f32.mxu0 0.0
      %522 = vmatmul.mubr.f32.gmra.mrb[0].mxu0 %v348
      %v523 = vpop.f32.mrb[0].mxu0
      %v524 = vadd.f32 0.0, %v523
      %v525 = vpop.f32.mrb[0].mxu0
      %526 = vmatprep.mubr.f32.mxu0 0.0
      %527 = vmatmul.mubr.f32.gmra.mrb[0].mxu0 %v351
      %v528 = vpop.f32.mrb[0].mxu0
      %v529 = vadd.f32 0.0, %v528
      %v530 = vpop.f32.mrb[0].mxu0
      %531 = vmatprep.mubr.f32.mxu0 0.0
      %532 = vmatmul.mubr.f32.gmra.mrb[0].mxu0 %v354
      %v533 = vpop.f32.mrb[0].mxu0
      %v534 = vadd.f32 0.0, %v533
      %v535 = vpop.f32.mrb[0].mxu0
      %536 = vmatprep.mubr.f32.mxu0 0.0
      %537 = vmatmul.mubr.f32.gmra.mrb[0].mxu0 %v357
      %v538 = vpop.f32.mrb[0].mxu0
      %v539 = vadd.f32 0.0, %v538
      %v540 = vpop.f32.mrb[0].mxu0
      %541 = vmatprep.mubr.f32.mxu0 0.0
      %542 = vmatmul.mubr.f32.gmra.mrb[0].mxu0 %v360
      %v543 = vpop.f32.mrb[0].mxu0
      %v544 = vadd.f32 0.0, %v543
      %v545 = vpop.f32.mrb[0].mxu0
      %546 = vmatprep.mubr.f32.mxu0 0.0
      %547 = vmatmul.mubr.f32.gmra.mrb[0].mxu0 %v363
      %v548 = vpop.f32.mrb[0].mxu0
      %v549 = vadd.f32 0.0, %v548
      %v550 = vpop.f32.mrb[0].mxu0
      %551 = vmatprep.mubr.f32.mxu0 0.0
      %552 = vmatmul.mubr.f32.gmra.mrb[0].mxu0 %v366
      %v553 = vpop.f32.mrb[0].mxu0
      %v554 = vadd.f32 0.0, %v553
      %v555 = vpop.f32.mrb[0].mxu0
      %556 = vmatprep.mubr.f32.mxu0 0.0
      %557 = vmatmul.mubr.f32.gmra.mrb[0].mxu0 %v369
      %v558 = vpop.f32.mrb[0].mxu0
      %v559 = vadd.f32 0.0, %v558
      %v560 = vpop.f32.mrb[0].mxu0
      %561 = vmatprep.mubr.f32.mxu0 0.0
      %562 = vmatmul.mubr.f32.gmra.mrb[0].mxu0 %v372
      %v563 = vpop.f32.mrb[0].mxu0
      %v564 = vadd.f32 0.0, %v563
      %v565 = vpop.f32.mrb[0].mxu0
      %566 = vmatprep.mubr.f32.mxu0 0.0
      %567 = vmatmul.mubr.f32.gmra.mrb[0].mxu0 %v375
      %v568 = vpop.f32.mrb[0].mxu0
      %v569 = vadd.f32 0.0, %v568
      %v570 = vpop.f32.mrb[0].mxu0
      %571 = vmatprep.mubr.f32.mxu0 0.0
      %572 = vmatmul.mubr.f32.gmra.mrb[0].mxu0 %v378
      %v573 = vpop.f32.mrb[0].mxu0
      %v574 = vadd.f32 0.0, %v573
      %v575 = vpop.f32.mrb[0].mxu0
      %576 = vmatprep.mubr.f32.mxu0 0.0
      %577 = vmatmul.mubr.f32.gmra.mrb[0].mxu0 %v381
      %v578 = vpop.f32.mrb[0].mxu0
      %v579 = vadd.f32 0.0, %v578
      %v580 = vpop.f32.mrb[0].mxu0
      %581 = vmatprep.mubr.f32.mxu0 0.0
      %582 = vmatmul.mubr.f32.gmra.mrb[0].mxu0 %v384
      %v583 = vpop.f32.mrb[0].mxu0
      %v584 = vadd.f32 0.0, %v583
      %v585 = vpop.f32.mrb[0].mxu0
      %586 = vmatprep.mubr.f32.mxu0 0.0
      %587 = vmatmul.mubr.f32.gmra.mrb[0].mxu0 %v387
      %v588 = vpop.f32.mrb[0].mxu0
      %v589 = vadd.f32 0.0, %v588
      %v590 = vpop.f32.mrb[0].mxu0
      %591 = vmatprep.mubr.f32.mxu0 0.0
      %592 = vmatmul.mubr.f32.gmra.mrb[0].mxu0 %v390
      %v593 = vpop.f32.mrb[0].mxu0
      %v594 = vadd.f32 0.0, %v593
      %v595 = vpop.f32.mrb[0].mxu0
      %596 = vmatprep.mubr.f32.mxu0 0.0
      %597 = vmatmul.mubr.f32.gmra.mrb[0].mxu0 %v393
      %v598 = vpop.f32.mrb[0].mxu0
      %v599 = vadd.f32 0.0, %v598
      %v600 = vpop.f32.mrb[0].mxu0
      %601 = vmatprep.mubr.f32.mxu0 0.0
      %602 = vmatmul.mubr.f32.gmra.mrb[0].mxu0 %v396
      %v603 = vpop.f32.mrb[0].mxu0
      %v604 = vadd.f32 0.0, %v603
      %v605 = vpop.f32.mrb[0].mxu0
      %606 = vmatprep.mubr.f32.mxu0 0.0
      %607 = vmatmul.mubr.f32.gmra.mrb[0].mxu0 %v399
      %v608 = vpop.f32.mrb[0].mxu0
      %v609 = vadd.f32 0.0, %v608
      %v610 = vpop.f32.mrb[0].mxu0
      %611 = vmatprep.mubr.f32.mxu0 0.0
      %612 = vmatmul.mubr.f32.gmra.mrb[0].mxu0 %v402
      %v613 = vpop.f32.mrb[0].mxu0
      %v614 = vadd.f32 0.0, %v613
      %v615 = vpop.f32.mrb[0].mxu0
      %616 = vmatprep.mubr.f32.mxu0 0.0
      %617 = vmatmul.mubr.f32.gmra.mrb[0].mxu0 %v405
      %v618 = vpop.f32.mrb[0].mxu0
      %v619 = vadd.f32 0.0, %v618
      %v620 = vpop.f32.mrb[0].mxu0
      %621 = vmatprep.mubr.f32.mxu0 0.0
      %622 = vmatmul.mubr.f32.gmra.mrb[0].mxu0 %v408
      %v623 = vpop.f32.mrb[0].mxu0
      %v624 = vadd.f32 0.0, %v623
      %v625 = vpop.f32.mrb[0].mxu0
      %626 = vmatprep.mubr.f32.mxu0 0.0
      %627 = vmatmul.mubr.f32.gmra.mrb[0].mxu0 %v411
      %v628 = vpop.f32.mrb[0].mxu0
      %v629 = vadd.f32 0.0, %v628
      %v630 = vpop.f32.mrb[0].mxu0
      %631 = vmatprep.mubr.f32.mxu0 0.0
      %632 = vmatmul.mubr.f32.gmra.mrb[0].mxu0 %v414
      %v633 = vpop.f32.mrb[0].mxu0
      %v634 = vadd.f32 0.0, %v633
      %v635 = vpop.f32.mrb[0].mxu0
      %636 = vmatprep.mubr.f32.mxu0 0.0
      %637 = vmatmul.mubr.f32.gmra.mrb[0].mxu0 %v417
      %v638 = vpop.f32.mrb[0].mxu0
      %v639 = vadd.f32 0.0, %v638
      %v640 = vpop.f32.mrb[0].mxu0
      %641 = vmatprep.mubr.f32.mxu0 0.0
      %642 = vmatmul.mubr.f32.gmra.mrb[0].mxu0 %v420
      %v643 = vpop.f32.mrb[0].mxu0
      %v644 = vadd.f32 0.0, %v643
      %v645 = vpop.f32.mrb[0].mxu0
      %646 = vdwg.mxu0
      %v647 = vadd.f32 %v255, %v489
      %v648 = vadd.f32 %v256, %v494
      %v649 = vadd.f32 %v257, %v499
      %v650 = vadd.f32 %v258, %v504
      %v651 = vadd.f32 %v259, %v509
      %v652 = vadd.f32 %v260, %v514
      %v653 = vadd.f32 %v261, %v519
      %v654 = vadd.f32 %v262, %v524
      %v655 = vadd.f32 %v263, %v529
      %v656 = vadd.f32 %v264, %v534
      %v657 = vadd.f32 %v265, %v539
      %v658 = vadd.f32 %v266, %v544
      %v659 = vadd.f32 %v267, %v549
      %v660 = vadd.f32 %v268, %v554
      %v661 = vadd.f32 %v269, %v559
      %v662 = vadd.f32 %v270, %v564
      %v663 = vadd.f32 %v271, %v569
      %v664 = vadd.f32 %v272, %v574
      %v665 = vadd.f32 %v273, %v579
      %v666 = vadd.f32 %v274, %v584
      %v667 = vadd.f32 %v275, %v589
      %v668 = vadd.f32 %v276, %v594
      %v669 = vadd.f32 %v277, %v599
      %v670 = vadd.f32 %v278, %v604
      %v671 = vadd.f32 %v279, %v609
      %v672 = vadd.f32 %v280, %v614
      %v673 = vadd.f32 %v281, %v619
      %v674 = vadd.f32 %v282, %v624
      %v675 = vadd.f32 %v283, %v629
      %v676 = vadd.f32 %v284, %v634
      %v677 = vadd.f32 %v285, %v639
      %v678 = vadd.f32 %v286, %v644
      %679 = vst.msk [vmem:[#allocation2] sm:$0xff] %vm325, %v647
      %680 = vst.msk [vmem:[#allocation2 + $0x8] sm:$0xff] %vm325, %v648
      %681 = vst.msk [vmem:[#allocation2 + $0x10] sm:$0xff] %vm325, %v649
      %682 = vst.msk [vmem:[#allocation2 + $0x18] sm:$0xff] %vm325, %v650
      %683 = vst.msk [vmem:[#allocation2 + $0x20] sm:$0xff] %vm325, %v651
      %684 = vst.msk [vmem:[#allocation2 + $0x28] sm:$0xff] %vm325, %v652
      %685 = vst.msk [vmem:[#allocation2 + $0x30] sm:$0xff] %vm325, %v653
      %686 = vst.msk [vmem:[#allocation2 + $0x38] sm:$0xff] %vm325, %v654
      %687 = vst.msk [vmem:[#allocation2 + $0x40] sm:$0xff] %vm325, %v655
      %688 = vst.msk [vmem:[#allocation2 + $0x48] sm:$0xff] %vm325, %v656
      %689 = vst.msk [vmem:[#allocation2 + $0x50] sm:$0xff] %vm325, %v657
      %690 = vst.msk [vmem:[#allocation2 + $0x58] sm:$0xff] %vm325, %v658
      %691 = vst.msk [vmem:[#allocation2 + $0x60] sm:$0xff] %vm325, %v659
      %692 = vst.msk [vmem:[#allocation2 + $0x68] sm:$0xff] %vm325, %v660
      %693 = vst.msk [vmem:[#allocation2 + $0x70] sm:$0xff] %vm325, %v661
      %694 = vst.msk [vmem:[#allocation2 + $0x78] sm:$0xff] %vm325, %v662
      %695 = vst.msk [vmem:[#allocation2 + $0x80] sm:$0xff] %vm325, %v663
      %696 = vst.msk [vmem:[#allocation2 + $0x88] sm:$0xff] %vm325, %v664
      %697 = vst.msk [vmem:[#allocation2 + $0x90] sm:$0xff] %vm325, %v665
      %698 = vst.msk [vmem:[#allocation2 + $0x98] sm:$0xff] %vm325, %v666
      %699 = vst.msk [vmem:[#allocation2 + $0xa0] sm:$0xff] %vm325, %v667
      %700 = vst.msk [vmem:[#allocation2 + $0xa8] sm:$0xff] %vm325, %v668
      %701 = vst.msk [vmem:[#allocation2 + $0xb0] sm:$0xff] %vm325, %v669
      %702 = vst.msk [vmem:[#allocation2 + $0xb8] sm:$0xff] %vm325, %v670
      %703 = vst.msk [vmem:[#allocation2 + $0xc0] sm:$0xff] %vm325, %v671
      %704 = vst.msk [vmem:[#allocation2 + $0xc8] sm:$0xff] %vm325, %v672
      %705 = vst.msk [vmem:[#allocation2 + $0xd0] sm:$0xff] %vm325, %v673
      %706 = vst.msk [vmem:[#allocation2 + $0xd8] sm:$0xff] %vm325, %v674
      %707 = vst.msk [vmem:[#allocation2 + $0xe0] sm:$0xff] %vm325, %v675
      %708 = vst.msk [vmem:[#allocation2 + $0xe8] sm:$0xff] %vm325, %v676
      %709 = vst.msk [vmem:[#allocation2 + $0xf0] sm:$0xff] %vm325, %v677
      %710 = vst.msk [vmem:[#allocation2 + $0xf8] sm:$0xff] %vm325, %v678
      // Predicated region
      $region33: #{flexible_lite_mla_forward.7} parent=27 // pred_check
        %p711 = pneg %p218
      $region34: #{flexible_lite_mla_forward.7} parent=27 // pred_check_branch
        %713 = sbr.rel (%p711) target = $region36
      $region35: #{flexible_lite_mla_forward.7} parent=27 // pred_region
        %v714 = vld [vmem:[#allocation2] sm:$0xff]
        %v715 = vld [vmem:[#allocation2 + $0x8] sm:$0xff]
        %v716 = vld [vmem:[#allocation2 + $0x10] sm:$0xff]
        %v717 = vld [vmem:[#allocation2 + $0x18] sm:$0xff]
        %v718 = vld [vmem:[#allocation2 + $0x20] sm:$0xff]
        %v719 = vld [vmem:[#allocation2 + $0x28] sm:$0xff]
        %v720 = vld [vmem:[#allocation2 + $0x30] sm:$0xff]
        %v721 = vld [vmem:[#allocation2 + $0x38] sm:$0xff]
        %v722 = vld [vmem:[#allocation2 + $0x40] sm:$0xff]
        %v723 = vld [vmem:[#allocation2 + $0x48] sm:$0xff]
        %v724 = vld [vmem:[#allocation2 + $0x50] sm:$0xff]
        %v725 = vld [vmem:[#allocation2 + $0x58] sm:$0xff]
        %v726 = vld [vmem:[#allocation2 + $0x60] sm:$0xff]
        %v727 = vld [vmem:[#allocation2 + $0x68] sm:$0xff]
        %v728 = vld [vmem:[#allocation2 + $0x70] sm:$0xff]
        %v729 = vld [vmem:[#allocation2 + $0x78] sm:$0xff]
        %v730 = vld [vmem:[#allocation2 + $0x80] sm:$0xff]
        %v731 = vld [vmem:[#allocation2 + $0x88] sm:$0xff]
        %v732 = vld [vmem:[#allocation2 + $0x90] sm:$0xff]
        %v733 = vld [vmem:[#allocation2 + $0x98] sm:$0xff]
        %v734 = vld [vmem:[#allocation2 + $0xa0] sm:$0xff]
        %v735 = vld [vmem:[#allocation2 + $0xa8] sm:$0xff]
        %v736 = vld [vmem:[#allocation2 + $0xb0] sm:$0xff]
        %v737 = vld [vmem:[#allocation2 + $0xb8] sm:$0xff]
        %v738 = vld [vmem:[#allocation2 + $0xc0] sm:$0xff]
        %v739 = vld [vmem:[#allocation2 + $0xc8] sm:$0xff]
        %v740 = vld [vmem:[#allocation2 + $0xd0] sm:$0xff]
        %v741 = vld [vmem:[#allocation2 + $0xd8] sm:$0xff]
        %v742 = vld [vmem:[#allocation2 + $0xe0] sm:$0xff]
        %v743 = vld [vmem:[#allocation2 + $0xe8] sm:$0xff]
        %v744 = vld [vmem:[#allocation2 + $0xf0] sm:$0xff]
        %v745 = vld [vmem:[#allocation2 + $0xf8] sm:$0xff]
        %746 = vst.msk [vmem:[%s216] sm:$0xff] %vm325, %v714
        %747 = vst.msk [vmem:[%s216 + $0x8] sm:$0xff] %vm325, %v715
        %748 = vst.msk [vmem:[%s216 + $0x10] sm:$0xff] %vm325, %v716
        %749 = vst.msk [vmem:[%s216 + $0x18] sm:$0xff] %vm325, %v717
        %750 = vst.msk [vmem:[%s216 + $0x20] sm:$0xff] %vm325, %v718
        %751 = vst.msk [vmem:[%s216 + $0x28] sm:$0xff] %vm325, %v719
        %752 = vst.msk [vmem:[%s216 + $0x30] sm:$0xff] %vm325, %v720
        %753 = vst.msk [vmem:[%s216 + $0x38] sm:$0xff] %vm325, %v721
        %754 = vst.msk [vmem:[%s216 + $0x40] sm:$0xff] %vm325, %v722
        %755 = vst.msk [vmem:[%s216 + $0x48] sm:$0xff] %vm325, %v723
        %756 = vst.msk [vmem:[%s216 + $0x50] sm:$0xff] %vm325, %v724
        %757 = vst.msk [vmem:[%s216 + $0x58] sm:$0xff] %vm325, %v725
        %758 = vst.msk [vmem:[%s216 + $0x60] sm:$0xff] %vm325, %v726
        %759 = vst.msk [vmem:[%s216 + $0x68] sm:$0xff] %vm325, %v727
        %760 = vst.msk [vmem:[%s216 + $0x70] sm:$0xff] %vm325, %v728
        %761 = vst.msk [vmem:[%s216 + $0x78] sm:$0xff] %vm325, %v729
        %762 = vst.msk [vmem:[%s216 + $0x80] sm:$0xff] %vm325, %v730
        %763 = vst.msk [vmem:[%s216 + $0x88] sm:$0xff] %vm325, %v731
        %764 = vst.msk [vmem:[%s216 + $0x90] sm:$0xff] %vm325, %v732
        %765 = vst.msk [vmem:[%s216 + $0x98] sm:$0xff] %vm325, %v733
        %766 = vst.msk [vmem:[%s216 + $0xa0] sm:$0xff] %vm325, %v734
        %767 = vst.msk [vmem:[%s216 + $0xa8] sm:$0xff] %vm325, %v735
        %768 = vst.msk [vmem:[%s216 + $0xb0] sm:$0xff] %vm325, %v736
        %769 = vst.msk [vmem:[%s216 + $0xb8] sm:$0xff] %vm325, %v737
        %770 = vst.msk [vmem:[%s216 + $0xc0] sm:$0xff] %vm325, %v738
        %771 = vst.msk [vmem:[%s216 + $0xc8] sm:$0xff] %vm325, %v739
        %772 = vst.msk [vmem:[%s216 + $0xd0] sm:$0xff] %vm325, %v740
        %773 = vst.msk [vmem:[%s216 + $0xd8] sm:$0xff] %vm325, %v741
        %774 = vst.msk [vmem:[%s216 + $0xe0] sm:$0xff] %vm325, %v742
        %775 = vst.msk [vmem:[%s216 + $0xe8] sm:$0xff] %vm325, %v743
        %776 = vst.msk [vmem:[%s216 + $0xf0] sm:$0xff] %vm325, %v744
        %777 = vst.msk [vmem:[%s216 + $0xf8] sm:$0xff] %vm325, %v745
      $region36: #{flexible_lite_mla_forward.7} parent=27 // pred_fallthru
        _
      %s778 = smul.u32 32, %s18
      %p779 = scmp.lt.s32.totalorder %s778, 63
      %s780 = scalar_select %p779, %s778, 63
      %p781 = scmp.lt.s32.totalorder %s19, 0
      %s782 = scalar_select %p781, %s19, 0
      %s783 = sadd.s32 %s782, %s780
      %s784 = smul.addr %s783, 8
      %s785 = scalar_lea.vmem %s2, %s784
      // Predicated region
      $region37: #{flexible_lite_mla_forward.7} parent=27 // pred_check
        %p786 = pneg %p108
      $region38: #{flexible_lite_mla_forward.7} parent=27 // pred_check_branch
        %788 = sbr.rel (%p786) target = $region40
      $region39: #{flexible_lite_mla_forward.7} parent=27 // pred_region
        %s789 = smul.u32 32, %s18
      $region40: #{flexible_lite_mla_forward.7} parent=27 // pred_fallthru
        _
    $region28: #{flexible_lite_mla_forward.7} parent=5 // pred_fallthru
      _
    %p790 = scmp.le.s32.totalorder 2, %s8
    // Predicated region
    $region41: #{flexible_lite_mla_forward.7} parent=5 // pred_check
      %p791 = pneg %p790
    $region42: #{flexible_lite_mla_forward.7} parent=5 // pred_check_branch
      %793 = sbr.rel (%p791) target = $region44
    $region43: #{flexible_lite_mla_forward.7} parent=5 // pred_region
      %s794 = ssub.s32 %s8, 2
      // Predicated region
      $region45: #{flexible_lite_mla_forward.7} parent=43 // pred_check
        %p795 = pneg %p114
      $region46: #{flexible_lite_mla_forward.7} parent=43 // pred_check_branch
        %797 = sbr.rel (%p795) target = $region48
      $region47: #{flexible_lite_mla_forward.7} parent=43 // pred_region
        %s798 = smul.u32 32, %s21
        %p799 = scmp.lt.s32.totalorder %s798, 63
        %s800 = scalar_select %p799, %s798, 63
        %p801 = scmp.lt.s32.totalorder %s22, 0
        %s802 = scalar_select %p801, %s22, 0
        %s803 = sadd.s32 %s802, %s800
        %s804 = smul.addr %s803, 8
        %s805 = scalar_lea.vmem %s2, %s804
      $region48: #{flexible_lite_mla_forward.7} parent=43 // pred_fallthru
        _
    $region44: #{flexible_lite_mla_forward.7} parent=5 // pred_fallthru
      _
  $region6: #{flexible_lite_mla_forward.7} parent=0 // loop_footer
    %s12 = sadd.s32 1, %s8
  $region7: #{flexible_lite_mla_forward.7} parent=0 // loop_footer_branch
    %7 = sbr.rel target = $region3
  $region8: #{flexible_lite_mla_forward.7} parent=0 // loop_exit
    _

// kernel: flexible_lite_mla_forward.5
$region0: #{flexible_lite_mla_forward.5}
  #allocation0 [shape = 'u32[]', space=smem, size = 0x4, offset = 0x4, fixed_abs, tag = 'smem constant byte address 0x4 - core index']
  #allocation1 [shape = 'u32[144,128]{1,0:T(1,128)}', space=vmem, size = 0x12000, scoped, tag = 'internal scratch']
  #allocation2 [shape = 'f32[256,48]{1,0:T(8,128)}', space=vmem, size = 0x20000, scoped, tag = 'scratch operand']
  %s0 = inlined_call_operand.vmem [shape: f32[512,16], index: 0, kind: input, shape index: {}]
  %s1 = inlined_call_operand.vmem [shape: f32[16,48], index: 1, kind: input, shape index: {}]
  %s2 = inlined_call_operand.vmem [shape: f32[512,48], index: 2, kind: output, shape index: {}]
  %s3 = sld [smem:[#allocation0]]
  $region49: #{flexible_lite_mla_forward.5} parent=0
    _
  %s5 = ssub.s32 1, %s3
  %s6 = scalar_select 0, %s5, %s3
  loop: start=0, step=1, limit=4
  $region2: #{flexible_lite_mla_forward.5} parent=0 // loop_pre_header
    _
  $region3: #{flexible_lite_mla_forward.5} parent=0 // loop_header
    %s8 = sphi 0, %s12
    %p9 = scmp.ge.s32.totalorder %s8, 4
    %s15 = sphi 0, %s34
    %s16 = sphi 0, %s30
    %s17 = sphi 0, %s26
    %s18 = sphi 0, %s15
    %s19 = sphi 0, %s16
    %s20 = sphi 0, %s17
    %s21 = sphi 0, %s18
    %s22 = sphi 0, %s19
    %s23 = sphi 0, %s20
    %s39 = sphi 0, %s41
    %s42 = sphi 0, %s39
    %s43 = sphi 0, %s42
    %s59 = sphi 0, %s43
    %s67 = sphi 0, %s69
    %s70 = sphi 0, %s67
    %s71 = sphi 0, %s70
    %s87 = sphi 0, %s71
    %s95 = sphi 0, %s97
    %s98 = sphi 0, %s95
    %s99 = sphi 0, %s98
    %s115 = sphi 0, %s99
  $region4: #{flexible_lite_mla_forward.5} parent=0 // loop_header_branch
    %11 = sbr.rel (%p9) target = $region8
  $region5: #{flexible_lite_mla_forward.5} parent=0 // loop_body
    %s13 = ssub.s32 %s8, 1
    %s14 = ssub.s32 %s8, 2
    %s24 = sadd.s32 1, %s17
    %p25 = scmp.ge.s32.totalorder %s24, 1
    %s26 = scalar_select %p25, 0, %s24
    %s27 = sadd.s32 1, %s16
    %s28 = scalar_select %p25, %s27, %s16
    %p29 = scmp.ge.s32.totalorder %s28, 1
    %s30 = scalar_select %p29, 0, %s28
    %s31 = sadd.s32 1, %s15
    %s32 = scalar_select %p29, %s31, %s15
    %p33 = scmp.ge.s32.totalorder %s32, 2
    %s34 = scalar_select %p33, 0, %s32
    %s35 = ssub.s32 %s15, %s34
    %s36 = ssub.s32 %s17, %s26
    %s37 = sor.u32 %s35, %s36
    %p38 = scmp.eq.s32.totalorder %s37, 0
    %s40 = sadd.s32 %s39, 1
    %s41 = scalar_select %p38, %s39, %s40
    %p44 = pneg %p38
    %p45 = scmp.eq.s32.totalorder %s8, 1
    %p46 = por %p44, %p45
    %p47 = scmp.ne.s32.totalorder %s39, %s42
    %p48 = scmp.eq.s32.totalorder %s8, 0
    %p49 = por %p47, %p48
    %p50 = scmp.ne.s32.totalorder %s39, %s42
    %p51 = scmp.eq.s32.totalorder %s13, 1
    %p52 = por %p50, %p51
    %p53 = scmp.ne.s32.totalorder %s42, %s43
    %p54 = scmp.eq.s32.totalorder %s13, 0
    %p55 = por %p53, %p54
    %p56 = scmp.ne.s32.totalorder %s42, %s43
    %p57 = scmp.eq.s32.totalorder %s14, 1
    %p58 = por %p56, %p57
    %p60 = scmp.ne.s32.totalorder %s43, %s59
    %p61 = scmp.eq.s32.totalorder %s14, 0
    %p62 = por %p60, %p61
    %s63 = ssub.s32 %s17, %s26
    %s64 = ssub.s32 %s16, %s30
    %s65 = sor.u32 %s63, %s64
    %p66 = scmp.eq.s32.totalorder %s65, 0
    %s68 = sadd.s32 %s67, 1
    %s69 = scalar_select %p66, %s67, %s68
    %p72 = pneg %p66
    %p73 = scmp.eq.s32.totalorder %s8, 1
    %p74 = por %p72, %p73
    %p75 = scmp.ne.s32.totalorder %s67, %s70
    %p76 = scmp.eq.s32.totalorder %s8, 0
    %p77 = por %p75, %p76
    %p78 = scmp.ne.s32.totalorder %s67, %s70
    %p79 = scmp.eq.s32.totalorder %s13, 1
    %p80 = por %p78, %p79
    %p81 = scmp.ne.s32.totalorder %s70, %s71
    %p82 = scmp.eq.s32.totalorder %s13, 0
    %p83 = por %p81, %p82
    %p84 = scmp.ne.s32.totalorder %s70, %s71
    %p85 = scmp.eq.s32.totalorder %s14, 1
    %p86 = por %p84, %p85
    %p88 = scmp.ne.s32.totalorder %s71, %s87
    %p89 = scmp.eq.s32.totalorder %s14, 0
    %p90 = por %p88, %p89
    %s91 = ssub.s32 %s15, %s34
    %s92 = ssub.s32 %s16, %s30
    %s93 = sor.u32 %s91, %s92
    %p94 = scmp.eq.s32.totalorder %s93, 0
    %s96 = sadd.s32 %s95, 1
    %s97 = scalar_select %p94, %s95, %s96
    %p100 = pneg %p94
    %p101 = scmp.eq.s32.totalorder %s8, 1
    %p102 = por %p100, %p101
    %p103 = scmp.ne.s32.totalorder %s95, %s98
    %p104 = scmp.eq.s32.totalorder %s8, 0
    %p105 = por %p103, %p104
    %p106 = scmp.ne.s32.totalorder %s95, %s98
    %p107 = scmp.eq.s32.totalorder %s13, 1
    %p108 = por %p106, %p107
    %p109 = scmp.ne.s32.totalorder %s98, %s99
    %p110 = scmp.eq.s32.totalorder %s13, 0
    %p111 = por %p109, %p110
    %p112 = scmp.ne.s32.totalorder %s98, %s99
    %p113 = scmp.eq.s32.totalorder %s14, 1
    %p114 = por %p112, %p113
    %p116 = scmp.ne.s32.totalorder %s99, %s115
    %p117 = scmp.eq.s32.totalorder %s14, 0
    %p118 = por %p116, %p117
    %p119 = scmp.le.s32.totalorder 1, %s8
    %p120 = scmp.lt.s32.totalorder %s8, 3
    %p121 = pnand %p119, %p120
    %p122 = pneg %p121
    // Predicated region
    $region9: #{flexible_lite_mla_forward.5} parent=5 // pred_check
      _
    $region10: #{flexible_lite_mla_forward.5} parent=5 // pred_check_branch
      %124 = sbr.rel (%p121) target = $region12
    $region11: #{flexible_lite_mla_forward.5} parent=5 // pred_region
      %s125 = ssub.s32 %s8, 1
      // Predicated region
      $region13: #{flexible_lite_mla_forward.5} parent=11 // pred_check
        %p126 = pneg %p83
      $region14: #{flexible_lite_mla_forward.5} parent=11 // pred_check_branch
        %128 = sbr.rel (%p126) target = $region16
      $region15: #{flexible_lite_mla_forward.5} parent=11 // pred_region
        %s129 = smul.u32 2, %s20
        %p130 = scmp.lt.s32.totalorder %s129, 1
        %s131 = scalar_select %p130, %s129, 1
        %p132 = scmp.lt.s32.totalorder %s19, 0
        %s133 = scalar_select %p132, %s19, 0
        %s134 = sadd.s32 %s133, %s131
        %s135 = smul.addr %s134, 8
        %s136 = scalar_lea.vmem %s1, %s135
        %s137 = smul.u32 2, %s20
      $region16: #{flexible_lite_mla_forward.5} parent=11 // pred_fallthru
        _
    $region12: #{flexible_lite_mla_forward.5} parent=5 // pred_fallthru
      _
    %p138 = scmp.lt.s32.totalorder %s8, 2
    // Predicated region
    $region17: #{flexible_lite_mla_forward.5} parent=5 // pred_check
      %p139 = pneg %p138
    $region18: #{flexible_lite_mla_forward.5} parent=5 // pred_check_branch
      %141 = sbr.rel (%p139) target = $region20
    $region19: #{flexible_lite_mla_forward.5} parent=5 // pred_region
      // Predicated region
      $region21: #{flexible_lite_mla_forward.5} parent=19 // pred_check
        %p142 = pneg %p49
      $region22: #{flexible_lite_mla_forward.5} parent=19 // pred_check_branch
        %144 = sbr.rel (%p142) target = $region24
      $region23: #{flexible_lite_mla_forward.5} parent=19 // pred_region
        %s145 = smul.u32 32, %s15
        %p146 = scmp.lt.s32.totalorder %s145, 63
        %s147 = scalar_select %p146, %s145, 63
        %p148 = scmp.lt.s32.totalorder %s17, 0
        %s149 = scalar_select %p148, %s17, 0
        %s150 = sadd.s32 %s149, %s147
        %s151 = smul.addr %s150, 8
        %s152 = scalar_lea.vmem %s0, %s151
        %s153 = smul.u32 32, %s15
      $region24: #{flexible_lite_mla_forward.5} parent=19 // pred_fallthru
        _
    $region20: #{flexible_lite_mla_forward.5} parent=5 // pred_fallthru
      _
    %p154 = scmp.le.s32.totalorder 1, %s8
    %p155 = scmp.lt.s32.totalorder %s8, 3
    %p156 = pnand %p154, %p155
    %p157 = pneg %p156
    // Predicated region
    $region25: #{flexible_lite_mla_forward.5} parent=5 // pred_check
      _
    $region26: #{flexible_lite_mla_forward.5} parent=5 // pred_check_branch
      %159 = sbr.rel (%p156) target = $region28
    $region27: #{flexible_lite_mla_forward.5} parent=5 // pred_region
      %s160 = ssub.s32 %s8, 1
      %s161 = smul.u32 32, %s18
      %p162 = scmp.lt.s32.totalorder %s161, 63
      %s163 = scalar_select %p162, %s161, 63
      %p164 = scmp.lt.s32.totalorder %s20, 0
      %s165 = scalar_select %p164, %s20, 0
      %s166 = sadd.s32 %s165, %s163
      %s167 = smul.addr %s166, 8
      %s168 = scalar_lea.vmem %s0, %s167
      %p169 = pneg %p55
      %p170 = pneg %p52
      %s171 = smul.u32 2, %s20
      %p172 = scmp.lt.s32.totalorder %s171, 1
      %s173 = scalar_select %p172, %s171, 1
      %p174 = scmp.lt.s32.totalorder %s19, 0
      %s175 = scalar_select %p174, %s19, 0
      %s176 = sadd.s32 %s175, %s173
      %s177 = smul.addr %s176, 8
      %s178 = scalar_lea.vmem %s1, %s177
      %p179 = pneg %p83
      %p180 = pneg %p80
      %p181 = pneg %p111
      %p182 = pneg %p108
      %s183 = smul.u32 32, %s18
      %p184 = scmp.lt.s32.totalorder %s183, 63
      %s185 = scalar_select %p184, %s183, 63
      %p186 = scmp.lt.s32.totalorder %s19, 0
      %s187 = scalar_select %p186, %s19, 0
      %s188 = sadd.s32 %s187, %s185
      %s189 = smul.addr %s188, 8
      %s190 = scalar_lea.vmem %s2, %s189
      %s191 = smul.u32 32, %s18
      %p192 = scmp.lt.s32.totalorder %s191, 63
      %s193 = scalar_select %p192, %s191, 63
      %p194 = scmp.lt.s32.totalorder %s20, 0
      %s195 = scalar_select %p194, %s20, 0
      %s196 = sadd.s32 %s195, %s193
      %s197 = smul.addr %s196, 8
      %s198 = scalar_lea.vmem %s0, %s197
      %s199 = smul.u32 32, %s18
      %s200 = smul.u32 2, %s20
      %p201 = scmp.lt.s32.totalorder %s200, 1
      %s202 = scalar_select %p201, %s200, 1
      %p203 = scmp.lt.s32.totalorder %s19, 0
      %s204 = scalar_select %p203, %s19, 0
      %s205 = sadd.s32 %s204, %s202
      %s206 = smul.addr %s205, 8
      %s207 = scalar_lea.vmem %s1, %s206
      %s208 = smul.u32 2, %s20
      %s209 = smul.u32 32, %s18
      %p210 = scmp.lt.s32.totalorder %s209, 63
      %s211 = scalar_select %p210, %s209, 63
      %p212 = scmp.lt.s32.totalorder %s19, 0
      %s213 = scalar_select %p212, %s19, 0
      %s214 = sadd.s32 %s213, %s211
      %s215 = smul.addr %s214, 8
      %s216 = scalar_lea.vmem %s2, %s215
      %s217 = smul.u32 32, %s18
      %p218 = scmp.eq.s32.totalorder %s20, 0
      // Predicated region
      $region29: #{flexible_lite_mla_forward.5} parent=27 // pred_check
        %p219 = pneg %p218
      $region30: #{flexible_lite_mla_forward.5} parent=27 // pred_check_branch
        %221 = sbr.rel (%p219) target = $region32
      $region31: #{flexible_lite_mla_forward.5} parent=27 // pred_region
        %vm222 = vcmask 392192
        %223 = vst.msk [vmem:[#allocation2] sm:$0xff] %vm222, 0.0
        %224 = vst.msk [vmem:[#allocation2 + $0x8] sm:$0xff] %vm222, 0.0
        %225 = vst.msk [vmem:[#allocation2 + $0x10] sm:$0xff] %vm222, 0.0
        %226 = vst.msk [vmem:[#allocation2 + $0x18] sm:$0xff] %vm222, 0.0
        %227 = vst.msk [vmem:[#allocation2 + $0x20] sm:$0xff] %vm222, 0.0
        %228 = vst.msk [vmem:[#allocation2 + $0x28] sm:$0xff] %vm222, 0.0
        %229 = vst.msk [vmem:[#allocation2 + $0x30] sm:$0xff] %vm222, 0.0
        %230 = vst.msk [vmem:[#allocation2 + $0x38] sm:$0xff] %vm222, 0.0
        %231 = vst.msk [vmem:[#allocation2 + $0x40] sm:$0xff] %vm222, 0.0
        %232 = vst.msk [vmem:[#allocation2 + $0x48] sm:$0xff] %vm222, 0.0
        %233 = vst.msk [vmem:[#allocation2 + $0x50] sm:$0xff] %vm222, 0.0
        %234 = vst.msk [vmem:[#allocation2 + $0x58] sm:$0xff] %vm222, 0.0
        %235 = vst.msk [vmem:[#allocation2 + $0x60] sm:$0xff] %vm222, 0.0
        %236 = vst.msk [vmem:[#allocation2 + $0x68] sm:$0xff] %vm222, 0.0
        %237 = vst.msk [vmem:[#allocation2 + $0x70] sm:$0xff] %vm222, 0.0
        %238 = vst.msk [vmem:[#allocation2 + $0x78] sm:$0xff] %vm222, 0.0
        %239 = vst.msk [vmem:[#allocation2 + $0x80] sm:$0xff] %vm222, 0.0
        %240 = vst.msk [vmem:[#allocation2 + $0x88] sm:$0xff] %vm222, 0.0
        %241 = vst.msk [vmem:[#allocation2 + $0x90] sm:$0xff] %vm222, 0.0
        %242 = vst.msk [vmem:[#allocation2 + $0x98] sm:$0xff] %vm222, 0.0
        %243 = vst.msk [vmem:[#allocation2 + $0xa0] sm:$0xff] %vm222, 0.0
        %244 = vst.msk [vmem:[#allocation2 + $0xa8] sm:$0xff] %vm222, 0.0
        %245 = vst.msk [vmem:[#allocation2 + $0xb0] sm:$0xff] %vm222, 0.0
        %246 = vst.msk [vmem:[#allocation2 + $0xb8] sm:$0xff] %vm222, 0.0
        %247 = vst.msk [vmem:[#allocation2 + $0xc0] sm:$0xff] %vm222, 0.0
        %248 = vst.msk [vmem:[#allocation2 + $0xc8] sm:$0xff] %vm222, 0.0
        %249 = vst.msk [vmem:[#allocation2 + $0xd0] sm:$0xff] %vm222, 0.0
        %250 = vst.msk [vmem:[#allocation2 + $0xd8] sm:$0xff] %vm222, 0.0
        %251 = vst.msk [vmem:[#allocation2 + $0xe0] sm:$0xff] %vm222, 0.0
        %252 = vst.msk [vmem:[#allocation2 + $0xe8] sm:$0xff] %vm222, 0.0
        %253 = vst.msk [vmem:[#allocation2 + $0xf0] sm:$0xff] %vm222, 0.0
        %254 = vst.msk [vmem:[#allocation2 + $0xf8] sm:$0xff] %vm222, 0.0
      $region32: #{flexible_lite_mla_forward.5} parent=27 // pred_fallthru
        _
      %v255 = vld [vmem:[#allocation2] sm:$0xff]
      %v256 = vld [vmem:[#allocation2 + $0x8] sm:$0xff]
      %v257 = vld [vmem:[#allocation2 + $0x10] sm:$0xff]
      %v258 = vld [vmem:[#allocation2 + $0x18] sm:$0xff]
      %v259 = vld [vmem:[#allocation2 + $0x20] sm:$0xff]
      %v260 = vld [vmem:[#allocation2 + $0x28] sm:$0xff]
      %v261 = vld [vmem:[#allocation2 + $0x30] sm:$0xff]
      %v262 = vld [vmem:[#allocation2 + $0x38] sm:$0xff]
      %v263 = vld [vmem:[#allocation2 + $0x40] sm:$0xff]
      %v264 = vld [vmem:[#allocation2 + $0x48] sm:$0xff]
      %v265 = vld [vmem:[#allocation2 + $0x50] sm:$0xff]
      %v266 = vld [vmem:[#allocation2 + $0x58] sm:$0xff]
      %v267 = vld [vmem:[#allocation2 + $0x60] sm:$0xff]
      %v268 = vld [vmem:[#allocation2 + $0x68] sm:$0xff]
      %v269 = vld [vmem:[#allocation2 + $0x70] sm:$0xff]
      %v270 = vld [vmem:[#allocation2 + $0x78] sm:$0xff]
      %v271 = vld [vmem:[#allocation2 + $0x80] sm:$0xff]
      %v272 = vld [vmem:[#allocation2 + $0x88] sm:$0xff]
      %v273 = vld [vmem:[#allocation2 + $0x90] sm:$0xff]
      %v274 = vld [vmem:[#allocation2 + $0x98] sm:$0xff]
      %v275 = vld [vmem:[#allocation2 + $0xa0] sm:$0xff]
      %v276 = vld [vmem:[#allocation2 + $0xa8] sm:$0xff]
      %v277 = vld [vmem:[#allocation2 + $0xb0] sm:$0xff]
      %v278 = vld [vmem:[#allocation2 + $0xb8] sm:$0xff]
      %v279 = vld [vmem:[#allocation2 + $0xc0] sm:$0xff]
      %v280 = vld [vmem:[#allocation2 + $0xc8] sm:$0xff]
      %v281 = vld [vmem:[#allocation2 + $0xd0] sm:$0xff]
      %v282 = vld [vmem:[#allocation2 + $0xd8] sm:$0xff]
      %v283 = vld [vmem:[#allocation2 + $0xe0] sm:$0xff]
      %v284 = vld [vmem:[#allocation2 + $0xe8] sm:$0xff]
      %v285 = vld [vmem:[#allocation2 + $0xf0] sm:$0xff]
      %v286 = vld [vmem:[#allocation2 + $0xf8] sm:$0xff]
      %v287 = vld [vmem:[%s198] sm:$0xff]
      %v288 = vld [vmem:[%s198 + $0x8] sm:$0xff]
      %v289 = vld [vmem:[%s198 + $0x10] sm:$0xff]
      %v290 = vld [vmem:[%s198 + $0x18] sm:$0xff]
      %v291 = vld [vmem:[%s198 + $0x20] sm:$0xff]
      %v292 = vld [vmem:[%s198 + $0x28] sm:$0xff]
      %v293 = vld [vmem:[%s198 + $0x30] sm:$0xff]
      %v294 = vld [vmem:[%s198 + $0x38] sm:$0xff]
      %v295 = vld [vmem:[%s198 + $0x40] sm:$0xff]
      %v296 = vld [vmem:[%s198 + $0x48] sm:$0xff]
      %v297 = vld [vmem:[%s198 + $0x50] sm:$0xff]
      %v298 = vld [vmem:[%s198 + $0x58] sm:$0xff]
      %v299 = vld [vmem:[%s198 + $0x60] sm:$0xff]
      %v300 = vld [vmem:[%s198 + $0x68] sm:$0xff]
      %v301 = vld [vmem:[%s198 + $0x70] sm:$0xff]
      %v302 = vld [vmem:[%s198 + $0x78] sm:$0xff]
      %v303 = vld [vmem:[%s198 + $0x80] sm:$0xff]
      %v304 = vld [vmem:[%s198 + $0x88] sm:$0xff]
      %v305 = vld [vmem:[%s198 + $0x90] sm:$0xff]
      %v306 = vld [vmem:[%s198 + $0x98] sm:$0xff]
      %v307 = vld [vmem:[%s198 + $0xa0] sm:$0xff]
      %v308 = vld [vmem:[%s198 + $0xa8] sm:$0xff]
      %v309 = vld [vmem:[%s198 + $0xb0] sm:$0xff]
      %v310 = vld [vmem:[%s198 + $0xb8] sm:$0xff]
      %v311 = vld [vmem:[%s198 + $0xc0] sm:$0xff]
      %v312 = vld [vmem:[%s198 + $0xc8] sm:$0xff]
      %v313 = vld [vmem:[%s198 + $0xd0] sm:$0xff]
      %v314 = vld [vmem:[%s198 + $0xd8] sm:$0xff]
      %v315 = vld [vmem:[%s198 + $0xe0] sm:$0xff]
      %v316 = vld [vmem:[%s198 + $0xe8] sm:$0xff]
      %v317 = vld [vmem:[%s198 + $0xf0] sm:$0xff]
      %v318 = vld [vmem:[%s198 + $0xf8] sm:$0xff]
      %v319 = vld [vmem:[%s207] sm:$0xff]
      %v320 = vld [vmem:[%s207 + $0x8] sm:$0xff]
      %vm321 = vcmask 130048
      %v323 = vsel %vm321, %v287, 0
      %v326 = vsel %vm321, %v288, 0
      %v329 = vsel %vm321, %v289, 0
      %v332 = vsel %vm321, %v290, 0
      %v335 = vsel %vm321, %v291, 0
      %v338 = vsel %vm321, %v292, 0
      %v341 = vsel %vm321, %v293, 0
      %v344 = vsel %vm321, %v294, 0
      %v347 = vsel %vm321, %v295, 0
      %v350 = vsel %vm321, %v296, 0
      %v353 = vsel %vm321, %v297, 0
      %v356 = vsel %vm321, %v298, 0
      %v359 = vsel %vm321, %v299, 0
      %v362 = vsel %vm321, %v300, 0
      %v365 = vsel %vm321, %v301, 0
      %v368 = vsel %vm321, %v302, 0
      %v371 = vsel %vm321, %v303, 0
      %v374 = vsel %vm321, %v304, 0
      %v377 = vsel %vm321, %v305, 0
      %v380 = vsel %vm321, %v306, 0
      %v383 = vsel %vm321, %v307, 0
      %v386 = vsel %vm321, %v308, 0
      %v389 = vsel %vm321, %v309, 0
      %v392 = vsel %vm321, %v310, 0
      %v395 = vsel %vm321, %v311, 0
      %v398 = vsel %vm321, %v312, 0
      %v401 = vsel %vm321, %v313, 0
      %v404 = vsel %vm321, %v314, 0
      %v407 = vsel %vm321, %v315, 0
      %v410 = vsel %vm321, %v316, 0
      %v413 = vsel %vm321, %v317, 0
      %v416 = vsel %vm321, %v318, 0
      %418 = vmatprep.subr.mxu0 0.0
      %419 = vmatpush1.msra.mxu0 %v319
      %420 = vmatprep.subr.mxu0 0.0
      %421 = vmatpush1.msra.mxu0 %v320
      %422 = vmatprep.subr.mxu0 0.0
      %423 = vmatpush1.msra.mxu0 0.0
      %424 = vmatprep.subr.mxu0 0.0
      %425 = vmatpush1.msra.mxu0 0.0
      %426 = vmatprep.subr.mxu0 0.0
      %427 = vmatpush1.msra.mxu0 0.0
      %428 = vmatprep.subr.mxu0 0.0
      %429 = vmatpush1.msra.mxu0 0.0
      %430 = vmatprep.subr.mxu0 0.0
      %431 = vmatpush1.msra.mxu0 0.0
      %432 = vmatprep.subr.mxu0 0.0
      %433 = vmatpush1.msra.mxu0 0.0
      %434 = vmatprep.subr.mxu0 0.0
      %435 = vmatpush1.msra.mxu0 0.0
      %436 = vmatprep.subr.mxu0 0.0
      %437 = vmatpush1.msra.mxu0 0.0
      %438 = vmatprep.subr.mxu0 0.0
      %439 = vmatpush1.msra.mxu0 0.0
      %440 = vmatprep.subr.mxu0 0.0
      %441 = vmatpush1.msra.mxu0 0.0
      %442 = vmatprep.subr.mxu0 0.0
      %443 = vmatpush1.msra.mxu0 0.0
      %444 = vmatprep.subr.mxu0 0.0
      %445 = vmatpush1.msra.mxu0 0.0
      %446 = vmatprep.subr.mxu0 0.0
      %447 = vmatpush1.msra.mxu0 0.0
      %448 = vmatprep.subr.mxu0 0.0
      %449 = vmatpush1.msra.mxu0 0.0
      %450 = vmatprep.subr.mxu0 0.0
      %451 = vmatpush1.msra.mxu0 0.0
      %452 = vmatprep.subr.mxu0 0.0
      %453 = vmatpush1.msra.mxu0 0.0
      %454 = vmatprep.subr.mxu0 0.0
      %455 = vmatpush1.msra.mxu0 0.0
      %456 = vmatprep.subr.mxu0 0.0
      %457 = vmatpush1.msra.mxu0 0.0
      %458 = vmatprep.subr.mxu0 0.0
      %459 = vmatpush1.msra.mxu0 0.0
      %460 = vmatprep.subr.mxu0 0.0
      %461 = vmatpush1.msra.mxu0 0.0
      %462 = vmatprep.subr.mxu0 0.0
      %463 = vmatpush1.msra.mxu0 0.0
      %464 = vmatprep.subr.mxu0 0.0
      %465 = vmatpush1.msra.mxu0 0.0
      %466 = vmatprep.subr.mxu0 0.0
      %467 = vmatpush1.msra.mxu0 0.0
      %468 = vmatprep.subr.mxu0 0.0
      %469 = vmatpush1.msra.mxu0 0.0
      %470 = vmatprep.subr.mxu0 0.0
      %471 = vmatpush1.msra.mxu0 0.0
      %472 = vmatprep.subr.mxu0 0.0
      %473 = vmatpush1.msra.mxu0 0.0
      %474 = vmatprep.subr.mxu0 0.0
      %475 = vmatpush1.msra.mxu0 0.0
      %476 = vmatprep.subr.mxu0 0.0
      %477 = vmatpush1.msra.mxu0 0.0
      %478 = vmatprep.subr.mxu0 0.0
      %479 = vmatpush1.msra.mxu0 0.0
      %480 = vmatprep.subr.mxu0 0.0
      %481 = vmatpush1.msra.mxu0 0.0
      %482 = vmatprep.mubr.f32.mxu0 0.0
      %483 = vmatmul.mubr.f32.gmra.mrb[0].mxu0 %v323
      %v484 = vpop.f32.mrb[0].mxu0
      %v485 = vadd.f32 0.0, %v484
      %v486 = vpop.f32.mrb[0].mxu0
      %487 = vmatprep.mubr.f32.mxu0 0.0
      %488 = vmatmul.mubr.f32.gmra.mrb[0].mxu0 %v326
      %v489 = vpop.f32.mrb[0].mxu0
      %v490 = vadd.f32 0.0, %v489
      %v491 = vpop.f32.mrb[0].mxu0
      %492 = vmatprep.mubr.f32.mxu0 0.0
      %493 = vmatmul.mubr.f32.gmra.mrb[0].mxu0 %v329
      %v494 = vpop.f32.mrb[0].mxu0
      %v495 = vadd.f32 0.0, %v494
      %v496 = vpop.f32.mrb[0].mxu0
      %497 = vmatprep.mubr.f32.mxu0 0.0
      %498 = vmatmul.mubr.f32.gmra.mrb[0].mxu0 %v332
      %v499 = vpop.f32.mrb[0].mxu0
      %v500 = vadd.f32 0.0, %v499
      %v501 = vpop.f32.mrb[0].mxu0
      %502 = vmatprep.mubr.f32.mxu0 0.0
      %503 = vmatmul.mubr.f32.gmra.mrb[0].mxu0 %v335
      %v504 = vpop.f32.mrb[0].mxu0
      %v505 = vadd.f32 0.0, %v504
      %v506 = vpop.f32.mrb[0].mxu0
      %507 = vmatprep.mubr.f32.mxu0 0.0
      %508 = vmatmul.mubr.f32.gmra.mrb[0].mxu0 %v338
      %v509 = vpop.f32.mrb[0].mxu0
      %v510 = vadd.f32 0.0, %v509
      %v511 = vpop.f32.mrb[0].mxu0
      %512 = vmatprep.mubr.f32.mxu0 0.0
      %513 = vmatmul.mubr.f32.gmra.mrb[0].mxu0 %v341
      %v514 = vpop.f32.mrb[0].mxu0
      %v515 = vadd.f32 0.0, %v514
      %v516 = vpop.f32.mrb[0].mxu0
      %517 = vmatprep.mubr.f32.mxu0 0.0
      %518 = vmatmul.mubr.f32.gmra.mrb[0].mxu0 %v344
      %v519 = vpop.f32.mrb[0].mxu0
      %v520 = vadd.f32 0.0, %v519
      %v521 = vpop.f32.mrb[0].mxu0
      %522 = vmatprep.mubr.f32.mxu0 0.0
      %523 = vmatmul.mubr.f32.gmra.mrb[0].mxu0 %v347
      %v524 = vpop.f32.mrb[0].mxu0
      %v525 = vadd.f32 0.0, %v524
      %v526 = vpop.f32.mrb[0].mxu0
      %527 = vmatprep.mubr.f32.mxu0 0.0
      %528 = vmatmul.mubr.f32.gmra.mrb[0].mxu0 %v350
      %v529 = vpop.f32.mrb[0].mxu0
      %v530 = vadd.f32 0.0, %v529
      %v531 = vpop.f32.mrb[0].mxu0
      %532 = vmatprep.mubr.f32.mxu0 0.0
      %533 = vmatmul.mubr.f32.gmra.mrb[0].mxu0 %v353
      %v534 = vpop.f32.mrb[0].mxu0
      %v535 = vadd.f32 0.0, %v534
      %v536 = vpop.f32.mrb[0].mxu0
      %537 = vmatprep.mubr.f32.mxu0 0.0
      %538 = vmatmul.mubr.f32.gmra.mrb[0].mxu0 %v356
      %v539 = vpop.f32.mrb[0].mxu0
      %v540 = vadd.f32 0.0, %v539
      %v541 = vpop.f32.mrb[0].mxu0
      %542 = vmatprep.mubr.f32.mxu0 0.0
      %543 = vmatmul.mubr.f32.gmra.mrb[0].mxu0 %v359
      %v544 = vpop.f32.mrb[0].mxu0
      %v545 = vadd.f32 0.0, %v544
      %v546 = vpop.f32.mrb[0].mxu0
      %547 = vmatprep.mubr.f32.mxu0 0.0
      %548 = vmatmul.mubr.f32.gmra.mrb[0].mxu0 %v362
      %v549 = vpop.f32.mrb[0].mxu0
      %v550 = vadd.f32 0.0, %v549
      %v551 = vpop.f32.mrb[0].mxu0
      %552 = vmatprep.mubr.f32.mxu0 0.0
      %553 = vmatmul.mubr.f32.gmra.mrb[0].mxu0 %v365
      %v554 = vpop.f32.mrb[0].mxu0
      %v555 = vadd.f32 0.0, %v554
      %v556 = vpop.f32.mrb[0].mxu0
      %557 = vmatprep.mubr.f32.mxu0 0.0
      %558 = vmatmul.mubr.f32.gmra.mrb[0].mxu0 %v368
      %v559 = vpop.f32.mrb[0].mxu0
      %v560 = vadd.f32 0.0, %v559
      %v561 = vpop.f32.mrb[0].mxu0
      %562 = vmatprep.mubr.f32.mxu0 0.0
      %563 = vmatmul.mubr.f32.gmra.mrb[0].mxu0 %v371
      %v564 = vpop.f32.mrb[0].mxu0
      %v565 = vadd.f32 0.0, %v564
      %v566 = vpop.f32.mrb[0].mxu0
      %567 = vmatprep.mubr.f32.mxu0 0.0
      %568 = vmatmul.mubr.f32.gmra.mrb[0].mxu0 %v374
      %v569 = vpop.f32.mrb[0].mxu0
      %v570 = vadd.f32 0.0, %v569
      %v571 = vpop.f32.mrb[0].mxu0
      %572 = vmatprep.mubr.f32.mxu0 0.0
      %573 = vmatmul.mubr.f32.gmra.mrb[0].mxu0 %v377
      %v574 = vpop.f32.mrb[0].mxu0
      %v575 = vadd.f32 0.0, %v574
      %v576 = vpop.f32.mrb[0].mxu0
      %577 = vmatprep.mubr.f32.mxu0 0.0
      %578 = vmatmul.mubr.f32.gmra.mrb[0].mxu0 %v380
      %v579 = vpop.f32.mrb[0].mxu0
      %v580 = vadd.f32 0.0, %v579
      %v581 = vpop.f32.mrb[0].mxu0
      %582 = vmatprep.mubr.f32.mxu0 0.0
      %583 = vmatmul.mubr.f32.gmra.mrb[0].mxu0 %v383
      %v584 = vpop.f32.mrb[0].mxu0
      %v585 = vadd.f32 0.0, %v584
      %v586 = vpop.f32.mrb[0].mxu0
      %587 = vmatprep.mubr.f32.mxu0 0.0
      %588 = vmatmul.mubr.f32.gmra.mrb[0].mxu0 %v386
      %v589 = vpop.f32.mrb[0].mxu0
      %v590 = vadd.f32 0.0, %v589
      %v591 = vpop.f32.mrb[0].mxu0
      %592 = vmatprep.mubr.f32.mxu0 0.0
      %593 = vmatmul.mubr.f32.gmra.mrb[0].mxu0 %v389
      %v594 = vpop.f32.mrb[0].mxu0
      %v595 = vadd.f32 0.0, %v594
      %v596 = vpop.f32.mrb[0].mxu0
      %597 = vmatprep.mubr.f32.mxu0 0.0
      %598 = vmatmul.mubr.f32.gmra.mrb[0].mxu0 %v392
      %v599 = vpop.f32.mrb[0].mxu0
      %v600 = vadd.f32 0.0, %v599
      %v601 = vpop.f32.mrb[0].mxu0
      %602 = vmatprep.mubr.f32.mxu0 0.0
      %603 = vmatmul.mubr.f32.gmra.mrb[0].mxu0 %v395
      %v604 = vpop.f32.mrb[0].mxu0
      %v605 = vadd.f32 0.0, %v604
      %v606 = vpop.f32.mrb[0].mxu0
      %607 = vmatprep.mubr.f32.mxu0 0.0
      %608 = vmatmul.mubr.f32.gmra.mrb[0].mxu0 %v398
      %v609 = vpop.f32.mrb[0].mxu0
      %v610 = vadd.f32 0.0, %v609
      %v611 = vpop.f32.mrb[0].mxu0
      %612 = vmatprep.mubr.f32.mxu0 0.0
      %613 = vmatmul.mubr.f32.gmra.mrb[0].mxu0 %v401
      %v614 = vpop.f32.mrb[0].mxu0
      %v615 = vadd.f32 0.0, %v614
      %v616 = vpop.f32.mrb[0].mxu0
      %617 = vmatprep.mubr.f32.mxu0 0.0
      %618 = vmatmul.mubr.f32.gmra.mrb[0].mxu0 %v404
      %v619 = vpop.f32.mrb[0].mxu0
      %v620 = vadd.f32 0.0, %v619
      %v621 = vpop.f32.mrb[0].mxu0
      %622 = vmatprep.mubr.f32.mxu0 0.0
      %623 = vmatmul.mubr.f32.gmra.mrb[0].mxu0 %v407
      %v624 = vpop.f32.mrb[0].mxu0
      %v625 = vadd.f32 0.0, %v624
      %v626 = vpop.f32.mrb[0].mxu0
      %627 = vmatprep.mubr.f32.mxu0 0.0
      %628 = vmatmul.mubr.f32.gmra.mrb[0].mxu0 %v410
      %v629 = vpop.f32.mrb[0].mxu0
      %v630 = vadd.f32 0.0, %v629
      %v631 = vpop.f32.mrb[0].mxu0
      %632 = vmatprep.mubr.f32.mxu0 0.0
      %633 = vmatmul.mubr.f32.gmra.mrb[0].mxu0 %v413
      %v634 = vpop.f32.mrb[0].mxu0
      %v635 = vadd.f32 0.0, %v634
      %v636 = vpop.f32.mrb[0].mxu0
      %637 = vmatprep.mubr.f32.mxu0 0.0
      %638 = vmatmul.mubr.f32.gmra.mrb[0].mxu0 %v416
      %v639 = vpop.f32.mrb[0].mxu0
      %v640 = vadd.f32 0.0, %v639
      %v641 = vpop.f32.mrb[0].mxu0
      %642 = vdwg.mxu0
      %v643 = vadd.f32 %v255, %v485
      %v644 = vadd.f32 %v256, %v490
      %v645 = vadd.f32 %v257, %v495
      %v646 = vadd.f32 %v258, %v500
      %v647 = vadd.f32 %v259, %v505
      %v648 = vadd.f32 %v260, %v510
      %v649 = vadd.f32 %v261, %v515
      %v650 = vadd.f32 %v262, %v520
      %v651 = vadd.f32 %v263, %v525
      %v652 = vadd.f32 %v264, %v530
      %v653 = vadd.f32 %v265, %v535
      %v654 = vadd.f32 %v266, %v540
      %v655 = vadd.f32 %v267, %v545
      %v656 = vadd.f32 %v268, %v550
      %v657 = vadd.f32 %v269, %v555
      %v658 = vadd.f32 %v270, %v560
      %v659 = vadd.f32 %v271, %v565
      %v660 = vadd.f32 %v272, %v570
      %v661 = vadd.f32 %v273, %v575
      %v662 = vadd.f32 %v274, %v580
      %v663 = vadd.f32 %v275, %v585
      %v664 = vadd.f32 %v276, %v590
      %v665 = vadd.f32 %v277, %v595
      %v666 = vadd.f32 %v278, %v600
      %v667 = vadd.f32 %v279, %v605
      %v668 = vadd.f32 %v280, %v610
      %v669 = vadd.f32 %v281, %v615
      %v670 = vadd.f32 %v282, %v620
      %v671 = vadd.f32 %v283, %v625
      %v672 = vadd.f32 %v284, %v630
      %v673 = vadd.f32 %v285, %v635
      %v674 = vadd.f32 %v286, %v640
      %vm675 = vcmask 392192
      %676 = vst.msk [vmem:[#allocation2] sm:$0xff] %vm675, %v643
      %677 = vst.msk [vmem:[#allocation2 + $0x8] sm:$0xff] %vm675, %v644
      %678 = vst.msk [vmem:[#allocation2 + $0x10] sm:$0xff] %vm675, %v645
      %679 = vst.msk [vmem:[#allocation2 + $0x18] sm:$0xff] %vm675, %v646
      %680 = vst.msk [vmem:[#allocation2 + $0x20] sm:$0xff] %vm675, %v647
      %681 = vst.msk [vmem:[#allocation2 + $0x28] sm:$0xff] %vm675, %v648
      %682 = vst.msk [vmem:[#allocation2 + $0x30] sm:$0xff] %vm675, %v649
      %683 = vst.msk [vmem:[#allocation2 + $0x38] sm:$0xff] %vm675, %v650
      %684 = vst.msk [vmem:[#allocation2 + $0x40] sm:$0xff] %vm675, %v651
      %685 = vst.msk [vmem:[#allocation2 + $0x48] sm:$0xff] %vm675, %v652
      %686 = vst.msk [vmem:[#allocation2 + $0x50] sm:$0xff] %vm675, %v653
      %687 = vst.msk [vmem:[#allocation2 + $0x58] sm:$0xff] %vm675, %v654
      %688 = vst.msk [vmem:[#allocation2 + $0x60] sm:$0xff] %vm675, %v655
      %689 = vst.msk [vmem:[#allocation2 + $0x68] sm:$0xff] %vm675, %v656
      %690 = vst.msk [vmem:[#allocation2 + $0x70] sm:$0xff] %vm675, %v657
      %691 = vst.msk [vmem:[#allocation2 + $0x78] sm:$0xff] %vm675, %v658
      %692 = vst.msk [vmem:[#allocation2 + $0x80] sm:$0xff] %vm675, %v659
      %693 = vst.msk [vmem:[#allocation2 + $0x88] sm:$0xff] %vm675, %v660
      %694 = vst.msk [vmem:[#allocation2 + $0x90] sm:$0xff] %vm675, %v661
      %695 = vst.msk [vmem:[#allocation2 + $0x98] sm:$0xff] %vm675, %v662
      %696 = vst.msk [vmem:[#allocation2 + $0xa0] sm:$0xff] %vm675, %v663
      %697 = vst.msk [vmem:[#allocation2 + $0xa8] sm:$0xff] %vm675, %v664
      %698 = vst.msk [vmem:[#allocation2 + $0xb0] sm:$0xff] %vm675, %v665
      %699 = vst.msk [vmem:[#allocation2 + $0xb8] sm:$0xff] %vm675, %v666
      %700 = vst.msk [vmem:[#allocation2 + $0xc0] sm:$0xff] %vm675, %v667
      %701 = vst.msk [vmem:[#allocation2 + $0xc8] sm:$0xff] %vm675, %v668
      %702 = vst.msk [vmem:[#allocation2 + $0xd0] sm:$0xff] %vm675, %v669
      %703 = vst.msk [vmem:[#allocation2 + $0xd8] sm:$0xff] %vm675, %v670
      %704 = vst.msk [vmem:[#allocation2 + $0xe0] sm:$0xff] %vm675, %v671
      %705 = vst.msk [vmem:[#allocation2 + $0xe8] sm:$0xff] %vm675, %v672
      %706 = vst.msk [vmem:[#allocation2 + $0xf0] sm:$0xff] %vm675, %v673
      %707 = vst.msk [vmem:[#allocation2 + $0xf8] sm:$0xff] %vm675, %v674
      // Predicated region
      $region33: #{flexible_lite_mla_forward.5} parent=27 // pred_check
        %p708 = pneg %p218
      $region34: #{flexible_lite_mla_forward.5} parent=27 // pred_check_branch
        %710 = sbr.rel (%p708) target = $region36
      $region35: #{flexible_lite_mla_forward.5} parent=27 // pred_region
        %v711 = vld [vmem:[#allocation2] sm:$0xff]
        %v712 = vld [vmem:[#allocation2 + $0x8] sm:$0xff]
        %v713 = vld [vmem:[#allocation2 + $0x10] sm:$0xff]
        %v714 = vld [vmem:[#allocation2 + $0x18] sm:$0xff]
        %v715 = vld [vmem:[#allocation2 + $0x20] sm:$0xff]
        %v716 = vld [vmem:[#allocation2 + $0x28] sm:$0xff]
        %v717 = vld [vmem:[#allocation2 + $0x30] sm:$0xff]
        %v718 = vld [vmem:[#allocation2 + $0x38] sm:$0xff]
        %v719 = vld [vmem:[#allocation2 + $0x40] sm:$0xff]
        %v720 = vld [vmem:[#allocation2 + $0x48] sm:$0xff]
        %v721 = vld [vmem:[#allocation2 + $0x50] sm:$0xff]
        %v722 = vld [vmem:[#allocation2 + $0x58] sm:$0xff]
        %v723 = vld [vmem:[#allocation2 + $0x60] sm:$0xff]
        %v724 = vld [vmem:[#allocation2 + $0x68] sm:$0xff]
        %v725 = vld [vmem:[#allocation2 + $0x70] sm:$0xff]
        %v726 = vld [vmem:[#allocation2 + $0x78] sm:$0xff]
        %v727 = vld [vmem:[#allocation2 + $0x80] sm:$0xff]
        %v728 = vld [vmem:[#allocation2 + $0x88] sm:$0xff]
        %v729 = vld [vmem:[#allocation2 + $0x90] sm:$0xff]
        %v730 = vld [vmem:[#allocation2 + $0x98] sm:$0xff]
        %v731 = vld [vmem:[#allocation2 + $0xa0] sm:$0xff]
        %v732 = vld [vmem:[#allocation2 + $0xa8] sm:$0xff]
        %v733 = vld [vmem:[#allocation2 + $0xb0] sm:$0xff]
        %v734 = vld [vmem:[#allocation2 + $0xb8] sm:$0xff]
        %v735 = vld [vmem:[#allocation2 + $0xc0] sm:$0xff]
        %v736 = vld [vmem:[#allocation2 + $0xc8] sm:$0xff]
        %v737 = vld [vmem:[#allocation2 + $0xd0] sm:$0xff]
        %v738 = vld [vmem:[#allocation2 + $0xd8] sm:$0xff]
        %v739 = vld [vmem:[#allocation2 + $0xe0] sm:$0xff]
        %v740 = vld [vmem:[#allocation2 + $0xe8] sm:$0xff]
        %v741 = vld [vmem:[#allocation2 + $0xf0] sm:$0xff]
        %v742 = vld [vmem:[#allocation2 + $0xf8] sm:$0xff]
        %743 = vst.msk [vmem:[%s216] sm:$0xff] %vm675, %v711
        %744 = vst.msk [vmem:[%s216 + $0x8] sm:$0xff] %vm675, %v712
        %745 = vst.msk [vmem:[%s216 + $0x10] sm:$0xff] %vm675, %v713
        %746 = vst.msk [vmem:[%s216 + $0x18] sm:$0xff] %vm675, %v714
        %747 = vst.msk [vmem:[%s216 + $0x20] sm:$0xff] %vm675, %v715
        %748 = vst.msk [vmem:[%s216 + $0x28] sm:$0xff] %vm675, %v716
        %749 = vst.msk [vmem:[%s216 + $0x30] sm:$0xff] %vm675, %v717
        %750 = vst.msk [vmem:[%s216 + $0x38] sm:$0xff] %vm675, %v718
        %751 = vst.msk [vmem:[%s216 + $0x40] sm:$0xff] %vm675, %v719
        %752 = vst.msk [vmem:[%s216 + $0x48] sm:$0xff] %vm675, %v720
        %753 = vst.msk [vmem:[%s216 + $0x50] sm:$0xff] %vm675, %v721
        %754 = vst.msk [vmem:[%s216 + $0x58] sm:$0xff] %vm675, %v722
        %755 = vst.msk [vmem:[%s216 + $0x60] sm:$0xff] %vm675, %v723
        %756 = vst.msk [vmem:[%s216 + $0x68] sm:$0xff] %vm675, %v724
        %757 = vst.msk [vmem:[%s216 + $0x70] sm:$0xff] %vm675, %v725
        %758 = vst.msk [vmem:[%s216 + $0x78] sm:$0xff] %vm675, %v726
        %759 = vst.msk [vmem:[%s216 + $0x80] sm:$0xff] %vm675, %v727
        %760 = vst.msk [vmem:[%s216 + $0x88] sm:$0xff] %vm675, %v728
        %761 = vst.msk [vmem:[%s216 + $0x90] sm:$0xff] %vm675, %v729
        %762 = vst.msk [vmem:[%s216 + $0x98] sm:$0xff] %vm675, %v730
        %763 = vst.msk [vmem:[%s216 + $0xa0] sm:$0xff] %vm675, %v731
        %764 = vst.msk [vmem:[%s216 + $0xa8] sm:$0xff] %vm675, %v732
        %765 = vst.msk [vmem:[%s216 + $0xb0] sm:$0xff] %vm675, %v733
        %766 = vst.msk [vmem:[%s216 + $0xb8] sm:$0xff] %vm675, %v734
        %767 = vst.msk [vmem:[%s216 + $0xc0] sm:$0xff] %vm675, %v735
        %768 = vst.msk [vmem:[%s216 + $0xc8] sm:$0xff] %vm675, %v736
        %769 = vst.msk [vmem:[%s216 + $0xd0] sm:$0xff] %vm675, %v737
        %770 = vst.msk [vmem:[%s216 + $0xd8] sm:$0xff] %vm675, %v738
        %771 = vst.msk [vmem:[%s216 + $0xe0] sm:$0xff] %vm675, %v739
        %772 = vst.msk [vmem:[%s216 + $0xe8] sm:$0xff] %vm675, %v740
        %773 = vst.msk [vmem:[%s216 + $0xf0] sm:$0xff] %vm675, %v741
        %774 = vst.msk [vmem:[%s216 + $0xf8] sm:$0xff] %vm675, %v742
      $region36: #{flexible_lite_mla_forward.5} parent=27 // pred_fallthru
        _
      %s775 = smul.u32 32, %s18
      %p776 = scmp.lt.s32.totalorder %s775, 63
      %s777 = scalar_select %p776, %s775, 63
      %p778 = scmp.lt.s32.totalorder %s19, 0
      %s779 = scalar_select %p778, %s19, 0
      %s780 = sadd.s32 %s779, %s777
      %s781 = smul.addr %s780, 8
      %s782 = scalar_lea.vmem %s2, %s781
      // Predicated region
      $region37: #{flexible_lite_mla_forward.5} parent=27 // pred_check
        %p783 = pneg %p108
      $region38: #{flexible_lite_mla_forward.5} parent=27 // pred_check_branch
        %785 = sbr.rel (%p783) target = $region40
      $region39: #{flexible_lite_mla_forward.5} parent=27 // pred_region
        %s786 = smul.u32 32, %s18
      $region40: #{flexible_lite_mla_forward.5} parent=27 // pred_fallthru
        _
    $region28: #{flexible_lite_mla_forward.5} parent=5 // pred_fallthru
      _
    %p787 = scmp.le.s32.totalorder 2, %s8
    // Predicated region
    $region41: #{flexible_lite_mla_forward.5} parent=5 // pred_check
      %p788 = pneg %p787
    $region42: #{flexible_lite_mla_forward.5} parent=5 // pred_check_branch
      %790 = sbr.rel (%p788) target = $region44
    $region43: #{flexible_lite_mla_forward.5} parent=5 // pred_region
      %s791 = ssub.s32 %s8, 2
      // Predicated region
      $region45: #{flexible_lite_mla_forward.5} parent=43 // pred_check
        %p792 = pneg %p114
      $region46: #{flexible_lite_mla_forward.5} parent=43 // pred_check_branch
        %794 = sbr.rel (%p792) target = $region48
      $region47: #{flexible_lite_mla_forward.5} parent=43 // pred_region
        %s795 = smul.u32 32, %s21
        %p796 = scmp.lt.s32.totalorder %s795, 63
        %s797 = scalar_select %p796, %s795, 63
        %p798 = scmp.lt.s32.totalorder %s22, 0
        %s799 = scalar_select %p798, %s22, 0
        %s800 = sadd.s32 %s799, %s797
        %s801 = smul.addr %s800, 8
        %s802 = scalar_lea.vmem %s2, %s801
      $region48: #{flexible_lite_mla_forward.5} parent=43 // pred_fallthru
        _
    $region44: #{flexible_lite_mla_forward.5} parent=5 // pred_fallthru
      _
  $region6: #{flexible_lite_mla_forward.5} parent=0 // loop_footer
    %s12 = sadd.s32 1, %s8
  $region7: #{flexible_lite_mla_forward.5} parent=0 // loop_footer_branch
    %7 = sbr.rel target = $region3
  $region8: #{flexible_lite_mla_forward.5} parent=0 // loop_exit
    _

// kernel: flexible_lite_mla_forward.9
$region0: #{flexible_lite_mla_forward.9}
  #allocation0 [shape = 'u32[]', space=smem, size = 0x4, offset = 0x4, fixed_abs, tag = 'smem constant byte address 0x4 - core index']
  #allocation1 [shape = 'u32[144,128]{1,0:T(1,128)}', space=vmem, size = 0x12000, scoped, tag = 'internal scratch']
  #allocation2 [shape = 'f32[256,16]{1,0:T(8,128)}', space=vmem, size = 0x20000, scoped, tag = 'scratch operand']
  %s0 = inlined_call_operand.vmem [shape: f32[512,32], index: 0, kind: input, shape index: {}]
  %s1 = inlined_call_operand.vmem [shape: f32[32,16], index: 1, kind: input, shape index: {}]
  %s2 = inlined_call_operand.vmem [shape: f32[1,16], index: 2, kind: input, shape index: {}]
  %s3 = inlined_call_operand.vmem [shape: f32[512,16], index: 3, kind: output, shape index: {}]
  %s4 = sld [smem:[#allocation0]]
  $region53: #{flexible_lite_mla_forward.9} parent=0
    _
  %s6 = ssub.s32 1, %s4
  %s7 = scalar_select 0, %s6, %s4
  loop: start=0, step=1, limit=4
  $region2: #{flexible_lite_mla_forward.9} parent=0 // loop_pre_header
    _
  $region3: #{flexible_lite_mla_forward.9} parent=0 // loop_header
    %s9 = sphi 0, %s13
    %p10 = scmp.ge.s32.totalorder %s9, 4
    %s16 = sphi 0, %s35
    %s17 = sphi 0, %s31
    %s18 = sphi 0, %s27
    %s19 = sphi 0, %s16
    %s20 = sphi 0, %s17
    %s21 = sphi 0, %s18
    %s22 = sphi 0, %s19
    %s23 = sphi 0, %s20
    %s24 = sphi 0, %s21
    %s40 = sphi 0, %s42
    %s43 = sphi 0, %s40
    %s44 = sphi 0, %s43
    %s60 = sphi 0, %s44
    %s68 = sphi 0, %s70
    %s71 = sphi 0, %s68
    %s72 = sphi 0, %s71
    %s88 = sphi 0, %s72
    %s94 = sphi 0, %s96
    %s97 = sphi 0, %s94
    %s98 = sphi 0, %s97
    %s114 = sphi 0, %s98
    %s122 = sphi 0, %s124
    %s125 = sphi 0, %s122
    %s126 = sphi 0, %s125
    %s142 = sphi 0, %s126
  $region4: #{flexible_lite_mla_forward.9} parent=0 // loop_header_branch
    %12 = sbr.rel (%p10) target = $region8
  $region5: #{flexible_lite_mla_forward.9} parent=0 // loop_body
    %s14 = ssub.s32 %s9, 1
    %s15 = ssub.s32 %s9, 2
    %s25 = sadd.s32 1, %s18
    %p26 = scmp.ge.s32.totalorder %s25, 1
    %s27 = scalar_select %p26, 0, %s25
    %s28 = sadd.s32 1, %s17
    %s29 = scalar_select %p26, %s28, %s17
    %p30 = scmp.ge.s32.totalorder %s29, 1
    %s31 = scalar_select %p30, 0, %s29
    %s32 = sadd.s32 1, %s16
    %s33 = scalar_select %p30, %s32, %s16
    %p34 = scmp.ge.s32.totalorder %s33, 2
    %s35 = scalar_select %p34, 0, %s33
    %s36 = ssub.s32 %s16, %s35
    %s37 = ssub.s32 %s18, %s27
    %s38 = sor.u32 %s36, %s37
    %p39 = scmp.eq.s32.totalorder %s38, 0
    %s41 = sadd.s32 %s40, 1
    %s42 = scalar_select %p39, %s40, %s41
    %p45 = pneg %p39
    %p46 = scmp.eq.s32.totalorder %s9, 1
    %p47 = por %p45, %p46
    %p48 = scmp.ne.s32.totalorder %s40, %s43
    %p49 = scmp.eq.s32.totalorder %s9, 0
    %p50 = por %p48, %p49
    %p51 = scmp.ne.s32.totalorder %s40, %s43
    %p52 = scmp.eq.s32.totalorder %s14, 1
    %p53 = por %p51, %p52
    %p54 = scmp.ne.s32.totalorder %s43, %s44
    %p55 = scmp.eq.s32.totalorder %s14, 0
    %p56 = por %p54, %p55
    %p57 = scmp.ne.s32.totalorder %s43, %s44
    %p58 = scmp.eq.s32.totalorder %s15, 1
    %p59 = por %p57, %p58
    %p61 = scmp.ne.s32.totalorder %s44, %s60
    %p62 = scmp.eq.s32.totalorder %s15, 0
    %p63 = por %p61, %p62
    %s64 = ssub.s32 %s18, %s27
    %s65 = ssub.s32 %s17, %s31
    %s66 = sor.u32 %s64, %s65
    %p67 = scmp.eq.s32.totalorder %s66, 0
    %s69 = sadd.s32 %s68, 1
    %s70 = scalar_select %p67, %s68, %s69
    %p73 = pneg %p67
    %p74 = scmp.eq.s32.totalorder %s9, 1
    %p75 = por %p73, %p74
    %p76 = scmp.ne.s32.totalorder %s68, %s71
    %p77 = scmp.eq.s32.totalorder %s9, 0
    %p78 = por %p76, %p77
    %p79 = scmp.ne.s32.totalorder %s68, %s71
    %p80 = scmp.eq.s32.totalorder %s14, 1
    %p81 = por %p79, %p80
    %p82 = scmp.ne.s32.totalorder %s71, %s72
    %p83 = scmp.eq.s32.totalorder %s14, 0
    %p84 = por %p82, %p83
    %p85 = scmp.ne.s32.totalorder %s71, %s72
    %p86 = scmp.eq.s32.totalorder %s15, 1
    %p87 = por %p85, %p86
    %p89 = scmp.ne.s32.totalorder %s72, %s88
    %p90 = scmp.eq.s32.totalorder %s15, 0
    %p91 = por %p89, %p90
    %s92 = ssub.s32 %s17, %s31
    %p93 = scmp.eq.s32.totalorder %s92, 0
    %s95 = sadd.s32 %s94, 1
    %s96 = scalar_select %p93, %s94, %s95
    %p99 = pneg %p93
    %p100 = scmp.eq.s32.totalorder %s9, 1
    %p101 = por %p99, %p100
    %p102 = scmp.ne.s32.totalorder %s94, %s97
    %p103 = scmp.eq.s32.totalorder %s9, 0
    %p104 = por %p102, %p103
    %p105 = scmp.ne.s32.totalorder %s94, %s97
    %p106 = scmp.eq.s32.totalorder %s14, 1
    %p107 = por %p105, %p106
    %p108 = scmp.ne.s32.totalorder %s97, %s98
    %p109 = scmp.eq.s32.totalorder %s14, 0
    %p110 = por %p108, %p109
    %p111 = scmp.ne.s32.totalorder %s97, %s98
    %p112 = scmp.eq.s32.totalorder %s15, 1
    %p113 = por %p111, %p112
    %p115 = scmp.ne.s32.totalorder %s98, %s114
    %p116 = scmp.eq.s32.totalorder %s15, 0
    %p117 = por %p115, %p116
    %s118 = ssub.s32 %s16, %s35
    %s119 = ssub.s32 %s17, %s31
    %s120 = sor.u32 %s118, %s119
    %p121 = scmp.eq.s32.totalorder %s120, 0
    %s123 = sadd.s32 %s122, 1
    %s124 = scalar_select %p121, %s122, %s123
    %p127 = pneg %p121
    %p128 = scmp.eq.s32.totalorder %s9, 1
    %p129 = por %p127, %p128
    %p130 = scmp.ne.s32.totalorder %s122, %s125
    %p131 = scmp.eq.s32.totalorder %s9, 0
    %p132 = por %p130, %p131
    %p133 = scmp.ne.s32.totalorder %s122, %s125
    %p134 = scmp.eq.s32.totalorder %s14, 1
    %p135 = por %p133, %p134
    %p136 = scmp.ne.s32.totalorder %s125, %s126
    %p137 = scmp.eq.s32.totalorder %s14, 0
    %p138 = por %p136, %p137
    %p139 = scmp.ne.s32.totalorder %s125, %s126
    %p140 = scmp.eq.s32.totalorder %s15, 1
    %p141 = por %p139, %p140
    %p143 = scmp.ne.s32.totalorder %s126, %s142
    %p144 = scmp.eq.s32.totalorder %s15, 0
    %p145 = por %p143, %p144
    %p146 = scmp.le.s32.totalorder 1, %s9
    %p147 = scmp.lt.s32.totalorder %s9, 3
    %p148 = pnand %p146, %p147
    %p149 = pneg %p148
    // Predicated region
    $region9: #{flexible_lite_mla_forward.9} parent=5 // pred_check
      _
    $region10: #{flexible_lite_mla_forward.9} parent=5 // pred_check_branch
      %151 = sbr.rel (%p148) target = $region12
    $region11: #{flexible_lite_mla_forward.9} parent=5 // pred_region
      %s152 = ssub.s32 %s9, 1
      // Predicated region
      $region13: #{flexible_lite_mla_forward.9} parent=11 // pred_check
        %p153 = pneg %p84
      $region14: #{flexible_lite_mla_forward.9} parent=11 // pred_check_branch
        %155 = sbr.rel (%p153) target = $region16
      $region15: #{flexible_lite_mla_forward.9} parent=11 // pred_region
        %s156 = smul.u32 4, %s21
        %p157 = scmp.lt.s32.totalorder %s156, 3
        %s158 = scalar_select %p157, %s156, 3
        %p159 = scmp.lt.s32.totalorder %s20, 0
        %s160 = scalar_select %p159, %s20, 0
        %s161 = sadd.s32 %s160, %s158
        %s162 = smul.addr %s161, 8
        %s163 = scalar_lea.vmem %s1, %s162
        %s164 = smul.u32 4, %s21
      $region16: #{flexible_lite_mla_forward.9} parent=11 // pred_fallthru
        _
      // Predicated region
      $region17: #{flexible_lite_mla_forward.9} parent=11 // pred_check
        %p165 = pneg %p110
      $region18: #{flexible_lite_mla_forward.9} parent=11 // pred_check_branch
        %167 = sbr.rel (%p165) target = $region20
      $region19: #{flexible_lite_mla_forward.9} parent=11 // pred_region
        %p168 = scmp.lt.s32.totalorder %s20, 0
        %s169 = scalar_select %p168, %s20, 0
        %s170 = scalar_lea.vmem %s2, %s169
      $region20: #{flexible_lite_mla_forward.9} parent=11 // pred_fallthru
        _
    $region12: #{flexible_lite_mla_forward.9} parent=5 // pred_fallthru
      _
    %p171 = scmp.lt.s32.totalorder %s9, 2
    // Predicated region
    $region21: #{flexible_lite_mla_forward.9} parent=5 // pred_check
      %p172 = pneg %p171
    $region22: #{flexible_lite_mla_forward.9} parent=5 // pred_check_branch
      %174 = sbr.rel (%p172) target = $region24
    $region23: #{flexible_lite_mla_forward.9} parent=5 // pred_region
      // Predicated region
      $region25: #{flexible_lite_mla_forward.9} parent=23 // pred_check
        %p175 = pneg %p50
      $region26: #{flexible_lite_mla_forward.9} parent=23 // pred_check_branch
        %177 = sbr.rel (%p175) target = $region28
      $region27: #{flexible_lite_mla_forward.9} parent=23 // pred_region
        %s178 = smul.u32 32, %s16
        %p179 = scmp.lt.s32.totalorder %s178, 63
        %s180 = scalar_select %p179, %s178, 63
        %p181 = scmp.lt.s32.totalorder %s18, 0
        %s182 = scalar_select %p181, %s18, 0
        %s183 = sadd.s32 %s182, %s180
        %s184 = smul.addr %s183, 8
        %s185 = scalar_lea.vmem %s0, %s184
        %s186 = smul.u32 32, %s16
      $region28: #{flexible_lite_mla_forward.9} parent=23 // pred_fallthru
        _
    $region24: #{flexible_lite_mla_forward.9} parent=5 // pred_fallthru
      _
    %p187 = scmp.le.s32.totalorder 1, %s9
    %p188 = scmp.lt.s32.totalorder %s9, 3
    %p189 = pnand %p187, %p188
    %p190 = pneg %p189
    // Predicated region
    $region29: #{flexible_lite_mla_forward.9} parent=5 // pred_check
      _
    $region30: #{flexible_lite_mla_forward.9} parent=5 // pred_check_branch
      %192 = sbr.rel (%p189) target = $region32
    $region31: #{flexible_lite_mla_forward.9} parent=5 // pred_region
      %s193 = ssub.s32 %s9, 1
      %s194 = smul.u32 32, %s19
      %p195 = scmp.lt.s32.totalorder %s194, 63
      %s196 = scalar_select %p195, %s194, 63
      %p197 = scmp.lt.s32.totalorder %s21, 0
      %s198 = scalar_select %p197, %s21, 0
      %s199 = sadd.s32 %s198, %s196
      %s200 = smul.addr %s199, 8
      %s201 = scalar_lea.vmem %s0, %s200
      %p202 = pneg %p56
      %p203 = pneg %p53
      %s204 = smul.u32 4, %s21
      %p205 = scmp.lt.s32.totalorder %s204, 3
      %s206 = scalar_select %p205, %s204, 3
      %p207 = scmp.lt.s32.totalorder %s20, 0
      %s208 = scalar_select %p207, %s20, 0
      %s209 = sadd.s32 %s208, %s206
      %s210 = smul.addr %s209, 8
      %s211 = scalar_lea.vmem %s1, %s210
      %p212 = pneg %p84
      %p213 = pneg %p81
      %p214 = scmp.lt.s32.totalorder %s20, 0
      %s215 = scalar_select %p214, %s20, 0
      %s216 = scalar_lea.vmem %s2, %s215
      %p217 = pneg %p110
      %p218 = pneg %p107
      %p219 = pneg %p138
      %p220 = pneg %p135
      %s221 = smul.u32 32, %s19
      %p222 = scmp.lt.s32.totalorder %s221, 63
      %s223 = scalar_select %p222, %s221, 63
      %p224 = scmp.lt.s32.totalorder %s20, 0
      %s225 = scalar_select %p224, %s20, 0
      %s226 = sadd.s32 %s225, %s223
      %s227 = smul.addr %s226, 8
      %s228 = scalar_lea.vmem %s3, %s227
      %s229 = smul.u32 32, %s19
      %p230 = scmp.lt.s32.totalorder %s229, 63
      %s231 = scalar_select %p230, %s229, 63
      %p232 = scmp.lt.s32.totalorder %s21, 0
      %s233 = scalar_select %p232, %s21, 0
      %s234 = sadd.s32 %s233, %s231
      %s235 = smul.addr %s234, 8
      %s236 = scalar_lea.vmem %s0, %s235
      %s237 = smul.u32 32, %s19
      %s238 = smul.u32 4, %s21
      %p239 = scmp.lt.s32.totalorder %s238, 3
      %s240 = scalar_select %p239, %s238, 3
      %p241 = scmp.lt.s32.totalorder %s20, 0
      %s242 = scalar_select %p241, %s20, 0
      %s243 = sadd.s32 %s242, %s240
      %s244 = smul.addr %s243, 8
      %s245 = scalar_lea.vmem %s1, %s244
      %s246 = smul.u32 4, %s21
      %p247 = scmp.lt.s32.totalorder %s20, 0
      %s248 = scalar_select %p247, %s20, 0
      %s249 = scalar_lea.vmem %s2, %s248
      %s250 = smul.u32 32, %s19
      %p251 = scmp.lt.s32.totalorder %s250, 63
      %s252 = scalar_select %p251, %s250, 63
      %p253 = scmp.lt.s32.totalorder %s20, 0
      %s254 = scalar_select %p253, %s20, 0
      %s255 = sadd.s32 %s254, %s252
      %s256 = smul.addr %s255, 8
      %s257 = scalar_lea.vmem %s3, %s256
      %s258 = smul.u32 32, %s19
      %p259 = scmp.eq.s32.totalorder %s21, 0
      // Predicated region
      $region33: #{flexible_lite_mla_forward.9} parent=31 // pred_check
        %p260 = pneg %p259
      $region34: #{flexible_lite_mla_forward.9} parent=31 // pred_check_branch
        %262 = sbr.rel (%p260) target = $region36
      $region35: #{flexible_lite_mla_forward.9} parent=31 // pred_region
        %vm263 = vcmask 130048
        %264 = vst.msk [vmem:[#allocation2] sm:$0xff] %vm263, 0.0
        %265 = vst.msk [vmem:[#allocation2 + $0x8] sm:$0xff] %vm263, 0.0
        %266 = vst.msk [vmem:[#allocation2 + $0x10] sm:$0xff] %vm263, 0.0
        %267 = vst.msk [vmem:[#allocation2 + $0x18] sm:$0xff] %vm263, 0.0
        %268 = vst.msk [vmem:[#allocation2 + $0x20] sm:$0xff] %vm263, 0.0
        %269 = vst.msk [vmem:[#allocation2 + $0x28] sm:$0xff] %vm263, 0.0
        %270 = vst.msk [vmem:[#allocation2 + $0x30] sm:$0xff] %vm263, 0.0
        %271 = vst.msk [vmem:[#allocation2 + $0x38] sm:$0xff] %vm263, 0.0
        %272 = vst.msk [vmem:[#allocation2 + $0x40] sm:$0xff] %vm263, 0.0
        %273 = vst.msk [vmem:[#allocation2 + $0x48] sm:$0xff] %vm263, 0.0
        %274 = vst.msk [vmem:[#allocation2 + $0x50] sm:$0xff] %vm263, 0.0
        %275 = vst.msk [vmem:[#allocation2 + $0x58] sm:$0xff] %vm263, 0.0
        %276 = vst.msk [vmem:[#allocation2 + $0x60] sm:$0xff] %vm263, 0.0
        %277 = vst.msk [vmem:[#allocation2 + $0x68] sm:$0xff] %vm263, 0.0
        %278 = vst.msk [vmem:[#allocation2 + $0x70] sm:$0xff] %vm263, 0.0
        %279 = vst.msk [vmem:[#allocation2 + $0x78] sm:$0xff] %vm263, 0.0
        %280 = vst.msk [vmem:[#allocation2 + $0x80] sm:$0xff] %vm263, 0.0
        %281 = vst.msk [vmem:[#allocation2 + $0x88] sm:$0xff] %vm263, 0.0
        %282 = vst.msk [vmem:[#allocation2 + $0x90] sm:$0xff] %vm263, 0.0
        %283 = vst.msk [vmem:[#allocation2 + $0x98] sm:$0xff] %vm263, 0.0
        %284 = vst.msk [vmem:[#allocation2 + $0xa0] sm:$0xff] %vm263, 0.0
        %285 = vst.msk [vmem:[#allocation2 + $0xa8] sm:$0xff] %vm263, 0.0
        %286 = vst.msk [vmem:[#allocation2 + $0xb0] sm:$0xff] %vm263, 0.0
        %287 = vst.msk [vmem:[#allocation2 + $0xb8] sm:$0xff] %vm263, 0.0
        %288 = vst.msk [vmem:[#allocation2 + $0xc0] sm:$0xff] %vm263, 0.0
        %289 = vst.msk [vmem:[#allocation2 + $0xc8] sm:$0xff] %vm263, 0.0
        %290 = vst.msk [vmem:[#allocation2 + $0xd0] sm:$0xff] %vm263, 0.0
        %291 = vst.msk [vmem:[#allocation2 + $0xd8] sm:$0xff] %vm263, 0.0
        %292 = vst.msk [vmem:[#allocation2 + $0xe0] sm:$0xff] %vm263, 0.0
        %293 = vst.msk [vmem:[#allocation2 + $0xe8] sm:$0xff] %vm263, 0.0
        %294 = vst.msk [vmem:[#allocation2 + $0xf0] sm:$0xff] %vm263, 0.0
        %295 = vst.msk [vmem:[#allocation2 + $0xf8] sm:$0xff] %vm263, 0.0
      $region36: #{flexible_lite_mla_forward.9} parent=31 // pred_fallthru
        _
      %v296 = vld [vmem:[#allocation2] sm:$0xff]
      %v297 = vld [vmem:[#allocation2 + $0x8] sm:$0xff]
      %v298 = vld [vmem:[#allocation2 + $0x10] sm:$0xff]
      %v299 = vld [vmem:[#allocation2 + $0x18] sm:$0xff]
      %v300 = vld [vmem:[#allocation2 + $0x20] sm:$0xff]
      %v301 = vld [vmem:[#allocation2 + $0x28] sm:$0xff]
      %v302 = vld [vmem:[#allocation2 + $0x30] sm:$0xff]
      %v303 = vld [vmem:[#allocation2 + $0x38] sm:$0xff]
      %v304 = vld [vmem:[#allocation2 + $0x40] sm:$0xff]
      %v305 = vld [vmem:[#allocation2 + $0x48] sm:$0xff]
      %v306 = vld [vmem:[#allocation2 + $0x50] sm:$0xff]
      %v307 = vld [vmem:[#allocation2 + $0x58] sm:$0xff]
      %v308 = vld [vmem:[#allocation2 + $0x60] sm:$0xff]
      %v309 = vld [vmem:[#allocation2 + $0x68] sm:$0xff]
      %v310 = vld [vmem:[#allocation2 + $0x70] sm:$0xff]
      %v311 = vld [vmem:[#allocation2 + $0x78] sm:$0xff]
      %v312 = vld [vmem:[#allocation2 + $0x80] sm:$0xff]
      %v313 = vld [vmem:[#allocation2 + $0x88] sm:$0xff]
      %v314 = vld [vmem:[#allocation2 + $0x90] sm:$0xff]
      %v315 = vld [vmem:[#allocation2 + $0x98] sm:$0xff]
      %v316 = vld [vmem:[#allocation2 + $0xa0] sm:$0xff]
      %v317 = vld [vmem:[#allocation2 + $0xa8] sm:$0xff]
      %v318 = vld [vmem:[#allocation2 + $0xb0] sm:$0xff]
      %v319 = vld [vmem:[#allocation2 + $0xb8] sm:$0xff]
      %v320 = vld [vmem:[#allocation2 + $0xc0] sm:$0xff]
      %v321 = vld [vmem:[#allocation2 + $0xc8] sm:$0xff]
      %v322 = vld [vmem:[#allocation2 + $0xd0] sm:$0xff]
      %v323 = vld [vmem:[#allocation2 + $0xd8] sm:$0xff]
      %v324 = vld [vmem:[#allocation2 + $0xe0] sm:$0xff]
      %v325 = vld [vmem:[#allocation2 + $0xe8] sm:$0xff]
      %v326 = vld [vmem:[#allocation2 + $0xf0] sm:$0xff]
      %v327 = vld [vmem:[#allocation2 + $0xf8] sm:$0xff]
      %v328 = vld [vmem:[%s236] sm:$0xff]
      %v329 = vld [vmem:[%s236 + $0x8] sm:$0xff]
      %v330 = vld [vmem:[%s236 + $0x10] sm:$0xff]
      %v331 = vld [vmem:[%s236 + $0x18] sm:$0xff]
      %v332 = vld [vmem:[%s236 + $0x20] sm:$0xff]
      %v333 = vld [vmem:[%s236 + $0x28] sm:$0xff]
      %v334 = vld [vmem:[%s236 + $0x30] sm:$0xff]
      %v335 = vld [vmem:[%s236 + $0x38] sm:$0xff]
      %v336 = vld [vmem:[%s236 + $0x40] sm:$0xff]
      %v337 = vld [vmem:[%s236 + $0x48] sm:$0xff]
      %v338 = vld [vmem:[%s236 + $0x50] sm:$0xff]
      %v339 = vld [vmem:[%s236 + $0x58] sm:$0xff]
      %v340 = vld [vmem:[%s236 + $0x60] sm:$0xff]
      %v341 = vld [vmem:[%s236 + $0x68] sm:$0xff]
      %v342 = vld [vmem:[%s236 + $0x70] sm:$0xff]
      %v343 = vld [vmem:[%s236 + $0x78] sm:$0xff]
      %v344 = vld [vmem:[%s236 + $0x80] sm:$0xff]
      %v345 = vld [vmem:[%s236 + $0x88] sm:$0xff]
      %v346 = vld [vmem:[%s236 + $0x90] sm:$0xff]
      %v347 = vld [vmem:[%s236 + $0x98] sm:$0xff]
      %v348 = vld [vmem:[%s236 + $0xa0] sm:$0xff]
      %v349 = vld [vmem:[%s236 + $0xa8] sm:$0xff]
      %v350 = vld [vmem:[%s236 + $0xb0] sm:$0xff]
      %v351 = vld [vmem:[%s236 + $0xb8] sm:$0xff]
      %v352 = vld [vmem:[%s236 + $0xc0] sm:$0xff]
      %v353 = vld [vmem:[%s236 + $0xc8] sm:$0xff]
      %v354 = vld [vmem:[%s236 + $0xd0] sm:$0xff]
      %v355 = vld [vmem:[%s236 + $0xd8] sm:$0xff]
      %v356 = vld [vmem:[%s236 + $0xe0] sm:$0xff]
      %v357 = vld [vmem:[%s236 + $0xe8] sm:$0xff]
      %v358 = vld [vmem:[%s236 + $0xf0] sm:$0xff]
      %v359 = vld [vmem:[%s236 + $0xf8] sm:$0xff]
      %v360 = vld [vmem:[%s245] sm:$0xff]
      %v361 = vld [vmem:[%s245 + $0x8] sm:$0xff]
      %v362 = vld [vmem:[%s245 + $0x10] sm:$0xff]
      %v363 = vld [vmem:[%s245 + $0x18] sm:$0xff]
      %vm364 = vcmask 261120
      %v366 = vsel %vm364, %v328, 0
      %v369 = vsel %vm364, %v329, 0
      %v372 = vsel %vm364, %v330, 0
      %v375 = vsel %vm364, %v331, 0
      %v378 = vsel %vm364, %v332, 0
      %v381 = vsel %vm364, %v333, 0
      %v384 = vsel %vm364, %v334, 0
      %v387 = vsel %vm364, %v335, 0
      %v390 = vsel %vm364, %v336, 0
      %v393 = vsel %vm364, %v337, 0
      %v396 = vsel %vm364, %v338, 0
      %v399 = vsel %vm364, %v339, 0
      %v402 = vsel %vm364, %v340, 0
      %v405 = vsel %vm364, %v341, 0
      %v408 = vsel %vm364, %v342, 0
      %v411 = vsel %vm364, %v343, 0
      %v414 = vsel %vm364, %v344, 0
      %v417 = vsel %vm364, %v345, 0
      %v420 = vsel %vm364, %v346, 0
      %v423 = vsel %vm364, %v347, 0
      %v426 = vsel %vm364, %v348, 0
      %v429 = vsel %vm364, %v349, 0
      %v432 = vsel %vm364, %v350, 0
      %v435 = vsel %vm364, %v351, 0
      %v438 = vsel %vm364, %v352, 0
      %v441 = vsel %vm364, %v353, 0
      %v444 = vsel %vm364, %v354, 0
      %v447 = vsel %vm364, %v355, 0
      %v450 = vsel %vm364, %v356, 0
      %v453 = vsel %vm364, %v357, 0
      %v456 = vsel %vm364, %v358, 0
      %v459 = vsel %vm364, %v359, 0
      %461 = vmatprep.subr.mxu0 0.0
      %462 = vmatpush1.msra.mxu0 %v360
      %463 = vmatprep.subr.mxu0 0.0
      %464 = vmatpush1.msra.mxu0 %v361
      %465 = vmatprep.subr.mxu0 0.0
      %466 = vmatpush1.msra.mxu0 %v362
      %467 = vmatprep.subr.mxu0 0.0
      %468 = vmatpush1.msra.mxu0 %v363
      %469 = vmatprep.subr.mxu0 0.0
      %470 = vmatpush1.msra.mxu0 0.0
      %471 = vmatprep.subr.mxu0 0.0
      %472 = vmatpush1.msra.mxu0 0.0
      %473 = vmatprep.subr.mxu0 0.0
      %474 = vmatpush1.msra.mxu0 0.0
      %475 = vmatprep.subr.mxu0 0.0
      %476 = vmatpush1.msra.mxu0 0.0
      %477 = vmatprep.subr.mxu0 0.0
      %478 = vmatpush1.msra.mxu0 0.0
      %479 = vmatprep.subr.mxu0 0.0
      %480 = vmatpush1.msra.mxu0 0.0
      %481 = vmatprep.subr.mxu0 0.0
      %482 = vmatpush1.msra.mxu0 0.0
      %483 = vmatprep.subr.mxu0 0.0
      %484 = vmatpush1.msra.mxu0 0.0
      %485 = vmatprep.subr.mxu0 0.0
      %486 = vmatpush1.msra.mxu0 0.0
      %487 = vmatprep.subr.mxu0 0.0
      %488 = vmatpush1.msra.mxu0 0.0
      %489 = vmatprep.subr.mxu0 0.0
      %490 = vmatpush1.msra.mxu0 0.0
      %491 = vmatprep.subr.mxu0 0.0
      %492 = vmatpush1.msra.mxu0 0.0
      %493 = vmatprep.subr.mxu0 0.0
      %494 = vmatpush1.msra.mxu0 0.0
      %495 = vmatprep.subr.mxu0 0.0
      %496 = vmatpush1.msra.mxu0 0.0
      %497 = vmatprep.subr.mxu0 0.0
      %498 = vmatpush1.msra.mxu0 0.0
      %499 = vmatprep.subr.mxu0 0.0
      %500 = vmatpush1.msra.mxu0 0.0
      %501 = vmatprep.subr.mxu0 0.0
      %502 = vmatpush1.msra.mxu0 0.0
      %503 = vmatprep.subr.mxu0 0.0
      %504 = vmatpush1.msra.mxu0 0.0
      %505 = vmatprep.subr.mxu0 0.0
      %506 = vmatpush1.msra.mxu0 0.0
      %507 = vmatprep.subr.mxu0 0.0
      %508 = vmatpush1.msra.mxu0 0.0
      %509 = vmatprep.subr.mxu0 0.0
      %510 = vmatpush1.msra.mxu0 0.0
      %511 = vmatprep.subr.mxu0 0.0
      %512 = vmatpush1.msra.mxu0 0.0
      %513 = vmatprep.subr.mxu0 0.0
      %514 = vmatpush1.msra.mxu0 0.0
      %515 = vmatprep.subr.mxu0 0.0
      %516 = vmatpush1.msra.mxu0 0.0
      %517 = vmatprep.subr.mxu0 0.0
      %518 = vmatpush1.msra.mxu0 0.0
      %519 = vmatprep.subr.mxu0 0.0
      %520 = vmatpush1.msra.mxu0 0.0
      %521 = vmatprep.subr.mxu0 0.0
      %522 = vmatpush1.msra.mxu0 0.0
      %523 = vmatprep.subr.mxu0 0.0
      %524 = vmatpush1.msra.mxu0 0.0
      %525 = vmatprep.mubr.f32.mxu0 0.0
      %526 = vmatmul.mubr.f32.gmra.mrb[0].mxu0 %v366
      %v527 = vpop.f32.mrb[0].mxu0
      %v528 = vadd.f32 0.0, %v527
      %v529 = vpop.f32.mrb[0].mxu0
      %530 = vmatprep.mubr.f32.mxu0 0.0
      %531 = vmatmul.mubr.f32.gmra.mrb[0].mxu0 %v369
      %v532 = vpop.f32.mrb[0].mxu0
      %v533 = vadd.f32 0.0, %v532
      %v534 = vpop.f32.mrb[0].mxu0
      %535 = vmatprep.mubr.f32.mxu0 0.0
      %536 = vmatmul.mubr.f32.gmra.mrb[0].mxu0 %v372
      %v537 = vpop.f32.mrb[0].mxu0
      %v538 = vadd.f32 0.0, %v537
      %v539 = vpop.f32.mrb[0].mxu0
      %540 = vmatprep.mubr.f32.mxu0 0.0
      %541 = vmatmul.mubr.f32.gmra.mrb[0].mxu0 %v375
      %v542 = vpop.f32.mrb[0].mxu0
      %v543 = vadd.f32 0.0, %v542
      %v544 = vpop.f32.mrb[0].mxu0
      %545 = vmatprep.mubr.f32.mxu0 0.0
      %546 = vmatmul.mubr.f32.gmra.mrb[0].mxu0 %v378
      %v547 = vpop.f32.mrb[0].mxu0
      %v548 = vadd.f32 0.0, %v547
      %v549 = vpop.f32.mrb[0].mxu0
      %550 = vmatprep.mubr.f32.mxu0 0.0
      %551 = vmatmul.mubr.f32.gmra.mrb[0].mxu0 %v381
      %v552 = vpop.f32.mrb[0].mxu0
      %v553 = vadd.f32 0.0, %v552
      %v554 = vpop.f32.mrb[0].mxu0
      %555 = vmatprep.mubr.f32.mxu0 0.0
      %556 = vmatmul.mubr.f32.gmra.mrb[0].mxu0 %v384
      %v557 = vpop.f32.mrb[0].mxu0
      %v558 = vadd.f32 0.0, %v557
      %v559 = vpop.f32.mrb[0].mxu0
      %560 = vmatprep.mubr.f32.mxu0 0.0
      %561 = vmatmul.mubr.f32.gmra.mrb[0].mxu0 %v387
      %v562 = vpop.f32.mrb[0].mxu0
      %v563 = vadd.f32 0.0, %v562
      %v564 = vpop.f32.mrb[0].mxu0
      %565 = vmatprep.mubr.f32.mxu0 0.0
      %566 = vmatmul.mubr.f32.gmra.mrb[0].mxu0 %v390
      %v567 = vpop.f32.mrb[0].mxu0
      %v568 = vadd.f32 0.0, %v567
      %v569 = vpop.f32.mrb[0].mxu0
      %570 = vmatprep.mubr.f32.mxu0 0.0
      %571 = vmatmul.mubr.f32.gmra.mrb[0].mxu0 %v393
      %v572 = vpop.f32.mrb[0].mxu0
      %v573 = vadd.f32 0.0, %v572
      %v574 = vpop.f32.mrb[0].mxu0
      %575 = vmatprep.mubr.f32.mxu0 0.0
      %576 = vmatmul.mubr.f32.gmra.mrb[0].mxu0 %v396
      %v577 = vpop.f32.mrb[0].mxu0
      %v578 = vadd.f32 0.0, %v577
      %v579 = vpop.f32.mrb[0].mxu0
      %580 = vmatprep.mubr.f32.mxu0 0.0
      %581 = vmatmul.mubr.f32.gmra.mrb[0].mxu0 %v399
      %v582 = vpop.f32.mrb[0].mxu0
      %v583 = vadd.f32 0.0, %v582
      %v584 = vpop.f32.mrb[0].mxu0
      %585 = vmatprep.mubr.f32.mxu0 0.0
      %586 = vmatmul.mubr.f32.gmra.mrb[0].mxu0 %v402
      %v587 = vpop.f32.mrb[0].mxu0
      %v588 = vadd.f32 0.0, %v587
      %v589 = vpop.f32.mrb[0].mxu0
      %590 = vmatprep.mubr.f32.mxu0 0.0
      %591 = vmatmul.mubr.f32.gmra.mrb[0].mxu0 %v405
      %v592 = vpop.f32.mrb[0].mxu0
      %v593 = vadd.f32 0.0, %v592
      %v594 = vpop.f32.mrb[0].mxu0
      %595 = vmatprep.mubr.f32.mxu0 0.0
      %596 = vmatmul.mubr.f32.gmra.mrb[0].mxu0 %v408
      %v597 = vpop.f32.mrb[0].mxu0
      %v598 = vadd.f32 0.0, %v597
      %v599 = vpop.f32.mrb[0].mxu0
      %600 = vmatprep.mubr.f32.mxu0 0.0
      %601 = vmatmul.mubr.f32.gmra.mrb[0].mxu0 %v411
      %v602 = vpop.f32.mrb[0].mxu0
      %v603 = vadd.f32 0.0, %v602
      %v604 = vpop.f32.mrb[0].mxu0
      %605 = vmatprep.mubr.f32.mxu0 0.0
      %606 = vmatmul.mubr.f32.gmra.mrb[0].mxu0 %v414
      %v607 = vpop.f32.mrb[0].mxu0
      %v608 = vadd.f32 0.0, %v607
      %v609 = vpop.f32.mrb[0].mxu0
      %610 = vmatprep.mubr.f32.mxu0 0.0
      %611 = vmatmul.mubr.f32.gmra.mrb[0].mxu0 %v417
      %v612 = vpop.f32.mrb[0].mxu0
      %v613 = vadd.f32 0.0, %v612
      %v614 = vpop.f32.mrb[0].mxu0
      %615 = vmatprep.mubr.f32.mxu0 0.0
      %616 = vmatmul.mubr.f32.gmra.mrb[0].mxu0 %v420
      %v617 = vpop.f32.mrb[0].mxu0
      %v618 = vadd.f32 0.0, %v617
      %v619 = vpop.f32.mrb[0].mxu0
      %620 = vmatprep.mubr.f32.mxu0 0.0
      %621 = vmatmul.mubr.f32.gmra.mrb[0].mxu0 %v423
      %v622 = vpop.f32.mrb[0].mxu0
      %v623 = vadd.f32 0.0, %v622
      %v624 = vpop.f32.mrb[0].mxu0
      %625 = vmatprep.mubr.f32.mxu0 0.0
      %626 = vmatmul.mubr.f32.gmra.mrb[0].mxu0 %v426
      %v627 = vpop.f32.mrb[0].mxu0
      %v628 = vadd.f32 0.0, %v627
      %v629 = vpop.f32.mrb[0].mxu0
      %630 = vmatprep.mubr.f32.mxu0 0.0
      %631 = vmatmul.mubr.f32.gmra.mrb[0].mxu0 %v429
      %v632 = vpop.f32.mrb[0].mxu0
      %v633 = vadd.f32 0.0, %v632
      %v634 = vpop.f32.mrb[0].mxu0
      %635 = vmatprep.mubr.f32.mxu0 0.0
      %636 = vmatmul.mubr.f32.gmra.mrb[0].mxu0 %v432
      %v637 = vpop.f32.mrb[0].mxu0
      %v638 = vadd.f32 0.0, %v637
      %v639 = vpop.f32.mrb[0].mxu0
      %640 = vmatprep.mubr.f32.mxu0 0.0
      %641 = vmatmul.mubr.f32.gmra.mrb[0].mxu0 %v435
      %v642 = vpop.f32.mrb[0].mxu0
      %v643 = vadd.f32 0.0, %v642
      %v644 = vpop.f32.mrb[0].mxu0
      %645 = vmatprep.mubr.f32.mxu0 0.0
      %646 = vmatmul.mubr.f32.gmra.mrb[0].mxu0 %v438
      %v647 = vpop.f32.mrb[0].mxu0
      %v648 = vadd.f32 0.0, %v647
      %v649 = vpop.f32.mrb[0].mxu0
      %650 = vmatprep.mubr.f32.mxu0 0.0
      %651 = vmatmul.mubr.f32.gmra.mrb[0].mxu0 %v441
      %v652 = vpop.f32.mrb[0].mxu0
      %v653 = vadd.f32 0.0, %v652
      %v654 = vpop.f32.mrb[0].mxu0
      %655 = vmatprep.mubr.f32.mxu0 0.0
      %656 = vmatmul.mubr.f32.gmra.mrb[0].mxu0 %v444
      %v657 = vpop.f32.mrb[0].mxu0
      %v658 = vadd.f32 0.0, %v657
      %v659 = vpop.f32.mrb[0].mxu0
      %660 = vmatprep.mubr.f32.mxu0 0.0
      %661 = vmatmul.mubr.f32.gmra.mrb[0].mxu0 %v447
      %v662 = vpop.f32.mrb[0].mxu0
      %v663 = vadd.f32 0.0, %v662
      %v664 = vpop.f32.mrb[0].mxu0
      %665 = vmatprep.mubr.f32.mxu0 0.0
      %666 = vmatmul.mubr.f32.gmra.mrb[0].mxu0 %v450
      %v667 = vpop.f32.mrb[0].mxu0
      %v668 = vadd.f32 0.0, %v667
      %v669 = vpop.f32.mrb[0].mxu0
      %670 = vmatprep.mubr.f32.mxu0 0.0
      %671 = vmatmul.mubr.f32.gmra.mrb[0].mxu0 %v453
      %v672 = vpop.f32.mrb[0].mxu0
      %v673 = vadd.f32 0.0, %v672
      %v674 = vpop.f32.mrb[0].mxu0
      %675 = vmatprep.mubr.f32.mxu0 0.0
      %676 = vmatmul.mubr.f32.gmra.mrb[0].mxu0 %v456
      %v677 = vpop.f32.mrb[0].mxu0
      %v678 = vadd.f32 0.0, %v677
      %v679 = vpop.f32.mrb[0].mxu0
      %680 = vmatprep.mubr.f32.mxu0 0.0
      %681 = vmatmul.mubr.f32.gmra.mrb[0].mxu0 %v459
      %v682 = vpop.f32.mrb[0].mxu0
      %v683 = vadd.f32 0.0, %v682
      %v684 = vpop.f32.mrb[0].mxu0
      %685 = vdwg.mxu0
      %v686 = vadd.f32 %v296, %v528
      %v687 = vadd.f32 %v297, %v533
      %v688 = vadd.f32 %v298, %v538
      %v689 = vadd.f32 %v299, %v543
      %v690 = vadd.f32 %v300, %v548
      %v691 = vadd.f32 %v301, %v553
      %v692 = vadd.f32 %v302, %v558
      %v693 = vadd.f32 %v303, %v563
      %v694 = vadd.f32 %v304, %v568
      %v695 = vadd.f32 %v305, %v573
      %v696 = vadd.f32 %v306, %v578
      %v697 = vadd.f32 %v307, %v583
      %v698 = vadd.f32 %v308, %v588
      %v699 = vadd.f32 %v309, %v593
      %v700 = vadd.f32 %v310, %v598
      %v701 = vadd.f32 %v311, %v603
      %v702 = vadd.f32 %v312, %v608
      %v703 = vadd.f32 %v313, %v613
      %v704 = vadd.f32 %v314, %v618
      %v705 = vadd.f32 %v315, %v623
      %v706 = vadd.f32 %v316, %v628
      %v707 = vadd.f32 %v317, %v633
      %v708 = vadd.f32 %v318, %v638
      %v709 = vadd.f32 %v319, %v643
      %v710 = vadd.f32 %v320, %v648
      %v711 = vadd.f32 %v321, %v653
      %v712 = vadd.f32 %v322, %v658
      %v713 = vadd.f32 %v323, %v663
      %v714 = vadd.f32 %v324, %v668
      %v715 = vadd.f32 %v325, %v673
      %v716 = vadd.f32 %v326, %v678
      %v717 = vadd.f32 %v327, %v683
      %vm718 = vcmask 130048
      %719 = vst.msk [vmem:[#allocation2] sm:$0xff] %vm718, %v686
      %720 = vst.msk [vmem:[#allocation2 + $0x8] sm:$0xff] %vm718, %v687
      %721 = vst.msk [vmem:[#allocation2 + $0x10] sm:$0xff] %vm718, %v688
      %722 = vst.msk [vmem:[#allocation2 + $0x18] sm:$0xff] %vm718, %v689
      %723 = vst.msk [vmem:[#allocation2 + $0x20] sm:$0xff] %vm718, %v690
      %724 = vst.msk [vmem:[#allocation2 + $0x28] sm:$0xff] %vm718, %v691
      %725 = vst.msk [vmem:[#allocation2 + $0x30] sm:$0xff] %vm718, %v692
      %726 = vst.msk [vmem:[#allocation2 + $0x38] sm:$0xff] %vm718, %v693
      %727 = vst.msk [vmem:[#allocation2 + $0x40] sm:$0xff] %vm718, %v694
      %728 = vst.msk [vmem:[#allocation2 + $0x48] sm:$0xff] %vm718, %v695
      %729 = vst.msk [vmem:[#allocation2 + $0x50] sm:$0xff] %vm718, %v696
      %730 = vst.msk [vmem:[#allocation2 + $0x58] sm:$0xff] %vm718, %v697
      %731 = vst.msk [vmem:[#allocation2 + $0x60] sm:$0xff] %vm718, %v698
      %732 = vst.msk [vmem:[#allocation2 + $0x68] sm:$0xff] %vm718, %v699
      %733 = vst.msk [vmem:[#allocation2 + $0x70] sm:$0xff] %vm718, %v700
      %734 = vst.msk [vmem:[#allocation2 + $0x78] sm:$0xff] %vm718, %v701
      %735 = vst.msk [vmem:[#allocation2 + $0x80] sm:$0xff] %vm718, %v702
      %736 = vst.msk [vmem:[#allocation2 + $0x88] sm:$0xff] %vm718, %v703
      %737 = vst.msk [vmem:[#allocation2 + $0x90] sm:$0xff] %vm718, %v704
      %738 = vst.msk [vmem:[#allocation2 + $0x98] sm:$0xff] %vm718, %v705
      %739 = vst.msk [vmem:[#allocation2 + $0xa0] sm:$0xff] %vm718, %v706
      %740 = vst.msk [vmem:[#allocation2 + $0xa8] sm:$0xff] %vm718, %v707
      %741 = vst.msk [vmem:[#allocation2 + $0xb0] sm:$0xff] %vm718, %v708
      %742 = vst.msk [vmem:[#allocation2 + $0xb8] sm:$0xff] %vm718, %v709
      %743 = vst.msk [vmem:[#allocation2 + $0xc0] sm:$0xff] %vm718, %v710
      %744 = vst.msk [vmem:[#allocation2 + $0xc8] sm:$0xff] %vm718, %v711
      %745 = vst.msk [vmem:[#allocation2 + $0xd0] sm:$0xff] %vm718, %v712
      %746 = vst.msk [vmem:[#allocation2 + $0xd8] sm:$0xff] %vm718, %v713
      %747 = vst.msk [vmem:[#allocation2 + $0xe0] sm:$0xff] %vm718, %v714
      %748 = vst.msk [vmem:[#allocation2 + $0xe8] sm:$0xff] %vm718, %v715
      %749 = vst.msk [vmem:[#allocation2 + $0xf0] sm:$0xff] %vm718, %v716
      %750 = vst.msk [vmem:[#allocation2 + $0xf8] sm:$0xff] %vm718, %v717
      // Predicated region
      $region37: #{flexible_lite_mla_forward.9} parent=31 // pred_check
        %p751 = pneg %p259
      $region38: #{flexible_lite_mla_forward.9} parent=31 // pred_check_branch
        %753 = sbr.rel (%p751) target = $region40
      $region39: #{flexible_lite_mla_forward.9} parent=31 // pred_region
        %v754 = vld [vmem:[#allocation2] sm:$0xff]
        %v755 = vld [vmem:[#allocation2 + $0x8] sm:$0xff]
        %v756 = vld [vmem:[#allocation2 + $0x10] sm:$0xff]
        %v757 = vld [vmem:[#allocation2 + $0x18] sm:$0xff]
        %v758 = vld [vmem:[#allocation2 + $0x20] sm:$0xff]
        %v759 = vld [vmem:[#allocation2 + $0x28] sm:$0xff]
        %v760 = vld [vmem:[#allocation2 + $0x30] sm:$0xff]
        %v761 = vld [vmem:[#allocation2 + $0x38] sm:$0xff]
        %v762 = vld [vmem:[#allocation2 + $0x40] sm:$0xff]
        %v763 = vld [vmem:[#allocation2 + $0x48] sm:$0xff]
        %v764 = vld [vmem:[#allocation2 + $0x50] sm:$0xff]
        %v765 = vld [vmem:[#allocation2 + $0x58] sm:$0xff]
        %v766 = vld [vmem:[#allocation2 + $0x60] sm:$0xff]
        %v767 = vld [vmem:[#allocation2 + $0x68] sm:$0xff]
        %v768 = vld [vmem:[#allocation2 + $0x70] sm:$0xff]
        %v769 = vld [vmem:[#allocation2 + $0x78] sm:$0xff]
        %v770 = vld [vmem:[#allocation2 + $0x80] sm:$0xff]
        %v771 = vld [vmem:[#allocation2 + $0x88] sm:$0xff]
        %v772 = vld [vmem:[#allocation2 + $0x90] sm:$0xff]
        %v773 = vld [vmem:[#allocation2 + $0x98] sm:$0xff]
        %v774 = vld [vmem:[#allocation2 + $0xa0] sm:$0xff]
        %v775 = vld [vmem:[#allocation2 + $0xa8] sm:$0xff]
        %v776 = vld [vmem:[#allocation2 + $0xb0] sm:$0xff]
        %v777 = vld [vmem:[#allocation2 + $0xb8] sm:$0xff]
        %v778 = vld [vmem:[#allocation2 + $0xc0] sm:$0xff]
        %v779 = vld [vmem:[#allocation2 + $0xc8] sm:$0xff]
        %v780 = vld [vmem:[#allocation2 + $0xd0] sm:$0xff]
        %v781 = vld [vmem:[#allocation2 + $0xd8] sm:$0xff]
        %v782 = vld [vmem:[#allocation2 + $0xe0] sm:$0xff]
        %v783 = vld [vmem:[#allocation2 + $0xe8] sm:$0xff]
        %v784 = vld [vmem:[#allocation2 + $0xf0] sm:$0xff]
        %v785 = vld [vmem:[#allocation2 + $0xf8] sm:$0xff]
        %v786 = vld [vmem:[%s249] sm:$0x1]
        %v788 = vlaneseq
        %v789 = vshrl.u32 %v788, 7
        %v790 = vsub.s32 0, %v789
        %v791 = vrot.slane %v786, %v790
        %v793 = vadd.f32 %v754, %v791
        %v794 = vadd.f32 %v755, %v791
        %v795 = vadd.f32 %v756, %v791
        %v796 = vadd.f32 %v757, %v791
        %v797 = vadd.f32 %v758, %v791
        %v798 = vadd.f32 %v759, %v791
        %v799 = vadd.f32 %v760, %v791
        %v800 = vadd.f32 %v761, %v791
        %v801 = vadd.f32 %v762, %v791
        %v802 = vadd.f32 %v763, %v791
        %v803 = vadd.f32 %v764, %v791
        %v804 = vadd.f32 %v765, %v791
        %v805 = vadd.f32 %v766, %v791
        %v806 = vadd.f32 %v767, %v791
        %v807 = vadd.f32 %v768, %v791
        %v808 = vadd.f32 %v769, %v791
        %v809 = vadd.f32 %v770, %v791
        %v810 = vadd.f32 %v771, %v791
        %v811 = vadd.f32 %v772, %v791
        %v812 = vadd.f32 %v773, %v791
        %v813 = vadd.f32 %v774, %v791
        %v814 = vadd.f32 %v775, %v791
        %v815 = vadd.f32 %v776, %v791
        %v816 = vadd.f32 %v777, %v791
        %v817 = vadd.f32 %v778, %v791
        %v818 = vadd.f32 %v779, %v791
        %v819 = vadd.f32 %v780, %v791
        %v820 = vadd.f32 %v781, %v791
        %v821 = vadd.f32 %v782, %v791
        %v822 = vadd.f32 %v783, %v791
        %v823 = vadd.f32 %v784, %v791
        %v824 = vadd.f32 %v785, %v791
        %825 = vst.msk [vmem:[%s257] sm:$0xff] %vm718, %v793
        %826 = vst.msk [vmem:[%s257 + $0x8] sm:$0xff] %vm718, %v794
        %827 = vst.msk [vmem:[%s257 + $0x10] sm:$0xff] %vm718, %v795
        %828 = vst.msk [vmem:[%s257 + $0x18] sm:$0xff] %vm718, %v796
        %829 = vst.msk [vmem:[%s257 + $0x20] sm:$0xff] %vm718, %v797
        %830 = vst.msk [vmem:[%s257 + $0x28] sm:$0xff] %vm718, %v798
        %831 = vst.msk [vmem:[%s257 + $0x30] sm:$0xff] %vm718, %v799
        %832 = vst.msk [vmem:[%s257 + $0x38] sm:$0xff] %vm718, %v800
        %833 = vst.msk [vmem:[%s257 + $0x40] sm:$0xff] %vm718, %v801
        %834 = vst.msk [vmem:[%s257 + $0x48] sm:$0xff] %vm718, %v802
        %835 = vst.msk [vmem:[%s257 + $0x50] sm:$0xff] %vm718, %v803
        %836 = vst.msk [vmem:[%s257 + $0x58] sm:$0xff] %vm718, %v804
        %837 = vst.msk [vmem:[%s257 + $0x60] sm:$0xff] %vm718, %v805
        %838 = vst.msk [vmem:[%s257 + $0x68] sm:$0xff] %vm718, %v806
        %839 = vst.msk [vmem:[%s257 + $0x70] sm:$0xff] %vm718, %v807
        %840 = vst.msk [vmem:[%s257 + $0x78] sm:$0xff] %vm718, %v808
        %841 = vst.msk [vmem:[%s257 + $0x80] sm:$0xff] %vm718, %v809
        %842 = vst.msk [vmem:[%s257 + $0x88] sm:$0xff] %vm718, %v810
        %843 = vst.msk [vmem:[%s257 + $0x90] sm:$0xff] %vm718, %v811
        %844 = vst.msk [vmem:[%s257 + $0x98] sm:$0xff] %vm718, %v812
        %845 = vst.msk [vmem:[%s257 + $0xa0] sm:$0xff] %vm718, %v813
        %846 = vst.msk [vmem:[%s257 + $0xa8] sm:$0xff] %vm718, %v814
        %847 = vst.msk [vmem:[%s257 + $0xb0] sm:$0xff] %vm718, %v815
        %848 = vst.msk [vmem:[%s257 + $0xb8] sm:$0xff] %vm718, %v816
        %849 = vst.msk [vmem:[%s257 + $0xc0] sm:$0xff] %vm718, %v817
        %850 = vst.msk [vmem:[%s257 + $0xc8] sm:$0xff] %vm718, %v818
        %851 = vst.msk [vmem:[%s257 + $0xd0] sm:$0xff] %vm718, %v819
        %852 = vst.msk [vmem:[%s257 + $0xd8] sm:$0xff] %vm718, %v820
        %853 = vst.msk [vmem:[%s257 + $0xe0] sm:$0xff] %vm718, %v821
        %854 = vst.msk [vmem:[%s257 + $0xe8] sm:$0xff] %vm718, %v822
        %855 = vst.msk [vmem:[%s257 + $0xf0] sm:$0xff] %vm718, %v823
        %856 = vst.msk [vmem:[%s257 + $0xf8] sm:$0xff] %vm718, %v824
      $region40: #{flexible_lite_mla_forward.9} parent=31 // pred_fallthru
        _
      %s857 = smul.u32 32, %s19
      %p858 = scmp.lt.s32.totalorder %s857, 63
      %s859 = scalar_select %p858, %s857, 63
      %p860 = scmp.lt.s32.totalorder %s20, 0
      %s861 = scalar_select %p860, %s20, 0
      %s862 = sadd.s32 %s861, %s859
      %s863 = smul.addr %s862, 8
      %s864 = scalar_lea.vmem %s3, %s863
      // Predicated region
      $region41: #{flexible_lite_mla_forward.9} parent=31 // pred_check
        %p865 = pneg %p135
      $region42: #{flexible_lite_mla_forward.9} parent=31 // pred_check_branch
        %867 = sbr.rel (%p865) target = $region44
      $region43: #{flexible_lite_mla_forward.9} parent=31 // pred_region
        %s868 = smul.u32 32, %s19
      $region44: #{flexible_lite_mla_forward.9} parent=31 // pred_fallthru
        _
    $region32: #{flexible_lite_mla_forward.9} parent=5 // pred_fallthru
      _
    %p869 = scmp.le.s32.totalorder 2, %s9
    // Predicated region
    $region45: #{flexible_lite_mla_forward.9} parent=5 // pred_check
      %p870 = pneg %p869
    $region46: #{flexible_lite_mla_forward.9} parent=5 // pred_check_branch
      %872 = sbr.rel (%p870) target = $region48
    $region47: #{flexible_lite_mla_forward.9} parent=5 // pred_region
      %s873 = ssub.s32 %s9, 2
      // Predicated region
      $region49: #{flexible_lite_mla_forward.9} parent=47 // pred_check
        %p874 = pneg %p141
      $region50: #{flexible_lite_mla_forward.9} parent=47 // pred_check_branch
        %876 = sbr.rel (%p874) target = $region52
      $region51: #{flexible_lite_mla_forward.9} parent=47 // pred_region
        %s877 = smul.u32 32, %s22
        %p878 = scmp.lt.s32.totalorder %s877, 63
        %s879 = scalar_select %p878, %s877, 63
        %p880 = scmp.lt.s32.totalorder %s23, 0
        %s881 = scalar_select %p880, %s23, 0
        %s882 = sadd.s32 %s881, %s879
        %s883 = smul.addr %s882, 8
        %s884 = scalar_lea.vmem %s3, %s883
      $region52: #{flexible_lite_mla_forward.9} parent=47 // pred_fallthru
        _
    $region48: #{flexible_lite_mla_forward.9} parent=5 // pred_fallthru
      _
  $region6: #{flexible_lite_mla_forward.9} parent=0 // loop_footer
    %s13 = sadd.s32 1, %s9
  $region7: #{flexible_lite_mla_forward.9} parent=0 // loop_footer_branch
    %8 = sbr.rel target = $region3
  $region8: #{flexible_lite_mla_forward.9} parent=0 // loop_exit
    _

// kernel: flexible_lite_mla_forward.8
$region0: #{flexible_lite_mla_forward.8}
  #allocation0 [shape = 'u32[]', space=smem, size = 0x4, offset = 0x4, fixed_abs, tag = 'smem constant byte address 0x4 - core index']
  #allocation1 [shape = 'u32[144,128]{1,0:T(1,128)}', space=vmem, size = 0x12000, scoped, tag = 'internal scratch']
  %s0 = inlined_call_operand.vmem [shape: f32[2,256,48], index: 0, kind: input, shape index: {}]
  %s1 = inlined_call_operand.vmem [shape: f32[2,256,48], index: 1, kind: input, shape index: {}]
  %s2 = inlined_call_operand.vmem [shape: f32[2,256,32], index: 2, kind: output, shape index: {}]
  %s3 = sld [smem:[#allocation0]]
  $region41: #{flexible_lite_mla_forward.8} parent=0
    _
  %s5 = ssub.s32 1, %s3
  %s6 = scalar_select 0, %s5, %s3
  loop: start=0, step=1, limit=4
  $region2: #{flexible_lite_mla_forward.8} parent=0 // loop_pre_header
    _
  $region3: #{flexible_lite_mla_forward.8} parent=0 // loop_header
    %s8 = sphi 0, %s12
    %p9 = scmp.ge.s32.totalorder %s8, 4
    %s18 = sphi 0, %s20
    %s21 = sphi 0, %s18
    %s22 = sphi 0, %s21
    %s38 = sphi 0, %s22
    %s44 = sphi 0, %s46
    %s47 = sphi 0, %s44
    %s48 = sphi 0, %s47
    %s64 = sphi 0, %s48
    %s70 = sphi 0, %s72
    %s73 = sphi 0, %s70
    %s74 = sphi 0, %s73
    %s90 = sphi 0, %s74
  $region4: #{flexible_lite_mla_forward.8} parent=0 // loop_header_branch
    %11 = sbr.rel (%p9) target = $region8
  $region5: #{flexible_lite_mla_forward.8} parent=0 // loop_body
    %s13 = ssub.s32 %s8, 1
    %s14 = ssub.s32 %s8, 2
    %s15 = sadd.s32 %s8, 1
    %s16 = ssub.s32 %s8, %s15
    %p17 = scmp.eq.s32.totalorder %s16, 0
    %s19 = sadd.s32 %s18, 1
    %s20 = scalar_select %p17, %s18, %s19
    %p23 = pneg %p17
    %p24 = scmp.eq.s32.totalorder %s8, 1
    %p25 = por %p23, %p24
    %p26 = scmp.ne.s32.totalorder %s18, %s21
    %p27 = scmp.eq.s32.totalorder %s8, 0
    %p28 = por %p26, %p27
    %p29 = scmp.ne.s32.totalorder %s18, %s21
    %p30 = scmp.eq.s32.totalorder %s13, 1
    %p31 = por %p29, %p30
    %p32 = scmp.ne.s32.totalorder %s21, %s22
    %p33 = scmp.eq.s32.totalorder %s13, 0
    %p34 = por %p32, %p33
    %p35 = scmp.ne.s32.totalorder %s21, %s22
    %p36 = scmp.eq.s32.totalorder %s14, 1
    %p37 = por %p35, %p36
    %p39 = scmp.ne.s32.totalorder %s22, %s38
    %p40 = scmp.eq.s32.totalorder %s14, 0
    %p41 = por %p39, %p40
    %s42 = ssub.s32 %s8, %s15
    %p43 = scmp.eq.s32.totalorder %s42, 0
    %s45 = sadd.s32 %s44, 1
    %s46 = scalar_select %p43, %s44, %s45
    %p49 = pneg %p43
    %p50 = scmp.eq.s32.totalorder %s8, 1
    %p51 = por %p49, %p50
    %p52 = scmp.ne.s32.totalorder %s44, %s47
    %p53 = scmp.eq.s32.totalorder %s8, 0
    %p54 = por %p52, %p53
    %p55 = scmp.ne.s32.totalorder %s44, %s47
    %p56 = scmp.eq.s32.totalorder %s13, 1
    %p57 = por %p55, %p56
    %p58 = scmp.ne.s32.totalorder %s47, %s48
    %p59 = scmp.eq.s32.totalorder %s13, 0
    %p60 = por %p58, %p59
    %p61 = scmp.ne.s32.totalorder %s47, %s48
    %p62 = scmp.eq.s32.totalorder %s14, 1
    %p63 = por %p61, %p62
    %p65 = scmp.ne.s32.totalorder %s48, %s64
    %p66 = scmp.eq.s32.totalorder %s14, 0
    %p67 = por %p65, %p66
    %s68 = ssub.s32 %s8, %s15
    %p69 = scmp.eq.s32.totalorder %s68, 0
    %s71 = sadd.s32 %s70, 1
    %s72 = scalar_select %p69, %s70, %s71
    %p75 = pneg %p69
    %p76 = scmp.eq.s32.totalorder %s8, 1
    %p77 = por %p75, %p76
    %p78 = scmp.ne.s32.totalorder %s70, %s73
    %p79 = scmp.eq.s32.totalorder %s8, 0
    %p80 = por %p78, %p79
    %p81 = scmp.ne.s32.totalorder %s70, %s73
    %p82 = scmp.eq.s32.totalorder %s13, 1
    %p83 = por %p81, %p82
    %p84 = scmp.ne.s32.totalorder %s73, %s74
    %p85 = scmp.eq.s32.totalorder %s13, 0
    %p86 = por %p84, %p85
    %p87 = scmp.ne.s32.totalorder %s73, %s74
    %p88 = scmp.eq.s32.totalorder %s14, 1
    %p89 = por %p87, %p88
    %p91 = scmp.ne.s32.totalorder %s74, %s90
    %p92 = scmp.eq.s32.totalorder %s14, 0
    %p93 = por %p91, %p92
    %p94 = scmp.le.s32.totalorder 1, %s8
    %p95 = scmp.lt.s32.totalorder %s8, 3
    %p96 = pnand %p94, %p95
    %p97 = pneg %p96
    // Predicated region
    $region9: #{flexible_lite_mla_forward.8} parent=5 // pred_check
      _
    $region10: #{flexible_lite_mla_forward.8} parent=5 // pred_check_branch
      %99 = sbr.rel (%p96) target = $region12
    $region11: #{flexible_lite_mla_forward.8} parent=5 // pred_region
      %s100 = ssub.s32 %s8, 1
    $region12: #{flexible_lite_mla_forward.8} parent=5 // pred_fallthru
      _
    %p101 = scmp.lt.s32.totalorder %s8, 2
    // Predicated region
    $region13: #{flexible_lite_mla_forward.8} parent=5 // pred_check
      %p102 = pneg %p101
    $region14: #{flexible_lite_mla_forward.8} parent=5 // pred_check_branch
      %104 = sbr.rel (%p102) target = $region16
    $region15: #{flexible_lite_mla_forward.8} parent=5 // pred_region
      // Predicated region
      $region17: #{flexible_lite_mla_forward.8} parent=15 // pred_check
        %p105 = pneg %p28
      $region18: #{flexible_lite_mla_forward.8} parent=15 // pred_check_branch
        %107 = sbr.rel (%p105) target = $region20
      $region19: #{flexible_lite_mla_forward.8} parent=15 // pred_region
        %p108 = scmp.lt.s32.totalorder %s8, 1
        %s109 = scalar_select %p108, %s8, 1
        %s110 = smul.addr %s109, 32
        %s111 = smul.addr %s110, 8
        %s112 = scalar_lea.vmem %s0, %s111
      $region20: #{flexible_lite_mla_forward.8} parent=15 // pred_fallthru
        _
      // Predicated region
      $region21: #{flexible_lite_mla_forward.8} parent=15 // pred_check
        %p113 = pneg %p54
      $region22: #{flexible_lite_mla_forward.8} parent=15 // pred_check_branch
        %115 = sbr.rel (%p113) target = $region24
      $region23: #{flexible_lite_mla_forward.8} parent=15 // pred_region
        %p116 = scmp.lt.s32.totalorder %s8, 1
        %s117 = scalar_select %p116, %s8, 1
        %s118 = smul.addr %s117, 32
        %s119 = smul.addr %s118, 8
        %s120 = scalar_lea.vmem %s1, %s119
      $region24: #{flexible_lite_mla_forward.8} parent=15 // pred_fallthru
        _
    $region16: #{flexible_lite_mla_forward.8} parent=5 // pred_fallthru
      _
    %p121 = scmp.le.s32.totalorder 1, %s8
    %p122 = scmp.lt.s32.totalorder %s8, 3
    %p123 = pnand %p121, %p122
    %p124 = pneg %p123
    // Predicated region
    $region25: #{flexible_lite_mla_forward.8} parent=5 // pred_check
      _
    $region26: #{flexible_lite_mla_forward.8} parent=5 // pred_check_branch
      %126 = sbr.rel (%p123) target = $region28
    $region27: #{flexible_lite_mla_forward.8} parent=5 // pred_region
      %s127 = ssub.s32 %s8, 1
      %p128 = scmp.lt.s32.totalorder %s13, 1
      %s129 = scalar_select %p128, %s13, 1
      %s130 = smul.addr %s129, 32
      %s131 = smul.addr %s130, 8
      %s132 = scalar_lea.vmem %s0, %s131
      %p133 = pneg %p34
      %p134 = pneg %p31
      %p135 = scmp.lt.s32.totalorder %s13, 1
      %s136 = scalar_select %p135, %s13, 1
      %s137 = smul.addr %s136, 32
      %s138 = smul.addr %s137, 8
      %s139 = scalar_lea.vmem %s1, %s138
      %p140 = pneg %p60
      %p141 = pneg %p57
      %p142 = pneg %p86
      %p143 = pneg %p83
      %p144 = scmp.lt.s32.totalorder %s13, 1
      %s145 = scalar_select %p144, %s13, 1
      %s146 = smul.addr %s145, 32
      %s147 = smul.addr %s146, 8
      %s148 = scalar_lea.vmem %s2, %s147
      %p149 = scmp.lt.s32.totalorder %s13, 1
      %s150 = scalar_select %p149, %s13, 1
      %s151 = smul.addr %s150, 32
      %s152 = smul.addr %s151, 8
      %s153 = scalar_lea.vmem %s0, %s152
      %p154 = scmp.lt.s32.totalorder %s13, 1
      %s155 = scalar_select %p154, %s13, 1
      %s156 = smul.addr %s155, 32
      %s157 = smul.addr %s156, 8
      %s158 = scalar_lea.vmem %s1, %s157
      %p159 = scmp.lt.s32.totalorder %s13, 1
      %s160 = scalar_select %p159, %s13, 1
      %s161 = smul.addr %s160, 32
      %s162 = smul.addr %s161, 8
      %s163 = scalar_lea.vmem %s2, %s162
      %v164 = vld [vmem:[%s153] sm:$0xff]
      %v165 = vld [vmem:[%s153 + $0x8] sm:$0xff]
      %v166 = vld [vmem:[%s153 + $0x10] sm:$0xff]
      %v167 = vld [vmem:[%s153 + $0x18] sm:$0xff]
      %v168 = vld [vmem:[%s153 + $0x20] sm:$0xff]
      %v169 = vld [vmem:[%s153 + $0x28] sm:$0xff]
      %v170 = vld [vmem:[%s153 + $0x30] sm:$0xff]
      %v171 = vld [vmem:[%s153 + $0x38] sm:$0xff]
      %v172 = vld [vmem:[%s153 + $0x40] sm:$0xff]
      %v173 = vld [vmem:[%s153 + $0x48] sm:$0xff]
      %v174 = vld [vmem:[%s153 + $0x50] sm:$0xff]
      %v175 = vld [vmem:[%s153 + $0x58] sm:$0xff]
      %v176 = vld [vmem:[%s153 + $0x60] sm:$0xff]
      %v177 = vld [vmem:[%s153 + $0x68] sm:$0xff]
      %v178 = vld [vmem:[%s153 + $0x70] sm:$0xff]
      %v179 = vld [vmem:[%s153 + $0x78] sm:$0xff]
      %v180 = vld [vmem:[%s153 + $0x80] sm:$0xff]
      %v181 = vld [vmem:[%s153 + $0x88] sm:$0xff]
      %v182 = vld [vmem:[%s153 + $0x90] sm:$0xff]
      %v183 = vld [vmem:[%s153 + $0x98] sm:$0xff]
      %v184 = vld [vmem:[%s153 + $0xa0] sm:$0xff]
      %v185 = vld [vmem:[%s153 + $0xa8] sm:$0xff]
      %v186 = vld [vmem:[%s153 + $0xb0] sm:$0xff]
      %v187 = vld [vmem:[%s153 + $0xb8] sm:$0xff]
      %v188 = vld [vmem:[%s153 + $0xc0] sm:$0xff]
      %v189 = vld [vmem:[%s153 + $0xc8] sm:$0xff]
      %v190 = vld [vmem:[%s153 + $0xd0] sm:$0xff]
      %v191 = vld [vmem:[%s153 + $0xd8] sm:$0xff]
      %v192 = vld [vmem:[%s153 + $0xe0] sm:$0xff]
      %v193 = vld [vmem:[%s153 + $0xe8] sm:$0xff]
      %v194 = vld [vmem:[%s153 + $0xf0] sm:$0xff]
      %v195 = vld [vmem:[%s153 + $0xf8] sm:$0xff]
      %v196 = vmax.f32 %v164, 0.0
      %v197 = vmax.f32 %v165, 0.0
      %v198 = vmax.f32 %v166, 0.0
      %v199 = vmax.f32 %v167, 0.0
      %v200 = vmax.f32 %v168, 0.0
      %v201 = vmax.f32 %v169, 0.0
      %v202 = vmax.f32 %v170, 0.0
      %v203 = vmax.f32 %v171, 0.0
      %v204 = vmax.f32 %v172, 0.0
      %v205 = vmax.f32 %v173, 0.0
      %v206 = vmax.f32 %v174, 0.0
      %v207 = vmax.f32 %v175, 0.0
      %v208 = vmax.f32 %v176, 0.0
      %v209 = vmax.f32 %v177, 0.0
      %v210 = vmax.f32 %v178, 0.0
      %v211 = vmax.f32 %v179, 0.0
      %v212 = vmax.f32 %v180, 0.0
      %v213 = vmax.f32 %v181, 0.0
      %v214 = vmax.f32 %v182, 0.0
      %v215 = vmax.f32 %v183, 0.0
      %v216 = vmax.f32 %v184, 0.0
      %v217 = vmax.f32 %v185, 0.0
      %v218 = vmax.f32 %v186, 0.0
      %v219 = vmax.f32 %v187, 0.0
      %v220 = vmax.f32 %v188, 0.0
      %v221 = vmax.f32 %v189, 0.0
      %v222 = vmax.f32 %v190, 0.0
      %v223 = vmax.f32 %v191, 0.0
      %v224 = vmax.f32 %v192, 0.0
      %v225 = vmax.f32 %v193, 0.0
      %v226 = vmax.f32 %v194, 0.0
      %v227 = vmax.f32 %v195, 0.0
      %260 = vrot.lane.b32.xlu0 %v164, 112
      %v261 = vpop.permute.xlu0 %260
      %262 = vrot.lane.b32.xlu0 %v165, 112
      %v263 = vpop.permute.xlu0 %262
      %264 = vrot.lane.b32.xlu0 %v166, 112
      %v265 = vpop.permute.xlu0 %264
      %266 = vrot.lane.b32.xlu0 %v167, 112
      %v267 = vpop.permute.xlu0 %266
      %268 = vrot.lane.b32.xlu0 %v168, 112
      %v269 = vpop.permute.xlu0 %268
      %270 = vrot.lane.b32.xlu0 %v169, 112
      %v271 = vpop.permute.xlu0 %270
      %272 = vrot.lane.b32.xlu0 %v170, 112
      %v273 = vpop.permute.xlu0 %272
      %274 = vrot.lane.b32.xlu0 %v171, 112
      %v275 = vpop.permute.xlu0 %274
      %276 = vrot.lane.b32.xlu0 %v172, 112
      %v277 = vpop.permute.xlu0 %276
      %278 = vrot.lane.b32.xlu0 %v173, 112
      %v279 = vpop.permute.xlu0 %278
      %280 = vrot.lane.b32.xlu0 %v174, 112
      %v281 = vpop.permute.xlu0 %280
      %282 = vrot.lane.b32.xlu0 %v175, 112
      %v283 = vpop.permute.xlu0 %282
      %284 = vrot.lane.b32.xlu0 %v176, 112
      %v285 = vpop.permute.xlu0 %284
      %286 = vrot.lane.b32.xlu0 %v177, 112
      %v287 = vpop.permute.xlu0 %286
      %288 = vrot.lane.b32.xlu0 %v178, 112
      %v289 = vpop.permute.xlu0 %288
      %290 = vrot.lane.b32.xlu0 %v179, 112
      %v291 = vpop.permute.xlu0 %290
      %292 = vrot.lane.b32.xlu0 %v180, 112
      %v293 = vpop.permute.xlu0 %292
      %294 = vrot.lane.b32.xlu0 %v181, 112
      %v295 = vpop.permute.xlu0 %294
      %296 = vrot.lane.b32.xlu0 %v182, 112
      %v297 = vpop.permute.xlu0 %296
      %298 = vrot.lane.b32.xlu0 %v183, 112
      %v299 = vpop.permute.xlu0 %298
      %300 = vrot.lane.b32.xlu0 %v184, 112
      %v301 = vpop.permute.xlu0 %300
      %302 = vrot.lane.b32.xlu0 %v185, 112
      %v303 = vpop.permute.xlu0 %302
      %304 = vrot.lane.b32.xlu0 %v186, 112
      %v305 = vpop.permute.xlu0 %304
      %306 = vrot.lane.b32.xlu0 %v187, 112
      %v307 = vpop.permute.xlu0 %306
      %308 = vrot.lane.b32.xlu0 %v188, 112
      %v309 = vpop.permute.xlu0 %308
      %310 = vrot.lane.b32.xlu0 %v189, 112
      %v311 = vpop.permute.xlu0 %310
      %312 = vrot.lane.b32.xlu0 %v190, 112
      %v313 = vpop.permute.xlu0 %312
      %314 = vrot.lane.b32.xlu0 %v191, 112
      %v315 = vpop.permute.xlu0 %314
      %316 = vrot.lane.b32.xlu0 %v192, 112
      %v317 = vpop.permute.xlu0 %316
      %318 = vrot.lane.b32.xlu0 %v193, 112
      %v319 = vpop.permute.xlu0 %318
      %320 = vrot.lane.b32.xlu0 %v194, 112
      %v321 = vpop.permute.xlu0 %320
      %322 = vrot.lane.b32.xlu0 %v195, 112
      %v323 = vpop.permute.xlu0 %322
      %vm356 = vcmask 64512
      %v357 = vsel %vm356, %v261, 1.0
      %v358 = vsel %vm356, %v263, 1.0
      %v359 = vsel %vm356, %v265, 1.0
      %v360 = vsel %vm356, %v267, 1.0
      %v361 = vsel %vm356, %v269, 1.0
      %v362 = vsel %vm356, %v271, 1.0
      %v363 = vsel %vm356, %v273, 1.0
      %v364 = vsel %vm356, %v275, 1.0
      %v365 = vsel %vm356, %v277, 1.0
      %v366 = vsel %vm356, %v279, 1.0
      %v367 = vsel %vm356, %v281, 1.0
      %v368 = vsel %vm356, %v283, 1.0
      %v369 = vsel %vm356, %v285, 1.0
      %v370 = vsel %vm356, %v287, 1.0
      %v371 = vsel %vm356, %v289, 1.0
      %v372 = vsel %vm356, %v291, 1.0
      %v373 = vsel %vm356, %v293, 1.0
      %v374 = vsel %vm356, %v295, 1.0
      %v375 = vsel %vm356, %v297, 1.0
      %v376 = vsel %vm356, %v299, 1.0
      %v377 = vsel %vm356, %v301, 1.0
      %v378 = vsel %vm356, %v303, 1.0
      %v379 = vsel %vm356, %v305, 1.0
      %v380 = vsel %vm356, %v307, 1.0
      %v381 = vsel %vm356, %v309, 1.0
      %v382 = vsel %vm356, %v311, 1.0
      %v383 = vsel %vm356, %v313, 1.0
      %v384 = vsel %vm356, %v315, 1.0
      %v385 = vsel %vm356, %v317, 1.0
      %v386 = vsel %vm356, %v319, 1.0
      %v387 = vsel %vm356, %v321, 1.0
      %v388 = vsel %vm356, %v323, 1.0
      %421 = vrot.lane.b32.xlu0 %v196, 120
      %v422 = vpop.permute.xlu0 %421
      %423 = vrot.lane.b32.xlu0 %v197, 120
      %v424 = vpop.permute.xlu0 %423
      %425 = vrot.lane.b32.xlu0 %v198, 120
      %v426 = vpop.permute.xlu0 %425
      %427 = vrot.lane.b32.xlu0 %v199, 120
      %v428 = vpop.permute.xlu0 %427
      %429 = vrot.lane.b32.xlu0 %v200, 120
      %v430 = vpop.permute.xlu0 %429
      %431 = vrot.lane.b32.xlu0 %v201, 120
      %v432 = vpop.permute.xlu0 %431
      %433 = vrot.lane.b32.xlu0 %v202, 120
      %v434 = vpop.permute.xlu0 %433
      %435 = vrot.lane.b32.xlu0 %v203, 120
      %v436 = vpop.permute.xlu0 %435
      %437 = vrot.lane.b32.xlu0 %v204, 120
      %v438 = vpop.permute.xlu0 %437
      %439 = vrot.lane.b32.xlu0 %v205, 120
      %v440 = vpop.permute.xlu0 %439
      %441 = vrot.lane.b32.xlu0 %v206, 120
      %v442 = vpop.permute.xlu0 %441
      %443 = vrot.lane.b32.xlu0 %v207, 120
      %v444 = vpop.permute.xlu0 %443
      %445 = vrot.lane.b32.xlu0 %v208, 120
      %v446 = vpop.permute.xlu0 %445
      %447 = vrot.lane.b32.xlu0 %v209, 120
      %v448 = vpop.permute.xlu0 %447
      %449 = vrot.lane.b32.xlu0 %v210, 120
      %v450 = vpop.permute.xlu0 %449
      %451 = vrot.lane.b32.xlu0 %v211, 120
      %v452 = vpop.permute.xlu0 %451
      %453 = vrot.lane.b32.xlu0 %v212, 120
      %v454 = vpop.permute.xlu0 %453
      %455 = vrot.lane.b32.xlu0 %v213, 120
      %v456 = vpop.permute.xlu0 %455
      %457 = vrot.lane.b32.xlu0 %v214, 120
      %v458 = vpop.permute.xlu0 %457
      %459 = vrot.lane.b32.xlu0 %v215, 120
      %v460 = vpop.permute.xlu0 %459
      %461 = vrot.lane.b32.xlu0 %v216, 120
      %v462 = vpop.permute.xlu0 %461
      %463 = vrot.lane.b32.xlu0 %v217, 120
      %v464 = vpop.permute.xlu0 %463
      %465 = vrot.lane.b32.xlu0 %v218, 120
      %v466 = vpop.permute.xlu0 %465
      %467 = vrot.lane.b32.xlu0 %v219, 120
      %v468 = vpop.permute.xlu0 %467
      %469 = vrot.lane.b32.xlu0 %v220, 120
      %v470 = vpop.permute.xlu0 %469
      %471 = vrot.lane.b32.xlu0 %v221, 120
      %v472 = vpop.permute.xlu0 %471
      %473 = vrot.lane.b32.xlu0 %v222, 120
      %v474 = vpop.permute.xlu0 %473
      %475 = vrot.lane.b32.xlu0 %v223, 120
      %v476 = vpop.permute.xlu0 %475
      %477 = vrot.lane.b32.xlu0 %v224, 120
      %v478 = vpop.permute.xlu0 %477
      %479 = vrot.lane.b32.xlu0 %v225, 120
      %v480 = vpop.permute.xlu0 %479
      %481 = vrot.lane.b32.xlu0 %v226, 120
      %v482 = vpop.permute.xlu0 %481
      %483 = vrot.lane.b32.xlu0 %v227, 120
      %v484 = vpop.permute.xlu0 %483
      %517 = vxpose.xlu0.b32.start [1/16] %v422, 128
      %518 = vxpose.xlu0.b32.cont [2/16] %v424, 128
      %519 = vxpose.xlu0.b32.cont [3/16] %v426, 128
      %520 = vxpose.xlu0.b32.cont [4/16] %v428, 128
      %521 = vxpose.xlu0.b32.cont [5/16] %v430, 128
      %522 = vxpose.xlu0.b32.cont [6/16] %v432, 128
      %523 = vxpose.xlu0.b32.cont [7/16] %v434, 128
      %524 = vxpose.xlu0.b32.cont [8/16] %v436, 128
      %525 = vxpose.xlu0.b32.cont [9/16] %v438, 128
      %526 = vxpose.xlu0.b32.cont [10/16] %v440, 128
      %527 = vxpose.xlu0.b32.cont [11/16] %v442, 128
      %528 = vxpose.xlu0.b32.cont [12/16] %v444, 128
      %529 = vxpose.xlu0.b32.cont [13/16] %v446, 128
      %530 = vxpose.xlu0.b32.cont [14/16] %v448, 128
      %531 = vxpose.xlu0.b32.cont [15/16] %v450, 128
      %532 = vxpose.xlu0.b32.end [16/16] %v452, 128
      %v533 = vpop.trf.xlu0
      %v534 = vpop.trf.xlu0
      %v535 = vpop.trf.xlu0
      %v536 = vpop.trf.xlu0
      %v537 = vpop.trf.xlu0
      %v538 = vpop.trf.xlu0
      %v539 = vpop.trf.xlu0
      %v540 = vpop.trf.xlu0
      %v541 = vpop.trf.xlu0
      %v542 = vpop.trf.xlu0
      %v543 = vpop.trf.xlu0
      %v544 = vpop.trf.xlu0
      %v545 = vpop.trf.xlu0
      %v546 = vpop.trf.xlu0
      %v547 = vpop.trf.xlu0
      %v548 = vpop.trf.xlu0
      %549 = vxpose.xlu0.b32.start [1/16] %v454, 128
      %550 = vxpose.xlu0.b32.cont [2/16] %v456, 128
      %551 = vxpose.xlu0.b32.cont [3/16] %v458, 128
      %552 = vxpose.xlu0.b32.cont [4/16] %v460, 128
      %553 = vxpose.xlu0.b32.cont [5/16] %v462, 128
      %554 = vxpose.xlu0.b32.cont [6/16] %v464, 128
      %555 = vxpose.xlu0.b32.cont [7/16] %v466, 128
      %556 = vxpose.xlu0.b32.cont [8/16] %v468, 128
      %557 = vxpose.xlu0.b32.cont [9/16] %v470, 128
      %558 = vxpose.xlu0.b32.cont [10/16] %v472, 128
      %559 = vxpose.xlu0.b32.cont [11/16] %v474, 128
      %560 = vxpose.xlu0.b32.cont [12/16] %v476, 128
      %561 = vxpose.xlu0.b32.cont [13/16] %v478, 128
      %562 = vxpose.xlu0.b32.cont [14/16] %v480, 128
      %563 = vxpose.xlu0.b32.cont [15/16] %v482, 128
      %564 = vxpose.xlu0.b32.end [16/16] %v484, 128
      %v565 = vpop.trf.xlu0
      %v566 = vpop.trf.xlu0
      %v567 = vpop.trf.xlu0
      %v568 = vpop.trf.xlu0
      %v569 = vpop.trf.xlu0
      %v570 = vpop.trf.xlu0
      %v571 = vpop.trf.xlu0
      %v572 = vpop.trf.xlu0
      %v573 = vpop.trf.xlu0
      %v574 = vpop.trf.xlu0
      %v575 = vpop.trf.xlu0
      %v576 = vpop.trf.xlu0
      %v577 = vpop.trf.xlu0
      %v578 = vpop.trf.xlu0
      %v579 = vpop.trf.xlu0
      %v580 = vpop.trf.xlu0
      %581 = vmatprep.subr.mxu0 0.0
      %582 = vmatpush1.msra.mxu0 %v357
      %583 = vmatprep.subr.mxu0 0.0
      %584 = vmatpush1.msra.mxu0 %v358
      %585 = vmatprep.subr.mxu0 0.0
      %586 = vmatpush1.msra.mxu0 %v359
      %587 = vmatprep.subr.mxu0 0.0
      %588 = vmatpush1.msra.mxu0 %v360
      %589 = vmatprep.subr.mxu0 0.0
      %590 = vmatpush1.msra.mxu0 %v361
      %591 = vmatprep.subr.mxu0 0.0
      %592 = vmatpush1.msra.mxu0 %v362
      %593 = vmatprep.subr.mxu0 0.0
      %594 = vmatpush1.msra.mxu0 %v363
      %595 = vmatprep.subr.mxu0 0.0
      %596 = vmatpush1.msra.mxu0 %v364
      %597 = vmatprep.subr.mxu0 0.0
      %598 = vmatpush1.msra.mxu0 %v365
      %599 = vmatprep.subr.mxu0 0.0
      %600 = vmatpush1.msra.mxu0 %v366
      %601 = vmatprep.subr.mxu0 0.0
      %602 = vmatpush1.msra.mxu0 %v367
      %603 = vmatprep.subr.mxu0 0.0
      %604 = vmatpush1.msra.mxu0 %v368
      %605 = vmatprep.subr.mxu0 0.0
      %606 = vmatpush1.msra.mxu0 %v369
      %607 = vmatprep.subr.mxu0 0.0
      %608 = vmatpush1.msra.mxu0 %v370
      %609 = vmatprep.subr.mxu0 0.0
      %610 = vmatpush1.msra.mxu0 %v371
      %611 = vmatprep.subr.mxu0 0.0
      %612 = vmatpush1.msra.mxu0 %v372
      %613 = vmatprep.subr.mxu0 0.0
      %614 = vmatpush1.msra.mxu0 %v373
      %615 = vmatprep.subr.mxu0 0.0
      %616 = vmatpush1.msra.mxu0 %v374
      %617 = vmatprep.subr.mxu0 0.0
      %618 = vmatpush1.msra.mxu0 %v375
      %619 = vmatprep.subr.mxu0 0.0
      %620 = vmatpush1.msra.mxu0 %v376
      %621 = vmatprep.subr.mxu0 0.0
      %622 = vmatpush1.msra.mxu0 %v377
      %623 = vmatprep.subr.mxu0 0.0
      %624 = vmatpush1.msra.mxu0 %v378
      %625 = vmatprep.subr.mxu0 0.0
      %626 = vmatpush1.msra.mxu0 %v379
      %627 = vmatprep.subr.mxu0 0.0
      %628 = vmatpush1.msra.mxu0 %v380
      %629 = vmatprep.subr.mxu0 0.0
      %630 = vmatpush1.msra.mxu0 %v381
      %631 = vmatprep.subr.mxu0 0.0
      %632 = vmatpush1.msra.mxu0 %v382
      %633 = vmatprep.subr.mxu0 0.0
      %634 = vmatpush1.msra.mxu0 %v383
      %635 = vmatprep.subr.mxu0 0.0
      %636 = vmatpush1.msra.mxu0 %v384
      %637 = vmatprep.subr.mxu0 0.0
      %638 = vmatpush1.msra.mxu0 %v385
      %639 = vmatprep.subr.mxu0 0.0
      %640 = vmatpush1.msra.mxu0 %v386
      %641 = vmatprep.subr.mxu0 0.0
      %642 = vmatpush1.msra.mxu0 %v387
      %643 = vmatprep.subr.mxu0 0.0
      %644 = vmatpush1.msra.mxu0 %v388
      %645 = vmatprep.mubr.f32.mxu0 %v565
      %646 = vmatmul.mubr.f32.gmra.mrb[0].mxu0 %v533
      %v647 = vpop.f32.mrb[0].mxu0
      %v648 = vadd.f32 0.0, %v647
      %v649 = vpop.f32.mrb[0].mxu0
      %650 = vdwg.mxu0
      %v651 = vsel %vm356, %v196, 0
      %v653 = vsel %vm356, %v197, 0
      %v655 = vsel %vm356, %v198, 0
      %v657 = vsel %vm356, %v199, 0
      %v659 = vsel %vm356, %v200, 0
      %v661 = vsel %vm356, %v201, 0
      %v663 = vsel %vm356, %v202, 0
      %v665 = vsel %vm356, %v203, 0
      %v667 = vsel %vm356, %v204, 0
      %v669 = vsel %vm356, %v205, 0
      %v671 = vsel %vm356, %v206, 0
      %v673 = vsel %vm356, %v207, 0
      %v675 = vsel %vm356, %v208, 0
      %v677 = vsel %vm356, %v209, 0
      %v679 = vsel %vm356, %v210, 0
      %v681 = vsel %vm356, %v211, 0
      %v683 = vsel %vm356, %v212, 0
      %v685 = vsel %vm356, %v213, 0
      %v687 = vsel %vm356, %v214, 0
      %v689 = vsel %vm356, %v215, 0
      %v691 = vsel %vm356, %v216, 0
      %v693 = vsel %vm356, %v217, 0
      %v695 = vsel %vm356, %v218, 0
      %v697 = vsel %vm356, %v219, 0
      %v699 = vsel %vm356, %v220, 0
      %v701 = vsel %vm356, %v221, 0
      %v703 = vsel %vm356, %v222, 0
      %v705 = vsel %vm356, %v223, 0
      %v707 = vsel %vm356, %v224, 0
      %v709 = vsel %vm356, %v225, 0
      %v711 = vsel %vm356, %v226, 0
      %v713 = vsel %vm356, %v227, 0
      %715 = vmatprep.subr.mxu0 0.0
      %716 = vmatpush1.msra.mxu0 %v648
      %717 = vmatprep.subr.mxu0 0.0
      %718 = vmatpush1.msra.mxu0 0.0
      %719 = vmatprep.subr.mxu0 0.0
      %720 = vmatpush1.msra.mxu0 0.0
      %721 = vmatprep.subr.mxu0 0.0
      %722 = vmatpush1.msra.mxu0 0.0
      %723 = vmatprep.subr.mxu0 0.0
      %724 = vmatpush1.msra.mxu0 0.0
      %725 = vmatprep.subr.mxu0 0.0
      %726 = vmatpush1.msra.mxu0 0.0
      %727 = vmatprep.subr.mxu0 0.0
      %728 = vmatpush1.msra.mxu0 0.0
      %729 = vmatprep.subr.mxu0 0.0
      %730 = vmatpush1.msra.mxu0 0.0
      %731 = vmatprep.subr.mxu0 0.0
      %732 = vmatpush1.msra.mxu0 0.0
      %733 = vmatprep.subr.mxu0 0.0
      %734 = vmatpush1.msra.mxu0 0.0
      %735 = vmatprep.subr.mxu0 0.0
      %736 = vmatpush1.msra.mxu0 0.0
      %737 = vmatprep.subr.mxu0 0.0
      %738 = vmatpush1.msra.mxu0 0.0
      %739 = vmatprep.subr.mxu0 0.0
      %740 = vmatpush1.msra.mxu0 0.0
      %741 = vmatprep.subr.mxu0 0.0
      %742 = vmatpush1.msra.mxu0 0.0
      %743 = vmatprep.subr.mxu0 0.0
      %744 = vmatpush1.msra.mxu0 0.0
      %745 = vmatprep.subr.mxu0 0.0
      %746 = vmatpush1.msra.mxu0 0.0
      %747 = vmatprep.subr.mxu0 0.0
      %748 = vmatpush1.msra.mxu0 0.0
      %749 = vmatprep.subr.mxu0 0.0
      %750 = vmatpush1.msra.mxu0 0.0
      %751 = vmatprep.subr.mxu0 0.0
      %752 = vmatpush1.msra.mxu0 0.0
      %753 = vmatprep.subr.mxu0 0.0
      %754 = vmatpush1.msra.mxu0 0.0
      %755 = vmatprep.subr.mxu0 0.0
      %756 = vmatpush1.msra.mxu0 0.0
      %757 = vmatprep.subr.mxu0 0.0
      %758 = vmatpush1.msra.mxu0 0.0
      %759 = vmatprep.subr.mxu0 0.0
      %760 = vmatpush1.msra.mxu0 0.0
      %761 = vmatprep.subr.mxu0 0.0
      %762 = vmatpush1.msra.mxu0 0.0
      %763 = vmatprep.subr.mxu0 0.0
      %764 = vmatpush1.msra.mxu0 0.0
      %765 = vmatprep.subr.mxu0 0.0
      %766 = vmatpush1.msra.mxu0 0.0
      %767 = vmatprep.subr.mxu0 0.0
      %768 = vmatpush1.msra.mxu0 0.0
      %769 = vmatprep.subr.mxu0 0.0
      %770 = vmatpush1.msra.mxu0 0.0
      %771 = vmatprep.subr.mxu0 0.0
      %772 = vmatpush1.msra.mxu0 0.0
      %773 = vmatprep.subr.mxu0 0.0
      %774 = vmatpush1.msra.mxu0 0.0
      %775 = vmatprep.subr.mxu0 0.0
      %776 = vmatpush1.msra.mxu0 0.0
      %777 = vmatprep.subr.mxu0 0.0
      %778 = vmatpush1.msra.mxu0 0.0
      %779 = vmatprep.mubr.f32.mxu0 0.0
      %780 = vmatmul.mubr.f32.gmra.mrb[0].mxu0 %v651
      %v781 = vpop.f32.mrb[0].mxu0
      %v782 = vadd.f32 0.0, %v781
      %v783 = vpop.f32.mrb[0].mxu0
      %784 = vmatprep.mubr.f32.mxu0 0.0
      %785 = vmatmul.mubr.f32.gmra.mrb[0].mxu0 %v653
      %v786 = vpop.f32.mrb[0].mxu0
      %v787 = vadd.f32 0.0, %v786
      %v788 = vpop.f32.mrb[0].mxu0
      %789 = vmatprep.mubr.f32.mxu0 0.0
      %790 = vmatmul.mubr.f32.gmra.mrb[0].mxu0 %v655
      %v791 = vpop.f32.mrb[0].mxu0
      %v792 = vadd.f32 0.0, %v791
      %v793 = vpop.f32.mrb[0].mxu0
      %794 = vmatprep.mubr.f32.mxu0 0.0
      %795 = vmatmul.mubr.f32.gmra.mrb[0].mxu0 %v657
      %v796 = vpop.f32.mrb[0].mxu0
      %v797 = vadd.f32 0.0, %v796
      %v798 = vpop.f32.mrb[0].mxu0
      %799 = vmatprep.mubr.f32.mxu0 0.0
      %800 = vmatmul.mubr.f32.gmra.mrb[0].mxu0 %v659
      %v801 = vpop.f32.mrb[0].mxu0
      %v802 = vadd.f32 0.0, %v801
      %v803 = vpop.f32.mrb[0].mxu0
      %804 = vmatprep.mubr.f32.mxu0 0.0
      %805 = vmatmul.mubr.f32.gmra.mrb[0].mxu0 %v661
      %v806 = vpop.f32.mrb[0].mxu0
      %v807 = vadd.f32 0.0, %v806
      %v808 = vpop.f32.mrb[0].mxu0
      %809 = vmatprep.mubr.f32.mxu0 0.0
      %810 = vmatmul.mubr.f32.gmra.mrb[0].mxu0 %v663
      %v811 = vpop.f32.mrb[0].mxu0
      %v812 = vadd.f32 0.0, %v811
      %v813 = vpop.f32.mrb[0].mxu0
      %814 = vmatprep.mubr.f32.mxu0 0.0
      %815 = vmatmul.mubr.f32.gmra.mrb[0].mxu0 %v665
      %v816 = vpop.f32.mrb[0].mxu0
      %v817 = vadd.f32 0.0, %v816
      %v818 = vpop.f32.mrb[0].mxu0
      %819 = vmatprep.mubr.f32.mxu0 0.0
      %820 = vmatmul.mubr.f32.gmra.mrb[0].mxu0 %v667
      %v821 = vpop.f32.mrb[0].mxu0
      %v822 = vadd.f32 0.0, %v821
      %v823 = vpop.f32.mrb[0].mxu0
      %824 = vmatprep.mubr.f32.mxu0 0.0
      %825 = vmatmul.mubr.f32.gmra.mrb[0].mxu0 %v669
      %v826 = vpop.f32.mrb[0].mxu0
      %v827 = vadd.f32 0.0, %v826
      %v828 = vpop.f32.mrb[0].mxu0
      %829 = vmatprep.mubr.f32.mxu0 0.0
      %830 = vmatmul.mubr.f32.gmra.mrb[0].mxu0 %v671
      %v831 = vpop.f32.mrb[0].mxu0
      %v832 = vadd.f32 0.0, %v831
      %v833 = vpop.f32.mrb[0].mxu0
      %834 = vmatprep.mubr.f32.mxu0 0.0
      %835 = vmatmul.mubr.f32.gmra.mrb[0].mxu0 %v673
      %v836 = vpop.f32.mrb[0].mxu0
      %v837 = vadd.f32 0.0, %v836
      %v838 = vpop.f32.mrb[0].mxu0
      %839 = vmatprep.mubr.f32.mxu0 0.0
      %840 = vmatmul.mubr.f32.gmra.mrb[0].mxu0 %v675
      %v841 = vpop.f32.mrb[0].mxu0
      %v842 = vadd.f32 0.0, %v841
      %v843 = vpop.f32.mrb[0].mxu0
      %844 = vmatprep.mubr.f32.mxu0 0.0
      %845 = vmatmul.mubr.f32.gmra.mrb[0].mxu0 %v677
      %v846 = vpop.f32.mrb[0].mxu0
      %v847 = vadd.f32 0.0, %v846
      %v848 = vpop.f32.mrb[0].mxu0
      %849 = vmatprep.mubr.f32.mxu0 0.0
      %850 = vmatmul.mubr.f32.gmra.mrb[0].mxu0 %v679
      %v851 = vpop.f32.mrb[0].mxu0
      %v852 = vadd.f32 0.0, %v851
      %v853 = vpop.f32.mrb[0].mxu0
      %854 = vmatprep.mubr.f32.mxu0 0.0
      %855 = vmatmul.mubr.f32.gmra.mrb[0].mxu0 %v681
      %v856 = vpop.f32.mrb[0].mxu0
      %v857 = vadd.f32 0.0, %v856
      %v858 = vpop.f32.mrb[0].mxu0
      %859 = vmatprep.mubr.f32.mxu0 0.0
      %860 = vmatmul.mubr.f32.gmra.mrb[0].mxu0 %v683
      %v861 = vpop.f32.mrb[0].mxu0
      %v862 = vadd.f32 0.0, %v861
      %v863 = vpop.f32.mrb[0].mxu0
      %864 = vmatprep.mubr.f32.mxu0 0.0
      %865 = vmatmul.mubr.f32.gmra.mrb[0].mxu0 %v685
      %v866 = vpop.f32.mrb[0].mxu0
      %v867 = vadd.f32 0.0, %v866
      %v868 = vpop.f32.mrb[0].mxu0
      %869 = vmatprep.mubr.f32.mxu0 0.0
      %870 = vmatmul.mubr.f32.gmra.mrb[0].mxu0 %v687
      %v871 = vpop.f32.mrb[0].mxu0
      %v872 = vadd.f32 0.0, %v871
      %v873 = vpop.f32.mrb[0].mxu0
      %874 = vmatprep.mubr.f32.mxu0 0.0
      %875 = vmatmul.mubr.f32.gmra.mrb[0].mxu0 %v689
      %v876 = vpop.f32.mrb[0].mxu0
      %v877 = vadd.f32 0.0, %v876
      %v878 = vpop.f32.mrb[0].mxu0
      %879 = vmatprep.mubr.f32.mxu0 0.0
      %880 = vmatmul.mubr.f32.gmra.mrb[0].mxu0 %v691
      %v881 = vpop.f32.mrb[0].mxu0
      %v882 = vadd.f32 0.0, %v881
      %v883 = vpop.f32.mrb[0].mxu0
      %884 = vmatprep.mubr.f32.mxu0 0.0
      %885 = vmatmul.mubr.f32.gmra.mrb[0].mxu0 %v693
      %v886 = vpop.f32.mrb[0].mxu0
      %v887 = vadd.f32 0.0, %v886
      %v888 = vpop.f32.mrb[0].mxu0
      %889 = vmatprep.mubr.f32.mxu0 0.0
      %890 = vmatmul.mubr.f32.gmra.mrb[0].mxu0 %v695
      %v891 = vpop.f32.mrb[0].mxu0
      %v892 = vadd.f32 0.0, %v891
      %v893 = vpop.f32.mrb[0].mxu0
      %894 = vmatprep.mubr.f32.mxu0 0.0
      %895 = vmatmul.mubr.f32.gmra.mrb[0].mxu0 %v697
      %v896 = vpop.f32.mrb[0].mxu0
      %v897 = vadd.f32 0.0, %v896
      %v898 = vpop.f32.mrb[0].mxu0
      %899 = vmatprep.mubr.f32.mxu0 0.0
      %900 = vmatmul.mubr.f32.gmra.mrb[0].mxu0 %v699
      %v901 = vpop.f32.mrb[0].mxu0
      %v902 = vadd.f32 0.0, %v901
      %v903 = vpop.f32.mrb[0].mxu0
      %904 = vmatprep.mubr.f32.mxu0 0.0
      %905 = vmatmul.mubr.f32.gmra.mrb[0].mxu0 %v701
      %v906 = vpop.f32.mrb[0].mxu0
      %v907 = vadd.f32 0.0, %v906
      %v908 = vpop.f32.mrb[0].mxu0
      %909 = vmatprep.mubr.f32.mxu0 0.0
      %910 = vmatmul.mubr.f32.gmra.mrb[0].mxu0 %v703
      %v911 = vpop.f32.mrb[0].mxu0
      %v912 = vadd.f32 0.0, %v911
      %v913 = vpop.f32.mrb[0].mxu0
      %914 = vmatprep.mubr.f32.mxu0 0.0
      %915 = vmatmul.mubr.f32.gmra.mrb[0].mxu0 %v705
      %v916 = vpop.f32.mrb[0].mxu0
      %v917 = vadd.f32 0.0, %v916
      %v918 = vpop.f32.mrb[0].mxu0
      %919 = vmatprep.mubr.f32.mxu0 0.0
      %920 = vmatmul.mubr.f32.gmra.mrb[0].mxu0 %v707
      %v921 = vpop.f32.mrb[0].mxu0
      %v922 = vadd.f32 0.0, %v921
      %v923 = vpop.f32.mrb[0].mxu0
      %924 = vmatprep.mubr.f32.mxu0 0.0
      %925 = vmatmul.mubr.f32.gmra.mrb[0].mxu0 %v709
      %v926 = vpop.f32.mrb[0].mxu0
      %v927 = vadd.f32 0.0, %v926
      %v928 = vpop.f32.mrb[0].mxu0
      %929 = vmatprep.mubr.f32.mxu0 0.0
      %930 = vmatmul.mubr.f32.gmra.mrb[0].mxu0 %v711
      %v931 = vpop.f32.mrb[0].mxu0
      %v932 = vadd.f32 0.0, %v931
      %v933 = vpop.f32.mrb[0].mxu0
      %934 = vmatprep.mubr.f32.mxu0 0.0
      %935 = vmatmul.mubr.f32.gmra.mrb[0].mxu0 %v713
      %v936 = vpop.f32.mrb[0].mxu0
      %v937 = vadd.f32 0.0, %v936
      %v938 = vpop.f32.mrb[0].mxu0
      %939 = vdwg.mxu0
      %v940 = vadd.f32 %v782, 1e-15
      %v941 = vadd.f32 %v787, 1e-15
      %v942 = vadd.f32 %v792, 1e-15
      %v943 = vadd.f32 %v797, 1e-15
      %v944 = vadd.f32 %v802, 1e-15
      %v945 = vadd.f32 %v807, 1e-15
      %v946 = vadd.f32 %v812, 1e-15
      %v947 = vadd.f32 %v817, 1e-15
      %v948 = vadd.f32 %v822, 1e-15
      %v949 = vadd.f32 %v827, 1e-15
      %v950 = vadd.f32 %v832, 1e-15
      %v951 = vadd.f32 %v837, 1e-15
      %v952 = vadd.f32 %v842, 1e-15
      %v953 = vadd.f32 %v847, 1e-15
      %v954 = vadd.f32 %v852, 1e-15
      %v955 = vadd.f32 %v857, 1e-15
      %v956 = vadd.f32 %v862, 1e-15
      %v957 = vadd.f32 %v867, 1e-15
      %v958 = vadd.f32 %v872, 1e-15
      %v959 = vadd.f32 %v877, 1e-15
      %v960 = vadd.f32 %v882, 1e-15
      %v961 = vadd.f32 %v887, 1e-15
      %v962 = vadd.f32 %v892, 1e-15
      %v963 = vadd.f32 %v897, 1e-15
      %v964 = vadd.f32 %v902, 1e-15
      %v965 = vadd.f32 %v907, 1e-15
      %v966 = vadd.f32 %v912, 1e-15
      %v967 = vadd.f32 %v917, 1e-15
      %v968 = vadd.f32 %v922, 1e-15
      %v969 = vadd.f32 %v927, 1e-15
      %v970 = vadd.f32 %v932, 1e-15
      %v971 = vadd.f32 %v937, 1e-15
      %v972 = vrcp.pop %v940
      %v973 = vrcp.pop %v941
      %v974 = vrcp.pop %v942
      %v975 = vrcp.pop %v943
      %v976 = vrcp.pop %v944
      %v977 = vrcp.pop %v945
      %v978 = vrcp.pop %v946
      %v979 = vrcp.pop %v947
      %v980 = vrcp.pop %v948
      %v981 = vrcp.pop %v949
      %v982 = vrcp.pop %v950
      %v983 = vrcp.pop %v951
      %v984 = vrcp.pop %v952
      %v985 = vrcp.pop %v953
      %v986 = vrcp.pop %v954
      %v987 = vrcp.pop %v955
      %v988 = vrcp.pop %v956
      %v989 = vrcp.pop %v957
      %v990 = vrcp.pop %v958
      %v991 = vrcp.pop %v959
      %v992 = vrcp.pop %v960
      %v993 = vrcp.pop %v961
      %v994 = vrcp.pop %v962
      %v995 = vrcp.pop %v963
      %v996 = vrcp.pop %v964
      %v997 = vrcp.pop %v965
      %v998 = vrcp.pop %v966
      %v999 = vrcp.pop %v967
      %v1000 = vrcp.pop %v968
      %v1001 = vrcp.pop %v969
      %v1002 = vrcp.pop %v970
      %v1003 = vrcp.pop %v971
      %1005 = vset.pattern.permute.xlu0 8
      %1006 = vperm.xlu0 %1005, %v972
      %v1007 = vpop.permute.xlu0 %1006
      %1010 = vset.pattern.permute.xlu0 8
      %1011 = vperm.xlu0 %1010, %v973
      %v1012 = vpop.permute.xlu0 %1011
      %1015 = vset.pattern.permute.xlu0 8
      %1016 = vperm.xlu0 %1015, %v974
      %v1017 = vpop.permute.xlu0 %1016
      %1020 = vset.pattern.permute.xlu0 8
      %1021 = vperm.xlu0 %1020, %v975
      %v1022 = vpop.permute.xlu0 %1021
      %1025 = vset.pattern.permute.xlu0 8
      %1026 = vperm.xlu0 %1025, %v976
      %v1027 = vpop.permute.xlu0 %1026
      %1030 = vset.pattern.permute.xlu0 8
      %1031 = vperm.xlu0 %1030, %v977
      %v1032 = vpop.permute.xlu0 %1031
      %1035 = vset.pattern.permute.xlu0 8
      %1036 = vperm.xlu0 %1035, %v978
      %v1037 = vpop.permute.xlu0 %1036
      %1040 = vset.pattern.permute.xlu0 8
      %1041 = vperm.xlu0 %1040, %v979
      %v1042 = vpop.permute.xlu0 %1041
      %1045 = vset.pattern.permute.xlu0 8
      %1046 = vperm.xlu0 %1045, %v980
      %v1047 = vpop.permute.xlu0 %1046
      %1050 = vset.pattern.permute.xlu0 8
      %1051 = vperm.xlu0 %1050, %v981
      %v1052 = vpop.permute.xlu0 %1051
      %1055 = vset.pattern.permute.xlu0 8
      %1056 = vperm.xlu0 %1055, %v982
      %v1057 = vpop.permute.xlu0 %1056
      %1060 = vset.pattern.permute.xlu0 8
      %1061 = vperm.xlu0 %1060, %v983
      %v1062 = vpop.permute.xlu0 %1061
      %1065 = vset.pattern.permute.xlu0 8
      %1066 = vperm.xlu0 %1065, %v984
      %v1067 = vpop.permute.xlu0 %1066
      %1070 = vset.pattern.permute.xlu0 8
      %1071 = vperm.xlu0 %1070, %v985
      %v1072 = vpop.permute.xlu0 %1071
      %1075 = vset.pattern.permute.xlu0 8
      %1076 = vperm.xlu0 %1075, %v986
      %v1077 = vpop.permute.xlu0 %1076
      %1080 = vset.pattern.permute.xlu0 8
      %1081 = vperm.xlu0 %1080, %v987
      %v1082 = vpop.permute.xlu0 %1081
      %1085 = vset.pattern.permute.xlu0 8
      %1086 = vperm.xlu0 %1085, %v988
      %v1087 = vpop.permute.xlu0 %1086
      %1090 = vset.pattern.permute.xlu0 8
      %1091 = vperm.xlu0 %1090, %v989
      %v1092 = vpop.permute.xlu0 %1091
      %1095 = vset.pattern.permute.xlu0 8
      %1096 = vperm.xlu0 %1095, %v990
      %v1097 = vpop.permute.xlu0 %1096
      %1100 = vset.pattern.permute.xlu0 8
      %1101 = vperm.xlu0 %1100, %v991
      %v1102 = vpop.permute.xlu0 %1101
      %1105 = vset.pattern.permute.xlu0 8
      %1106 = vperm.xlu0 %1105, %v992
      %v1107 = vpop.permute.xlu0 %1106
      %1110 = vset.pattern.permute.xlu0 8
      %1111 = vperm.xlu0 %1110, %v993
      %v1112 = vpop.permute.xlu0 %1111
      %1115 = vset.pattern.permute.xlu0 8
      %1116 = vperm.xlu0 %1115, %v994
      %v1117 = vpop.permute.xlu0 %1116
      %1120 = vset.pattern.permute.xlu0 8
      %1121 = vperm.xlu0 %1120, %v995
      %v1122 = vpop.permute.xlu0 %1121
      %1125 = vset.pattern.permute.xlu0 8
      %1126 = vperm.xlu0 %1125, %v996
      %v1127 = vpop.permute.xlu0 %1126
      %1130 = vset.pattern.permute.xlu0 8
      %1131 = vperm.xlu0 %1130, %v997
      %v1132 = vpop.permute.xlu0 %1131
      %1135 = vset.pattern.permute.xlu0 8
      %1136 = vperm.xlu0 %1135, %v998
      %v1137 = vpop.permute.xlu0 %1136
      %1140 = vset.pattern.permute.xlu0 8
      %1141 = vperm.xlu0 %1140, %v999
      %v1142 = vpop.permute.xlu0 %1141
      %1145 = vset.pattern.permute.xlu0 8
      %1146 = vperm.xlu0 %1145, %v1000
      %v1147 = vpop.permute.xlu0 %1146
      %1150 = vset.pattern.permute.xlu0 8
      %1151 = vperm.xlu0 %1150, %v1001
      %v1152 = vpop.permute.xlu0 %1151
      %1155 = vset.pattern.permute.xlu0 8
      %1156 = vperm.xlu0 %1155, %v1002
      %v1157 = vpop.permute.xlu0 %1156
      %1160 = vset.pattern.permute.xlu0 8
      %1161 = vperm.xlu0 %1160, %v1003
      %v1162 = vpop.permute.xlu0 %1161
      %v1164 = vmul.f32 %v782, %v1007
      %v1165 = vmul.f32 %v787, %v1012
      %v1166 = vmul.f32 %v792, %v1017
      %v1167 = vmul.f32 %v797, %v1022
      %v1168 = vmul.f32 %v802, %v1027
      %v1169 = vmul.f32 %v807, %v1032
      %v1170 = vmul.f32 %v812, %v1037
      %v1171 = vmul.f32 %v817, %v1042
      %v1172 = vmul.f32 %v822, %v1047
      %v1173 = vmul.f32 %v827, %v1052
      %v1174 = vmul.f32 %v832, %v1057
      %v1175 = vmul.f32 %v837, %v1062
      %v1176 = vmul.f32 %v842, %v1067
      %v1177 = vmul.f32 %v847, %v1072
      %v1178 = vmul.f32 %v852, %v1077
      %v1179 = vmul.f32 %v857, %v1082
      %v1180 = vmul.f32 %v862, %v1087
      %v1181 = vmul.f32 %v867, %v1092
      %v1182 = vmul.f32 %v872, %v1097
      %v1183 = vmul.f32 %v877, %v1102
      %v1184 = vmul.f32 %v882, %v1107
      %v1185 = vmul.f32 %v887, %v1112
      %v1186 = vmul.f32 %v892, %v1117
      %v1187 = vmul.f32 %v897, %v1122
      %v1188 = vmul.f32 %v902, %v1127
      %v1189 = vmul.f32 %v907, %v1132
      %v1190 = vmul.f32 %v912, %v1137
      %v1191 = vmul.f32 %v917, %v1142
      %v1192 = vmul.f32 %v922, %v1147
      %v1193 = vmul.f32 %v927, %v1152
      %v1194 = vmul.f32 %v932, %v1157
      %v1195 = vmul.f32 %v937, %v1162
      %1196 = vrot.lane.b32.xlu0 %v164, 88
      %v1197 = vpop.permute.xlu0 %1196
      %1198 = vrot.lane.b32.xlu0 %v165, 88
      %v1199 = vpop.permute.xlu0 %1198
      %1200 = vrot.lane.b32.xlu0 %v166, 88
      %v1201 = vpop.permute.xlu0 %1200
      %1202 = vrot.lane.b32.xlu0 %v167, 88
      %v1203 = vpop.permute.xlu0 %1202
      %1204 = vrot.lane.b32.xlu0 %v168, 88
      %v1205 = vpop.permute.xlu0 %1204
      %1206 = vrot.lane.b32.xlu0 %v169, 88
      %v1207 = vpop.permute.xlu0 %1206
      %1208 = vrot.lane.b32.xlu0 %v170, 88
      %v1209 = vpop.permute.xlu0 %1208
      %1210 = vrot.lane.b32.xlu0 %v171, 88
      %v1211 = vpop.permute.xlu0 %1210
      %1212 = vrot.lane.b32.xlu0 %v172, 88
      %v1213 = vpop.permute.xlu0 %1212
      %1214 = vrot.lane.b32.xlu0 %v173, 88
      %v1215 = vpop.permute.xlu0 %1214
      %1216 = vrot.lane.b32.xlu0 %v174, 88
      %v1217 = vpop.permute.xlu0 %1216
      %1218 = vrot.lane.b32.xlu0 %v175, 88
      %v1219 = vpop.permute.xlu0 %1218
      %1220 = vrot.lane.b32.xlu0 %v176, 88
      %v1221 = vpop.permute.xlu0 %1220
      %1222 = vrot.lane.b32.xlu0 %v177, 88
      %v1223 = vpop.permute.xlu0 %1222
      %1224 = vrot.lane.b32.xlu0 %v178, 88
      %v1225 = vpop.permute.xlu0 %1224
      %1226 = vrot.lane.b32.xlu0 %v179, 88
      %v1227 = vpop.permute.xlu0 %1226
      %1228 = vrot.lane.b32.xlu0 %v180, 88
      %v1229 = vpop.permute.xlu0 %1228
      %1230 = vrot.lane.b32.xlu0 %v181, 88
      %v1231 = vpop.permute.xlu0 %1230
      %1232 = vrot.lane.b32.xlu0 %v182, 88
      %v1233 = vpop.permute.xlu0 %1232
      %1234 = vrot.lane.b32.xlu0 %v183, 88
      %v1235 = vpop.permute.xlu0 %1234
      %1236 = vrot.lane.b32.xlu0 %v184, 88
      %v1237 = vpop.permute.xlu0 %1236
      %1238 = vrot.lane.b32.xlu0 %v185, 88
      %v1239 = vpop.permute.xlu0 %1238
      %1240 = vrot.lane.b32.xlu0 %v186, 88
      %v1241 = vpop.permute.xlu0 %1240
      %1242 = vrot.lane.b32.xlu0 %v187, 88
      %v1243 = vpop.permute.xlu0 %1242
      %1244 = vrot.lane.b32.xlu0 %v188, 88
      %v1245 = vpop.permute.xlu0 %1244
      %1246 = vrot.lane.b32.xlu0 %v189, 88
      %v1247 = vpop.permute.xlu0 %1246
      %1248 = vrot.lane.b32.xlu0 %v190, 88
      %v1249 = vpop.permute.xlu0 %1248
      %1250 = vrot.lane.b32.xlu0 %v191, 88
      %v1251 = vpop.permute.xlu0 %1250
      %1252 = vrot.lane.b32.xlu0 %v192, 88
      %v1253 = vpop.permute.xlu0 %1252
      %1254 = vrot.lane.b32.xlu0 %v193, 88
      %v1255 = vpop.permute.xlu0 %1254
      %1256 = vrot.lane.b32.xlu0 %v194, 88
      %v1257 = vpop.permute.xlu0 %1256
      %1258 = vrot.lane.b32.xlu0 %v195, 88
      %v1259 = vpop.permute.xlu0 %1258
      %v1292 = vsel %vm356, %v1197, 1.0
      %v1293 = vsel %vm356, %v1199, 1.0
      %v1294 = vsel %vm356, %v1201, 1.0
      %v1295 = vsel %vm356, %v1203, 1.0
      %v1296 = vsel %vm356, %v1205, 1.0
      %v1297 = vsel %vm356, %v1207, 1.0
      %v1298 = vsel %vm356, %v1209, 1.0
      %v1299 = vsel %vm356, %v1211, 1.0
      %v1300 = vsel %vm356, %v1213, 1.0
      %v1301 = vsel %vm356, %v1215, 1.0
      %v1302 = vsel %vm356, %v1217, 1.0
      %v1303 = vsel %vm356, %v1219, 1.0
      %v1304 = vsel %vm356, %v1221, 1.0
      %v1305 = vsel %vm356, %v1223, 1.0
      %v1306 = vsel %vm356, %v1225, 1.0
      %v1307 = vsel %vm356, %v1227, 1.0
      %v1308 = vsel %vm356, %v1229, 1.0
      %v1309 = vsel %vm356, %v1231, 1.0
      %v1310 = vsel %vm356, %v1233, 1.0
      %v1311 = vsel %vm356, %v1235, 1.0
      %v1312 = vsel %vm356, %v1237, 1.0
      %v1313 = vsel %vm356, %v1239, 1.0
      %v1314 = vsel %vm356, %v1241, 1.0
      %v1315 = vsel %vm356, %v1243, 1.0
      %v1316 = vsel %vm356, %v1245, 1.0
      %v1317 = vsel %vm356, %v1247, 1.0
      %v1318 = vsel %vm356, %v1249, 1.0
      %v1319 = vsel %vm356, %v1251, 1.0
      %v1320 = vsel %vm356, %v1253, 1.0
      %v1321 = vsel %vm356, %v1255, 1.0
      %v1322 = vsel %vm356, %v1257, 1.0
      %v1323 = vsel %vm356, %v1259, 1.0
      %1324 = vrot.lane.b32.xlu0 %v196, 96
      %v1325 = vpop.permute.xlu0 %1324
      %1326 = vrot.lane.b32.xlu0 %v197, 96
      %v1327 = vpop.permute.xlu0 %1326
      %1328 = vrot.lane.b32.xlu0 %v198, 96
      %v1329 = vpop.permute.xlu0 %1328
      %1330 = vrot.lane.b32.xlu0 %v199, 96
      %v1331 = vpop.permute.xlu0 %1330
      %1332 = vrot.lane.b32.xlu0 %v200, 96
      %v1333 = vpop.permute.xlu0 %1332
      %1334 = vrot.lane.b32.xlu0 %v201, 96
      %v1335 = vpop.permute.xlu0 %1334
      %1336 = vrot.lane.b32.xlu0 %v202, 96
      %v1337 = vpop.permute.xlu0 %1336
      %1338 = vrot.lane.b32.xlu0 %v203, 96
      %v1339 = vpop.permute.xlu0 %1338
      %1340 = vrot.lane.b32.xlu0 %v204, 96
      %v1341 = vpop.permute.xlu0 %1340
      %1342 = vrot.lane.b32.xlu0 %v205, 96
      %v1343 = vpop.permute.xlu0 %1342
      %1344 = vrot.lane.b32.xlu0 %v206, 96
      %v1345 = vpop.permute.xlu0 %1344
      %1346 = vrot.lane.b32.xlu0 %v207, 96
      %v1347 = vpop.permute.xlu0 %1346
      %1348 = vrot.lane.b32.xlu0 %v208, 96
      %v1349 = vpop.permute.xlu0 %1348
      %1350 = vrot.lane.b32.xlu0 %v209, 96
      %v1351 = vpop.permute.xlu0 %1350
      %1352 = vrot.lane.b32.xlu0 %v210, 96
      %v1353 = vpop.permute.xlu0 %1352
      %1354 = vrot.lane.b32.xlu0 %v211, 96
      %v1355 = vpop.permute.xlu0 %1354
      %1356 = vrot.lane.b32.xlu0 %v212, 96
      %v1357 = vpop.permute.xlu0 %1356
      %1358 = vrot.lane.b32.xlu0 %v213, 96
      %v1359 = vpop.permute.xlu0 %1358
      %1360 = vrot.lane.b32.xlu0 %v214, 96
      %v1361 = vpop.permute.xlu0 %1360
      %1362 = vrot.lane.b32.xlu0 %v215, 96
      %v1363 = vpop.permute.xlu0 %1362
      %1364 = vrot.lane.b32.xlu0 %v216, 96
      %v1365 = vpop.permute.xlu0 %1364
      %1366 = vrot.lane.b32.xlu0 %v217, 96
      %v1367 = vpop.permute.xlu0 %1366
      %1368 = vrot.lane.b32.xlu0 %v218, 96
      %v1369 = vpop.permute.xlu0 %1368
      %1370 = vrot.lane.b32.xlu0 %v219, 96
      %v1371 = vpop.permute.xlu0 %1370
      %1372 = vrot.lane.b32.xlu0 %v220, 96
      %v1373 = vpop.permute.xlu0 %1372
      %1374 = vrot.lane.b32.xlu0 %v221, 96
      %v1375 = vpop.permute.xlu0 %1374
      %1376 = vrot.lane.b32.xlu0 %v222, 96
      %v1377 = vpop.permute.xlu0 %1376
      %1378 = vrot.lane.b32.xlu0 %v223, 96
      %v1379 = vpop.permute.xlu0 %1378
      %1380 = vrot.lane.b32.xlu0 %v224, 96
      %v1381 = vpop.permute.xlu0 %1380
      %1382 = vrot.lane.b32.xlu0 %v225, 96
      %v1383 = vpop.permute.xlu0 %1382
      %1384 = vrot.lane.b32.xlu0 %v226, 96
      %v1385 = vpop.permute.xlu0 %1384
      %1386 = vrot.lane.b32.xlu0 %v227, 96
      %v1387 = vpop.permute.xlu0 %1386
      %1420 = vxpose.xlu0.b32.start [1/16] %v1325, 128
      %1421 = vxpose.xlu0.b32.cont [2/16] %v1327, 128
      %1422 = vxpose.xlu0.b32.cont [3/16] %v1329, 128
      %1423 = vxpose.xlu0.b32.cont [4/16] %v1331, 128
      %1424 = vxpose.xlu0.b32.cont [5/16] %v1333, 128
      %1425 = vxpose.xlu0.b32.cont [6/16] %v1335, 128
      %1426 = vxpose.xlu0.b32.cont [7/16] %v1337, 128
      %1427 = vxpose.xlu0.b32.cont [8/16] %v1339, 128
      %1428 = vxpose.xlu0.b32.cont [9/16] %v1341, 128
      %1429 = vxpose.xlu0.b32.cont [10/16] %v1343, 128
      %1430 = vxpose.xlu0.b32.cont [11/16] %v1345, 128
      %1431 = vxpose.xlu0.b32.cont [12/16] %v1347, 128
      %1432 = vxpose.xlu0.b32.cont [13/16] %v1349, 128
      %1433 = vxpose.xlu0.b32.cont [14/16] %v1351, 128
      %1434 = vxpose.xlu0.b32.cont [15/16] %v1353, 128
      %1435 = vxpose.xlu0.b32.end [16/16] %v1355, 128
      %v1436 = vpop.trf.xlu0
      %v1437 = vpop.trf.xlu0
      %v1438 = vpop.trf.xlu0
      %v1439 = vpop.trf.xlu0
      %v1440 = vpop.trf.xlu0
      %v1441 = vpop.trf.xlu0
      %v1442 = vpop.trf.xlu0
      %v1443 = vpop.trf.xlu0
      %v1444 = vpop.trf.xlu0
      %v1445 = vpop.trf.xlu0
      %v1446 = vpop.trf.xlu0
      %v1447 = vpop.trf.xlu0
      %v1448 = vpop.trf.xlu0
      %v1449 = vpop.trf.xlu0
      %v1450 = vpop.trf.xlu0
      %v1451 = vpop.trf.xlu0
      %1452 = vxpose.xlu0.b32.start [1/16] %v1357, 128
      %1453 = vxpose.xlu0.b32.cont [2/16] %v1359, 128
      %1454 = vxpose.xlu0.b32.cont [3/16] %v1361, 128
      %1455 = vxpose.xlu0.b32.cont [4/16] %v1363, 128
      %1456 = vxpose.xlu0.b32.cont [5/16] %v1365, 128
      %1457 = vxpose.xlu0.b32.cont [6/16] %v1367, 128
      %1458 = vxpose.xlu0.b32.cont [7/16] %v1369, 128
      %1459 = vxpose.xlu0.b32.cont [8/16] %v1371, 128
      %1460 = vxpose.xlu0.b32.cont [9/16] %v1373, 128
      %1461 = vxpose.xlu0.b32.cont [10/16] %v1375, 128
      %1462 = vxpose.xlu0.b32.cont [11/16] %v1377, 128
      %1463 = vxpose.xlu0.b32.cont [12/16] %v1379, 128
      %1464 = vxpose.xlu0.b32.cont [13/16] %v1381, 128
      %1465 = vxpose.xlu0.b32.cont [14/16] %v1383, 128
      %1466 = vxpose.xlu0.b32.cont [15/16] %v1385, 128
      %1467 = vxpose.xlu0.b32.end [16/16] %v1387, 128
      %v1468 = vpop.trf.xlu0
      %v1469 = vpop.trf.xlu0
      %v1470 = vpop.trf.xlu0
      %v1471 = vpop.trf.xlu0
      %v1472 = vpop.trf.xlu0
      %v1473 = vpop.trf.xlu0
      %v1474 = vpop.trf.xlu0
      %v1475 = vpop.trf.xlu0
      %v1476 = vpop.trf.xlu0
      %v1477 = vpop.trf.xlu0
      %v1478 = vpop.trf.xlu0
      %v1479 = vpop.trf.xlu0
      %v1480 = vpop.trf.xlu0
      %v1481 = vpop.trf.xlu0
      %v1482 = vpop.trf.xlu0
      %v1483 = vpop.trf.xlu0
      %1484 = vmatprep.subr.mxu0 0.0
      %1485 = vmatpush1.msra.mxu0 %v1292
      %1486 = vmatprep.subr.mxu0 0.0
      %1487 = vmatpush1.msra.mxu0 %v1293
      %1488 = vmatprep.subr.mxu0 0.0
      %1489 = vmatpush1.msra.mxu0 %v1294
      %1490 = vmatprep.subr.mxu0 0.0
      %1491 = vmatpush1.msra.mxu0 %v1295
      %1492 = vmatprep.subr.mxu0 0.0
      %1493 = vmatpush1.msra.mxu0 %v1296
      %1494 = vmatprep.subr.mxu0 0.0
      %1495 = vmatpush1.msra.mxu0 %v1297
      %1496 = vmatprep.subr.mxu0 0.0
      %1497 = vmatpush1.msra.mxu0 %v1298
      %1498 = vmatprep.subr.mxu0 0.0
      %1499 = vmatpush1.msra.mxu0 %v1299
      %1500 = vmatprep.subr.mxu0 0.0
      %1501 = vmatpush1.msra.mxu0 %v1300
      %1502 = vmatprep.subr.mxu0 0.0
      %1503 = vmatpush1.msra.mxu0 %v1301
      %1504 = vmatprep.subr.mxu0 0.0
      %1505 = vmatpush1.msra.mxu0 %v1302
      %1506 = vmatprep.subr.mxu0 0.0
      %1507 = vmatpush1.msra.mxu0 %v1303
      %1508 = vmatprep.subr.mxu0 0.0
      %1509 = vmatpush1.msra.mxu0 %v1304
      %1510 = vmatprep.subr.mxu0 0.0
      %1511 = vmatpush1.msra.mxu0 %v1305
      %1512 = vmatprep.subr.mxu0 0.0
      %1513 = vmatpush1.msra.mxu0 %v1306
      %1514 = vmatprep.subr.mxu0 0.0
      %1515 = vmatpush1.msra.mxu0 %v1307
      %1516 = vmatprep.subr.mxu0 0.0
      %1517 = vmatpush1.msra.mxu0 %v1308
      %1518 = vmatprep.subr.mxu0 0.0
      %1519 = vmatpush1.msra.mxu0 %v1309
      %1520 = vmatprep.subr.mxu0 0.0
      %1521 = vmatpush1.msra.mxu0 %v1310
      %1522 = vmatprep.subr.mxu0 0.0
      %1523 = vmatpush1.msra.mxu0 %v1311
      %1524 = vmatprep.subr.mxu0 0.0
      %1525 = vmatpush1.msra.mxu0 %v1312
      %1526 = vmatprep.subr.mxu0 0.0
      %1527 = vmatpush1.msra.mxu0 %v1313
      %1528 = vmatprep.subr.mxu0 0.0
      %1529 = vmatpush1.msra.mxu0 %v1314
      %1530 = vmatprep.subr.mxu0 0.0
      %1531 = vmatpush1.msra.mxu0 %v1315
      %1532 = vmatprep.subr.mxu0 0.0
      %1533 = vmatpush1.msra.mxu0 %v1316
      %1534 = vmatprep.subr.mxu0 0.0
      %1535 = vmatpush1.msra.mxu0 %v1317
      %1536 = vmatprep.subr.mxu0 0.0
      %1537 = vmatpush1.msra.mxu0 %v1318
      %1538 = vmatprep.subr.mxu0 0.0
      %1539 = vmatpush1.msra.mxu0 %v1319
      %1540 = vmatprep.subr.mxu0 0.0
      %1541 = vmatpush1.msra.mxu0 %v1320
      %1542 = vmatprep.subr.mxu0 0.0
      %1543 = vmatpush1.msra.mxu0 %v1321
      %1544 = vmatprep.subr.mxu0 0.0
      %1545 = vmatpush1.msra.mxu0 %v1322
      %1546 = vmatprep.subr.mxu0 0.0
      %1547 = vmatpush1.msra.mxu0 %v1323
      %1548 = vmatprep.mubr.f32.mxu0 %v1468
      %1549 = vmatmul.mubr.f32.gmra.mrb[0].mxu0 %v1436
      %v1550 = vpop.f32.mrb[0].mxu0
      %v1551 = vadd.f32 0.0, %v1550
      %v1552 = vpop.f32.mrb[0].mxu0
      %1553 = vdwg.mxu0
      %1554 = vrot.lane.b32.xlu0 %v196, 104
      %v1555 = vpop.permute.xlu0 %1554
      %1556 = vrot.lane.b32.xlu0 %v197, 104
      %v1557 = vpop.permute.xlu0 %1556
      %1558 = vrot.lane.b32.xlu0 %v198, 104
      %v1559 = vpop.permute.xlu0 %1558
      %1560 = vrot.lane.b32.xlu0 %v199, 104
      %v1561 = vpop.permute.xlu0 %1560
      %1562 = vrot.lane.b32.xlu0 %v200, 104
      %v1563 = vpop.permute.xlu0 %1562
      %1564 = vrot.lane.b32.xlu0 %v201, 104
      %v1565 = vpop.permute.xlu0 %1564
      %1566 = vrot.lane.b32.xlu0 %v202, 104
      %v1567 = vpop.permute.xlu0 %1566
      %1568 = vrot.lane.b32.xlu0 %v203, 104
      %v1569 = vpop.permute.xlu0 %1568
      %1570 = vrot.lane.b32.xlu0 %v204, 104
      %v1571 = vpop.permute.xlu0 %1570
      %1572 = vrot.lane.b32.xlu0 %v205, 104
      %v1573 = vpop.permute.xlu0 %1572
      %1574 = vrot.lane.b32.xlu0 %v206, 104
      %v1575 = vpop.permute.xlu0 %1574
      %1576 = vrot.lane.b32.xlu0 %v207, 104
      %v1577 = vpop.permute.xlu0 %1576
      %1578 = vrot.lane.b32.xlu0 %v208, 104
      %v1579 = vpop.permute.xlu0 %1578
      %1580 = vrot.lane.b32.xlu0 %v209, 104
      %v1581 = vpop.permute.xlu0 %1580
      %1582 = vrot.lane.b32.xlu0 %v210, 104
      %v1583 = vpop.permute.xlu0 %1582
      %1584 = vrot.lane.b32.xlu0 %v211, 104
      %v1585 = vpop.permute.xlu0 %1584
      %1586 = vrot.lane.b32.xlu0 %v212, 104
      %v1587 = vpop.permute.xlu0 %1586
      %1588 = vrot.lane.b32.xlu0 %v213, 104
      %v1589 = vpop.permute.xlu0 %1588
      %1590 = vrot.lane.b32.xlu0 %v214, 104
      %v1591 = vpop.permute.xlu0 %1590
      %1592 = vrot.lane.b32.xlu0 %v215, 104
      %v1593 = vpop.permute.xlu0 %1592
      %1594 = vrot.lane.b32.xlu0 %v216, 104
      %v1595 = vpop.permute.xlu0 %1594
      %1596 = vrot.lane.b32.xlu0 %v217, 104
      %v1597 = vpop.permute.xlu0 %1596
      %1598 = vrot.lane.b32.xlu0 %v218, 104
      %v1599 = vpop.permute.xlu0 %1598
      %1600 = vrot.lane.b32.xlu0 %v219, 104
      %v1601 = vpop.permute.xlu0 %1600
      %1602 = vrot.lane.b32.xlu0 %v220, 104
      %v1603 = vpop.permute.xlu0 %1602
      %1604 = vrot.lane.b32.xlu0 %v221, 104
      %v1605 = vpop.permute.xlu0 %1604
      %1606 = vrot.lane.b32.xlu0 %v222, 104
      %v1607 = vpop.permute.xlu0 %1606
      %1608 = vrot.lane.b32.xlu0 %v223, 104
      %v1609 = vpop.permute.xlu0 %1608
      %1610 = vrot.lane.b32.xlu0 %v224, 104
      %v1611 = vpop.permute.xlu0 %1610
      %1612 = vrot.lane.b32.xlu0 %v225, 104
      %v1613 = vpop.permute.xlu0 %1612
      %1614 = vrot.lane.b32.xlu0 %v226, 104
      %v1615 = vpop.permute.xlu0 %1614
      %1616 = vrot.lane.b32.xlu0 %v227, 104
      %v1617 = vpop.permute.xlu0 %1616
      %v1618 = vsel %vm356, %v1555, 0
      %v1620 = vsel %vm356, %v1557, 0
      %v1622 = vsel %vm356, %v1559, 0
      %v1624 = vsel %vm356, %v1561, 0
      %v1626 = vsel %vm356, %v1563, 0
      %v1628 = vsel %vm356, %v1565, 0
      %v1630 = vsel %vm356, %v1567, 0
      %v1632 = vsel %vm356, %v1569, 0
      %v1634 = vsel %vm356, %v1571, 0
      %v1636 = vsel %vm356, %v1573, 0
      %v1638 = vsel %vm356, %v1575, 0
      %v1640 = vsel %vm356, %v1577, 0
      %v1642 = vsel %vm356, %v1579, 0
      %v1644 = vsel %vm356, %v1581, 0
      %v1646 = vsel %vm356, %v1583, 0
      %v1648 = vsel %vm356, %v1585, 0
      %v1650 = vsel %vm356, %v1587, 0
      %v1652 = vsel %vm356, %v1589, 0
      %v1654 = vsel %vm356, %v1591, 0
      %v1656 = vsel %vm356, %v1593, 0
      %v1658 = vsel %vm356, %v1595, 0
      %v1660 = vsel %vm356, %v1597, 0
      %v1662 = vsel %vm356, %v1599, 0
      %v1664 = vsel %vm356, %v1601, 0
      %v1666 = vsel %vm356, %v1603, 0
      %v1668 = vsel %vm356, %v1605, 0
      %v1670 = vsel %vm356, %v1607, 0
      %v1672 = vsel %vm356, %v1609, 0
      %v1674 = vsel %vm356, %v1611, 0
      %v1676 = vsel %vm356, %v1613, 0
      %v1678 = vsel %vm356, %v1615, 0
      %v1680 = vsel %vm356, %v1617, 0
      %1682 = vmatprep.subr.mxu0 0.0
      %1683 = vmatpush1.msra.mxu0 %v1551
      %1684 = vmatprep.subr.mxu0 0.0
      %1685 = vmatpush1.msra.mxu0 0.0
      %1686 = vmatprep.subr.mxu0 0.0
      %1687 = vmatpush1.msra.mxu0 0.0
      %1688 = vmatprep.subr.mxu0 0.0
      %1689 = vmatpush1.msra.mxu0 0.0
      %1690 = vmatprep.subr.mxu0 0.0
      %1691 = vmatpush1.msra.mxu0 0.0
      %1692 = vmatprep.subr.mxu0 0.0
      %1693 = vmatpush1.msra.mxu0 0.0
      %1694 = vmatprep.subr.mxu0 0.0
      %1695 = vmatpush1.msra.mxu0 0.0
      %1696 = vmatprep.subr.mxu0 0.0
      %1697 = vmatpush1.msra.mxu0 0.0
      %1698 = vmatprep.subr.mxu0 0.0
      %1699 = vmatpush1.msra.mxu0 0.0
      %1700 = vmatprep.subr.mxu0 0.0
      %1701 = vmatpush1.msra.mxu0 0.0
      %1702 = vmatprep.subr.mxu0 0.0
      %1703 = vmatpush1.msra.mxu0 0.0
      %1704 = vmatprep.subr.mxu0 0.0
      %1705 = vmatpush1.msra.mxu0 0.0
      %1706 = vmatprep.subr.mxu0 0.0
      %1707 = vmatpush1.msra.mxu0 0.0
      %1708 = vmatprep.subr.mxu0 0.0
      %1709 = vmatpush1.msra.mxu0 0.0
      %1710 = vmatprep.subr.mxu0 0.0
      %1711 = vmatpush1.msra.mxu0 0.0
      %1712 = vmatprep.subr.mxu0 0.0
      %1713 = vmatpush1.msra.mxu0 0.0
      %1714 = vmatprep.subr.mxu0 0.0
      %1715 = vmatpush1.msra.mxu0 0.0
      %1716 = vmatprep.subr.mxu0 0.0
      %1717 = vmatpush1.msra.mxu0 0.0
      %1718 = vmatprep.subr.mxu0 0.0
      %1719 = vmatpush1.msra.mxu0 0.0
      %1720 = vmatprep.subr.mxu0 0.0
      %1721 = vmatpush1.msra.mxu0 0.0
      %1722 = vmatprep.subr.mxu0 0.0
      %1723 = vmatpush1.msra.mxu0 0.0
      %1724 = vmatprep.subr.mxu0 0.0
      %1725 = vmatpush1.msra.mxu0 0.0
      %1726 = vmatprep.subr.mxu0 0.0
      %1727 = vmatpush1.msra.mxu0 0.0
      %1728 = vmatprep.subr.mxu0 0.0
      %1729 = vmatpush1.msra.mxu0 0.0
      %1730 = vmatprep.subr.mxu0 0.0
      %1731 = vmatpush1.msra.mxu0 0.0
      %1732 = vmatprep.subr.mxu0 0.0
      %1733 = vmatpush1.msra.mxu0 0.0
      %1734 = vmatprep.subr.mxu0 0.0
      %1735 = vmatpush1.msra.mxu0 0.0
      %1736 = vmatprep.subr.mxu0 0.0
      %1737 = vmatpush1.msra.mxu0 0.0
      %1738 = vmatprep.subr.mxu0 0.0
      %1739 = vmatpush1.msra.mxu0 0.0
      %1740 = vmatprep.subr.mxu0 0.0
      %1741 = vmatpush1.msra.mxu0 0.0
      %1742 = vmatprep.subr.mxu0 0.0
      %1743 = vmatpush1.msra.mxu0 0.0
      %1744 = vmatprep.subr.mxu0 0.0
      %1745 = vmatpush1.msra.mxu0 0.0
      %1746 = vmatprep.mubr.f32.mxu0 0.0
      %1747 = vmatmul.mubr.f32.gmra.mrb[0].mxu0 %v1618
      %v1748 = vpop.f32.mrb[0].mxu0
      %v1749 = vadd.f32 0.0, %v1748
      %v1750 = vpop.f32.mrb[0].mxu0
      %1751 = vmatprep.mubr.f32.mxu0 0.0
      %1752 = vmatmul.mubr.f32.gmra.mrb[0].mxu0 %v1620
      %v1753 = vpop.f32.mrb[0].mxu0
      %v1754 = vadd.f32 0.0, %v1753
      %v1755 = vpop.f32.mrb[0].mxu0
      %1756 = vmatprep.mubr.f32.mxu0 0.0
      %1757 = vmatmul.mubr.f32.gmra.mrb[0].mxu0 %v1622
      %v1758 = vpop.f32.mrb[0].mxu0
      %v1759 = vadd.f32 0.0, %v1758
      %v1760 = vpop.f32.mrb[0].mxu0
      %1761 = vmatprep.mubr.f32.mxu0 0.0
      %1762 = vmatmul.mubr.f32.gmra.mrb[0].mxu0 %v1624
      %v1763 = vpop.f32.mrb[0].mxu0
      %v1764 = vadd.f32 0.0, %v1763
      %v1765 = vpop.f32.mrb[0].mxu0
      %1766 = vmatprep.mubr.f32.mxu0 0.0
      %1767 = vmatmul.mubr.f32.gmra.mrb[0].mxu0 %v1626
      %v1768 = vpop.f32.mrb[0].mxu0
      %v1769 = vadd.f32 0.0, %v1768
      %v1770 = vpop.f32.mrb[0].mxu0
      %1771 = vmatprep.mubr.f32.mxu0 0.0
      %1772 = vmatmul.mubr.f32.gmra.mrb[0].mxu0 %v1628
      %v1773 = vpop.f32.mrb[0].mxu0
      %v1774 = vadd.f32 0.0, %v1773
      %v1775 = vpop.f32.mrb[0].mxu0
      %1776 = vmatprep.mubr.f32.mxu0 0.0
      %1777 = vmatmul.mubr.f32.gmra.mrb[0].mxu0 %v1630
      %v1778 = vpop.f32.mrb[0].mxu0
      %v1779 = vadd.f32 0.0, %v1778
      %v1780 = vpop.f32.mrb[0].mxu0
      %1781 = vmatprep.mubr.f32.mxu0 0.0
      %1782 = vmatmul.mubr.f32.gmra.mrb[0].mxu0 %v1632
      %v1783 = vpop.f32.mrb[0].mxu0
      %v1784 = vadd.f32 0.0, %v1783
      %v1785 = vpop.f32.mrb[0].mxu0
      %1786 = vmatprep.mubr.f32.mxu0 0.0
      %1787 = vmatmul.mubr.f32.gmra.mrb[0].mxu0 %v1634
      %v1788 = vpop.f32.mrb[0].mxu0
      %v1789 = vadd.f32 0.0, %v1788
      %v1790 = vpop.f32.mrb[0].mxu0
      %1791 = vmatprep.mubr.f32.mxu0 0.0
      %1792 = vmatmul.mubr.f32.gmra.mrb[0].mxu0 %v1636
      %v1793 = vpop.f32.mrb[0].mxu0
      %v1794 = vadd.f32 0.0, %v1793
      %v1795 = vpop.f32.mrb[0].mxu0
      %1796 = vmatprep.mubr.f32.mxu0 0.0
      %1797 = vmatmul.mubr.f32.gmra.mrb[0].mxu0 %v1638
      %v1798 = vpop.f32.mrb[0].mxu0
      %v1799 = vadd.f32 0.0, %v1798
      %v1800 = vpop.f32.mrb[0].mxu0
      %1801 = vmatprep.mubr.f32.mxu0 0.0
      %1802 = vmatmul.mubr.f32.gmra.mrb[0].mxu0 %v1640
      %v1803 = vpop.f32.mrb[0].mxu0
      %v1804 = vadd.f32 0.0, %v1803
      %v1805 = vpop.f32.mrb[0].mxu0
      %1806 = vmatprep.mubr.f32.mxu0 0.0
      %1807 = vmatmul.mubr.f32.gmra.mrb[0].mxu0 %v1642
      %v1808 = vpop.f32.mrb[0].mxu0
      %v1809 = vadd.f32 0.0, %v1808
      %v1810 = vpop.f32.mrb[0].mxu0
      %1811 = vmatprep.mubr.f32.mxu0 0.0
      %1812 = vmatmul.mubr.f32.gmra.mrb[0].mxu0 %v1644
      %v1813 = vpop.f32.mrb[0].mxu0
      %v1814 = vadd.f32 0.0, %v1813
      %v1815 = vpop.f32.mrb[0].mxu0
      %1816 = vmatprep.mubr.f32.mxu0 0.0
      %1817 = vmatmul.mubr.f32.gmra.mrb[0].mxu0 %v1646
      %v1818 = vpop.f32.mrb[0].mxu0
      %v1819 = vadd.f32 0.0, %v1818
      %v1820 = vpop.f32.mrb[0].mxu0
      %1821 = vmatprep.mubr.f32.mxu0 0.0
      %1822 = vmatmul.mubr.f32.gmra.mrb[0].mxu0 %v1648
      %v1823 = vpop.f32.mrb[0].mxu0
      %v1824 = vadd.f32 0.0, %v1823
      %v1825 = vpop.f32.mrb[0].mxu0
      %1826 = vmatprep.mubr.f32.mxu0 0.0
      %1827 = vmatmul.mubr.f32.gmra.mrb[0].mxu0 %v1650
      %v1828 = vpop.f32.mrb[0].mxu0
      %v1829 = vadd.f32 0.0, %v1828
      %v1830 = vpop.f32.mrb[0].mxu0
      %1831 = vmatprep.mubr.f32.mxu0 0.0
      %1832 = vmatmul.mubr.f32.gmra.mrb[0].mxu0 %v1652
      %v1833 = vpop.f32.mrb[0].mxu0
      %v1834 = vadd.f32 0.0, %v1833
      %v1835 = vpop.f32.mrb[0].mxu0
      %1836 = vmatprep.mubr.f32.mxu0 0.0
      %1837 = vmatmul.mubr.f32.gmra.mrb[0].mxu0 %v1654
      %v1838 = vpop.f32.mrb[0].mxu0
      %v1839 = vadd.f32 0.0, %v1838
      %v1840 = vpop.f32.mrb[0].mxu0
      %1841 = vmatprep.mubr.f32.mxu0 0.0
      %1842 = vmatmul.mubr.f32.gmra.mrb[0].mxu0 %v1656
      %v1843 = vpop.f32.mrb[0].mxu0
      %v1844 = vadd.f32 0.0, %v1843
      %v1845 = vpop.f32.mrb[0].mxu0
      %1846 = vmatprep.mubr.f32.mxu0 0.0
      %1847 = vmatmul.mubr.f32.gmra.mrb[0].mxu0 %v1658
      %v1848 = vpop.f32.mrb[0].mxu0
      %v1849 = vadd.f32 0.0, %v1848
      %v1850 = vpop.f32.mrb[0].mxu0
      %1851 = vmatprep.mubr.f32.mxu0 0.0
      %1852 = vmatmul.mubr.f32.gmra.mrb[0].mxu0 %v1660
      %v1853 = vpop.f32.mrb[0].mxu0
      %v1854 = vadd.f32 0.0, %v1853
      %v1855 = vpop.f32.mrb[0].mxu0
      %1856 = vmatprep.mubr.f32.mxu0 0.0
      %1857 = vmatmul.mubr.f32.gmra.mrb[0].mxu0 %v1662
      %v1858 = vpop.f32.mrb[0].mxu0
      %v1859 = vadd.f32 0.0, %v1858
      %v1860 = vpop.f32.mrb[0].mxu0
      %1861 = vmatprep.mubr.f32.mxu0 0.0
      %1862 = vmatmul.mubr.f32.gmra.mrb[0].mxu0 %v1664
      %v1863 = vpop.f32.mrb[0].mxu0
      %v1864 = vadd.f32 0.0, %v1863
      %v1865 = vpop.f32.mrb[0].mxu0
      %1866 = vmatprep.mubr.f32.mxu0 0.0
      %1867 = vmatmul.mubr.f32.gmra.mrb[0].mxu0 %v1666
      %v1868 = vpop.f32.mrb[0].mxu0
      %v1869 = vadd.f32 0.0, %v1868
      %v1870 = vpop.f32.mrb[0].mxu0
      %1871 = vmatprep.mubr.f32.mxu0 0.0
      %1872 = vmatmul.mubr.f32.gmra.mrb[0].mxu0 %v1668
      %v1873 = vpop.f32.mrb[0].mxu0
      %v1874 = vadd.f32 0.0, %v1873
      %v1875 = vpop.f32.mrb[0].mxu0
      %1876 = vmatprep.mubr.f32.mxu0 0.0
      %1877 = vmatmul.mubr.f32.gmra.mrb[0].mxu0 %v1670
      %v1878 = vpop.f32.mrb[0].mxu0
      %v1879 = vadd.f32 0.0, %v1878
      %v1880 = vpop.f32.mrb[0].mxu0
      %1881 = vmatprep.mubr.f32.mxu0 0.0
      %1882 = vmatmul.mubr.f32.gmra.mrb[0].mxu0 %v1672
      %v1883 = vpop.f32.mrb[0].mxu0
      %v1884 = vadd.f32 0.0, %v1883
      %v1885 = vpop.f32.mrb[0].mxu0
      %1886 = vmatprep.mubr.f32.mxu0 0.0
      %1887 = vmatmul.mubr.f32.gmra.mrb[0].mxu0 %v1674
      %v1888 = vpop.f32.mrb[0].mxu0
      %v1889 = vadd.f32 0.0, %v1888
      %v1890 = vpop.f32.mrb[0].mxu0
      %1891 = vmatprep.mubr.f32.mxu0 0.0
      %1892 = vmatmul.mubr.f32.gmra.mrb[0].mxu0 %v1676
      %v1893 = vpop.f32.mrb[0].mxu0
      %v1894 = vadd.f32 0.0, %v1893
      %v1895 = vpop.f32.mrb[0].mxu0
      %1896 = vmatprep.mubr.f32.mxu0 0.0
      %1897 = vmatmul.mubr.f32.gmra.mrb[0].mxu0 %v1678
      %v1898 = vpop.f32.mrb[0].mxu0
      %v1899 = vadd.f32 0.0, %v1898
      %v1900 = vpop.f32.mrb[0].mxu0
      %1901 = vmatprep.mubr.f32.mxu0 0.0
      %1902 = vmatmul.mubr.f32.gmra.mrb[0].mxu0 %v1680
      %v1903 = vpop.f32.mrb[0].mxu0
      %v1904 = vadd.f32 0.0, %v1903
      %v1905 = vpop.f32.mrb[0].mxu0
      %1906 = vdwg.mxu0
      %v1907 = vadd.f32 %v1749, 1e-15
      %v1908 = vadd.f32 %v1754, 1e-15
      %v1909 = vadd.f32 %v1759, 1e-15
      %v1910 = vadd.f32 %v1764, 1e-15
      %v1911 = vadd.f32 %v1769, 1e-15
      %v1912 = vadd.f32 %v1774, 1e-15
      %v1913 = vadd.f32 %v1779, 1e-15
      %v1914 = vadd.f32 %v1784, 1e-15
      %v1915 = vadd.f32 %v1789, 1e-15
      %v1916 = vadd.f32 %v1794, 1e-15
      %v1917 = vadd.f32 %v1799, 1e-15
      %v1918 = vadd.f32 %v1804, 1e-15
      %v1919 = vadd.f32 %v1809, 1e-15
      %v1920 = vadd.f32 %v1814, 1e-15
      %v1921 = vadd.f32 %v1819, 1e-15
      %v1922 = vadd.f32 %v1824, 1e-15
      %v1923 = vadd.f32 %v1829, 1e-15
      %v1924 = vadd.f32 %v1834, 1e-15
      %v1925 = vadd.f32 %v1839, 1e-15
      %v1926 = vadd.f32 %v1844, 1e-15
      %v1927 = vadd.f32 %v1849, 1e-15
      %v1928 = vadd.f32 %v1854, 1e-15
      %v1929 = vadd.f32 %v1859, 1e-15
      %v1930 = vadd.f32 %v1864, 1e-15
      %v1931 = vadd.f32 %v1869, 1e-15
      %v1932 = vadd.f32 %v1874, 1e-15
      %v1933 = vadd.f32 %v1879, 1e-15
      %v1934 = vadd.f32 %v1884, 1e-15
      %v1935 = vadd.f32 %v1889, 1e-15
      %v1936 = vadd.f32 %v1894, 1e-15
      %v1937 = vadd.f32 %v1899, 1e-15
      %v1938 = vadd.f32 %v1904, 1e-15
      %v1939 = vrcp.pop %v1907
      %v1940 = vrcp.pop %v1908
      %v1941 = vrcp.pop %v1909
      %v1942 = vrcp.pop %v1910
      %v1943 = vrcp.pop %v1911
      %v1944 = vrcp.pop %v1912
      %v1945 = vrcp.pop %v1913
      %v1946 = vrcp.pop %v1914
      %v1947 = vrcp.pop %v1915
      %v1948 = vrcp.pop %v1916
      %v1949 = vrcp.pop %v1917
      %v1950 = vrcp.pop %v1918
      %v1951 = vrcp.pop %v1919
      %v1952 = vrcp.pop %v1920
      %v1953 = vrcp.pop %v1921
      %v1954 = vrcp.pop %v1922
      %v1955 = vrcp.pop %v1923
      %v1956 = vrcp.pop %v1924
      %v1957 = vrcp.pop %v1925
      %v1958 = vrcp.pop %v1926
      %v1959 = vrcp.pop %v1927
      %v1960 = vrcp.pop %v1928
      %v1961 = vrcp.pop %v1929
      %v1962 = vrcp.pop %v1930
      %v1963 = vrcp.pop %v1931
      %v1964 = vrcp.pop %v1932
      %v1965 = vrcp.pop %v1933
      %v1966 = vrcp.pop %v1934
      %v1967 = vrcp.pop %v1935
      %v1968 = vrcp.pop %v1936
      %v1969 = vrcp.pop %v1937
      %v1970 = vrcp.pop %v1938
      %1972 = vset.pattern.permute.xlu0 8
      %1973 = vperm.xlu0 %1972, %v1939
      %v1974 = vpop.permute.xlu0 %1973
      %1977 = vset.pattern.permute.xlu0 8
      %1978 = vperm.xlu0 %1977, %v1940
      %v1979 = vpop.permute.xlu0 %1978
      %1982 = vset.pattern.permute.xlu0 8
      %1983 = vperm.xlu0 %1982, %v1941
      %v1984 = vpop.permute.xlu0 %1983
      %1987 = vset.pattern.permute.xlu0 8
      %1988 = vperm.xlu0 %1987, %v1942
      %v1989 = vpop.permute.xlu0 %1988
      %1992 = vset.pattern.permute.xlu0 8
      %1993 = vperm.xlu0 %1992, %v1943
      %v1994 = vpop.permute.xlu0 %1993
      %1997 = vset.pattern.permute.xlu0 8
      %1998 = vperm.xlu0 %1997, %v1944
      %v1999 = vpop.permute.xlu0 %1998
      %2002 = vset.pattern.permute.xlu0 8
      %2003 = vperm.xlu0 %2002, %v1945
      %v2004 = vpop.permute.xlu0 %2003
      %2007 = vset.pattern.permute.xlu0 8
      %2008 = vperm.xlu0 %2007, %v1946
      %v2009 = vpop.permute.xlu0 %2008
      %2012 = vset.pattern.permute.xlu0 8
      %2013 = vperm.xlu0 %2012, %v1947
      %v2014 = vpop.permute.xlu0 %2013
      %2017 = vset.pattern.permute.xlu0 8
      %2018 = vperm.xlu0 %2017, %v1948
      %v2019 = vpop.permute.xlu0 %2018
      %2022 = vset.pattern.permute.xlu0 8
      %2023 = vperm.xlu0 %2022, %v1949
      %v2024 = vpop.permute.xlu0 %2023
      %2027 = vset.pattern.permute.xlu0 8
      %2028 = vperm.xlu0 %2027, %v1950
      %v2029 = vpop.permute.xlu0 %2028
      %2032 = vset.pattern.permute.xlu0 8
      %2033 = vperm.xlu0 %2032, %v1951
      %v2034 = vpop.permute.xlu0 %2033
      %2037 = vset.pattern.permute.xlu0 8
      %2038 = vperm.xlu0 %2037, %v1952
      %v2039 = vpop.permute.xlu0 %2038
      %2042 = vset.pattern.permute.xlu0 8
      %2043 = vperm.xlu0 %2042, %v1953
      %v2044 = vpop.permute.xlu0 %2043
      %2047 = vset.pattern.permute.xlu0 8
      %2048 = vperm.xlu0 %2047, %v1954
      %v2049 = vpop.permute.xlu0 %2048
      %2052 = vset.pattern.permute.xlu0 8
      %2053 = vperm.xlu0 %2052, %v1955
      %v2054 = vpop.permute.xlu0 %2053
      %2057 = vset.pattern.permute.xlu0 8
      %2058 = vperm.xlu0 %2057, %v1956
      %v2059 = vpop.permute.xlu0 %2058
      %2062 = vset.pattern.permute.xlu0 8
      %2063 = vperm.xlu0 %2062, %v1957
      %v2064 = vpop.permute.xlu0 %2063
      %2067 = vset.pattern.permute.xlu0 8
      %2068 = vperm.xlu0 %2067, %v1958
      %v2069 = vpop.permute.xlu0 %2068
      %2072 = vset.pattern.permute.xlu0 8
      %2073 = vperm.xlu0 %2072, %v1959
      %v2074 = vpop.permute.xlu0 %2073
      %2077 = vset.pattern.permute.xlu0 8
      %2078 = vperm.xlu0 %2077, %v1960
      %v2079 = vpop.permute.xlu0 %2078
      %2082 = vset.pattern.permute.xlu0 8
      %2083 = vperm.xlu0 %2082, %v1961
      %v2084 = vpop.permute.xlu0 %2083
      %2087 = vset.pattern.permute.xlu0 8
      %2088 = vperm.xlu0 %2087, %v1962
      %v2089 = vpop.permute.xlu0 %2088
      %2092 = vset.pattern.permute.xlu0 8
      %2093 = vperm.xlu0 %2092, %v1963
      %v2094 = vpop.permute.xlu0 %2093
      %2097 = vset.pattern.permute.xlu0 8
      %2098 = vperm.xlu0 %2097, %v1964
      %v2099 = vpop.permute.xlu0 %2098
      %2102 = vset.pattern.permute.xlu0 8
      %2103 = vperm.xlu0 %2102, %v1965
      %v2104 = vpop.permute.xlu0 %2103
      %2107 = vset.pattern.permute.xlu0 8
      %2108 = vperm.xlu0 %2107, %v1966
      %v2109 = vpop.permute.xlu0 %2108
      %2112 = vset.pattern.permute.xlu0 8
      %2113 = vperm.xlu0 %2112, %v1967
      %v2114 = vpop.permute.xlu0 %2113
      %2117 = vset.pattern.permute.xlu0 8
      %2118 = vperm.xlu0 %2117, %v1968
      %v2119 = vpop.permute.xlu0 %2118
      %2122 = vset.pattern.permute.xlu0 8
      %2123 = vperm.xlu0 %2122, %v1969
      %v2124 = vpop.permute.xlu0 %2123
      %2127 = vset.pattern.permute.xlu0 8
      %2128 = vperm.xlu0 %2127, %v1970
      %v2129 = vpop.permute.xlu0 %2128
      %v2131 = vmul.f32 %v1749, %v1974
      %v2132 = vmul.f32 %v1754, %v1979
      %v2133 = vmul.f32 %v1759, %v1984
      %v2134 = vmul.f32 %v1764, %v1989
      %v2135 = vmul.f32 %v1769, %v1994
      %v2136 = vmul.f32 %v1774, %v1999
      %v2137 = vmul.f32 %v1779, %v2004
      %v2138 = vmul.f32 %v1784, %v2009
      %v2139 = vmul.f32 %v1789, %v2014
      %v2140 = vmul.f32 %v1794, %v2019
      %v2141 = vmul.f32 %v1799, %v2024
      %v2142 = vmul.f32 %v1804, %v2029
      %v2143 = vmul.f32 %v1809, %v2034
      %v2144 = vmul.f32 %v1814, %v2039
      %v2145 = vmul.f32 %v1819, %v2044
      %v2146 = vmul.f32 %v1824, %v2049
      %v2147 = vmul.f32 %v1829, %v2054
      %v2148 = vmul.f32 %v1834, %v2059
      %v2149 = vmul.f32 %v1839, %v2064
      %v2150 = vmul.f32 %v1844, %v2069
      %v2151 = vmul.f32 %v1849, %v2074
      %v2152 = vmul.f32 %v1854, %v2079
      %v2153 = vmul.f32 %v1859, %v2084
      %v2154 = vmul.f32 %v1864, %v2089
      %v2155 = vmul.f32 %v1869, %v2094
      %v2156 = vmul.f32 %v1874, %v2099
      %v2157 = vmul.f32 %v1879, %v2104
      %v2158 = vmul.f32 %v1884, %v2109
      %v2159 = vmul.f32 %v1889, %v2114
      %v2160 = vmul.f32 %v1894, %v2119
      %v2161 = vmul.f32 %v1899, %v2124
      %v2162 = vmul.f32 %v1904, %v2129
      %v2163 = vld [vmem:[%s158] sm:$0xff]
      %v2164 = vld [vmem:[%s158 + $0x8] sm:$0xff]
      %v2165 = vld [vmem:[%s158 + $0x10] sm:$0xff]
      %v2166 = vld [vmem:[%s158 + $0x18] sm:$0xff]
      %v2167 = vld [vmem:[%s158 + $0x20] sm:$0xff]
      %v2168 = vld [vmem:[%s158 + $0x28] sm:$0xff]
      %v2169 = vld [vmem:[%s158 + $0x30] sm:$0xff]
      %v2170 = vld [vmem:[%s158 + $0x38] sm:$0xff]
      %v2171 = vld [vmem:[%s158 + $0x40] sm:$0xff]
      %v2172 = vld [vmem:[%s158 + $0x48] sm:$0xff]
      %v2173 = vld [vmem:[%s158 + $0x50] sm:$0xff]
      %v2174 = vld [vmem:[%s158 + $0x58] sm:$0xff]
      %v2175 = vld [vmem:[%s158 + $0x60] sm:$0xff]
      %v2176 = vld [vmem:[%s158 + $0x68] sm:$0xff]
      %v2177 = vld [vmem:[%s158 + $0x70] sm:$0xff]
      %v2178 = vld [vmem:[%s158 + $0x78] sm:$0xff]
      %v2179 = vld [vmem:[%s158 + $0x80] sm:$0xff]
      %v2180 = vld [vmem:[%s158 + $0x88] sm:$0xff]
      %v2181 = vld [vmem:[%s158 + $0x90] sm:$0xff]
      %v2182 = vld [vmem:[%s158 + $0x98] sm:$0xff]
      %v2183 = vld [vmem:[%s158 + $0xa0] sm:$0xff]
      %v2184 = vld [vmem:[%s158 + $0xa8] sm:$0xff]
      %v2185 = vld [vmem:[%s158 + $0xb0] sm:$0xff]
      %v2186 = vld [vmem:[%s158 + $0xb8] sm:$0xff]
      %v2187 = vld [vmem:[%s158 + $0xc0] sm:$0xff]
      %v2188 = vld [vmem:[%s158 + $0xc8] sm:$0xff]
      %v2189 = vld [vmem:[%s158 + $0xd0] sm:$0xff]
      %v2190 = vld [vmem:[%s158 + $0xd8] sm:$0xff]
      %v2191 = vld [vmem:[%s158 + $0xe0] sm:$0xff]
      %v2192 = vld [vmem:[%s158 + $0xe8] sm:$0xff]
      %v2193 = vld [vmem:[%s158 + $0xf0] sm:$0xff]
      %v2194 = vld [vmem:[%s158 + $0xf8] sm:$0xff]
      %v2195 = vmax.f32 %v2163, 0.0
      %v2196 = vmax.f32 %v2164, 0.0
      %v2197 = vmax.f32 %v2165, 0.0
      %v2198 = vmax.f32 %v2166, 0.0
      %v2199 = vmax.f32 %v2167, 0.0
      %v2200 = vmax.f32 %v2168, 0.0
      %v2201 = vmax.f32 %v2169, 0.0
      %v2202 = vmax.f32 %v2170, 0.0
      %v2203 = vmax.f32 %v2171, 0.0
      %v2204 = vmax.f32 %v2172, 0.0
      %v2205 = vmax.f32 %v2173, 0.0
      %v2206 = vmax.f32 %v2174, 0.0
      %v2207 = vmax.f32 %v2175, 0.0
      %v2208 = vmax.f32 %v2176, 0.0
      %v2209 = vmax.f32 %v2177, 0.0
      %v2210 = vmax.f32 %v2178, 0.0
      %v2211 = vmax.f32 %v2179, 0.0
      %v2212 = vmax.f32 %v2180, 0.0
      %v2213 = vmax.f32 %v2181, 0.0
      %v2214 = vmax.f32 %v2182, 0.0
      %v2215 = vmax.f32 %v2183, 0.0
      %v2216 = vmax.f32 %v2184, 0.0
      %v2217 = vmax.f32 %v2185, 0.0
      %v2218 = vmax.f32 %v2186, 0.0
      %v2219 = vmax.f32 %v2187, 0.0
      %v2220 = vmax.f32 %v2188, 0.0
      %v2221 = vmax.f32 %v2189, 0.0
      %v2222 = vmax.f32 %v2190, 0.0
      %v2223 = vmax.f32 %v2191, 0.0
      %v2224 = vmax.f32 %v2192, 0.0
      %v2225 = vmax.f32 %v2193, 0.0
      %v2226 = vmax.f32 %v2194, 0.0
      %2259 = vrot.lane.b32.xlu0 %v2163, 112
      %v2260 = vpop.permute.xlu0 %2259
      %2261 = vrot.lane.b32.xlu0 %v2164, 112
      %v2262 = vpop.permute.xlu0 %2261
      %2263 = vrot.lane.b32.xlu0 %v2165, 112
      %v2264 = vpop.permute.xlu0 %2263
      %2265 = vrot.lane.b32.xlu0 %v2166, 112
      %v2266 = vpop.permute.xlu0 %2265
      %2267 = vrot.lane.b32.xlu0 %v2167, 112
      %v2268 = vpop.permute.xlu0 %2267
      %2269 = vrot.lane.b32.xlu0 %v2168, 112
      %v2270 = vpop.permute.xlu0 %2269
      %2271 = vrot.lane.b32.xlu0 %v2169, 112
      %v2272 = vpop.permute.xlu0 %2271
      %2273 = vrot.lane.b32.xlu0 %v2170, 112
      %v2274 = vpop.permute.xlu0 %2273
      %2275 = vrot.lane.b32.xlu0 %v2171, 112
      %v2276 = vpop.permute.xlu0 %2275
      %2277 = vrot.lane.b32.xlu0 %v2172, 112
      %v2278 = vpop.permute.xlu0 %2277
      %2279 = vrot.lane.b32.xlu0 %v2173, 112
      %v2280 = vpop.permute.xlu0 %2279
      %2281 = vrot.lane.b32.xlu0 %v2174, 112
      %v2282 = vpop.permute.xlu0 %2281
      %2283 = vrot.lane.b32.xlu0 %v2175, 112
      %v2284 = vpop.permute.xlu0 %2283
      %2285 = vrot.lane.b32.xlu0 %v2176, 112
      %v2286 = vpop.permute.xlu0 %2285
      %2287 = vrot.lane.b32.xlu0 %v2177, 112
      %v2288 = vpop.permute.xlu0 %2287
      %2289 = vrot.lane.b32.xlu0 %v2178, 112
      %v2290 = vpop.permute.xlu0 %2289
      %2291 = vrot.lane.b32.xlu0 %v2179, 112
      %v2292 = vpop.permute.xlu0 %2291
      %2293 = vrot.lane.b32.xlu0 %v2180, 112
      %v2294 = vpop.permute.xlu0 %2293
      %2295 = vrot.lane.b32.xlu0 %v2181, 112
      %v2296 = vpop.permute.xlu0 %2295
      %2297 = vrot.lane.b32.xlu0 %v2182, 112
      %v2298 = vpop.permute.xlu0 %2297
      %2299 = vrot.lane.b32.xlu0 %v2183, 112
      %v2300 = vpop.permute.xlu0 %2299
      %2301 = vrot.lane.b32.xlu0 %v2184, 112
      %v2302 = vpop.permute.xlu0 %2301
      %2303 = vrot.lane.b32.xlu0 %v2185, 112
      %v2304 = vpop.permute.xlu0 %2303
      %2305 = vrot.lane.b32.xlu0 %v2186, 112
      %v2306 = vpop.permute.xlu0 %2305
      %2307 = vrot.lane.b32.xlu0 %v2187, 112
      %v2308 = vpop.permute.xlu0 %2307
      %2309 = vrot.lane.b32.xlu0 %v2188, 112
      %v2310 = vpop.permute.xlu0 %2309
      %2311 = vrot.lane.b32.xlu0 %v2189, 112
      %v2312 = vpop.permute.xlu0 %2311
      %2313 = vrot.lane.b32.xlu0 %v2190, 112
      %v2314 = vpop.permute.xlu0 %2313
      %2315 = vrot.lane.b32.xlu0 %v2191, 112
      %v2316 = vpop.permute.xlu0 %2315
      %2317 = vrot.lane.b32.xlu0 %v2192, 112
      %v2318 = vpop.permute.xlu0 %2317
      %2319 = vrot.lane.b32.xlu0 %v2193, 112
      %v2320 = vpop.permute.xlu0 %2319
      %2321 = vrot.lane.b32.xlu0 %v2194, 112
      %v2322 = vpop.permute.xlu0 %2321
      %v2355 = vsel %vm356, %v2260, 1.0
      %v2356 = vsel %vm356, %v2262, 1.0
      %v2357 = vsel %vm356, %v2264, 1.0
      %v2358 = vsel %vm356, %v2266, 1.0
      %v2359 = vsel %vm356, %v2268, 1.0
      %v2360 = vsel %vm356, %v2270, 1.0
      %v2361 = vsel %vm356, %v2272, 1.0
      %v2362 = vsel %vm356, %v2274, 1.0
      %v2363 = vsel %vm356, %v2276, 1.0
      %v2364 = vsel %vm356, %v2278, 1.0
      %v2365 = vsel %vm356, %v2280, 1.0
      %v2366 = vsel %vm356, %v2282, 1.0
      %v2367 = vsel %vm356, %v2284, 1.0
      %v2368 = vsel %vm356, %v2286, 1.0
      %v2369 = vsel %vm356, %v2288, 1.0
      %v2370 = vsel %vm356, %v2290, 1.0
      %v2371 = vsel %vm356, %v2292, 1.0
      %v2372 = vsel %vm356, %v2294, 1.0
      %v2373 = vsel %vm356, %v2296, 1.0
      %v2374 = vsel %vm356, %v2298, 1.0
      %v2375 = vsel %vm356, %v2300, 1.0
      %v2376 = vsel %vm356, %v2302, 1.0
      %v2377 = vsel %vm356, %v2304, 1.0
      %v2378 = vsel %vm356, %v2306, 1.0
      %v2379 = vsel %vm356, %v2308, 1.0
      %v2380 = vsel %vm356, %v2310, 1.0
      %v2381 = vsel %vm356, %v2312, 1.0
      %v2382 = vsel %vm356, %v2314, 1.0
      %v2383 = vsel %vm356, %v2316, 1.0
      %v2384 = vsel %vm356, %v2318, 1.0
      %v2385 = vsel %vm356, %v2320, 1.0
      %v2386 = vsel %vm356, %v2322, 1.0
      %2419 = vrot.lane.b32.xlu0 %v2195, 120
      %v2420 = vpop.permute.xlu0 %2419
      %2421 = vrot.lane.b32.xlu0 %v2196, 120
      %v2422 = vpop.permute.xlu0 %2421
      %2423 = vrot.lane.b32.xlu0 %v2197, 120
      %v2424 = vpop.permute.xlu0 %2423
      %2425 = vrot.lane.b32.xlu0 %v2198, 120
      %v2426 = vpop.permute.xlu0 %2425
      %2427 = vrot.lane.b32.xlu0 %v2199, 120
      %v2428 = vpop.permute.xlu0 %2427
      %2429 = vrot.lane.b32.xlu0 %v2200, 120
      %v2430 = vpop.permute.xlu0 %2429
      %2431 = vrot.lane.b32.xlu0 %v2201, 120
      %v2432 = vpop.permute.xlu0 %2431
      %2433 = vrot.lane.b32.xlu0 %v2202, 120
      %v2434 = vpop.permute.xlu0 %2433
      %2435 = vrot.lane.b32.xlu0 %v2203, 120
      %v2436 = vpop.permute.xlu0 %2435
      %2437 = vrot.lane.b32.xlu0 %v2204, 120
      %v2438 = vpop.permute.xlu0 %2437
      %2439 = vrot.lane.b32.xlu0 %v2205, 120
      %v2440 = vpop.permute.xlu0 %2439
      %2441 = vrot.lane.b32.xlu0 %v2206, 120
      %v2442 = vpop.permute.xlu0 %2441
      %2443 = vrot.lane.b32.xlu0 %v2207, 120
      %v2444 = vpop.permute.xlu0 %2443
      %2445 = vrot.lane.b32.xlu0 %v2208, 120
      %v2446 = vpop.permute.xlu0 %2445
      %2447 = vrot.lane.b32.xlu0 %v2209, 120
      %v2448 = vpop.permute.xlu0 %2447
      %2449 = vrot.lane.b32.xlu0 %v2210, 120
      %v2450 = vpop.permute.xlu0 %2449
      %2451 = vrot.lane.b32.xlu0 %v2211, 120
      %v2452 = vpop.permute.xlu0 %2451
      %2453 = vrot.lane.b32.xlu0 %v2212, 120
      %v2454 = vpop.permute.xlu0 %2453
      %2455 = vrot.lane.b32.xlu0 %v2213, 120
      %v2456 = vpop.permute.xlu0 %2455
      %2457 = vrot.lane.b32.xlu0 %v2214, 120
      %v2458 = vpop.permute.xlu0 %2457
      %2459 = vrot.lane.b32.xlu0 %v2215, 120
      %v2460 = vpop.permute.xlu0 %2459
      %2461 = vrot.lane.b32.xlu0 %v2216, 120
      %v2462 = vpop.permute.xlu0 %2461
      %2463 = vrot.lane.b32.xlu0 %v2217, 120
      %v2464 = vpop.permute.xlu0 %2463
      %2465 = vrot.lane.b32.xlu0 %v2218, 120
      %v2466 = vpop.permute.xlu0 %2465
      %2467 = vrot.lane.b32.xlu0 %v2219, 120
      %v2468 = vpop.permute.xlu0 %2467
      %2469 = vrot.lane.b32.xlu0 %v2220, 120
      %v2470 = vpop.permute.xlu0 %2469
      %2471 = vrot.lane.b32.xlu0 %v2221, 120
      %v2472 = vpop.permute.xlu0 %2471
      %2473 = vrot.lane.b32.xlu0 %v2222, 120
      %v2474 = vpop.permute.xlu0 %2473
      %2475 = vrot.lane.b32.xlu0 %v2223, 120
      %v2476 = vpop.permute.xlu0 %2475
      %2477 = vrot.lane.b32.xlu0 %v2224, 120
      %v2478 = vpop.permute.xlu0 %2477
      %2479 = vrot.lane.b32.xlu0 %v2225, 120
      %v2480 = vpop.permute.xlu0 %2479
      %2481 = vrot.lane.b32.xlu0 %v2226, 120
      %v2482 = vpop.permute.xlu0 %2481
      %2515 = vxpose.xlu0.b32.start [1/16] %v2420, 128
      %2516 = vxpose.xlu0.b32.cont [2/16] %v2422, 128
      %2517 = vxpose.xlu0.b32.cont [3/16] %v2424, 128
      %2518 = vxpose.xlu0.b32.cont [4/16] %v2426, 128
      %2519 = vxpose.xlu0.b32.cont [5/16] %v2428, 128
      %2520 = vxpose.xlu0.b32.cont [6/16] %v2430, 128
      %2521 = vxpose.xlu0.b32.cont [7/16] %v2432, 128
      %2522 = vxpose.xlu0.b32.cont [8/16] %v2434, 128
      %2523 = vxpose.xlu0.b32.cont [9/16] %v2436, 128
      %2524 = vxpose.xlu0.b32.cont [10/16] %v2438, 128
      %2525 = vxpose.xlu0.b32.cont [11/16] %v2440, 128
      %2526 = vxpose.xlu0.b32.cont [12/16] %v2442, 128
      %2527 = vxpose.xlu0.b32.cont [13/16] %v2444, 128
      %2528 = vxpose.xlu0.b32.cont [14/16] %v2446, 128
      %2529 = vxpose.xlu0.b32.cont [15/16] %v2448, 128
      %2530 = vxpose.xlu0.b32.end [16/16] %v2450, 128
      %v2531 = vpop.trf.xlu0
      %v2532 = vpop.trf.xlu0
      %v2533 = vpop.trf.xlu0
      %v2534 = vpop.trf.xlu0
      %v2535 = vpop.trf.xlu0
      %v2536 = vpop.trf.xlu0
      %v2537 = vpop.trf.xlu0
      %v2538 = vpop.trf.xlu0
      %v2539 = vpop.trf.xlu0
      %v2540 = vpop.trf.xlu0
      %v2541 = vpop.trf.xlu0
      %v2542 = vpop.trf.xlu0
      %v2543 = vpop.trf.xlu0
      %v2544 = vpop.trf.xlu0
      %v2545 = vpop.trf.xlu0
      %v2546 = vpop.trf.xlu0
      %2547 = vxpose.xlu0.b32.start [1/16] %v2452, 128
      %2548 = vxpose.xlu0.b32.cont [2/16] %v2454, 128
      %2549 = vxpose.xlu0.b32.cont [3/16] %v2456, 128
      %2550 = vxpose.xlu0.b32.cont [4/16] %v2458, 128
      %2551 = vxpose.xlu0.b32.cont [5/16] %v2460, 128
      %2552 = vxpose.xlu0.b32.cont [6/16] %v2462, 128
      %2553 = vxpose.xlu0.b32.cont [7/16] %v2464, 128
      %2554 = vxpose.xlu0.b32.cont [8/16] %v2466, 128
      %2555 = vxpose.xlu0.b32.cont [9/16] %v2468, 128
      %2556 = vxpose.xlu0.b32.cont [10/16] %v2470, 128
      %2557 = vxpose.xlu0.b32.cont [11/16] %v2472, 128
      %2558 = vxpose.xlu0.b32.cont [12/16] %v2474, 128
      %2559 = vxpose.xlu0.b32.cont [13/16] %v2476, 128
      %2560 = vxpose.xlu0.b32.cont [14/16] %v2478, 128
      %2561 = vxpose.xlu0.b32.cont [15/16] %v2480, 128
      %2562 = vxpose.xlu0.b32.end [16/16] %v2482, 128
      %v2563 = vpop.trf.xlu0
      %v2564 = vpop.trf.xlu0
      %v2565 = vpop.trf.xlu0
      %v2566 = vpop.trf.xlu0
      %v2567 = vpop.trf.xlu0
      %v2568 = vpop.trf.xlu0
      %v2569 = vpop.trf.xlu0
      %v2570 = vpop.trf.xlu0
      %v2571 = vpop.trf.xlu0
      %v2572 = vpop.trf.xlu0
      %v2573 = vpop.trf.xlu0
      %v2574 = vpop.trf.xlu0
      %v2575 = vpop.trf.xlu0
      %v2576 = vpop.trf.xlu0
      %v2577 = vpop.trf.xlu0
      %v2578 = vpop.trf.xlu0
      %2579 = vmatprep.subr.mxu0 0.0
      %2580 = vmatpush1.msra.mxu0 %v2355
      %2581 = vmatprep.subr.mxu0 0.0
      %2582 = vmatpush1.msra.mxu0 %v2356
      %2583 = vmatprep.subr.mxu0 0.0
      %2584 = vmatpush1.msra.mxu0 %v2357
      %2585 = vmatprep.subr.mxu0 0.0
      %2586 = vmatpush1.msra.mxu0 %v2358
      %2587 = vmatprep.subr.mxu0 0.0
      %2588 = vmatpush1.msra.mxu0 %v2359
      %2589 = vmatprep.subr.mxu0 0.0
      %2590 = vmatpush1.msra.mxu0 %v2360
      %2591 = vmatprep.subr.mxu0 0.0
      %2592 = vmatpush1.msra.mxu0 %v2361
      %2593 = vmatprep.subr.mxu0 0.0
      %2594 = vmatpush1.msra.mxu0 %v2362
      %2595 = vmatprep.subr.mxu0 0.0
      %2596 = vmatpush1.msra.mxu0 %v2363
      %2597 = vmatprep.subr.mxu0 0.0
      %2598 = vmatpush1.msra.mxu0 %v2364
      %2599 = vmatprep.subr.mxu0 0.0
      %2600 = vmatpush1.msra.mxu0 %v2365
      %2601 = vmatprep.subr.mxu0 0.0
      %2602 = vmatpush1.msra.mxu0 %v2366
      %2603 = vmatprep.subr.mxu0 0.0
      %2604 = vmatpush1.msra.mxu0 %v2367
      %2605 = vmatprep.subr.mxu0 0.0
      %2606 = vmatpush1.msra.mxu0 %v2368
      %2607 = vmatprep.subr.mxu0 0.0
      %2608 = vmatpush1.msra.mxu0 %v2369
      %2609 = vmatprep.subr.mxu0 0.0
      %2610 = vmatpush1.msra.mxu0 %v2370
      %2611 = vmatprep.subr.mxu0 0.0
      %2612 = vmatpush1.msra.mxu0 %v2371
      %2613 = vmatprep.subr.mxu0 0.0
      %2614 = vmatpush1.msra.mxu0 %v2372
      %2615 = vmatprep.subr.mxu0 0.0
      %2616 = vmatpush1.msra.mxu0 %v2373
      %2617 = vmatprep.subr.mxu0 0.0
      %2618 = vmatpush1.msra.mxu0 %v2374
      %2619 = vmatprep.subr.mxu0 0.0
      %2620 = vmatpush1.msra.mxu0 %v2375
      %2621 = vmatprep.subr.mxu0 0.0
      %2622 = vmatpush1.msra.mxu0 %v2376
      %2623 = vmatprep.subr.mxu0 0.0
      %2624 = vmatpush1.msra.mxu0 %v2377
      %2625 = vmatprep.subr.mxu0 0.0
      %2626 = vmatpush1.msra.mxu0 %v2378
      %2627 = vmatprep.subr.mxu0 0.0
      %2628 = vmatpush1.msra.mxu0 %v2379
      %2629 = vmatprep.subr.mxu0 0.0
      %2630 = vmatpush1.msra.mxu0 %v2380
      %2631 = vmatprep.subr.mxu0 0.0
      %2632 = vmatpush1.msra.mxu0 %v2381
      %2633 = vmatprep.subr.mxu0 0.0
      %2634 = vmatpush1.msra.mxu0 %v2382
      %2635 = vmatprep.subr.mxu0 0.0
      %2636 = vmatpush1.msra.mxu0 %v2383
      %2637 = vmatprep.subr.mxu0 0.0
      %2638 = vmatpush1.msra.mxu0 %v2384
      %2639 = vmatprep.subr.mxu0 0.0
      %2640 = vmatpush1.msra.mxu0 %v2385
      %2641 = vmatprep.subr.mxu0 0.0
      %2642 = vmatpush1.msra.mxu0 %v2386
      %2643 = vmatprep.mubr.f32.mxu0 %v2563
      %2644 = vmatmul.mubr.f32.gmra.mrb[0].mxu0 %v2531
      %v2645 = vpop.f32.mrb[0].mxu0
      %v2646 = vadd.f32 0.0, %v2645
      %v2647 = vpop.f32.mrb[0].mxu0
      %2648 = vdwg.mxu0
      %v2649 = vsel %vm356, %v2195, 0
      %v2651 = vsel %vm356, %v2196, 0
      %v2653 = vsel %vm356, %v2197, 0
      %v2655 = vsel %vm356, %v2198, 0
      %v2657 = vsel %vm356, %v2199, 0
      %v2659 = vsel %vm356, %v2200, 0
      %v2661 = vsel %vm356, %v2201, 0
      %v2663 = vsel %vm356, %v2202, 0
      %v2665 = vsel %vm356, %v2203, 0
      %v2667 = vsel %vm356, %v2204, 0
      %v2669 = vsel %vm356, %v2205, 0
      %v2671 = vsel %vm356, %v2206, 0
      %v2673 = vsel %vm356, %v2207, 0
      %v2675 = vsel %vm356, %v2208, 0
      %v2677 = vsel %vm356, %v2209, 0
      %v2679 = vsel %vm356, %v2210, 0
      %v2681 = vsel %vm356, %v2211, 0
      %v2683 = vsel %vm356, %v2212, 0
      %v2685 = vsel %vm356, %v2213, 0
      %v2687 = vsel %vm356, %v2214, 0
      %v2689 = vsel %vm356, %v2215, 0
      %v2691 = vsel %vm356, %v2216, 0
      %v2693 = vsel %vm356, %v2217, 0
      %v2695 = vsel %vm356, %v2218, 0
      %v2697 = vsel %vm356, %v2219, 0
      %v2699 = vsel %vm356, %v2220, 0
      %v2701 = vsel %vm356, %v2221, 0
      %v2703 = vsel %vm356, %v2222, 0
      %v2705 = vsel %vm356, %v2223, 0
      %v2707 = vsel %vm356, %v2224, 0
      %v2709 = vsel %vm356, %v2225, 0
      %v2711 = vsel %vm356, %v2226, 0
      %2713 = vmatprep.subr.mxu0 0.0
      %2714 = vmatpush1.msra.mxu0 %v2646
      %2715 = vmatprep.subr.mxu0 0.0
      %2716 = vmatpush1.msra.mxu0 0.0
      %2717 = vmatprep.subr.mxu0 0.0
      %2718 = vmatpush1.msra.mxu0 0.0
      %2719 = vmatprep.subr.mxu0 0.0
      %2720 = vmatpush1.msra.mxu0 0.0
      %2721 = vmatprep.subr.mxu0 0.0
      %2722 = vmatpush1.msra.mxu0 0.0
      %2723 = vmatprep.subr.mxu0 0.0
      %2724 = vmatpush1.msra.mxu0 0.0
      %2725 = vmatprep.subr.mxu0 0.0
      %2726 = vmatpush1.msra.mxu0 0.0
      %2727 = vmatprep.subr.mxu0 0.0
      %2728 = vmatpush1.msra.mxu0 0.0
      %2729 = vmatprep.subr.mxu0 0.0
      %2730 = vmatpush1.msra.mxu0 0.0
      %2731 = vmatprep.subr.mxu0 0.0
      %2732 = vmatpush1.msra.mxu0 0.0
      %2733 = vmatprep.subr.mxu0 0.0
      %2734 = vmatpush1.msra.mxu0 0.0
      %2735 = vmatprep.subr.mxu0 0.0
      %2736 = vmatpush1.msra.mxu0 0.0
      %2737 = vmatprep.subr.mxu0 0.0
      %2738 = vmatpush1.msra.mxu0 0.0
      %2739 = vmatprep.subr.mxu0 0.0
      %2740 = vmatpush1.msra.mxu0 0.0
      %2741 = vmatprep.subr.mxu0 0.0
      %2742 = vmatpush1.msra.mxu0 0.0
      %2743 = vmatprep.subr.mxu0 0.0
      %2744 = vmatpush1.msra.mxu0 0.0
      %2745 = vmatprep.subr.mxu0 0.0
      %2746 = vmatpush1.msra.mxu0 0.0
      %2747 = vmatprep.subr.mxu0 0.0
      %2748 = vmatpush1.msra.mxu0 0.0
      %2749 = vmatprep.subr.mxu0 0.0
      %2750 = vmatpush1.msra.mxu0 0.0
      %2751 = vmatprep.subr.mxu0 0.0
      %2752 = vmatpush1.msra.mxu0 0.0
      %2753 = vmatprep.subr.mxu0 0.0
      %2754 = vmatpush1.msra.mxu0 0.0
      %2755 = vmatprep.subr.mxu0 0.0
      %2756 = vmatpush1.msra.mxu0 0.0
      %2757 = vmatprep.subr.mxu0 0.0
      %2758 = vmatpush1.msra.mxu0 0.0
      %2759 = vmatprep.subr.mxu0 0.0
      %2760 = vmatpush1.msra.mxu0 0.0
      %2761 = vmatprep.subr.mxu0 0.0
      %2762 = vmatpush1.msra.mxu0 0.0
      %2763 = vmatprep.subr.mxu0 0.0
      %2764 = vmatpush1.msra.mxu0 0.0
      %2765 = vmatprep.subr.mxu0 0.0
      %2766 = vmatpush1.msra.mxu0 0.0
      %2767 = vmatprep.subr.mxu0 0.0
      %2768 = vmatpush1.msra.mxu0 0.0
      %2769 = vmatprep.subr.mxu0 0.0
      %2770 = vmatpush1.msra.mxu0 0.0
      %2771 = vmatprep.subr.mxu0 0.0
      %2772 = vmatpush1.msra.mxu0 0.0
      %2773 = vmatprep.subr.mxu0 0.0
      %2774 = vmatpush1.msra.mxu0 0.0
      %2775 = vmatprep.subr.mxu0 0.0
      %2776 = vmatpush1.msra.mxu0 0.0
      %2777 = vmatprep.mubr.f32.mxu0 0.0
      %2778 = vmatmul.mubr.f32.gmra.mrb[0].mxu0 %v2649
      %v2779 = vpop.f32.mrb[0].mxu0
      %v2780 = vadd.f32 0.0, %v2779
      %v2781 = vpop.f32.mrb[0].mxu0
      %2782 = vmatprep.mubr.f32.mxu0 0.0
      %2783 = vmatmul.mubr.f32.gmra.mrb[0].mxu0 %v2651
      %v2784 = vpop.f32.mrb[0].mxu0
      %v2785 = vadd.f32 0.0, %v2784
      %v2786 = vpop.f32.mrb[0].mxu0
      %2787 = vmatprep.mubr.f32.mxu0 0.0
      %2788 = vmatmul.mubr.f32.gmra.mrb[0].mxu0 %v2653
      %v2789 = vpop.f32.mrb[0].mxu0
      %v2790 = vadd.f32 0.0, %v2789
      %v2791 = vpop.f32.mrb[0].mxu0
      %2792 = vmatprep.mubr.f32.mxu0 0.0
      %2793 = vmatmul.mubr.f32.gmra.mrb[0].mxu0 %v2655
      %v2794 = vpop.f32.mrb[0].mxu0
      %v2795 = vadd.f32 0.0, %v2794
      %v2796 = vpop.f32.mrb[0].mxu0
      %2797 = vmatprep.mubr.f32.mxu0 0.0
      %2798 = vmatmul.mubr.f32.gmra.mrb[0].mxu0 %v2657
      %v2799 = vpop.f32.mrb[0].mxu0
      %v2800 = vadd.f32 0.0, %v2799
      %v2801 = vpop.f32.mrb[0].mxu0
      %2802 = vmatprep.mubr.f32.mxu0 0.0
      %2803 = vmatmul.mubr.f32.gmra.mrb[0].mxu0 %v2659
      %v2804 = vpop.f32.mrb[0].mxu0
      %v2805 = vadd.f32 0.0, %v2804
      %v2806 = vpop.f32.mrb[0].mxu0
      %2807 = vmatprep.mubr.f32.mxu0 0.0
      %2808 = vmatmul.mubr.f32.gmra.mrb[0].mxu0 %v2661
      %v2809 = vpop.f32.mrb[0].mxu0
      %v2810 = vadd.f32 0.0, %v2809
      %v2811 = vpop.f32.mrb[0].mxu0
      %2812 = vmatprep.mubr.f32.mxu0 0.0
      %2813 = vmatmul.mubr.f32.gmra.mrb[0].mxu0 %v2663
      %v2814 = vpop.f32.mrb[0].mxu0
      %v2815 = vadd.f32 0.0, %v2814
      %v2816 = vpop.f32.mrb[0].mxu0
      %2817 = vmatprep.mubr.f32.mxu0 0.0
      %2818 = vmatmul.mubr.f32.gmra.mrb[0].mxu0 %v2665
      %v2819 = vpop.f32.mrb[0].mxu0
      %v2820 = vadd.f32 0.0, %v2819
      %v2821 = vpop.f32.mrb[0].mxu0
      %2822 = vmatprep.mubr.f32.mxu0 0.0
      %2823 = vmatmul.mubr.f32.gmra.mrb[0].mxu0 %v2667
      %v2824 = vpop.f32.mrb[0].mxu0
      %v2825 = vadd.f32 0.0, %v2824
      %v2826 = vpop.f32.mrb[0].mxu0
      %2827 = vmatprep.mubr.f32.mxu0 0.0
      %2828 = vmatmul.mubr.f32.gmra.mrb[0].mxu0 %v2669
      %v2829 = vpop.f32.mrb[0].mxu0
      %v2830 = vadd.f32 0.0, %v2829
      %v2831 = vpop.f32.mrb[0].mxu0
      %2832 = vmatprep.mubr.f32.mxu0 0.0
      %2833 = vmatmul.mubr.f32.gmra.mrb[0].mxu0 %v2671
      %v2834 = vpop.f32.mrb[0].mxu0
      %v2835 = vadd.f32 0.0, %v2834
      %v2836 = vpop.f32.mrb[0].mxu0
      %2837 = vmatprep.mubr.f32.mxu0 0.0
      %2838 = vmatmul.mubr.f32.gmra.mrb[0].mxu0 %v2673
      %v2839 = vpop.f32.mrb[0].mxu0
      %v2840 = vadd.f32 0.0, %v2839
      %v2841 = vpop.f32.mrb[0].mxu0
      %2842 = vmatprep.mubr.f32.mxu0 0.0
      %2843 = vmatmul.mubr.f32.gmra.mrb[0].mxu0 %v2675
      %v2844 = vpop.f32.mrb[0].mxu0
      %v2845 = vadd.f32 0.0, %v2844
      %v2846 = vpop.f32.mrb[0].mxu0
      %2847 = vmatprep.mubr.f32.mxu0 0.0
      %2848 = vmatmul.mubr.f32.gmra.mrb[0].mxu0 %v2677
      %v2849 = vpop.f32.mrb[0].mxu0
      %v2850 = vadd.f32 0.0, %v2849
      %v2851 = vpop.f32.mrb[0].mxu0
      %2852 = vmatprep.mubr.f32.mxu0 0.0
      %2853 = vmatmul.mubr.f32.gmra.mrb[0].mxu0 %v2679
      %v2854 = vpop.f32.mrb[0].mxu0
      %v2855 = vadd.f32 0.0, %v2854
      %v2856 = vpop.f32.mrb[0].mxu0
      %2857 = vmatprep.mubr.f32.mxu0 0.0
      %2858 = vmatmul.mubr.f32.gmra.mrb[0].mxu0 %v2681
      %v2859 = vpop.f32.mrb[0].mxu0
      %v2860 = vadd.f32 0.0, %v2859
      %v2861 = vpop.f32.mrb[0].mxu0
      %2862 = vmatprep.mubr.f32.mxu0 0.0
      %2863 = vmatmul.mubr.f32.gmra.mrb[0].mxu0 %v2683
      %v2864 = vpop.f32.mrb[0].mxu0
      %v2865 = vadd.f32 0.0, %v2864
      %v2866 = vpop.f32.mrb[0].mxu0
      %2867 = vmatprep.mubr.f32.mxu0 0.0
      %2868 = vmatmul.mubr.f32.gmra.mrb[0].mxu0 %v2685
      %v2869 = vpop.f32.mrb[0].mxu0
      %v2870 = vadd.f32 0.0, %v2869
      %v2871 = vpop.f32.mrb[0].mxu0
      %2872 = vmatprep.mubr.f32.mxu0 0.0
      %2873 = vmatmul.mubr.f32.gmra.mrb[0].mxu0 %v2687
      %v2874 = vpop.f32.mrb[0].mxu0
      %v2875 = vadd.f32 0.0, %v2874
      %v2876 = vpop.f32.mrb[0].mxu0
      %2877 = vmatprep.mubr.f32.mxu0 0.0
      %2878 = vmatmul.mubr.f32.gmra.mrb[0].mxu0 %v2689
      %v2879 = vpop.f32.mrb[0].mxu0
      %v2880 = vadd.f32 0.0, %v2879
      %v2881 = vpop.f32.mrb[0].mxu0
      %2882 = vmatprep.mubr.f32.mxu0 0.0
      %2883 = vmatmul.mubr.f32.gmra.mrb[0].mxu0 %v2691
      %v2884 = vpop.f32.mrb[0].mxu0
      %v2885 = vadd.f32 0.0, %v2884
      %v2886 = vpop.f32.mrb[0].mxu0
      %2887 = vmatprep.mubr.f32.mxu0 0.0
      %2888 = vmatmul.mubr.f32.gmra.mrb[0].mxu0 %v2693
      %v2889 = vpop.f32.mrb[0].mxu0
      %v2890 = vadd.f32 0.0, %v2889
      %v2891 = vpop.f32.mrb[0].mxu0
      %2892 = vmatprep.mubr.f32.mxu0 0.0
      %2893 = vmatmul.mubr.f32.gmra.mrb[0].mxu0 %v2695
      %v2894 = vpop.f32.mrb[0].mxu0
      %v2895 = vadd.f32 0.0, %v2894
      %v2896 = vpop.f32.mrb[0].mxu0
      %2897 = vmatprep.mubr.f32.mxu0 0.0
      %2898 = vmatmul.mubr.f32.gmra.mrb[0].mxu0 %v2697
      %v2899 = vpop.f32.mrb[0].mxu0
      %v2900 = vadd.f32 0.0, %v2899
      %v2901 = vpop.f32.mrb[0].mxu0
      %2902 = vmatprep.mubr.f32.mxu0 0.0
      %2903 = vmatmul.mubr.f32.gmra.mrb[0].mxu0 %v2699
      %v2904 = vpop.f32.mrb[0].mxu0
      %v2905 = vadd.f32 0.0, %v2904
      %v2906 = vpop.f32.mrb[0].mxu0
      %2907 = vmatprep.mubr.f32.mxu0 0.0
      %2908 = vmatmul.mubr.f32.gmra.mrb[0].mxu0 %v2701
      %v2909 = vpop.f32.mrb[0].mxu0
      %v2910 = vadd.f32 0.0, %v2909
      %v2911 = vpop.f32.mrb[0].mxu0
      %2912 = vmatprep.mubr.f32.mxu0 0.0
      %2913 = vmatmul.mubr.f32.gmra.mrb[0].mxu0 %v2703
      %v2914 = vpop.f32.mrb[0].mxu0
      %v2915 = vadd.f32 0.0, %v2914
      %v2916 = vpop.f32.mrb[0].mxu0
      %2917 = vmatprep.mubr.f32.mxu0 0.0
      %2918 = vmatmul.mubr.f32.gmra.mrb[0].mxu0 %v2705
      %v2919 = vpop.f32.mrb[0].mxu0
      %v2920 = vadd.f32 0.0, %v2919
      %v2921 = vpop.f32.mrb[0].mxu0
      %2922 = vmatprep.mubr.f32.mxu0 0.0
      %2923 = vmatmul.mubr.f32.gmra.mrb[0].mxu0 %v2707
      %v2924 = vpop.f32.mrb[0].mxu0
      %v2925 = vadd.f32 0.0, %v2924
      %v2926 = vpop.f32.mrb[0].mxu0
      %2927 = vmatprep.mubr.f32.mxu0 0.0
      %2928 = vmatmul.mubr.f32.gmra.mrb[0].mxu0 %v2709
      %v2929 = vpop.f32.mrb[0].mxu0
      %v2930 = vadd.f32 0.0, %v2929
      %v2931 = vpop.f32.mrb[0].mxu0
      %2932 = vmatprep.mubr.f32.mxu0 0.0
      %2933 = vmatmul.mubr.f32.gmra.mrb[0].mxu0 %v2711
      %v2934 = vpop.f32.mrb[0].mxu0
      %v2935 = vadd.f32 0.0, %v2934
      %v2936 = vpop.f32.mrb[0].mxu0
      %2937 = vdwg.mxu0
      %v2938 = vadd.f32 %v2780, 1e-15
      %v2939 = vadd.f32 %v2785, 1e-15
      %v2940 = vadd.f32 %v2790, 1e-15
      %v2941 = vadd.f32 %v2795, 1e-15
      %v2942 = vadd.f32 %v2800, 1e-15
      %v2943 = vadd.f32 %v2805, 1e-15
      %v2944 = vadd.f32 %v2810, 1e-15
      %v2945 = vadd.f32 %v2815, 1e-15
      %v2946 = vadd.f32 %v2820, 1e-15
      %v2947 = vadd.f32 %v2825, 1e-15
      %v2948 = vadd.f32 %v2830, 1e-15
      %v2949 = vadd.f32 %v2835, 1e-15
      %v2950 = vadd.f32 %v2840, 1e-15
      %v2951 = vadd.f32 %v2845, 1e-15
      %v2952 = vadd.f32 %v2850, 1e-15
      %v2953 = vadd.f32 %v2855, 1e-15
      %v2954 = vadd.f32 %v2860, 1e-15
      %v2955 = vadd.f32 %v2865, 1e-15
      %v2956 = vadd.f32 %v2870, 1e-15
      %v2957 = vadd.f32 %v2875, 1e-15
      %v2958 = vadd.f32 %v2880, 1e-15
      %v2959 = vadd.f32 %v2885, 1e-15
      %v2960 = vadd.f32 %v2890, 1e-15
      %v2961 = vadd.f32 %v2895, 1e-15
      %v2962 = vadd.f32 %v2900, 1e-15
      %v2963 = vadd.f32 %v2905, 1e-15
      %v2964 = vadd.f32 %v2910, 1e-15
      %v2965 = vadd.f32 %v2915, 1e-15
      %v2966 = vadd.f32 %v2920, 1e-15
      %v2967 = vadd.f32 %v2925, 1e-15
      %v2968 = vadd.f32 %v2930, 1e-15
      %v2969 = vadd.f32 %v2935, 1e-15
      %v2970 = vrcp.pop %v2938
      %v2971 = vrcp.pop %v2939
      %v2972 = vrcp.pop %v2940
      %v2973 = vrcp.pop %v2941
      %v2974 = vrcp.pop %v2942
      %v2975 = vrcp.pop %v2943
      %v2976 = vrcp.pop %v2944
      %v2977 = vrcp.pop %v2945
      %v2978 = vrcp.pop %v2946
      %v2979 = vrcp.pop %v2947
      %v2980 = vrcp.pop %v2948
      %v2981 = vrcp.pop %v2949
      %v2982 = vrcp.pop %v2950
      %v2983 = vrcp.pop %v2951
      %v2984 = vrcp.pop %v2952
      %v2985 = vrcp.pop %v2953
      %v2986 = vrcp.pop %v2954
      %v2987 = vrcp.pop %v2955
      %v2988 = vrcp.pop %v2956
      %v2989 = vrcp.pop %v2957
      %v2990 = vrcp.pop %v2958
      %v2991 = vrcp.pop %v2959
      %v2992 = vrcp.pop %v2960
      %v2993 = vrcp.pop %v2961
      %v2994 = vrcp.pop %v2962
      %v2995 = vrcp.pop %v2963
      %v2996 = vrcp.pop %v2964
      %v2997 = vrcp.pop %v2965
      %v2998 = vrcp.pop %v2966
      %v2999 = vrcp.pop %v2967
      %v3000 = vrcp.pop %v2968
      %v3001 = vrcp.pop %v2969
      %3003 = vset.pattern.permute.xlu0 8
      %3004 = vperm.xlu0 %3003, %v2970
      %v3005 = vpop.permute.xlu0 %3004
      %3008 = vset.pattern.permute.xlu0 8
      %3009 = vperm.xlu0 %3008, %v2971
      %v3010 = vpop.permute.xlu0 %3009
      %3013 = vset.pattern.permute.xlu0 8
      %3014 = vperm.xlu0 %3013, %v2972
      %v3015 = vpop.permute.xlu0 %3014
      %3018 = vset.pattern.permute.xlu0 8
      %3019 = vperm.xlu0 %3018, %v2973
      %v3020 = vpop.permute.xlu0 %3019
      %3023 = vset.pattern.permute.xlu0 8
      %3024 = vperm.xlu0 %3023, %v2974
      %v3025 = vpop.permute.xlu0 %3024
      %3028 = vset.pattern.permute.xlu0 8
      %3029 = vperm.xlu0 %3028, %v2975
      %v3030 = vpop.permute.xlu0 %3029
      %3033 = vset.pattern.permute.xlu0 8
      %3034 = vperm.xlu0 %3033, %v2976
      %v3035 = vpop.permute.xlu0 %3034
      %3038 = vset.pattern.permute.xlu0 8
      %3039 = vperm.xlu0 %3038, %v2977
      %v3040 = vpop.permute.xlu0 %3039
      %3043 = vset.pattern.permute.xlu0 8
      %3044 = vperm.xlu0 %3043, %v2978
      %v3045 = vpop.permute.xlu0 %3044
      %3048 = vset.pattern.permute.xlu0 8
      %3049 = vperm.xlu0 %3048, %v2979
      %v3050 = vpop.permute.xlu0 %3049
      %3053 = vset.pattern.permute.xlu0 8
      %3054 = vperm.xlu0 %3053, %v2980
      %v3055 = vpop.permute.xlu0 %3054
      %3058 = vset.pattern.permute.xlu0 8
      %3059 = vperm.xlu0 %3058, %v2981
      %v3060 = vpop.permute.xlu0 %3059
      %3063 = vset.pattern.permute.xlu0 8
      %3064 = vperm.xlu0 %3063, %v2982
      %v3065 = vpop.permute.xlu0 %3064
      %3068 = vset.pattern.permute.xlu0 8
      %3069 = vperm.xlu0 %3068, %v2983
      %v3070 = vpop.permute.xlu0 %3069
      %3073 = vset.pattern.permute.xlu0 8
      %3074 = vperm.xlu0 %3073, %v2984
      %v3075 = vpop.permute.xlu0 %3074
      %3078 = vset.pattern.permute.xlu0 8
      %3079 = vperm.xlu0 %3078, %v2985
      %v3080 = vpop.permute.xlu0 %3079
      %3083 = vset.pattern.permute.xlu0 8
      %3084 = vperm.xlu0 %3083, %v2986
      %v3085 = vpop.permute.xlu0 %3084
      %3088 = vset.pattern.permute.xlu0 8
      %3089 = vperm.xlu0 %3088, %v2987
      %v3090 = vpop.permute.xlu0 %3089
      %3093 = vset.pattern.permute.xlu0 8
      %3094 = vperm.xlu0 %3093, %v2988
      %v3095 = vpop.permute.xlu0 %3094
      %3098 = vset.pattern.permute.xlu0 8
      %3099 = vperm.xlu0 %3098, %v2989
      %v3100 = vpop.permute.xlu0 %3099
      %3103 = vset.pattern.permute.xlu0 8
      %3104 = vperm.xlu0 %3103, %v2990
      %v3105 = vpop.permute.xlu0 %3104
      %3108 = vset.pattern.permute.xlu0 8
      %3109 = vperm.xlu0 %3108, %v2991
      %v3110 = vpop.permute.xlu0 %3109
      %3113 = vset.pattern.permute.xlu0 8
      %3114 = vperm.xlu0 %3113, %v2992
      %v3115 = vpop.permute.xlu0 %3114
      %3118 = vset.pattern.permute.xlu0 8
      %3119 = vperm.xlu0 %3118, %v2993
      %v3120 = vpop.permute.xlu0 %3119
      %3123 = vset.pattern.permute.xlu0 8
      %3124 = vperm.xlu0 %3123, %v2994
      %v3125 = vpop.permute.xlu0 %3124
      %3128 = vset.pattern.permute.xlu0 8
      %3129 = vperm.xlu0 %3128, %v2995
      %v3130 = vpop.permute.xlu0 %3129
      %3133 = vset.pattern.permute.xlu0 8
      %3134 = vperm.xlu0 %3133, %v2996
      %v3135 = vpop.permute.xlu0 %3134
      %3138 = vset.pattern.permute.xlu0 8
      %3139 = vperm.xlu0 %3138, %v2997
      %v3140 = vpop.permute.xlu0 %3139
      %3143 = vset.pattern.permute.xlu0 8
      %3144 = vperm.xlu0 %3143, %v2998
      %v3145 = vpop.permute.xlu0 %3144
      %3148 = vset.pattern.permute.xlu0 8
      %3149 = vperm.xlu0 %3148, %v2999
      %v3150 = vpop.permute.xlu0 %3149
      %3153 = vset.pattern.permute.xlu0 8
      %3154 = vperm.xlu0 %3153, %v3000
      %v3155 = vpop.permute.xlu0 %3154
      %3158 = vset.pattern.permute.xlu0 8
      %3159 = vperm.xlu0 %3158, %v3001
      %v3160 = vpop.permute.xlu0 %3159
      %v3162 = vmul.f32 %v2780, %v3005
      %v3163 = vmul.f32 %v2785, %v3010
      %v3164 = vmul.f32 %v2790, %v3015
      %v3165 = vmul.f32 %v2795, %v3020
      %v3166 = vmul.f32 %v2800, %v3025
      %v3167 = vmul.f32 %v2805, %v3030
      %v3168 = vmul.f32 %v2810, %v3035
      %v3169 = vmul.f32 %v2815, %v3040
      %v3170 = vmul.f32 %v2820, %v3045
      %v3171 = vmul.f32 %v2825, %v3050
      %v3172 = vmul.f32 %v2830, %v3055
      %v3173 = vmul.f32 %v2835, %v3060
      %v3174 = vmul.f32 %v2840, %v3065
      %v3175 = vmul.f32 %v2845, %v3070
      %v3176 = vmul.f32 %v2850, %v3075
      %v3177 = vmul.f32 %v2855, %v3080
      %v3178 = vmul.f32 %v2860, %v3085
      %v3179 = vmul.f32 %v2865, %v3090
      %v3180 = vmul.f32 %v2870, %v3095
      %v3181 = vmul.f32 %v2875, %v3100
      %v3182 = vmul.f32 %v2880, %v3105
      %v3183 = vmul.f32 %v2885, %v3110
      %v3184 = vmul.f32 %v2890, %v3115
      %v3185 = vmul.f32 %v2895, %v3120
      %v3186 = vmul.f32 %v2900, %v3125
      %v3187 = vmul.f32 %v2905, %v3130
      %v3188 = vmul.f32 %v2910, %v3135
      %v3189 = vmul.f32 %v2915, %v3140
      %v3190 = vmul.f32 %v2920, %v3145
      %v3191 = vmul.f32 %v2925, %v3150
      %v3192 = vmul.f32 %v2930, %v3155
      %v3193 = vmul.f32 %v2935, %v3160
      %3194 = vrot.lane.b32.xlu0 %v2163, 88
      %v3195 = vpop.permute.xlu0 %3194
      %3196 = vrot.lane.b32.xlu0 %v2164, 88
      %v3197 = vpop.permute.xlu0 %3196
      %3198 = vrot.lane.b32.xlu0 %v2165, 88
      %v3199 = vpop.permute.xlu0 %3198
      %3200 = vrot.lane.b32.xlu0 %v2166, 88
      %v3201 = vpop.permute.xlu0 %3200
      %3202 = vrot.lane.b32.xlu0 %v2167, 88
      %v3203 = vpop.permute.xlu0 %3202
      %3204 = vrot.lane.b32.xlu0 %v2168, 88
      %v3205 = vpop.permute.xlu0 %3204
      %3206 = vrot.lane.b32.xlu0 %v2169, 88
      %v3207 = vpop.permute.xlu0 %3206
      %3208 = vrot.lane.b32.xlu0 %v2170, 88
      %v3209 = vpop.permute.xlu0 %3208
      %3210 = vrot.lane.b32.xlu0 %v2171, 88
      %v3211 = vpop.permute.xlu0 %3210
      %3212 = vrot.lane.b32.xlu0 %v2172, 88
      %v3213 = vpop.permute.xlu0 %3212
      %3214 = vrot.lane.b32.xlu0 %v2173, 88
      %v3215 = vpop.permute.xlu0 %3214
      %3216 = vrot.lane.b32.xlu0 %v2174, 88
      %v3217 = vpop.permute.xlu0 %3216
      %3218 = vrot.lane.b32.xlu0 %v2175, 88
      %v3219 = vpop.permute.xlu0 %3218
      %3220 = vrot.lane.b32.xlu0 %v2176, 88
      %v3221 = vpop.permute.xlu0 %3220
      %3222 = vrot.lane.b32.xlu0 %v2177, 88
      %v3223 = vpop.permute.xlu0 %3222
      %3224 = vrot.lane.b32.xlu0 %v2178, 88
      %v3225 = vpop.permute.xlu0 %3224
      %3226 = vrot.lane.b32.xlu0 %v2179, 88
      %v3227 = vpop.permute.xlu0 %3226
      %3228 = vrot.lane.b32.xlu0 %v2180, 88
      %v3229 = vpop.permute.xlu0 %3228
      %3230 = vrot.lane.b32.xlu0 %v2181, 88
      %v3231 = vpop.permute.xlu0 %3230
      %3232 = vrot.lane.b32.xlu0 %v2182, 88
      %v3233 = vpop.permute.xlu0 %3232
      %3234 = vrot.lane.b32.xlu0 %v2183, 88
      %v3235 = vpop.permute.xlu0 %3234
      %3236 = vrot.lane.b32.xlu0 %v2184, 88
      %v3237 = vpop.permute.xlu0 %3236
      %3238 = vrot.lane.b32.xlu0 %v2185, 88
      %v3239 = vpop.permute.xlu0 %3238
      %3240 = vrot.lane.b32.xlu0 %v2186, 88
      %v3241 = vpop.permute.xlu0 %3240
      %3242 = vrot.lane.b32.xlu0 %v2187, 88
      %v3243 = vpop.permute.xlu0 %3242
      %3244 = vrot.lane.b32.xlu0 %v2188, 88
      %v3245 = vpop.permute.xlu0 %3244
      %3246 = vrot.lane.b32.xlu0 %v2189, 88
      %v3247 = vpop.permute.xlu0 %3246
      %3248 = vrot.lane.b32.xlu0 %v2190, 88
      %v3249 = vpop.permute.xlu0 %3248
      %3250 = vrot.lane.b32.xlu0 %v2191, 88
      %v3251 = vpop.permute.xlu0 %3250
      %3252 = vrot.lane.b32.xlu0 %v2192, 88
      %v3253 = vpop.permute.xlu0 %3252
      %3254 = vrot.lane.b32.xlu0 %v2193, 88
      %v3255 = vpop.permute.xlu0 %3254
      %3256 = vrot.lane.b32.xlu0 %v2194, 88
      %v3257 = vpop.permute.xlu0 %3256
      %v3290 = vsel %vm356, %v3195, 1.0
      %v3291 = vsel %vm356, %v3197, 1.0
      %v3292 = vsel %vm356, %v3199, 1.0
      %v3293 = vsel %vm356, %v3201, 1.0
      %v3294 = vsel %vm356, %v3203, 1.0
      %v3295 = vsel %vm356, %v3205, 1.0
      %v3296 = vsel %vm356, %v3207, 1.0
      %v3297 = vsel %vm356, %v3209, 1.0
      %v3298 = vsel %vm356, %v3211, 1.0
      %v3299 = vsel %vm356, %v3213, 1.0
      %v3300 = vsel %vm356, %v3215, 1.0
      %v3301 = vsel %vm356, %v3217, 1.0
      %v3302 = vsel %vm356, %v3219, 1.0
      %v3303 = vsel %vm356, %v3221, 1.0
      %v3304 = vsel %vm356, %v3223, 1.0
      %v3305 = vsel %vm356, %v3225, 1.0
      %v3306 = vsel %vm356, %v3227, 1.0
      %v3307 = vsel %vm356, %v3229, 1.0
      %v3308 = vsel %vm356, %v3231, 1.0
      %v3309 = vsel %vm356, %v3233, 1.0
      %v3310 = vsel %vm356, %v3235, 1.0
      %v3311 = vsel %vm356, %v3237, 1.0
      %v3312 = vsel %vm356, %v3239, 1.0
      %v3313 = vsel %vm356, %v3241, 1.0
      %v3314 = vsel %vm356, %v3243, 1.0
      %v3315 = vsel %vm356, %v3245, 1.0
      %v3316 = vsel %vm356, %v3247, 1.0
      %v3317 = vsel %vm356, %v3249, 1.0
      %v3318 = vsel %vm356, %v3251, 1.0
      %v3319 = vsel %vm356, %v3253, 1.0
      %v3320 = vsel %vm356, %v3255, 1.0
      %v3321 = vsel %vm356, %v3257, 1.0
      %3322 = vrot.lane.b32.xlu0 %v2195, 96
      %v3323 = vpop.permute.xlu0 %3322
      %3324 = vrot.lane.b32.xlu0 %v2196, 96
      %v3325 = vpop.permute.xlu0 %3324
      %3326 = vrot.lane.b32.xlu0 %v2197, 96
      %v3327 = vpop.permute.xlu0 %3326
      %3328 = vrot.lane.b32.xlu0 %v2198, 96
      %v3329 = vpop.permute.xlu0 %3328
      %3330 = vrot.lane.b32.xlu0 %v2199, 96
      %v3331 = vpop.permute.xlu0 %3330
      %3332 = vrot.lane.b32.xlu0 %v2200, 96
      %v3333 = vpop.permute.xlu0 %3332
      %3334 = vrot.lane.b32.xlu0 %v2201, 96
      %v3335 = vpop.permute.xlu0 %3334
      %3336 = vrot.lane.b32.xlu0 %v2202, 96
      %v3337 = vpop.permute.xlu0 %3336
      %3338 = vrot.lane.b32.xlu0 %v2203, 96
      %v3339 = vpop.permute.xlu0 %3338
      %3340 = vrot.lane.b32.xlu0 %v2204, 96
      %v3341 = vpop.permute.xlu0 %3340
      %3342 = vrot.lane.b32.xlu0 %v2205, 96
      %v3343 = vpop.permute.xlu0 %3342
      %3344 = vrot.lane.b32.xlu0 %v2206, 96
      %v3345 = vpop.permute.xlu0 %3344
      %3346 = vrot.lane.b32.xlu0 %v2207, 96
      %v3347 = vpop.permute.xlu0 %3346
      %3348 = vrot.lane.b32.xlu0 %v2208, 96
      %v3349 = vpop.permute.xlu0 %3348
      %3350 = vrot.lane.b32.xlu0 %v2209, 96
      %v3351 = vpop.permute.xlu0 %3350
      %3352 = vrot.lane.b32.xlu0 %v2210, 96
      %v3353 = vpop.permute.xlu0 %3352
      %3354 = vrot.lane.b32.xlu0 %v2211, 96
      %v3355 = vpop.permute.xlu0 %3354
      %3356 = vrot.lane.b32.xlu0 %v2212, 96
      %v3357 = vpop.permute.xlu0 %3356
      %3358 = vrot.lane.b32.xlu0 %v2213, 96
      %v3359 = vpop.permute.xlu0 %3358
      %3360 = vrot.lane.b32.xlu0 %v2214, 96
      %v3361 = vpop.permute.xlu0 %3360
      %3362 = vrot.lane.b32.xlu0 %v2215, 96
      %v3363 = vpop.permute.xlu0 %3362
      %3364 = vrot.lane.b32.xlu0 %v2216, 96
      %v3365 = vpop.permute.xlu0 %3364
      %3366 = vrot.lane.b32.xlu0 %v2217, 96
      %v3367 = vpop.permute.xlu0 %3366
      %3368 = vrot.lane.b32.xlu0 %v2218, 96
      %v3369 = vpop.permute.xlu0 %3368
      %3370 = vrot.lane.b32.xlu0 %v2219, 96
      %v3371 = vpop.permute.xlu0 %3370
      %3372 = vrot.lane.b32.xlu0 %v2220, 96
      %v3373 = vpop.permute.xlu0 %3372
      %3374 = vrot.lane.b32.xlu0 %v2221, 96
      %v3375 = vpop.permute.xlu0 %3374
      %3376 = vrot.lane.b32.xlu0 %v2222, 96
      %v3377 = vpop.permute.xlu0 %3376
      %3378 = vrot.lane.b32.xlu0 %v2223, 96
      %v3379 = vpop.permute.xlu0 %3378
      %3380 = vrot.lane.b32.xlu0 %v2224, 96
      %v3381 = vpop.permute.xlu0 %3380
      %3382 = vrot.lane.b32.xlu0 %v2225, 96
      %v3383 = vpop.permute.xlu0 %3382
      %3384 = vrot.lane.b32.xlu0 %v2226, 96
      %v3385 = vpop.permute.xlu0 %3384
      %3418 = vxpose.xlu0.b32.start [1/16] %v3323, 128
      %3419 = vxpose.xlu0.b32.cont [2/16] %v3325, 128
      %3420 = vxpose.xlu0.b32.cont [3/16] %v3327, 128
      %3421 = vxpose.xlu0.b32.cont [4/16] %v3329, 128
      %3422 = vxpose.xlu0.b32.cont [5/16] %v3331, 128
      %3423 = vxpose.xlu0.b32.cont [6/16] %v3333, 128
      %3424 = vxpose.xlu0.b32.cont [7/16] %v3335, 128
      %3425 = vxpose.xlu0.b32.cont [8/16] %v3337, 128
      %3426 = vxpose.xlu0.b32.cont [9/16] %v3339, 128
      %3427 = vxpose.xlu0.b32.cont [10/16] %v3341, 128
      %3428 = vxpose.xlu0.b32.cont [11/16] %v3343, 128
      %3429 = vxpose.xlu0.b32.cont [12/16] %v3345, 128
      %3430 = vxpose.xlu0.b32.cont [13/16] %v3347, 128
      %3431 = vxpose.xlu0.b32.cont [14/16] %v3349, 128
      %3432 = vxpose.xlu0.b32.cont [15/16] %v3351, 128
      %3433 = vxpose.xlu0.b32.end [16/16] %v3353, 128
      %v3434 = vpop.trf.xlu0
      %v3435 = vpop.trf.xlu0
      %v3436 = vpop.trf.xlu0
      %v3437 = vpop.trf.xlu0
      %v3438 = vpop.trf.xlu0
      %v3439 = vpop.trf.xlu0
      %v3440 = vpop.trf.xlu0
      %v3441 = vpop.trf.xlu0
      %v3442 = vpop.trf.xlu0
      %v3443 = vpop.trf.xlu0
      %v3444 = vpop.trf.xlu0
      %v3445 = vpop.trf.xlu0
      %v3446 = vpop.trf.xlu0
      %v3447 = vpop.trf.xlu0
      %v3448 = vpop.trf.xlu0
      %v3449 = vpop.trf.xlu0
      %3450 = vxpose.xlu0.b32.start [1/16] %v3355, 128
      %3451 = vxpose.xlu0.b32.cont [2/16] %v3357, 128
      %3452 = vxpose.xlu0.b32.cont [3/16] %v3359, 128
      %3453 = vxpose.xlu0.b32.cont [4/16] %v3361, 128
      %3454 = vxpose.xlu0.b32.cont [5/16] %v3363, 128
      %3455 = vxpose.xlu0.b32.cont [6/16] %v3365, 128
      %3456 = vxpose.xlu0.b32.cont [7/16] %v3367, 128
      %3457 = vxpose.xlu0.b32.cont [8/16] %v3369, 128
      %3458 = vxpose.xlu0.b32.cont [9/16] %v3371, 128
      %3459 = vxpose.xlu0.b32.cont [10/16] %v3373, 128
      %3460 = vxpose.xlu0.b32.cont [11/16] %v3375, 128
      %3461 = vxpose.xlu0.b32.cont [12/16] %v3377, 128
      %3462 = vxpose.xlu0.b32.cont [13/16] %v3379, 128
      %3463 = vxpose.xlu0.b32.cont [14/16] %v3381, 128
      %3464 = vxpose.xlu0.b32.cont [15/16] %v3383, 128
      %3465 = vxpose.xlu0.b32.end [16/16] %v3385, 128
      %v3466 = vpop.trf.xlu0
      %v3467 = vpop.trf.xlu0
      %v3468 = vpop.trf.xlu0
      %v3469 = vpop.trf.xlu0
      %v3470 = vpop.trf.xlu0
      %v3471 = vpop.trf.xlu0
      %v3472 = vpop.trf.xlu0
      %v3473 = vpop.trf.xlu0
      %v3474 = vpop.trf.xlu0
      %v3475 = vpop.trf.xlu0
      %v3476 = vpop.trf.xlu0
      %v3477 = vpop.trf.xlu0
      %v3478 = vpop.trf.xlu0
      %v3479 = vpop.trf.xlu0
      %v3480 = vpop.trf.xlu0
      %v3481 = vpop.trf.xlu0
      %3482 = vmatprep.subr.mxu0 0.0
      %3483 = vmatpush1.msra.mxu0 %v3290
      %3484 = vmatprep.subr.mxu0 0.0
      %3485 = vmatpush1.msra.mxu0 %v3291
      %3486 = vmatprep.subr.mxu0 0.0
      %3487 = vmatpush1.msra.mxu0 %v3292
      %3488 = vmatprep.subr.mxu0 0.0
      %3489 = vmatpush1.msra.mxu0 %v3293
      %3490 = vmatprep.subr.mxu0 0.0
      %3491 = vmatpush1.msra.mxu0 %v3294
      %3492 = vmatprep.subr.mxu0 0.0
      %3493 = vmatpush1.msra.mxu0 %v3295
      %3494 = vmatprep.subr.mxu0 0.0
      %3495 = vmatpush1.msra.mxu0 %v3296
      %3496 = vmatprep.subr.mxu0 0.0
      %3497 = vmatpush1.msra.mxu0 %v3297
      %3498 = vmatprep.subr.mxu0 0.0
      %3499 = vmatpush1.msra.mxu0 %v3298
      %3500 = vmatprep.subr.mxu0 0.0
      %3501 = vmatpush1.msra.mxu0 %v3299
      %3502 = vmatprep.subr.mxu0 0.0
      %3503 = vmatpush1.msra.mxu0 %v3300
      %3504 = vmatprep.subr.mxu0 0.0
      %3505 = vmatpush1.msra.mxu0 %v3301
      %3506 = vmatprep.subr.mxu0 0.0
      %3507 = vmatpush1.msra.mxu0 %v3302
      %3508 = vmatprep.subr.mxu0 0.0
      %3509 = vmatpush1.msra.mxu0 %v3303
      %3510 = vmatprep.subr.mxu0 0.0
      %3511 = vmatpush1.msra.mxu0 %v3304
      %3512 = vmatprep.subr.mxu0 0.0
      %3513 = vmatpush1.msra.mxu0 %v3305
      %3514 = vmatprep.subr.mxu0 0.0
      %3515 = vmatpush1.msra.mxu0 %v3306
      %3516 = vmatprep.subr.mxu0 0.0
      %3517 = vmatpush1.msra.mxu0 %v3307
      %3518 = vmatprep.subr.mxu0 0.0
      %3519 = vmatpush1.msra.mxu0 %v3308
      %3520 = vmatprep.subr.mxu0 0.0
      %3521 = vmatpush1.msra.mxu0 %v3309
      %3522 = vmatprep.subr.mxu0 0.0
      %3523 = vmatpush1.msra.mxu0 %v3310
      %3524 = vmatprep.subr.mxu0 0.0
      %3525 = vmatpush1.msra.mxu0 %v3311
      %3526 = vmatprep.subr.mxu0 0.0
      %3527 = vmatpush1.msra.mxu0 %v3312
      %3528 = vmatprep.subr.mxu0 0.0
      %3529 = vmatpush1.msra.mxu0 %v3313
      %3530 = vmatprep.subr.mxu0 0.0
      %3531 = vmatpush1.msra.mxu0 %v3314
      %3532 = vmatprep.subr.mxu0 0.0
      %3533 = vmatpush1.msra.mxu0 %v3315
      %3534 = vmatprep.subr.mxu0 0.0
      %3535 = vmatpush1.msra.mxu0 %v3316
      %3536 = vmatprep.subr.mxu0 0.0
      %3537 = vmatpush1.msra.mxu0 %v3317
      %3538 = vmatprep.subr.mxu0 0.0
      %3539 = vmatpush1.msra.mxu0 %v3318
      %3540 = vmatprep.subr.mxu0 0.0
      %3541 = vmatpush1.msra.mxu0 %v3319
      %3542 = vmatprep.subr.mxu0 0.0
      %3543 = vmatpush1.msra.mxu0 %v3320
      %3544 = vmatprep.subr.mxu0 0.0
      %3545 = vmatpush1.msra.mxu0 %v3321
      %3546 = vmatprep.mubr.f32.mxu0 %v3466
      %3547 = vmatmul.mubr.f32.gmra.mrb[0].mxu0 %v3434
      %v3548 = vpop.f32.mrb[0].mxu0
      %v3549 = vadd.f32 0.0, %v3548
      %v3550 = vpop.f32.mrb[0].mxu0
      %3551 = vdwg.mxu0
      %3552 = vrot.lane.b32.xlu0 %v2195, 104
      %v3553 = vpop.permute.xlu0 %3552
      %3554 = vrot.lane.b32.xlu0 %v2196, 104
      %v3555 = vpop.permute.xlu0 %3554
      %3556 = vrot.lane.b32.xlu0 %v2197, 104
      %v3557 = vpop.permute.xlu0 %3556
      %3558 = vrot.lane.b32.xlu0 %v2198, 104
      %v3559 = vpop.permute.xlu0 %3558
      %3560 = vrot.lane.b32.xlu0 %v2199, 104
      %v3561 = vpop.permute.xlu0 %3560
      %3562 = vrot.lane.b32.xlu0 %v2200, 104
      %v3563 = vpop.permute.xlu0 %3562
      %3564 = vrot.lane.b32.xlu0 %v2201, 104
      %v3565 = vpop.permute.xlu0 %3564
      %3566 = vrot.lane.b32.xlu0 %v2202, 104
      %v3567 = vpop.permute.xlu0 %3566
      %3568 = vrot.lane.b32.xlu0 %v2203, 104
      %v3569 = vpop.permute.xlu0 %3568
      %3570 = vrot.lane.b32.xlu0 %v2204, 104
      %v3571 = vpop.permute.xlu0 %3570
      %3572 = vrot.lane.b32.xlu0 %v2205, 104
      %v3573 = vpop.permute.xlu0 %3572
      %3574 = vrot.lane.b32.xlu0 %v2206, 104
      %v3575 = vpop.permute.xlu0 %3574
      %3576 = vrot.lane.b32.xlu0 %v2207, 104
      %v3577 = vpop.permute.xlu0 %3576
      %3578 = vrot.lane.b32.xlu0 %v2208, 104
      %v3579 = vpop.permute.xlu0 %3578
      %3580 = vrot.lane.b32.xlu0 %v2209, 104
      %v3581 = vpop.permute.xlu0 %3580
      %3582 = vrot.lane.b32.xlu0 %v2210, 104
      %v3583 = vpop.permute.xlu0 %3582
      %3584 = vrot.lane.b32.xlu0 %v2211, 104
      %v3585 = vpop.permute.xlu0 %3584
      %3586 = vrot.lane.b32.xlu0 %v2212, 104
      %v3587 = vpop.permute.xlu0 %3586
      %3588 = vrot.lane.b32.xlu0 %v2213, 104
      %v3589 = vpop.permute.xlu0 %3588
      %3590 = vrot.lane.b32.xlu0 %v2214, 104
      %v3591 = vpop.permute.xlu0 %3590
      %3592 = vrot.lane.b32.xlu0 %v2215, 104
      %v3593 = vpop.permute.xlu0 %3592
      %3594 = vrot.lane.b32.xlu0 %v2216, 104
      %v3595 = vpop.permute.xlu0 %3594
      %3596 = vrot.lane.b32.xlu0 %v2217, 104
      %v3597 = vpop.permute.xlu0 %3596
      %3598 = vrot.lane.b32.xlu0 %v2218, 104
      %v3599 = vpop.permute.xlu0 %3598
      %3600 = vrot.lane.b32.xlu0 %v2219, 104
      %v3601 = vpop.permute.xlu0 %3600
      %3602 = vrot.lane.b32.xlu0 %v2220, 104
      %v3603 = vpop.permute.xlu0 %3602
      %3604 = vrot.lane.b32.xlu0 %v2221, 104
      %v3605 = vpop.permute.xlu0 %3604
      %3606 = vrot.lane.b32.xlu0 %v2222, 104
      %v3607 = vpop.permute.xlu0 %3606
      %3608 = vrot.lane.b32.xlu0 %v2223, 104
      %v3609 = vpop.permute.xlu0 %3608
      %3610 = vrot.lane.b32.xlu0 %v2224, 104
      %v3611 = vpop.permute.xlu0 %3610
      %3612 = vrot.lane.b32.xlu0 %v2225, 104
      %v3613 = vpop.permute.xlu0 %3612
      %3614 = vrot.lane.b32.xlu0 %v2226, 104
      %v3615 = vpop.permute.xlu0 %3614
      %v3616 = vsel %vm356, %v3553, 0
      %v3618 = vsel %vm356, %v3555, 0
      %v3620 = vsel %vm356, %v3557, 0
      %v3622 = vsel %vm356, %v3559, 0
      %v3624 = vsel %vm356, %v3561, 0
      %v3626 = vsel %vm356, %v3563, 0
      %v3628 = vsel %vm356, %v3565, 0
      %v3630 = vsel %vm356, %v3567, 0
      %v3632 = vsel %vm356, %v3569, 0
      %v3634 = vsel %vm356, %v3571, 0
      %v3636 = vsel %vm356, %v3573, 0
      %v3638 = vsel %vm356, %v3575, 0
      %v3640 = vsel %vm356, %v3577, 0
      %v3642 = vsel %vm356, %v3579, 0
      %v3644 = vsel %vm356, %v3581, 0
      %v3646 = vsel %vm356, %v3583, 0
      %v3648 = vsel %vm356, %v3585, 0
      %v3650 = vsel %vm356, %v3587, 0
      %v3652 = vsel %vm356, %v3589, 0
      %v3654 = vsel %vm356, %v3591, 0
      %v3656 = vsel %vm356, %v3593, 0
      %v3658 = vsel %vm356, %v3595, 0
      %v3660 = vsel %vm356, %v3597, 0
      %v3662 = vsel %vm356, %v3599, 0
      %v3664 = vsel %vm356, %v3601, 0
      %v3666 = vsel %vm356, %v3603, 0
      %v3668 = vsel %vm356, %v3605, 0
      %v3670 = vsel %vm356, %v3607, 0
      %v3672 = vsel %vm356, %v3609, 0
      %v3674 = vsel %vm356, %v3611, 0
      %v3676 = vsel %vm356, %v3613, 0
      %v3678 = vsel %vm356, %v3615, 0
      %3680 = vmatprep.subr.mxu0 0.0
      %3681 = vmatpush1.msra.mxu0 %v3549
      %3682 = vmatprep.subr.mxu0 0.0
      %3683 = vmatpush1.msra.mxu0 0.0
      %3684 = vmatprep.subr.mxu0 0.0
      %3685 = vmatpush1.msra.mxu0 0.0
      %3686 = vmatprep.subr.mxu0 0.0
      %3687 = vmatpush1.msra.mxu0 0.0
      %3688 = vmatprep.subr.mxu0 0.0
      %3689 = vmatpush1.msra.mxu0 0.0
      %3690 = vmatprep.subr.mxu0 0.0
      %3691 = vmatpush1.msra.mxu0 0.0
      %3692 = vmatprep.subr.mxu0 0.0
      %3693 = vmatpush1.msra.mxu0 0.0
      %3694 = vmatprep.subr.mxu0 0.0
      %3695 = vmatpush1.msra.mxu0 0.0
      %3696 = vmatprep.subr.mxu0 0.0
      %3697 = vmatpush1.msra.mxu0 0.0
      %3698 = vmatprep.subr.mxu0 0.0
      %3699 = vmatpush1.msra.mxu0 0.0
      %3700 = vmatprep.subr.mxu0 0.0
      %3701 = vmatpush1.msra.mxu0 0.0
      %3702 = vmatprep.subr.mxu0 0.0
      %3703 = vmatpush1.msra.mxu0 0.0
      %3704 = vmatprep.subr.mxu0 0.0
      %3705 = vmatpush1.msra.mxu0 0.0
      %3706 = vmatprep.subr.mxu0 0.0
      %3707 = vmatpush1.msra.mxu0 0.0
      %3708 = vmatprep.subr.mxu0 0.0
      %3709 = vmatpush1.msra.mxu0 0.0
      %3710 = vmatprep.subr.mxu0 0.0
      %3711 = vmatpush1.msra.mxu0 0.0
      %3712 = vmatprep.subr.mxu0 0.0
      %3713 = vmatpush1.msra.mxu0 0.0
      %3714 = vmatprep.subr.mxu0 0.0
      %3715 = vmatpush1.msra.mxu0 0.0
      %3716 = vmatprep.subr.mxu0 0.0
      %3717 = vmatpush1.msra.mxu0 0.0
      %3718 = vmatprep.subr.mxu0 0.0
      %3719 = vmatpush1.msra.mxu0 0.0
      %3720 = vmatprep.subr.mxu0 0.0
      %3721 = vmatpush1.msra.mxu0 0.0
      %3722 = vmatprep.subr.mxu0 0.0
      %3723 = vmatpush1.msra.mxu0 0.0
      %3724 = vmatprep.subr.mxu0 0.0
      %3725 = vmatpush1.msra.mxu0 0.0
      %3726 = vmatprep.subr.mxu0 0.0
      %3727 = vmatpush1.msra.mxu0 0.0
      %3728 = vmatprep.subr.mxu0 0.0
      %3729 = vmatpush1.msra.mxu0 0.0
      %3730 = vmatprep.subr.mxu0 0.0
      %3731 = vmatpush1.msra.mxu0 0.0
      %3732 = vmatprep.subr.mxu0 0.0
      %3733 = vmatpush1.msra.mxu0 0.0
      %3734 = vmatprep.subr.mxu0 0.0
      %3735 = vmatpush1.msra.mxu0 0.0
      %3736 = vmatprep.subr.mxu0 0.0
      %3737 = vmatpush1.msra.mxu0 0.0
      %3738 = vmatprep.subr.mxu0 0.0
      %3739 = vmatpush1.msra.mxu0 0.0
      %3740 = vmatprep.subr.mxu0 0.0
      %3741 = vmatpush1.msra.mxu0 0.0
      %3742 = vmatprep.subr.mxu0 0.0
      %3743 = vmatpush1.msra.mxu0 0.0
      %3744 = vmatprep.mubr.f32.mxu0 0.0
      %3745 = vmatmul.mubr.f32.gmra.mrb[0].mxu0 %v3616
      %v3746 = vpop.f32.mrb[0].mxu0
      %v3747 = vadd.f32 0.0, %v3746
      %v3748 = vpop.f32.mrb[0].mxu0
      %3749 = vmatprep.mubr.f32.mxu0 0.0
      %3750 = vmatmul.mubr.f32.gmra.mrb[0].mxu0 %v3618
      %v3751 = vpop.f32.mrb[0].mxu0
      %v3752 = vadd.f32 0.0, %v3751
      %v3753 = vpop.f32.mrb[0].mxu0
      %3754 = vmatprep.mubr.f32.mxu0 0.0
      %3755 = vmatmul.mubr.f32.gmra.mrb[0].mxu0 %v3620
      %v3756 = vpop.f32.mrb[0].mxu0
      %v3757 = vadd.f32 0.0, %v3756
      %v3758 = vpop.f32.mrb[0].mxu0
      %3759 = vmatprep.mubr.f32.mxu0 0.0
      %3760 = vmatmul.mubr.f32.gmra.mrb[0].mxu0 %v3622
      %v3761 = vpop.f32.mrb[0].mxu0
      %v3762 = vadd.f32 0.0, %v3761
      %v3763 = vpop.f32.mrb[0].mxu0
      %3764 = vmatprep.mubr.f32.mxu0 0.0
      %3765 = vmatmul.mubr.f32.gmra.mrb[0].mxu0 %v3624
      %v3766 = vpop.f32.mrb[0].mxu0
      %v3767 = vadd.f32 0.0, %v3766
      %v3768 = vpop.f32.mrb[0].mxu0
      %3769 = vmatprep.mubr.f32.mxu0 0.0
      %3770 = vmatmul.mubr.f32.gmra.mrb[0].mxu0 %v3626
      %v3771 = vpop.f32.mrb[0].mxu0
      %v3772 = vadd.f32 0.0, %v3771
      %v3773 = vpop.f32.mrb[0].mxu0
      %3774 = vmatprep.mubr.f32.mxu0 0.0
      %3775 = vmatmul.mubr.f32.gmra.mrb[0].mxu0 %v3628
      %v3776 = vpop.f32.mrb[0].mxu0
      %v3777 = vadd.f32 0.0, %v3776
      %v3778 = vpop.f32.mrb[0].mxu0
      %3779 = vmatprep.mubr.f32.mxu0 0.0
      %3780 = vmatmul.mubr.f32.gmra.mrb[0].mxu0 %v3630
      %v3781 = vpop.f32.mrb[0].mxu0
      %v3782 = vadd.f32 0.0, %v3781
      %v3783 = vpop.f32.mrb[0].mxu0
      %3784 = vmatprep.mubr.f32.mxu0 0.0
      %3785 = vmatmul.mubr.f32.gmra.mrb[0].mxu0 %v3632
      %v3786 = vpop.f32.mrb[0].mxu0
      %v3787 = vadd.f32 0.0, %v3786
      %v3788 = vpop.f32.mrb[0].mxu0
      %3789 = vmatprep.mubr.f32.mxu0 0.0
      %3790 = vmatmul.mubr.f32.gmra.mrb[0].mxu0 %v3634
      %v3791 = vpop.f32.mrb[0].mxu0
      %v3792 = vadd.f32 0.0, %v3791
      %v3793 = vpop.f32.mrb[0].mxu0
      %3794 = vmatprep.mubr.f32.mxu0 0.0
      %3795 = vmatmul.mubr.f32.gmra.mrb[0].mxu0 %v3636
      %v3796 = vpop.f32.mrb[0].mxu0
      %v3797 = vadd.f32 0.0, %v3796
      %v3798 = vpop.f32.mrb[0].mxu0
      %3799 = vmatprep.mubr.f32.mxu0 0.0
      %3800 = vmatmul.mubr.f32.gmra.mrb[0].mxu0 %v3638
      %v3801 = vpop.f32.mrb[0].mxu0
      %v3802 = vadd.f32 0.0, %v3801
      %v3803 = vpop.f32.mrb[0].mxu0
      %3804 = vmatprep.mubr.f32.mxu0 0.0
      %3805 = vmatmul.mubr.f32.gmra.mrb[0].mxu0 %v3640
      %v3806 = vpop.f32.mrb[0].mxu0
      %v3807 = vadd.f32 0.0, %v3806
      %v3808 = vpop.f32.mrb[0].mxu0
      %3809 = vmatprep.mubr.f32.mxu0 0.0
      %3810 = vmatmul.mubr.f32.gmra.mrb[0].mxu0 %v3642
      %v3811 = vpop.f32.mrb[0].mxu0
      %v3812 = vadd.f32 0.0, %v3811
      %v3813 = vpop.f32.mrb[0].mxu0
      %3814 = vmatprep.mubr.f32.mxu0 0.0
      %3815 = vmatmul.mubr.f32.gmra.mrb[0].mxu0 %v3644
      %v3816 = vpop.f32.mrb[0].mxu0
      %v3817 = vadd.f32 0.0, %v3816
      %v3818 = vpop.f32.mrb[0].mxu0
      %3819 = vmatprep.mubr.f32.mxu0 0.0
      %3820 = vmatmul.mubr.f32.gmra.mrb[0].mxu0 %v3646
      %v3821 = vpop.f32.mrb[0].mxu0
      %v3822 = vadd.f32 0.0, %v3821
      %v3823 = vpop.f32.mrb[0].mxu0
      %3824 = vmatprep.mubr.f32.mxu0 0.0
      %3825 = vmatmul.mubr.f32.gmra.mrb[0].mxu0 %v3648
      %v3826 = vpop.f32.mrb[0].mxu0
      %v3827 = vadd.f32 0.0, %v3826
      %v3828 = vpop.f32.mrb[0].mxu0
      %3829 = vmatprep.mubr.f32.mxu0 0.0
      %3830 = vmatmul.mubr.f32.gmra.mrb[0].mxu0 %v3650
      %v3831 = vpop.f32.mrb[0].mxu0
      %v3832 = vadd.f32 0.0, %v3831
      %v3833 = vpop.f32.mrb[0].mxu0
      %3834 = vmatprep.mubr.f32.mxu0 0.0
      %3835 = vmatmul.mubr.f32.gmra.mrb[0].mxu0 %v3652
      %v3836 = vpop.f32.mrb[0].mxu0
      %v3837 = vadd.f32 0.0, %v3836
      %v3838 = vpop.f32.mrb[0].mxu0
      %3839 = vmatprep.mubr.f32.mxu0 0.0
      %3840 = vmatmul.mubr.f32.gmra.mrb[0].mxu0 %v3654
      %v3841 = vpop.f32.mrb[0].mxu0
      %v3842 = vadd.f32 0.0, %v3841
      %v3843 = vpop.f32.mrb[0].mxu0
      %3844 = vmatprep.mubr.f32.mxu0 0.0
      %3845 = vmatmul.mubr.f32.gmra.mrb[0].mxu0 %v3656
      %v3846 = vpop.f32.mrb[0].mxu0
      %v3847 = vadd.f32 0.0, %v3846
      %v3848 = vpop.f32.mrb[0].mxu0
      %3849 = vmatprep.mubr.f32.mxu0 0.0
      %3850 = vmatmul.mubr.f32.gmra.mrb[0].mxu0 %v3658
      %v3851 = vpop.f32.mrb[0].mxu0
      %v3852 = vadd.f32 0.0, %v3851
      %v3853 = vpop.f32.mrb[0].mxu0
      %3854 = vmatprep.mubr.f32.mxu0 0.0
      %3855 = vmatmul.mubr.f32.gmra.mrb[0].mxu0 %v3660
      %v3856 = vpop.f32.mrb[0].mxu0
      %v3857 = vadd.f32 0.0, %v3856
      %v3858 = vpop.f32.mrb[0].mxu0
      %3859 = vmatprep.mubr.f32.mxu0 0.0
      %3860 = vmatmul.mubr.f32.gmra.mrb[0].mxu0 %v3662
      %v3861 = vpop.f32.mrb[0].mxu0
      %v3862 = vadd.f32 0.0, %v3861
      %v3863 = vpop.f32.mrb[0].mxu0
      %3864 = vmatprep.mubr.f32.mxu0 0.0
      %3865 = vmatmul.mubr.f32.gmra.mrb[0].mxu0 %v3664
      %v3866 = vpop.f32.mrb[0].mxu0
      %v3867 = vadd.f32 0.0, %v3866
      %v3868 = vpop.f32.mrb[0].mxu0
      %3869 = vmatprep.mubr.f32.mxu0 0.0
      %3870 = vmatmul.mubr.f32.gmra.mrb[0].mxu0 %v3666
      %v3871 = vpop.f32.mrb[0].mxu0
      %v3872 = vadd.f32 0.0, %v3871
      %v3873 = vpop.f32.mrb[0].mxu0
      %3874 = vmatprep.mubr.f32.mxu0 0.0
      %3875 = vmatmul.mubr.f32.gmra.mrb[0].mxu0 %v3668
      %v3876 = vpop.f32.mrb[0].mxu0
      %v3877 = vadd.f32 0.0, %v3876
      %v3878 = vpop.f32.mrb[0].mxu0
      %3879 = vmatprep.mubr.f32.mxu0 0.0
      %3880 = vmatmul.mubr.f32.gmra.mrb[0].mxu0 %v3670
      %v3881 = vpop.f32.mrb[0].mxu0
      %v3882 = vadd.f32 0.0, %v3881
      %v3883 = vpop.f32.mrb[0].mxu0
      %3884 = vmatprep.mubr.f32.mxu0 0.0
      %3885 = vmatmul.mubr.f32.gmra.mrb[0].mxu0 %v3672
      %v3886 = vpop.f32.mrb[0].mxu0
      %v3887 = vadd.f32 0.0, %v3886
      %v3888 = vpop.f32.mrb[0].mxu0
      %3889 = vmatprep.mubr.f32.mxu0 0.0
      %3890 = vmatmul.mubr.f32.gmra.mrb[0].mxu0 %v3674
      %v3891 = vpop.f32.mrb[0].mxu0
      %v3892 = vadd.f32 0.0, %v3891
      %v3893 = vpop.f32.mrb[0].mxu0
      %3894 = vmatprep.mubr.f32.mxu0 0.0
      %3895 = vmatmul.mubr.f32.gmra.mrb[0].mxu0 %v3676
      %v3896 = vpop.f32.mrb[0].mxu0
      %v3897 = vadd.f32 0.0, %v3896
      %v3898 = vpop.f32.mrb[0].mxu0
      %3899 = vmatprep.mubr.f32.mxu0 0.0
      %3900 = vmatmul.mubr.f32.gmra.mrb[0].mxu0 %v3678
      %v3901 = vpop.f32.mrb[0].mxu0
      %v3902 = vadd.f32 0.0, %v3901
      %v3903 = vpop.f32.mrb[0].mxu0
      %3904 = vdwg.mxu0
      %v3905 = vadd.f32 %v3747, 1e-15
      %v3906 = vadd.f32 %v3752, 1e-15
      %v3907 = vadd.f32 %v3757, 1e-15
      %v3908 = vadd.f32 %v3762, 1e-15
      %v3909 = vadd.f32 %v3767, 1e-15
      %v3910 = vadd.f32 %v3772, 1e-15
      %v3911 = vadd.f32 %v3777, 1e-15
      %v3912 = vadd.f32 %v3782, 1e-15
      %v3913 = vadd.f32 %v3787, 1e-15
      %v3914 = vadd.f32 %v3792, 1e-15
      %v3915 = vadd.f32 %v3797, 1e-15
      %v3916 = vadd.f32 %v3802, 1e-15
      %v3917 = vadd.f32 %v3807, 1e-15
      %v3918 = vadd.f32 %v3812, 1e-15
      %v3919 = vadd.f32 %v3817, 1e-15
      %v3920 = vadd.f32 %v3822, 1e-15
      %v3921 = vadd.f32 %v3827, 1e-15
      %v3922 = vadd.f32 %v3832, 1e-15
      %v3923 = vadd.f32 %v3837, 1e-15
      %v3924 = vadd.f32 %v3842, 1e-15
      %v3925 = vadd.f32 %v3847, 1e-15
      %v3926 = vadd.f32 %v3852, 1e-15
      %v3927 = vadd.f32 %v3857, 1e-15
      %v3928 = vadd.f32 %v3862, 1e-15
      %v3929 = vadd.f32 %v3867, 1e-15
      %v3930 = vadd.f32 %v3872, 1e-15
      %v3931 = vadd.f32 %v3877, 1e-15
      %v3932 = vadd.f32 %v3882, 1e-15
      %v3933 = vadd.f32 %v3887, 1e-15
      %v3934 = vadd.f32 %v3892, 1e-15
      %v3935 = vadd.f32 %v3897, 1e-15
      %v3936 = vadd.f32 %v3902, 1e-15
      %v3937 = vrcp.pop %v3905
      %v3938 = vrcp.pop %v3906
      %v3939 = vrcp.pop %v3907
      %v3940 = vrcp.pop %v3908
      %v3941 = vrcp.pop %v3909
      %v3942 = vrcp.pop %v3910
      %v3943 = vrcp.pop %v3911
      %v3944 = vrcp.pop %v3912
      %v3945 = vrcp.pop %v3913
      %v3946 = vrcp.pop %v3914
      %v3947 = vrcp.pop %v3915
      %v3948 = vrcp.pop %v3916
      %v3949 = vrcp.pop %v3917
      %v3950 = vrcp.pop %v3918
      %v3951 = vrcp.pop %v3919
      %v3952 = vrcp.pop %v3920
      %v3953 = vrcp.pop %v3921
      %v3954 = vrcp.pop %v3922
      %v3955 = vrcp.pop %v3923
      %v3956 = vrcp.pop %v3924
      %v3957 = vrcp.pop %v3925
      %v3958 = vrcp.pop %v3926
      %v3959 = vrcp.pop %v3927
      %v3960 = vrcp.pop %v3928
      %v3961 = vrcp.pop %v3929
      %v3962 = vrcp.pop %v3930
      %v3963 = vrcp.pop %v3931
      %v3964 = vrcp.pop %v3932
      %v3965 = vrcp.pop %v3933
      %v3966 = vrcp.pop %v3934
      %v3967 = vrcp.pop %v3935
      %v3968 = vrcp.pop %v3936
      %3970 = vset.pattern.permute.xlu0 8
      %3971 = vperm.xlu0 %3970, %v3937
      %v3972 = vpop.permute.xlu0 %3971
      %3975 = vset.pattern.permute.xlu0 8
      %3976 = vperm.xlu0 %3975, %v3938
      %v3977 = vpop.permute.xlu0 %3976
      %3980 = vset.pattern.permute.xlu0 8
      %3981 = vperm.xlu0 %3980, %v3939
      %v3982 = vpop.permute.xlu0 %3981
      %3985 = vset.pattern.permute.xlu0 8
      %3986 = vperm.xlu0 %3985, %v3940
      %v3987 = vpop.permute.xlu0 %3986
      %3990 = vset.pattern.permute.xlu0 8
      %3991 = vperm.xlu0 %3990, %v3941
      %v3992 = vpop.permute.xlu0 %3991
      %3995 = vset.pattern.permute.xlu0 8
      %3996 = vperm.xlu0 %3995, %v3942
      %v3997 = vpop.permute.xlu0 %3996
      %4000 = vset.pattern.permute.xlu0 8
      %4001 = vperm.xlu0 %4000, %v3943
      %v4002 = vpop.permute.xlu0 %4001
      %4005 = vset.pattern.permute.xlu0 8
      %4006 = vperm.xlu0 %4005, %v3944
      %v4007 = vpop.permute.xlu0 %4006
      %4010 = vset.pattern.permute.xlu0 8
      %4011 = vperm.xlu0 %4010, %v3945
      %v4012 = vpop.permute.xlu0 %4011
      %4015 = vset.pattern.permute.xlu0 8
      %4016 = vperm.xlu0 %4015, %v3946
      %v4017 = vpop.permute.xlu0 %4016
      %4020 = vset.pattern.permute.xlu0 8
      %4021 = vperm.xlu0 %4020, %v3947
      %v4022 = vpop.permute.xlu0 %4021
      %4025 = vset.pattern.permute.xlu0 8
      %4026 = vperm.xlu0 %4025, %v3948
      %v4027 = vpop.permute.xlu0 %4026
      %4030 = vset.pattern.permute.xlu0 8
      %4031 = vperm.xlu0 %4030, %v3949
      %v4032 = vpop.permute.xlu0 %4031
      %4035 = vset.pattern.permute.xlu0 8
      %4036 = vperm.xlu0 %4035, %v3950
      %v4037 = vpop.permute.xlu0 %4036
      %4040 = vset.pattern.permute.xlu0 8
      %4041 = vperm.xlu0 %4040, %v3951
      %v4042 = vpop.permute.xlu0 %4041
      %4045 = vset.pattern.permute.xlu0 8
      %4046 = vperm.xlu0 %4045, %v3952
      %v4047 = vpop.permute.xlu0 %4046
      %4050 = vset.pattern.permute.xlu0 8
      %4051 = vperm.xlu0 %4050, %v3953
      %v4052 = vpop.permute.xlu0 %4051
      %4055 = vset.pattern.permute.xlu0 8
      %4056 = vperm.xlu0 %4055, %v3954
      %v4057 = vpop.permute.xlu0 %4056
      %4060 = vset.pattern.permute.xlu0 8
      %4061 = vperm.xlu0 %4060, %v3955
      %v4062 = vpop.permute.xlu0 %4061
      %4065 = vset.pattern.permute.xlu0 8
      %4066 = vperm.xlu0 %4065, %v3956
      %v4067 = vpop.permute.xlu0 %4066
      %4070 = vset.pattern.permute.xlu0 8
      %4071 = vperm.xlu0 %4070, %v3957
      %v4072 = vpop.permute.xlu0 %4071
      %4075 = vset.pattern.permute.xlu0 8
      %4076 = vperm.xlu0 %4075, %v3958
      %v4077 = vpop.permute.xlu0 %4076
      %4080 = vset.pattern.permute.xlu0 8
      %4081 = vperm.xlu0 %4080, %v3959
      %v4082 = vpop.permute.xlu0 %4081
      %4085 = vset.pattern.permute.xlu0 8
      %4086 = vperm.xlu0 %4085, %v3960
      %v4087 = vpop.permute.xlu0 %4086
      %4090 = vset.pattern.permute.xlu0 8
      %4091 = vperm.xlu0 %4090, %v3961
      %v4092 = vpop.permute.xlu0 %4091
      %4095 = vset.pattern.permute.xlu0 8
      %4096 = vperm.xlu0 %4095, %v3962
      %v4097 = vpop.permute.xlu0 %4096
      %4100 = vset.pattern.permute.xlu0 8
      %4101 = vperm.xlu0 %4100, %v3963
      %v4102 = vpop.permute.xlu0 %4101
      %4105 = vset.pattern.permute.xlu0 8
      %4106 = vperm.xlu0 %4105, %v3964
      %v4107 = vpop.permute.xlu0 %4106
      %4110 = vset.pattern.permute.xlu0 8
      %4111 = vperm.xlu0 %4110, %v3965
      %v4112 = vpop.permute.xlu0 %4111
      %4115 = vset.pattern.permute.xlu0 8
      %4116 = vperm.xlu0 %4115, %v3966
      %v4117 = vpop.permute.xlu0 %4116
      %4120 = vset.pattern.permute.xlu0 8
      %4121 = vperm.xlu0 %4120, %v3967
      %v4122 = vpop.permute.xlu0 %4121
      %4125 = vset.pattern.permute.xlu0 8
      %4126 = vperm.xlu0 %4125, %v3968
      %v4127 = vpop.permute.xlu0 %4126
      %v4129 = vmul.f32 %v3747, %v3972
      %v4130 = vmul.f32 %v3752, %v3977
      %v4131 = vmul.f32 %v3757, %v3982
      %v4132 = vmul.f32 %v3762, %v3987
      %v4133 = vmul.f32 %v3767, %v3992
      %v4134 = vmul.f32 %v3772, %v3997
      %v4135 = vmul.f32 %v3777, %v4002
      %v4136 = vmul.f32 %v3782, %v4007
      %v4137 = vmul.f32 %v3787, %v4012
      %v4138 = vmul.f32 %v3792, %v4017
      %v4139 = vmul.f32 %v3797, %v4022
      %v4140 = vmul.f32 %v3802, %v4027
      %v4141 = vmul.f32 %v3807, %v4032
      %v4142 = vmul.f32 %v3812, %v4037
      %v4143 = vmul.f32 %v3817, %v4042
      %v4144 = vmul.f32 %v3822, %v4047
      %v4145 = vmul.f32 %v3827, %v4052
      %v4146 = vmul.f32 %v3832, %v4057
      %v4147 = vmul.f32 %v3837, %v4062
      %v4148 = vmul.f32 %v3842, %v4067
      %v4149 = vmul.f32 %v3847, %v4072
      %v4150 = vmul.f32 %v3852, %v4077
      %v4151 = vmul.f32 %v3857, %v4082
      %v4152 = vmul.f32 %v3862, %v4087
      %v4153 = vmul.f32 %v3867, %v4092
      %v4154 = vmul.f32 %v3872, %v4097
      %v4155 = vmul.f32 %v3877, %v4102
      %v4156 = vmul.f32 %v3882, %v4107
      %v4157 = vmul.f32 %v3887, %v4112
      %v4158 = vmul.f32 %v3892, %v4117
      %v4159 = vmul.f32 %v3897, %v4122
      %v4160 = vmul.f32 %v3902, %v4127
      %4193 = vrot.lane.b32.xlu0 %v2131, 8
      %v4194 = vpop.permute.xlu0 %4193
      %4195 = vrot.lane.b32.xlu0 %v2132, 8
      %v4196 = vpop.permute.xlu0 %4195
      %4197 = vrot.lane.b32.xlu0 %v2133, 8
      %v4198 = vpop.permute.xlu0 %4197
      %4199 = vrot.lane.b32.xlu0 %v2134, 8
      %v4200 = vpop.permute.xlu0 %4199
      %4201 = vrot.lane.b32.xlu0 %v2135, 8
      %v4202 = vpop.permute.xlu0 %4201
      %4203 = vrot.lane.b32.xlu0 %v2136, 8
      %v4204 = vpop.permute.xlu0 %4203
      %4205 = vrot.lane.b32.xlu0 %v2137, 8
      %v4206 = vpop.permute.xlu0 %4205
      %4207 = vrot.lane.b32.xlu0 %v2138, 8
      %v4208 = vpop.permute.xlu0 %4207
      %4209 = vrot.lane.b32.xlu0 %v2139, 8
      %v4210 = vpop.permute.xlu0 %4209
      %4211 = vrot.lane.b32.xlu0 %v2140, 8
      %v4212 = vpop.permute.xlu0 %4211
      %4213 = vrot.lane.b32.xlu0 %v2141, 8
      %v4214 = vpop.permute.xlu0 %4213
      %4215 = vrot.lane.b32.xlu0 %v2142, 8
      %v4216 = vpop.permute.xlu0 %4215
      %4217 = vrot.lane.b32.xlu0 %v2143, 8
      %v4218 = vpop.permute.xlu0 %4217
      %4219 = vrot.lane.b32.xlu0 %v2144, 8
      %v4220 = vpop.permute.xlu0 %4219
      %4221 = vrot.lane.b32.xlu0 %v2145, 8
      %v4222 = vpop.permute.xlu0 %4221
      %4223 = vrot.lane.b32.xlu0 %v2146, 8
      %v4224 = vpop.permute.xlu0 %4223
      %4225 = vrot.lane.b32.xlu0 %v2147, 8
      %v4226 = vpop.permute.xlu0 %4225
      %4227 = vrot.lane.b32.xlu0 %v2148, 8
      %v4228 = vpop.permute.xlu0 %4227
      %4229 = vrot.lane.b32.xlu0 %v2149, 8
      %v4230 = vpop.permute.xlu0 %4229
      %4231 = vrot.lane.b32.xlu0 %v2150, 8
      %v4232 = vpop.permute.xlu0 %4231
      %4233 = vrot.lane.b32.xlu0 %v2151, 8
      %v4234 = vpop.permute.xlu0 %4233
      %4235 = vrot.lane.b32.xlu0 %v2152, 8
      %v4236 = vpop.permute.xlu0 %4235
      %4237 = vrot.lane.b32.xlu0 %v2153, 8
      %v4238 = vpop.permute.xlu0 %4237
      %4239 = vrot.lane.b32.xlu0 %v2154, 8
      %v4240 = vpop.permute.xlu0 %4239
      %4241 = vrot.lane.b32.xlu0 %v2155, 8
      %v4242 = vpop.permute.xlu0 %4241
      %4243 = vrot.lane.b32.xlu0 %v2156, 8
      %v4244 = vpop.permute.xlu0 %4243
      %4245 = vrot.lane.b32.xlu0 %v2157, 8
      %v4246 = vpop.permute.xlu0 %4245
      %4247 = vrot.lane.b32.xlu0 %v2158, 8
      %v4248 = vpop.permute.xlu0 %4247
      %4249 = vrot.lane.b32.xlu0 %v2159, 8
      %v4250 = vpop.permute.xlu0 %4249
      %4251 = vrot.lane.b32.xlu0 %v2160, 8
      %v4252 = vpop.permute.xlu0 %4251
      %4253 = vrot.lane.b32.xlu0 %v2161, 8
      %v4254 = vpop.permute.xlu0 %4253
      %4255 = vrot.lane.b32.xlu0 %v2162, 8
      %v4256 = vpop.permute.xlu0 %4255
      %4321 = vrot.lane.b32.xlu0 %v3162, 16
      %v4322 = vpop.permute.xlu0 %4321
      %4323 = vrot.lane.b32.xlu0 %v3163, 16
      %v4324 = vpop.permute.xlu0 %4323
      %4325 = vrot.lane.b32.xlu0 %v3164, 16
      %v4326 = vpop.permute.xlu0 %4325
      %4327 = vrot.lane.b32.xlu0 %v3165, 16
      %v4328 = vpop.permute.xlu0 %4327
      %4329 = vrot.lane.b32.xlu0 %v3166, 16
      %v4330 = vpop.permute.xlu0 %4329
      %4331 = vrot.lane.b32.xlu0 %v3167, 16
      %v4332 = vpop.permute.xlu0 %4331
      %4333 = vrot.lane.b32.xlu0 %v3168, 16
      %v4334 = vpop.permute.xlu0 %4333
      %4335 = vrot.lane.b32.xlu0 %v3169, 16
      %v4336 = vpop.permute.xlu0 %4335
      %4337 = vrot.lane.b32.xlu0 %v3170, 16
      %v4338 = vpop.permute.xlu0 %4337
      %4339 = vrot.lane.b32.xlu0 %v3171, 16
      %v4340 = vpop.permute.xlu0 %4339
      %4341 = vrot.lane.b32.xlu0 %v3172, 16
      %v4342 = vpop.permute.xlu0 %4341
      %4343 = vrot.lane.b32.xlu0 %v3173, 16
      %v4344 = vpop.permute.xlu0 %4343
      %4345 = vrot.lane.b32.xlu0 %v3174, 16
      %v4346 = vpop.permute.xlu0 %4345
      %4347 = vrot.lane.b32.xlu0 %v3175, 16
      %v4348 = vpop.permute.xlu0 %4347
      %4349 = vrot.lane.b32.xlu0 %v3176, 16
      %v4350 = vpop.permute.xlu0 %4349
      %4351 = vrot.lane.b32.xlu0 %v3177, 16
      %v4352 = vpop.permute.xlu0 %4351
      %4353 = vrot.lane.b32.xlu0 %v3178, 16
      %v4354 = vpop.permute.xlu0 %4353
      %4355 = vrot.lane.b32.xlu0 %v3179, 16
      %v4356 = vpop.permute.xlu0 %4355
      %4357 = vrot.lane.b32.xlu0 %v3180, 16
      %v4358 = vpop.permute.xlu0 %4357
      %4359 = vrot.lane.b32.xlu0 %v3181, 16
      %v4360 = vpop.permute.xlu0 %4359
      %4361 = vrot.lane.b32.xlu0 %v3182, 16
      %v4362 = vpop.permute.xlu0 %4361
      %4363 = vrot.lane.b32.xlu0 %v3183, 16
      %v4364 = vpop.permute.xlu0 %4363
      %4365 = vrot.lane.b32.xlu0 %v3184, 16
      %v4366 = vpop.permute.xlu0 %4365
      %4367 = vrot.lane.b32.xlu0 %v3185, 16
      %v4368 = vpop.permute.xlu0 %4367
      %4369 = vrot.lane.b32.xlu0 %v3186, 16
      %v4370 = vpop.permute.xlu0 %4369
      %4371 = vrot.lane.b32.xlu0 %v3187, 16
      %v4372 = vpop.permute.xlu0 %4371
      %4373 = vrot.lane.b32.xlu0 %v3188, 16
      %v4374 = vpop.permute.xlu0 %4373
      %4375 = vrot.lane.b32.xlu0 %v3189, 16
      %v4376 = vpop.permute.xlu0 %4375
      %4377 = vrot.lane.b32.xlu0 %v3190, 16
      %v4378 = vpop.permute.xlu0 %4377
      %4379 = vrot.lane.b32.xlu0 %v3191, 16
      %v4380 = vpop.permute.xlu0 %4379
      %4381 = vrot.lane.b32.xlu0 %v3192, 16
      %v4382 = vpop.permute.xlu0 %4381
      %4383 = vrot.lane.b32.xlu0 %v3193, 16
      %v4384 = vpop.permute.xlu0 %4383
      %4449 = vrot.lane.b32.xlu0 %v4129, 24
      %v4450 = vpop.permute.xlu0 %4449
      %4451 = vrot.lane.b32.xlu0 %v4130, 24
      %v4452 = vpop.permute.xlu0 %4451
      %4453 = vrot.lane.b32.xlu0 %v4131, 24
      %v4454 = vpop.permute.xlu0 %4453
      %4455 = vrot.lane.b32.xlu0 %v4132, 24
      %v4456 = vpop.permute.xlu0 %4455
      %4457 = vrot.lane.b32.xlu0 %v4133, 24
      %v4458 = vpop.permute.xlu0 %4457
      %4459 = vrot.lane.b32.xlu0 %v4134, 24
      %v4460 = vpop.permute.xlu0 %4459
      %4461 = vrot.lane.b32.xlu0 %v4135, 24
      %v4462 = vpop.permute.xlu0 %4461
      %4463 = vrot.lane.b32.xlu0 %v4136, 24
      %v4464 = vpop.permute.xlu0 %4463
      %4465 = vrot.lane.b32.xlu0 %v4137, 24
      %v4466 = vpop.permute.xlu0 %4465
      %4467 = vrot.lane.b32.xlu0 %v4138, 24
      %v4468 = vpop.permute.xlu0 %4467
      %4469 = vrot.lane.b32.xlu0 %v4139, 24
      %v4470 = vpop.permute.xlu0 %4469
      %4471 = vrot.lane.b32.xlu0 %v4140, 24
      %v4472 = vpop.permute.xlu0 %4471
      %4473 = vrot.lane.b32.xlu0 %v4141, 24
      %v4474 = vpop.permute.xlu0 %4473
      %4475 = vrot.lane.b32.xlu0 %v4142, 24
      %v4476 = vpop.permute.xlu0 %4475
      %4477 = vrot.lane.b32.xlu0 %v4143, 24
      %v4478 = vpop.permute.xlu0 %4477
      %4479 = vrot.lane.b32.xlu0 %v4144, 24
      %v4480 = vpop.permute.xlu0 %4479
      %4481 = vrot.lane.b32.xlu0 %v4145, 24
      %v4482 = vpop.permute.xlu0 %4481
      %4483 = vrot.lane.b32.xlu0 %v4146, 24
      %v4484 = vpop.permute.xlu0 %4483
      %4485 = vrot.lane.b32.xlu0 %v4147, 24
      %v4486 = vpop.permute.xlu0 %4485
      %4487 = vrot.lane.b32.xlu0 %v4148, 24
      %v4488 = vpop.permute.xlu0 %4487
      %4489 = vrot.lane.b32.xlu0 %v4149, 24
      %v4490 = vpop.permute.xlu0 %4489
      %4491 = vrot.lane.b32.xlu0 %v4150, 24
      %v4492 = vpop.permute.xlu0 %4491
      %4493 = vrot.lane.b32.xlu0 %v4151, 24
      %v4494 = vpop.permute.xlu0 %4493
      %4495 = vrot.lane.b32.xlu0 %v4152, 24
      %v4496 = vpop.permute.xlu0 %4495
      %4497 = vrot.lane.b32.xlu0 %v4153, 24
      %v4498 = vpop.permute.xlu0 %4497
      %4499 = vrot.lane.b32.xlu0 %v4154, 24
      %v4500 = vpop.permute.xlu0 %4499
      %4501 = vrot.lane.b32.xlu0 %v4155, 24
      %v4502 = vpop.permute.xlu0 %4501
      %4503 = vrot.lane.b32.xlu0 %v4156, 24
      %v4504 = vpop.permute.xlu0 %4503
      %4505 = vrot.lane.b32.xlu0 %v4157, 24
      %v4506 = vpop.permute.xlu0 %4505
      %4507 = vrot.lane.b32.xlu0 %v4158, 24
      %v4508 = vpop.permute.xlu0 %4507
      %4509 = vrot.lane.b32.xlu0 %v4159, 24
      %v4510 = vpop.permute.xlu0 %4509
      %4511 = vrot.lane.b32.xlu0 %v4160, 24
      %v4512 = vpop.permute.xlu0 %4511
      %v4545 = vsel %vm356, %v1164, %v4194
      %v4546 = vsel %vm356, %v1165, %v4196
      %v4547 = vsel %vm356, %v1166, %v4198
      %v4548 = vsel %vm356, %v1167, %v4200
      %v4549 = vsel %vm356, %v1168, %v4202
      %v4550 = vsel %vm356, %v1169, %v4204
      %v4551 = vsel %vm356, %v1170, %v4206
      %v4552 = vsel %vm356, %v1171, %v4208
      %v4553 = vsel %vm356, %v1172, %v4210
      %v4554 = vsel %vm356, %v1173, %v4212
      %v4555 = vsel %vm356, %v1174, %v4214
      %v4556 = vsel %vm356, %v1175, %v4216
      %v4557 = vsel %vm356, %v1176, %v4218
      %v4558 = vsel %vm356, %v1177, %v4220
      %v4559 = vsel %vm356, %v1178, %v4222
      %v4560 = vsel %vm356, %v1179, %v4224
      %v4561 = vsel %vm356, %v1180, %v4226
      %v4562 = vsel %vm356, %v1181, %v4228
      %v4563 = vsel %vm356, %v1182, %v4230
      %v4564 = vsel %vm356, %v1183, %v4232
      %v4565 = vsel %vm356, %v1184, %v4234
      %v4566 = vsel %vm356, %v1185, %v4236
      %v4567 = vsel %vm356, %v1186, %v4238
      %v4568 = vsel %vm356, %v1187, %v4240
      %v4569 = vsel %vm356, %v1188, %v4242
      %v4570 = vsel %vm356, %v1189, %v4244
      %v4571 = vsel %vm356, %v1190, %v4246
      %v4572 = vsel %vm356, %v1191, %v4248
      %v4573 = vsel %vm356, %v1192, %v4250
      %v4574 = vsel %vm356, %v1193, %v4252
      %v4575 = vsel %vm356, %v1194, %v4254
      %v4576 = vsel %vm356, %v1195, %v4256
      %vm4577 = vcmask 130048
      %v4578 = vsel %vm4577, %v4545, %v4322
      %v4579 = vsel %vm4577, %v4546, %v4324
      %v4580 = vsel %vm4577, %v4547, %v4326
      %v4581 = vsel %vm4577, %v4548, %v4328
      %v4582 = vsel %vm4577, %v4549, %v4330
      %v4583 = vsel %vm4577, %v4550, %v4332
      %v4584 = vsel %vm4577, %v4551, %v4334
      %v4585 = vsel %vm4577, %v4552, %v4336
      %v4586 = vsel %vm4577, %v4553, %v4338
      %v4587 = vsel %vm4577, %v4554, %v4340
      %v4588 = vsel %vm4577, %v4555, %v4342
      %v4589 = vsel %vm4577, %v4556, %v4344
      %v4590 = vsel %vm4577, %v4557, %v4346
      %v4591 = vsel %vm4577, %v4558, %v4348
      %v4592 = vsel %vm4577, %v4559, %v4350
      %v4593 = vsel %vm4577, %v4560, %v4352
      %v4594 = vsel %vm4577, %v4561, %v4354
      %v4595 = vsel %vm4577, %v4562, %v4356
      %v4596 = vsel %vm4577, %v4563, %v4358
      %v4597 = vsel %vm4577, %v4564, %v4360
      %v4598 = vsel %vm4577, %v4565, %v4362
      %v4599 = vsel %vm4577, %v4566, %v4364
      %v4600 = vsel %vm4577, %v4567, %v4366
      %v4601 = vsel %vm4577, %v4568, %v4368
      %v4602 = vsel %vm4577, %v4569, %v4370
      %v4603 = vsel %vm4577, %v4570, %v4372
      %v4604 = vsel %vm4577, %v4571, %v4374
      %v4605 = vsel %vm4577, %v4572, %v4376
      %v4606 = vsel %vm4577, %v4573, %v4378
      %v4607 = vsel %vm4577, %v4574, %v4380
      %v4608 = vsel %vm4577, %v4575, %v4382
      %v4609 = vsel %vm4577, %v4576, %v4384
      %vm4610 = vcmask 195584
      %v4611 = vsel %vm4610, %v4578, %v4450
      %v4612 = vsel %vm4610, %v4579, %v4452
      %v4613 = vsel %vm4610, %v4580, %v4454
      %v4614 = vsel %vm4610, %v4581, %v4456
      %v4615 = vsel %vm4610, %v4582, %v4458
      %v4616 = vsel %vm4610, %v4583, %v4460
      %v4617 = vsel %vm4610, %v4584, %v4462
      %v4618 = vsel %vm4610, %v4585, %v4464
      %v4619 = vsel %vm4610, %v4586, %v4466
      %v4620 = vsel %vm4610, %v4587, %v4468
      %v4621 = vsel %vm4610, %v4588, %v4470
      %v4622 = vsel %vm4610, %v4589, %v4472
      %v4623 = vsel %vm4610, %v4590, %v4474
      %v4624 = vsel %vm4610, %v4591, %v4476
      %v4625 = vsel %vm4610, %v4592, %v4478
      %v4626 = vsel %vm4610, %v4593, %v4480
      %v4627 = vsel %vm4610, %v4594, %v4482
      %v4628 = vsel %vm4610, %v4595, %v4484
      %v4629 = vsel %vm4610, %v4596, %v4486
      %v4630 = vsel %vm4610, %v4597, %v4488
      %v4631 = vsel %vm4610, %v4598, %v4490
      %v4632 = vsel %vm4610, %v4599, %v4492
      %v4633 = vsel %vm4610, %v4600, %v4494
      %v4634 = vsel %vm4610, %v4601, %v4496
      %v4635 = vsel %vm4610, %v4602, %v4498
      %v4636 = vsel %vm4610, %v4603, %v4500
      %v4637 = vsel %vm4610, %v4604, %v4502
      %v4638 = vsel %vm4610, %v4605, %v4504
      %v4639 = vsel %vm4610, %v4606, %v4506
      %v4640 = vsel %vm4610, %v4607, %v4508
      %v4641 = vsel %vm4610, %v4608, %v4510
      %v4642 = vsel %vm4610, %v4609, %v4512
      %vm4643 = vcmask 261120
      %4644 = vst.msk [vmem:[%s163] sm:$0xff] %vm4643, %v4611
      %4645 = vst.msk [vmem:[%s163 + $0x8] sm:$0xff] %vm4643, %v4612
      %4646 = vst.msk [vmem:[%s163 + $0x10] sm:$0xff] %vm4643, %v4613
      %4647 = vst.msk [vmem:[%s163 + $0x18] sm:$0xff] %vm4643, %v4614
      %4648 = vst.msk [vmem:[%s163 + $0x20] sm:$0xff] %vm4643, %v4615
      %4649 = vst.msk [vmem:[%s163 + $0x28] sm:$0xff] %vm4643, %v4616
      %4650 = vst.msk [vmem:[%s163 + $0x30] sm:$0xff] %vm4643, %v4617
      %4651 = vst.msk [vmem:[%s163 + $0x38] sm:$0xff] %vm4643, %v4618
      %4652 = vst.msk [vmem:[%s163 + $0x40] sm:$0xff] %vm4643, %v4619
      %4653 = vst.msk [vmem:[%s163 + $0x48] sm:$0xff] %vm4643, %v4620
      %4654 = vst.msk [vmem:[%s163 + $0x50] sm:$0xff] %vm4643, %v4621
      %4655 = vst.msk [vmem:[%s163 + $0x58] sm:$0xff] %vm4643, %v4622
      %4656 = vst.msk [vmem:[%s163 + $0x60] sm:$0xff] %vm4643, %v4623
      %4657 = vst.msk [vmem:[%s163 + $0x68] sm:$0xff] %vm4643, %v4624
      %4658 = vst.msk [vmem:[%s163 + $0x70] sm:$0xff] %vm4643, %v4625
      %4659 = vst.msk [vmem:[%s163 + $0x78] sm:$0xff] %vm4643, %v4626
      %4660 = vst.msk [vmem:[%s163 + $0x80] sm:$0xff] %vm4643, %v4627
      %4661 = vst.msk [vmem:[%s163 + $0x88] sm:$0xff] %vm4643, %v4628
      %4662 = vst.msk [vmem:[%s163 + $0x90] sm:$0xff] %vm4643, %v4629
      %4663 = vst.msk [vmem:[%s163 + $0x98] sm:$0xff] %vm4643, %v4630
      %4664 = vst.msk [vmem:[%s163 + $0xa0] sm:$0xff] %vm4643, %v4631
      %4665 = vst.msk [vmem:[%s163 + $0xa8] sm:$0xff] %vm4643, %v4632
      %4666 = vst.msk [vmem:[%s163 + $0xb0] sm:$0xff] %vm4643, %v4633
      %4667 = vst.msk [vmem:[%s163 + $0xb8] sm:$0xff] %vm4643, %v4634
      %4668 = vst.msk [vmem:[%s163 + $0xc0] sm:$0xff] %vm4643, %v4635
      %4669 = vst.msk [vmem:[%s163 + $0xc8] sm:$0xff] %vm4643, %v4636
      %4670 = vst.msk [vmem:[%s163 + $0xd0] sm:$0xff] %vm4643, %v4637
      %4671 = vst.msk [vmem:[%s163 + $0xd8] sm:$0xff] %vm4643, %v4638
      %4672 = vst.msk [vmem:[%s163 + $0xe0] sm:$0xff] %vm4643, %v4639
      %4673 = vst.msk [vmem:[%s163 + $0xe8] sm:$0xff] %vm4643, %v4640
      %4674 = vst.msk [vmem:[%s163 + $0xf0] sm:$0xff] %vm4643, %v4641
      %4675 = vst.msk [vmem:[%s163 + $0xf8] sm:$0xff] %vm4643, %v4642
      %p4676 = scmp.lt.s32.totalorder %s13, 1
      %s4677 = scalar_select %p4676, %s13, 1
      %s4678 = smul.addr %s4677, 32
      %s4679 = smul.addr %s4678, 8
      %s4680 = scalar_lea.vmem %s2, %s4679
      // Predicated region
      $region29: #{flexible_lite_mla_forward.8} parent=27 // pred_check
        %p4681 = pneg %p83
      $region30: #{flexible_lite_mla_forward.8} parent=27 // pred_check_branch
        %4683 = sbr.rel (%p4681) target = $region32
      $region31: #{flexible_lite_mla_forward.8} parent=27 // pred_region
        _
      $region32: #{flexible_lite_mla_forward.8} parent=27 // pred_fallthru
        _
    $region28: #{flexible_lite_mla_forward.8} parent=5 // pred_fallthru
      _
    %p4684 = scmp.le.s32.totalorder 2, %s8
    // Predicated region
    $region33: #{flexible_lite_mla_forward.8} parent=5 // pred_check
      %p4685 = pneg %p4684
    $region34: #{flexible_lite_mla_forward.8} parent=5 // pred_check_branch
      %4687 = sbr.rel (%p4685) target = $region36
    $region35: #{flexible_lite_mla_forward.8} parent=5 // pred_region
      %s4688 = ssub.s32 %s8, 2
      // Predicated region
      $region37: #{flexible_lite_mla_forward.8} parent=35 // pred_check
        %p4689 = pneg %p89
      $region38: #{flexible_lite_mla_forward.8} parent=35 // pred_check_branch
        %4691 = sbr.rel (%p4689) target = $region40
      $region39: #{flexible_lite_mla_forward.8} parent=35 // pred_region
        %p4692 = scmp.lt.s32.totalorder %s14, 1
        %s4693 = scalar_select %p4692, %s14, 1
        %s4694 = smul.addr %s4693, 32
        %s4695 = smul.addr %s4694, 8
        %s4696 = scalar_lea.vmem %s2, %s4695
      $region40: #{flexible_lite_mla_forward.8} parent=35 // pred_fallthru
        _
    $region36: #{flexible_lite_mla_forward.8} parent=5 // pred_fallthru
      _
  $region6: #{flexible_lite_mla_forward.8} parent=0 // loop_footer
    %s12 = sadd.s32 1, %s8
  $region7: #{flexible_lite_mla_forward.8} parent=0 // loop_footer_branch
    %7 = sbr.rel target = $region3
  $region8: #{flexible_lite_mla_forward.8} parent=0 // loop_exit
    _

// kernel: flexible_lite_mla_forward.6
$region0: #{flexible_lite_mla_forward.6}
  #allocation0 [shape = 'u32[]', space=smem, size = 0x4, offset = 0x4, fixed_abs, tag = 'smem constant byte address 0x4 - core index']
  #allocation1 [shape = 'u32[144,128]{1,0:T(1,128)}', space=vmem, size = 0x12000, scoped, tag = 'internal scratch']
  #allocation2 [shape = 'f32[20,20,48]{2,1,0:T(8,128)}', space=vmem, size = 0x3c000, scoped, tag = 'scratch operand']
  %s0 = inlined_call_operand.vmem [shape: f32[2,16,16,48], index: 0, kind: input, shape index: {}]
  %s1 = inlined_call_operand.vmem [shape: f32[25,48], index: 1, kind: input, shape index: {}]
  %s2 = inlined_call_operand.vmem [shape: f32[2,16,16,48], index: 2, kind: output, shape index: {}]
  %s3 = sld [smem:[#allocation0]]
  $region41: #{flexible_lite_mla_forward.6} parent=0
    _
  %s5 = ssub.s32 1, %s3
  %s6 = scalar_select 0, %s5, %s3
  loop: start=0, step=1, limit=4
  $region2: #{flexible_lite_mla_forward.6} parent=0 // loop_pre_header
    _
  $region3: #{flexible_lite_mla_forward.6} parent=0 // loop_header
    %s8 = sphi 0, %s12
    %p9 = scmp.ge.s32.totalorder %s8, 4
    %s15 = sphi 0, %s27
    %s16 = sphi 0, %s23
    %s17 = sphi 0, %s15
    %s18 = sphi 0, %s16
    %s19 = sphi 0, %s17
    %s20 = sphi 0, %s18
    %s32 = sphi 0, %s34
    %s35 = sphi 0, %s32
    %s36 = sphi 0, %s35
    %s52 = sphi 0, %s36
    %s58 = sphi 0, %s60
    %s61 = sphi 0, %s58
    %s62 = sphi 0, %s61
    %s78 = sphi 0, %s62
    %s86 = sphi 0, %s88
    %s89 = sphi 0, %s86
    %s90 = sphi 0, %s89
    %s106 = sphi 0, %s90
  $region4: #{flexible_lite_mla_forward.6} parent=0 // loop_header_branch
    %11 = sbr.rel (%p9) target = $region8
  $region5: #{flexible_lite_mla_forward.6} parent=0 // loop_body
    %s13 = ssub.s32 %s8, 1
    %s14 = ssub.s32 %s8, 2
    %s21 = sadd.s32 1, %s16
    %p22 = scmp.ge.s32.totalorder %s21, 1
    %s23 = scalar_select %p22, 0, %s21
    %s24 = sadd.s32 1, %s15
    %s25 = scalar_select %p22, %s24, %s15
    %p26 = scmp.ge.s32.totalorder %s25, 2
    %s27 = scalar_select %p26, 0, %s25
    %s28 = ssub.s32 %s15, %s27
    %s29 = ssub.s32 %s16, %s23
    %s30 = sor.u32 %s28, %s29
    %p31 = scmp.eq.s32.totalorder %s30, 0
    %s33 = sadd.s32 %s32, 1
    %s34 = scalar_select %p31, %s32, %s33
    %p37 = pneg %p31
    %p38 = scmp.eq.s32.totalorder %s8, 1
    %p39 = por %p37, %p38
    %p40 = scmp.ne.s32.totalorder %s32, %s35
    %p41 = scmp.eq.s32.totalorder %s8, 0
    %p42 = por %p40, %p41
    %p43 = scmp.ne.s32.totalorder %s32, %s35
    %p44 = scmp.eq.s32.totalorder %s13, 1
    %p45 = por %p43, %p44
    %p46 = scmp.ne.s32.totalorder %s35, %s36
    %p47 = scmp.eq.s32.totalorder %s13, 0
    %p48 = por %p46, %p47
    %p49 = scmp.ne.s32.totalorder %s35, %s36
    %p50 = scmp.eq.s32.totalorder %s14, 1
    %p51 = por %p49, %p50
    %p53 = scmp.ne.s32.totalorder %s36, %s52
    %p54 = scmp.eq.s32.totalorder %s14, 0
    %p55 = por %p53, %p54
    %s56 = ssub.s32 %s16, %s23
    %p57 = scmp.eq.s32.totalorder %s56, 0
    %s59 = sadd.s32 %s58, 1
    %s60 = scalar_select %p57, %s58, %s59
    %p63 = pneg %p57
    %p64 = scmp.eq.s32.totalorder %s8, 1
    %p65 = por %p63, %p64
    %p66 = scmp.ne.s32.totalorder %s58, %s61
    %p67 = scmp.eq.s32.totalorder %s8, 0
    %p68 = por %p66, %p67
    %p69 = scmp.ne.s32.totalorder %s58, %s61
    %p70 = scmp.eq.s32.totalorder %s13, 1
    %p71 = por %p69, %p70
    %p72 = scmp.ne.s32.totalorder %s61, %s62
    %p73 = scmp.eq.s32.totalorder %s13, 0
    %p74 = por %p72, %p73
    %p75 = scmp.ne.s32.totalorder %s61, %s62
    %p76 = scmp.eq.s32.totalorder %s14, 1
    %p77 = por %p75, %p76
    %p79 = scmp.ne.s32.totalorder %s62, %s78
    %p80 = scmp.eq.s32.totalorder %s14, 0
    %p81 = por %p79, %p80
    %s82 = ssub.s32 %s15, %s27
    %s83 = ssub.s32 %s16, %s23
    %s84 = sor.u32 %s82, %s83
    %p85 = scmp.eq.s32.totalorder %s84, 0
    %s87 = sadd.s32 %s86, 1
    %s88 = scalar_select %p85, %s86, %s87
    %p91 = pneg %p85
    %p92 = scmp.eq.s32.totalorder %s8, 1
    %p93 = por %p91, %p92
    %p94 = scmp.ne.s32.totalorder %s86, %s89
    %p95 = scmp.eq.s32.totalorder %s8, 0
    %p96 = por %p94, %p95
    %p97 = scmp.ne.s32.totalorder %s86, %s89
    %p98 = scmp.eq.s32.totalorder %s13, 1
    %p99 = por %p97, %p98
    %p100 = scmp.ne.s32.totalorder %s89, %s90
    %p101 = scmp.eq.s32.totalorder %s13, 0
    %p102 = por %p100, %p101
    %p103 = scmp.ne.s32.totalorder %s89, %s90
    %p104 = scmp.eq.s32.totalorder %s14, 1
    %p105 = por %p103, %p104
    %p107 = scmp.ne.s32.totalorder %s90, %s106
    %p108 = scmp.eq.s32.totalorder %s14, 0
    %p109 = por %p107, %p108
    %p110 = scmp.le.s32.totalorder 1, %s8
    %p111 = scmp.lt.s32.totalorder %s8, 3
    %p112 = pnand %p110, %p111
    %p113 = pneg %p112
    // Predicated region
    $region9: #{flexible_lite_mla_forward.6} parent=5 // pred_check
      _
    $region10: #{flexible_lite_mla_forward.6} parent=5 // pred_check_branch
      %115 = sbr.rel (%p112) target = $region12
    $region11: #{flexible_lite_mla_forward.6} parent=5 // pred_region
      %s116 = ssub.s32 %s8, 1
      // Predicated region
      $region13: #{flexible_lite_mla_forward.6} parent=11 // pred_check
        %p117 = pneg %p74
      $region14: #{flexible_lite_mla_forward.6} parent=11 // pred_check_branch
        %119 = sbr.rel (%p117) target = $region16
      $region15: #{flexible_lite_mla_forward.6} parent=11 // pred_region
        %p120 = scmp.lt.s32.totalorder %s18, 0
        %s121 = scalar_select %p120, %s18, 0
        %s122 = smul.addr %s121, 8
        %s123 = scalar_lea.vmem %s1, %s122
      $region16: #{flexible_lite_mla_forward.6} parent=11 // pred_fallthru
        _
    $region12: #{flexible_lite_mla_forward.6} parent=5 // pred_fallthru
      _
    %p124 = scmp.lt.s32.totalorder %s8, 2
    // Predicated region
    $region17: #{flexible_lite_mla_forward.6} parent=5 // pred_check
      %p125 = pneg %p124
    $region18: #{flexible_lite_mla_forward.6} parent=5 // pred_check_branch
      %127 = sbr.rel (%p125) target = $region20
    $region19: #{flexible_lite_mla_forward.6} parent=5 // pred_region
      // Predicated region
      $region21: #{flexible_lite_mla_forward.6} parent=19 // pred_check
        %p128 = pneg %p42
      $region22: #{flexible_lite_mla_forward.6} parent=19 // pred_check_branch
        %130 = sbr.rel (%p128) target = $region24
      $region23: #{flexible_lite_mla_forward.6} parent=19 // pred_region
        %p131 = scmp.lt.s32.totalorder %s15, 1
        %s132 = scalar_select %p131, %s15, 1
        %p133 = scmp.lt.s32.totalorder %s16, 0
        %s134 = scalar_select %p133, %s16, 0
        %s135 = smul.addr %s132, 32
        %s136 = sadd.s32 %s134, %s135
        %s137 = smul.addr %s136, 8
        %s138 = scalar_lea.vmem %s0, %s137
      $region24: #{flexible_lite_mla_forward.6} parent=19 // pred_fallthru
        _
    $region20: #{flexible_lite_mla_forward.6} parent=5 // pred_fallthru
      _
    %p139 = scmp.le.s32.totalorder 1, %s8
    %p140 = scmp.lt.s32.totalorder %s8, 3
    %p141 = pnand %p139, %p140
    %p142 = pneg %p141
    // Predicated region
    $region25: #{flexible_lite_mla_forward.6} parent=5 // pred_check
      _
    $region26: #{flexible_lite_mla_forward.6} parent=5 // pred_check_branch
      %144 = sbr.rel (%p141) target = $region28
    $region27: #{flexible_lite_mla_forward.6} parent=5 // pred_region
      %s145 = ssub.s32 %s8, 1
      %p146 = scmp.lt.s32.totalorder %s17, 1
      %s147 = scalar_select %p146, %s17, 1
      %p148 = scmp.lt.s32.totalorder %s18, 0
      %s149 = scalar_select %p148, %s18, 0
      %s150 = smul.addr %s147, 32
      %s151 = sadd.s32 %s149, %s150
      %s152 = smul.addr %s151, 8
      %s153 = scalar_lea.vmem %s0, %s152
      %p154 = pneg %p48
      %p155 = pneg %p45
      %p156 = scmp.lt.s32.totalorder %s18, 0
      %s157 = scalar_select %p156, %s18, 0
      %s158 = smul.addr %s157, 8
      %s159 = scalar_lea.vmem %s1, %s158
      %p160 = pneg %p74
      %p161 = pneg %p71
      %p162 = pneg %p102
      %p163 = pneg %p99
      %p164 = scmp.lt.s32.totalorder %s17, 1
      %s165 = scalar_select %p164, %s17, 1
      %p166 = scmp.lt.s32.totalorder %s18, 0
      %s167 = scalar_select %p166, %s18, 0
      %s168 = smul.addr %s165, 32
      %s169 = sadd.s32 %s167, %s168
      %s170 = smul.addr %s169, 8
      %s171 = scalar_lea.vmem %s2, %s170
      %p172 = scmp.lt.s32.totalorder %s17, 1
      %s173 = scalar_select %p172, %s17, 1
      %p174 = scmp.lt.s32.totalorder %s18, 0
      %s175 = scalar_select %p174, %s18, 0
      %s176 = smul.addr %s173, 32
      %s177 = sadd.s32 %s175, %s176
      %s178 = smul.addr %s177, 8
      %s179 = scalar_lea.vmem %s0, %s178
      %p180 = scmp.lt.s32.totalorder %s18, 0
      %s181 = scalar_select %p180, %s18, 0
      %s182 = smul.addr %s181, 8
      %s183 = scalar_lea.vmem %s1, %s182
      %p184 = scmp.lt.s32.totalorder %s17, 1
      %s185 = scalar_select %p184, %s17, 1
      %p186 = scmp.lt.s32.totalorder %s18, 0
      %s187 = scalar_select %p186, %s18, 0
      %s188 = smul.addr %s185, 32
      %s189 = sadd.s32 %s187, %s188
      %s190 = smul.addr %s189, 8
      %s191 = scalar_lea.vmem %s2, %s190
      %vm192 = vcmask 392192
      %193 = vst.msk [vmem:[#allocation2] sm:$0xff] %vm192, 0.0
      %194 = vst.msk [vmem:[#allocation2 + $0x8] sm:$0xff] %vm192, 0.0
      %vm195 = vcmask 388096
      %196 = vst.msk [vmem:[#allocation2 + $0x10] sm:$0xf] %vm195, 0.0
      %197 = vst.msk [vmem:[#allocation2 + $0x18] sm:$0xff] %vm192, 0.0
      %198 = vst.msk [vmem:[#allocation2 + $0x20] sm:$0xff] %vm192, 0.0
      %199 = vst.msk [vmem:[#allocation2 + $0x28] sm:$0xf] %vm195, 0.0
      %200 = vst.msk [vmem:[#allocation2 + $0x30] sm:$0xff] %vm192, 0.0
      %201 = vst.msk [vmem:[#allocation2 + $0x38] sm:$0xff] %vm192, 0.0
      %202 = vst.msk [vmem:[#allocation2 + $0x40] sm:$0xf] %vm195, 0.0
      %203 = vst.msk [vmem:[#allocation2 + $0x48] sm:$0xff] %vm192, 0.0
      %204 = vst.msk [vmem:[#allocation2 + $0x50] sm:$0xff] %vm192, 0.0
      %205 = vst.msk [vmem:[#allocation2 + $0x58] sm:$0xf] %vm195, 0.0
      %206 = vst.msk [vmem:[#allocation2 + $0x60] sm:$0xff] %vm192, 0.0
      %207 = vst.msk [vmem:[#allocation2 + $0x68] sm:$0xff] %vm192, 0.0
      %208 = vst.msk [vmem:[#allocation2 + $0x70] sm:$0xf] %vm195, 0.0
      %209 = vst.msk [vmem:[#allocation2 + $0x78] sm:$0xff] %vm192, 0.0
      %210 = vst.msk [vmem:[#allocation2 + $0x80] sm:$0xff] %vm192, 0.0
      %211 = vst.msk [vmem:[#allocation2 + $0x88] sm:$0xf] %vm195, 0.0
      %212 = vst.msk [vmem:[#allocation2 + $0x90] sm:$0xff] %vm192, 0.0
      %213 = vst.msk [vmem:[#allocation2 + $0x98] sm:$0xff] %vm192, 0.0
      %214 = vst.msk [vmem:[#allocation2 + $0xa0] sm:$0xf] %vm195, 0.0
      %215 = vst.msk [vmem:[#allocation2 + $0xa8] sm:$0xff] %vm192, 0.0
      %216 = vst.msk [vmem:[#allocation2 + $0xb0] sm:$0xff] %vm192, 0.0
      %217 = vst.msk [vmem:[#allocation2 + $0xb8] sm:$0xf] %vm195, 0.0
      %218 = vst.msk [vmem:[#allocation2 + $0xc0] sm:$0xff] %vm192, 0.0
      %219 = vst.msk [vmem:[#allocation2 + $0xc8] sm:$0xff] %vm192, 0.0
      %220 = vst.msk [vmem:[#allocation2 + $0xd0] sm:$0xf] %vm195, 0.0
      %221 = vst.msk [vmem:[#allocation2 + $0xd8] sm:$0xff] %vm192, 0.0
      %222 = vst.msk [vmem:[#allocation2 + $0xe0] sm:$0xff] %vm192, 0.0
      %223 = vst.msk [vmem:[#allocation2 + $0xe8] sm:$0xf] %vm195, 0.0
      %224 = vst.msk [vmem:[#allocation2 + $0xf0] sm:$0xff] %vm192, 0.0
      %225 = vst.msk [vmem:[#allocation2 + $0xf8] sm:$0xff] %vm192, 0.0
      %226 = vst.msk [vmem:[#allocation2 + $0x100] sm:$0xf] %vm195, 0.0
      %227 = vst.msk [vmem:[#allocation2 + $0x108] sm:$0xff] %vm192, 0.0
      %228 = vst.msk [vmem:[#allocation2 + $0x110] sm:$0xff] %vm192, 0.0
      %229 = vst.msk [vmem:[#allocation2 + $0x118] sm:$0xf] %vm195, 0.0
      %230 = vst.msk [vmem:[#allocation2 + $0x120] sm:$0xff] %vm192, 0.0
      %231 = vst.msk [vmem:[#allocation2 + $0x128] sm:$0xff] %vm192, 0.0
      %232 = vst.msk [vmem:[#allocation2 + $0x130] sm:$0xf] %vm195, 0.0
      %233 = vst.msk [vmem:[#allocation2 + $0x138] sm:$0xff] %vm192, 0.0
      %234 = vst.msk [vmem:[#allocation2 + $0x140] sm:$0xff] %vm192, 0.0
      %235 = vst.msk [vmem:[#allocation2 + $0x148] sm:$0xf] %vm195, 0.0
      %236 = vst.msk [vmem:[#allocation2 + $0x150] sm:$0xff] %vm192, 0.0
      %237 = vst.msk [vmem:[#allocation2 + $0x158] sm:$0xff] %vm192, 0.0
      %238 = vst.msk [vmem:[#allocation2 + $0x160] sm:$0xf] %vm195, 0.0
      %239 = vst.msk [vmem:[#allocation2 + $0x168] sm:$0xff] %vm192, 0.0
      %240 = vst.msk [vmem:[#allocation2 + $0x170] sm:$0xff] %vm192, 0.0
      %241 = vst.msk [vmem:[#allocation2 + $0x178] sm:$0xf] %vm195, 0.0
      %242 = vst.msk [vmem:[#allocation2 + $0x180] sm:$0xff] %vm192, 0.0
      %243 = vst.msk [vmem:[#allocation2 + $0x188] sm:$0xff] %vm192, 0.0
      %244 = vst.msk [vmem:[#allocation2 + $0x190] sm:$0xf] %vm195, 0.0
      %245 = vst.msk [vmem:[#allocation2 + $0x198] sm:$0xff] %vm192, 0.0
      %246 = vst.msk [vmem:[#allocation2 + $0x1a0] sm:$0xff] %vm192, 0.0
      %247 = vst.msk [vmem:[#allocation2 + $0x1a8] sm:$0xf] %vm195, 0.0
      %248 = vst.msk [vmem:[#allocation2 + $0x1b0] sm:$0xff] %vm192, 0.0
      %249 = vst.msk [vmem:[#allocation2 + $0x1b8] sm:$0xff] %vm192, 0.0
      %250 = vst.msk [vmem:[#allocation2 + $0x1c0] sm:$0xf] %vm195, 0.0
      %251 = vst.msk [vmem:[#allocation2 + $0x1c8] sm:$0xff] %vm192, 0.0
      %252 = vst.msk [vmem:[#allocation2 + $0x1d0] sm:$0xff] %vm192, 0.0
      %253 = vst.msk [vmem:[#allocation2 + $0x1d8] sm:$0xf] %vm195, 0.0
      %v254 = vld [vmem:[%s179] sm:$0xff]
      %v255 = vld [vmem:[%s179 + $0x8] sm:$0xff]
      %v256 = vld [vmem:[%s179 + $0x10] sm:$0xff]
      %v257 = vld [vmem:[%s179 + $0x18] sm:$0xff]
      %v258 = vld [vmem:[%s179 + $0x20] sm:$0xff]
      %v259 = vld [vmem:[%s179 + $0x28] sm:$0xff]
      %v260 = vld [vmem:[%s179 + $0x30] sm:$0xff]
      %v261 = vld [vmem:[%s179 + $0x38] sm:$0xff]
      %v262 = vld [vmem:[%s179 + $0x40] sm:$0xff]
      %v263 = vld [vmem:[%s179 + $0x48] sm:$0xff]
      %v264 = vld [vmem:[%s179 + $0x50] sm:$0xff]
      %v265 = vld [vmem:[%s179 + $0x58] sm:$0xff]
      %v266 = vld [vmem:[%s179 + $0x60] sm:$0xff]
      %v267 = vld [vmem:[%s179 + $0x68] sm:$0xff]
      %v268 = vld [vmem:[%s179 + $0x70] sm:$0xff]
      %v269 = vld [vmem:[%s179 + $0x78] sm:$0xff]
      %v270 = vld [vmem:[%s179 + $0x80] sm:$0xff]
      %v271 = vld [vmem:[%s179 + $0x88] sm:$0xff]
      %v272 = vld [vmem:[%s179 + $0x90] sm:$0xff]
      %v273 = vld [vmem:[%s179 + $0x98] sm:$0xff]
      %v274 = vld [vmem:[%s179 + $0xa0] sm:$0xff]
      %v275 = vld [vmem:[%s179 + $0xa8] sm:$0xff]
      %v276 = vld [vmem:[%s179 + $0xb0] sm:$0xff]
      %v277 = vld [vmem:[%s179 + $0xb8] sm:$0xff]
      %v278 = vld [vmem:[%s179 + $0xc0] sm:$0xff]
      %v279 = vld [vmem:[%s179 + $0xc8] sm:$0xff]
      %v280 = vld [vmem:[%s179 + $0xd0] sm:$0xff]
      %v281 = vld [vmem:[%s179 + $0xd8] sm:$0xff]
      %v282 = vld [vmem:[%s179 + $0xe0] sm:$0xff]
      %v283 = vld [vmem:[%s179 + $0xe8] sm:$0xff]
      %v284 = vld [vmem:[%s179 + $0xf0] sm:$0xff]
      %v285 = vld [vmem:[%s179 + $0xf8] sm:$0xff]
      %s286 = scalar_lea.vmem [#allocation2], 48
      %287 = vst.msk [vmem:[%s286 + $0x2] sm:$0xff] %vm192, %v254
      %288 = vst.msk [vmem:[%s286 + $0xa] sm:$0xff] %vm192, %v255
      %289 = vst.msk [vmem:[%s286 + $0x1a] sm:$0xff] %vm192, %v256
      %290 = vst.msk [vmem:[%s286 + $0x22] sm:$0xff] %vm192, %v257
      %291 = vst.msk [vmem:[%s286 + $0x32] sm:$0xff] %vm192, %v258
      %292 = vst.msk [vmem:[%s286 + $0x3a] sm:$0xff] %vm192, %v259
      %293 = vst.msk [vmem:[%s286 + $0x4a] sm:$0xff] %vm192, %v260
      %294 = vst.msk [vmem:[%s286 + $0x52] sm:$0xff] %vm192, %v261
      %295 = vst.msk [vmem:[%s286 + $0x62] sm:$0xff] %vm192, %v262
      %296 = vst.msk [vmem:[%s286 + $0x6a] sm:$0xff] %vm192, %v263
      %297 = vst.msk [vmem:[%s286 + $0x7a] sm:$0xff] %vm192, %v264
      %298 = vst.msk [vmem:[%s286 + $0x82] sm:$0xff] %vm192, %v265
      %299 = vst.msk [vmem:[%s286 + $0x92] sm:$0xff] %vm192, %v266
      %300 = vst.msk [vmem:[%s286 + $0x9a] sm:$0xff] %vm192, %v267
      %301 = vst.msk [vmem:[%s286 + $0xaa] sm:$0xff] %vm192, %v268
      %302 = vst.msk [vmem:[%s286 + $0xb2] sm:$0xff] %vm192, %v269
      %303 = vst.msk [vmem:[%s286 + $0xc2] sm:$0xff] %vm192, %v270
      %304 = vst.msk [vmem:[%s286 + $0xca] sm:$0xff] %vm192, %v271
      %305 = vst.msk [vmem:[%s286 + $0xda] sm:$0xff] %vm192, %v272
      %306 = vst.msk [vmem:[%s286 + $0xe2] sm:$0xff] %vm192, %v273
      %307 = vst.msk [vmem:[%s286 + $0xf2] sm:$0xff] %vm192, %v274
      %308 = vst.msk [vmem:[%s286 + $0xfa] sm:$0xff] %vm192, %v275
      %309 = vst.msk [vmem:[%s286 + $0x10a] sm:$0xff] %vm192, %v276
      %310 = vst.msk [vmem:[%s286 + $0x112] sm:$0xff] %vm192, %v277
      %311 = vst.msk [vmem:[%s286 + $0x122] sm:$0xff] %vm192, %v278
      %312 = vst.msk [vmem:[%s286 + $0x12a] sm:$0xff] %vm192, %v279
      %313 = vst.msk [vmem:[%s286 + $0x13a] sm:$0xff] %vm192, %v280
      %314 = vst.msk [vmem:[%s286 + $0x142] sm:$0xff] %vm192, %v281
      %315 = vst.msk [vmem:[%s286 + $0x152] sm:$0xff] %vm192, %v282
      %316 = vst.msk [vmem:[%s286 + $0x15a] sm:$0xff] %vm192, %v283
      %317 = vst.msk [vmem:[%s286 + $0x16a] sm:$0xff] %vm192, %v284
      %318 = vst.msk [vmem:[%s286 + $0x172] sm:$0xff] %vm192, %v285
      %v319 = vld [vmem:[%s183] sm:$0xff]
      %v320 = vld [vmem:[%s183 + $0x8] sm:$0xff]
      %v321 = vld [vmem:[%s183 + $0x10] sm:$0xff]
      %v322 = vld [vmem:[%s183 + $0x18] sm:$0x1]
      %v323 = vld [vmem:[#allocation2] sm:$0xff]
      %v324 = vld [vmem:[#allocation2 + $0x8] sm:$0xff]
      %v325 = vld [vmem:[#allocation2 + $0x18] sm:$0xff]
      %v326 = vld [vmem:[#allocation2 + $0x20] sm:$0xff]
      %v327 = vld [vmem:[#allocation2 + $0x30] sm:$0xff]
      %v328 = vld [vmem:[#allocation2 + $0x38] sm:$0xff]
      %v329 = vld [vmem:[#allocation2 + $0x48] sm:$0xff]
      %v330 = vld [vmem:[#allocation2 + $0x50] sm:$0xff]
      %v331 = vld [vmem:[#allocation2 + $0x60] sm:$0xff]
      %v332 = vld [vmem:[#allocation2 + $0x68] sm:$0xff]
      %v333 = vld [vmem:[#allocation2 + $0x78] sm:$0xff]
      %v334 = vld [vmem:[#allocation2 + $0x80] sm:$0xff]
      %v335 = vld [vmem:[#allocation2 + $0x90] sm:$0xff]
      %v336 = vld [vmem:[#allocation2 + $0x98] sm:$0xff]
      %v337 = vld [vmem:[#allocation2 + $0xa8] sm:$0xff]
      %v338 = vld [vmem:[#allocation2 + $0xb0] sm:$0xff]
      %v339 = vld [vmem:[#allocation2 + $0xc0] sm:$0xff]
      %v340 = vld [vmem:[#allocation2 + $0xc8] sm:$0xff]
      %v341 = vld [vmem:[#allocation2 + $0xd8] sm:$0xff]
      %v342 = vld [vmem:[#allocation2 + $0xe0] sm:$0xff]
      %v343 = vld [vmem:[#allocation2 + $0xf0] sm:$0xff]
      %v344 = vld [vmem:[#allocation2 + $0xf8] sm:$0xff]
      %v345 = vld [vmem:[#allocation2 + $0x108] sm:$0xff]
      %v346 = vld [vmem:[#allocation2 + $0x110] sm:$0xff]
      %v347 = vld [vmem:[#allocation2 + $0x120] sm:$0xff]
      %v348 = vld [vmem:[#allocation2 + $0x128] sm:$0xff]
      %v349 = vld [vmem:[#allocation2 + $0x138] sm:$0xff]
      %v350 = vld [vmem:[#allocation2 + $0x140] sm:$0xff]
      %v351 = vld [vmem:[#allocation2 + $0x150] sm:$0xff]
      %v352 = vld [vmem:[#allocation2 + $0x158] sm:$0xff]
      %v353 = vld [vmem:[#allocation2 + $0x168] sm:$0xff]
      %v354 = vld [vmem:[#allocation2 + $0x170] sm:$0xff]
      %v355 = vlaneseq
      %v356 = vshrl.u32 %v355, 7
      %v357 = vsub.s32 0, %v356
      %v358 = vrot.slane %v319, %v357
      %v359 = vmul.f32 %v323, %v358
      %v360 = vmul.f32 %v324, %v358
      %v361 = vmul.f32 %v325, %v358
      %v362 = vmul.f32 %v326, %v358
      %v363 = vmul.f32 %v327, %v358
      %v364 = vmul.f32 %v328, %v358
      %v365 = vmul.f32 %v329, %v358
      %v366 = vmul.f32 %v330, %v358
      %v367 = vmul.f32 %v331, %v358
      %v368 = vmul.f32 %v332, %v358
      %v369 = vmul.f32 %v333, %v358
      %v370 = vmul.f32 %v334, %v358
      %v371 = vmul.f32 %v335, %v358
      %v372 = vmul.f32 %v336, %v358
      %v373 = vmul.f32 %v337, %v358
      %v374 = vmul.f32 %v338, %v358
      %v375 = vmul.f32 %v339, %v358
      %v376 = vmul.f32 %v340, %v358
      %v377 = vmul.f32 %v341, %v358
      %v378 = vmul.f32 %v342, %v358
      %v379 = vmul.f32 %v343, %v358
      %v380 = vmul.f32 %v344, %v358
      %v381 = vmul.f32 %v345, %v358
      %v382 = vmul.f32 %v346, %v358
      %v383 = vmul.f32 %v347, %v358
      %v384 = vmul.f32 %v348, %v358
      %v385 = vmul.f32 %v349, %v358
      %v386 = vmul.f32 %v350, %v358
      %v387 = vmul.f32 %v351, %v358
      %v388 = vmul.f32 %v352, %v358
      %v389 = vmul.f32 %v353, %v358
      %v390 = vmul.f32 %v354, %v358
      %v391 = vadd.f32 %v359, 0.0
      %v392 = vadd.f32 %v360, 0.0
      %v393 = vadd.f32 %v361, 0.0
      %v394 = vadd.f32 %v362, 0.0
      %v395 = vadd.f32 %v363, 0.0
      %v396 = vadd.f32 %v364, 0.0
      %v397 = vadd.f32 %v365, 0.0
      %v398 = vadd.f32 %v366, 0.0
      %v399 = vadd.f32 %v367, 0.0
      %v400 = vadd.f32 %v368, 0.0
      %v401 = vadd.f32 %v369, 0.0
      %v402 = vadd.f32 %v370, 0.0
      %v403 = vadd.f32 %v371, 0.0
      %v404 = vadd.f32 %v372, 0.0
      %v405 = vadd.f32 %v373, 0.0
      %v406 = vadd.f32 %v374, 0.0
      %v407 = vadd.f32 %v375, 0.0
      %v408 = vadd.f32 %v376, 0.0
      %v409 = vadd.f32 %v377, 0.0
      %v410 = vadd.f32 %v378, 0.0
      %v411 = vadd.f32 %v379, 0.0
      %v412 = vadd.f32 %v380, 0.0
      %v413 = vadd.f32 %v381, 0.0
      %v414 = vadd.f32 %v382, 0.0
      %v415 = vadd.f32 %v383, 0.0
      %v416 = vadd.f32 %v384, 0.0
      %v417 = vadd.f32 %v385, 0.0
      %v418 = vadd.f32 %v386, 0.0
      %v419 = vadd.f32 %v387, 0.0
      %v420 = vadd.f32 %v388, 0.0
      %v421 = vadd.f32 %v389, 0.0
      %v422 = vadd.f32 %v390, 0.0
      %v423 = vld [vmem:[#allocation2 + $0x1] sm:$0xff]
      %v424 = vld [vmem:[#allocation2 + $0x9] sm:$0xff]
      %v425 = vld [vmem:[#allocation2 + $0x19] sm:$0xff]
      %v426 = vld [vmem:[#allocation2 + $0x21] sm:$0xff]
      %v427 = vld [vmem:[#allocation2 + $0x31] sm:$0xff]
      %v428 = vld [vmem:[#allocation2 + $0x39] sm:$0xff]
      %v429 = vld [vmem:[#allocation2 + $0x49] sm:$0xff]
      %v430 = vld [vmem:[#allocation2 + $0x51] sm:$0xff]
      %v431 = vld [vmem:[#allocation2 + $0x61] sm:$0xff]
      %v432 = vld [vmem:[#allocation2 + $0x69] sm:$0xff]
      %v433 = vld [vmem:[#allocation2 + $0x79] sm:$0xff]
      %v434 = vld [vmem:[#allocation2 + $0x81] sm:$0xff]
      %v435 = vld [vmem:[#allocation2 + $0x91] sm:$0xff]
      %v436 = vld [vmem:[#allocation2 + $0x99] sm:$0xff]
      %v437 = vld [vmem:[#allocation2 + $0xa9] sm:$0xff]
      %v438 = vld [vmem:[#allocation2 + $0xb1] sm:$0xff]
      %v439 = vld [vmem:[#allocation2 + $0xc1] sm:$0xff]
      %v440 = vld [vmem:[#allocation2 + $0xc9] sm:$0xff]
      %v441 = vld [vmem:[#allocation2 + $0xd9] sm:$0xff]
      %v442 = vld [vmem:[#allocation2 + $0xe1] sm:$0xff]
      %v443 = vld [vmem:[#allocation2 + $0xf1] sm:$0xff]
      %v444 = vld [vmem:[#allocation2 + $0xf9] sm:$0xff]
      %v445 = vld [vmem:[#allocation2 + $0x109] sm:$0xff]
      %v446 = vld [vmem:[#allocation2 + $0x111] sm:$0xff]
      %v447 = vld [vmem:[#allocation2 + $0x121] sm:$0xff]
      %v448 = vld [vmem:[#allocation2 + $0x129] sm:$0xff]
      %v449 = vld [vmem:[#allocation2 + $0x139] sm:$0xff]
      %v450 = vld [vmem:[#allocation2 + $0x141] sm:$0xff]
      %v451 = vld [vmem:[#allocation2 + $0x151] sm:$0xff]
      %v452 = vld [vmem:[#allocation2 + $0x159] sm:$0xff]
      %v453 = vld [vmem:[#allocation2 + $0x169] sm:$0xff]
      %v454 = vld [vmem:[#allocation2 + $0x171] sm:$0xff]
      %v455 = vlaneseq
      %v456 = vshrl.u32 %v455, 7
      %v457 = vsub.s32 1, %v456
      %v458 = vrot.slane %v319, %v457
      %v459 = vmul.f32 %v423, %v458
      %v460 = vmul.f32 %v424, %v458
      %v461 = vmul.f32 %v425, %v458
      %v462 = vmul.f32 %v426, %v458
      %v463 = vmul.f32 %v427, %v458
      %v464 = vmul.f32 %v428, %v458
      %v465 = vmul.f32 %v429, %v458
      %v466 = vmul.f32 %v430, %v458
      %v467 = vmul.f32 %v431, %v458
      %v468 = vmul.f32 %v432, %v458
      %v469 = vmul.f32 %v433, %v458
      %v470 = vmul.f32 %v434, %v458
      %v471 = vmul.f32 %v435, %v458
      %v472 = vmul.f32 %v436, %v458
      %v473 = vmul.f32 %v437, %v458
      %v474 = vmul.f32 %v438, %v458
      %v475 = vmul.f32 %v439, %v458
      %v476 = vmul.f32 %v440, %v458
      %v477 = vmul.f32 %v441, %v458
      %v478 = vmul.f32 %v442, %v458
      %v479 = vmul.f32 %v443, %v458
      %v480 = vmul.f32 %v444, %v458
      %v481 = vmul.f32 %v445, %v458
      %v482 = vmul.f32 %v446, %v458
      %v483 = vmul.f32 %v447, %v458
      %v484 = vmul.f32 %v448, %v458
      %v485 = vmul.f32 %v449, %v458
      %v486 = vmul.f32 %v450, %v458
      %v487 = vmul.f32 %v451, %v458
      %v488 = vmul.f32 %v452, %v458
      %v489 = vmul.f32 %v453, %v458
      %v490 = vmul.f32 %v454, %v458
      %v491 = vadd.f32 %v391, %v459
      %v492 = vadd.f32 %v392, %v460
      %v493 = vadd.f32 %v393, %v461
      %v494 = vadd.f32 %v394, %v462
      %v495 = vadd.f32 %v395, %v463
      %v496 = vadd.f32 %v396, %v464
      %v497 = vadd.f32 %v397, %v465
      %v498 = vadd.f32 %v398, %v466
      %v499 = vadd.f32 %v399, %v467
      %v500 = vadd.f32 %v400, %v468
      %v501 = vadd.f32 %v401, %v469
      %v502 = vadd.f32 %v402, %v470
      %v503 = vadd.f32 %v403, %v471
      %v504 = vadd.f32 %v404, %v472
      %v505 = vadd.f32 %v405, %v473
      %v506 = vadd.f32 %v406, %v474
      %v507 = vadd.f32 %v407, %v475
      %v508 = vadd.f32 %v408, %v476
      %v509 = vadd.f32 %v409, %v477
      %v510 = vadd.f32 %v410, %v478
      %v511 = vadd.f32 %v411, %v479
      %v512 = vadd.f32 %v412, %v480
      %v513 = vadd.f32 %v413, %v481
      %v514 = vadd.f32 %v414, %v482
      %v515 = vadd.f32 %v415, %v483
      %v516 = vadd.f32 %v416, %v484
      %v517 = vadd.f32 %v417, %v485
      %v518 = vadd.f32 %v418, %v486
      %v519 = vadd.f32 %v419, %v487
      %v520 = vadd.f32 %v420, %v488
      %v521 = vadd.f32 %v421, %v489
      %v522 = vadd.f32 %v422, %v490
      %v523 = vld [vmem:[#allocation2 + $0x2] sm:$0xff]
      %v524 = vld [vmem:[#allocation2 + $0xa] sm:$0xff]
      %v525 = vld [vmem:[#allocation2 + $0x1a] sm:$0xff]
      %v526 = vld [vmem:[#allocation2 + $0x22] sm:$0xff]
      %v527 = vld [vmem:[#allocation2 + $0x32] sm:$0xff]
      %v528 = vld [vmem:[#allocation2 + $0x3a] sm:$0xff]
      %v529 = vld [vmem:[#allocation2 + $0x4a] sm:$0xff]
      %v530 = vld [vmem:[#allocation2 + $0x52] sm:$0xff]
      %v531 = vld [vmem:[#allocation2 + $0x62] sm:$0xff]
      %v532 = vld [vmem:[#allocation2 + $0x6a] sm:$0xff]
      %v533 = vld [vmem:[#allocation2 + $0x7a] sm:$0xff]
      %v534 = vld [vmem:[#allocation2 + $0x82] sm:$0xff]
      %v535 = vld [vmem:[#allocation2 + $0x92] sm:$0xff]
      %v536 = vld [vmem:[#allocation2 + $0x9a] sm:$0xff]
      %v537 = vld [vmem:[#allocation2 + $0xaa] sm:$0xff]
      %v538 = vld [vmem:[#allocation2 + $0xb2] sm:$0xff]
      %v539 = vld [vmem:[#allocation2 + $0xc2] sm:$0xff]
      %v540 = vld [vmem:[#allocation2 + $0xca] sm:$0xff]
      %v541 = vld [vmem:[#allocation2 + $0xda] sm:$0xff]
      %v542 = vld [vmem:[#allocation2 + $0xe2] sm:$0xff]
      %v543 = vld [vmem:[#allocation2 + $0xf2] sm:$0xff]
      %v544 = vld [vmem:[#allocation2 + $0xfa] sm:$0xff]
      %v545 = vld [vmem:[#allocation2 + $0x10a] sm:$0xff]
      %v546 = vld [vmem:[#allocation2 + $0x112] sm:$0xff]
      %v547 = vld [vmem:[#allocation2 + $0x122] sm:$0xff]
      %v548 = vld [vmem:[#allocation2 + $0x12a] sm:$0xff]
      %v549 = vld [vmem:[#allocation2 + $0x13a] sm:$0xff]
      %v550 = vld [vmem:[#allocation2 + $0x142] sm:$0xff]
      %v551 = vld [vmem:[#allocation2 + $0x152] sm:$0xff]
      %v552 = vld [vmem:[#allocation2 + $0x15a] sm:$0xff]
      %v553 = vld [vmem:[#allocation2 + $0x16a] sm:$0xff]
      %v554 = vld [vmem:[#allocation2 + $0x172] sm:$0xff]
      %v555 = vlaneseq
      %v556 = vshrl.u32 %v555, 7
      %v557 = vsub.s32 2, %v556
      %v558 = vrot.slane %v319, %v557
      %v559 = vmul.f32 %v523, %v558
      %v560 = vmul.f32 %v524, %v558
      %v561 = vmul.f32 %v525, %v558
      %v562 = vmul.f32 %v526, %v558
      %v563 = vmul.f32 %v527, %v558
      %v564 = vmul.f32 %v528, %v558
      %v565 = vmul.f32 %v529, %v558
      %v566 = vmul.f32 %v530, %v558
      %v567 = vmul.f32 %v531, %v558
      %v568 = vmul.f32 %v532, %v558
      %v569 = vmul.f32 %v533, %v558
      %v570 = vmul.f32 %v534, %v558
      %v571 = vmul.f32 %v535, %v558
      %v572 = vmul.f32 %v536, %v558
      %v573 = vmul.f32 %v537, %v558
      %v574 = vmul.f32 %v538, %v558
      %v575 = vmul.f32 %v539, %v558
      %v576 = vmul.f32 %v540, %v558
      %v577 = vmul.f32 %v541, %v558
      %v578 = vmul.f32 %v542, %v558
      %v579 = vmul.f32 %v543, %v558
      %v580 = vmul.f32 %v544, %v558
      %v581 = vmul.f32 %v545, %v558
      %v582 = vmul.f32 %v546, %v558
      %v583 = vmul.f32 %v547, %v558
      %v584 = vmul.f32 %v548, %v558
      %v585 = vmul.f32 %v549, %v558
      %v586 = vmul.f32 %v550, %v558
      %v587 = vmul.f32 %v551, %v558
      %v588 = vmul.f32 %v552, %v558
      %v589 = vmul.f32 %v553, %v558
      %v590 = vmul.f32 %v554, %v558
      %v591 = vadd.f32 %v491, %v559
      %v592 = vadd.f32 %v492, %v560
      %v593 = vadd.f32 %v493, %v561
      %v594 = vadd.f32 %v494, %v562
      %v595 = vadd.f32 %v495, %v563
      %v596 = vadd.f32 %v496, %v564
      %v597 = vadd.f32 %v497, %v565
      %v598 = vadd.f32 %v498, %v566
      %v599 = vadd.f32 %v499, %v567
      %v600 = vadd.f32 %v500, %v568
      %v601 = vadd.f32 %v501, %v569
      %v602 = vadd.f32 %v502, %v570
      %v603 = vadd.f32 %v503, %v571
      %v604 = vadd.f32 %v504, %v572
      %v605 = vadd.f32 %v505, %v573
      %v606 = vadd.f32 %v506, %v574
      %v607 = vadd.f32 %v507, %v575
      %v608 = vadd.f32 %v508, %v576
      %v609 = vadd.f32 %v509, %v577
      %v610 = vadd.f32 %v510, %v578
      %v611 = vadd.f32 %v511, %v579
      %v612 = vadd.f32 %v512, %v580
      %v613 = vadd.f32 %v513, %v581
      %v614 = vadd.f32 %v514, %v582
      %v615 = vadd.f32 %v515, %v583
      %v616 = vadd.f32 %v516, %v584
      %v617 = vadd.f32 %v517, %v585
      %v618 = vadd.f32 %v518, %v586
      %v619 = vadd.f32 %v519, %v587
      %v620 = vadd.f32 %v520, %v588
      %v621 = vadd.f32 %v521, %v589
      %v622 = vadd.f32 %v522, %v590
      %v623 = vld [vmem:[#allocation2 + $0x3] sm:$0xff]
      %v624 = vld [vmem:[#allocation2 + $0xb] sm:$0xff]
      %v625 = vld [vmem:[#allocation2 + $0x1b] sm:$0xff]
      %v626 = vld [vmem:[#allocation2 + $0x23] sm:$0xff]
      %v627 = vld [vmem:[#allocation2 + $0x33] sm:$0xff]
      %v628 = vld [vmem:[#allocation2 + $0x3b] sm:$0xff]
      %v629 = vld [vmem:[#allocation2 + $0x4b] sm:$0xff]
      %v630 = vld [vmem:[#allocation2 + $0x53] sm:$0xff]
      %v631 = vld [vmem:[#allocation2 + $0x63] sm:$0xff]
      %v632 = vld [vmem:[#allocation2 + $0x6b] sm:$0xff]
      %v633 = vld [vmem:[#allocation2 + $0x7b] sm:$0xff]
      %v634 = vld [vmem:[#allocation2 + $0x83] sm:$0xff]
      %v635 = vld [vmem:[#allocation2 + $0x93] sm:$0xff]
      %v636 = vld [vmem:[#allocation2 + $0x9b] sm:$0xff]
      %v637 = vld [vmem:[#allocation2 + $0xab] sm:$0xff]
      %v638 = vld [vmem:[#allocation2 + $0xb3] sm:$0xff]
      %v639 = vld [vmem:[#allocation2 + $0xc3] sm:$0xff]
      %v640 = vld [vmem:[#allocation2 + $0xcb] sm:$0xff]
      %v641 = vld [vmem:[#allocation2 + $0xdb] sm:$0xff]
      %v642 = vld [vmem:[#allocation2 + $0xe3] sm:$0xff]
      %v643 = vld [vmem:[#allocation2 + $0xf3] sm:$0xff]
      %v644 = vld [vmem:[#allocation2 + $0xfb] sm:$0xff]
      %v645 = vld [vmem:[#allocation2 + $0x10b] sm:$0xff]
      %v646 = vld [vmem:[#allocation2 + $0x113] sm:$0xff]
      %v647 = vld [vmem:[#allocation2 + $0x123] sm:$0xff]
      %v648 = vld [vmem:[#allocation2 + $0x12b] sm:$0xff]
      %v649 = vld [vmem:[#allocation2 + $0x13b] sm:$0xff]
      %v650 = vld [vmem:[#allocation2 + $0x143] sm:$0xff]
      %v651 = vld [vmem:[#allocation2 + $0x153] sm:$0xff]
      %v652 = vld [vmem:[#allocation2 + $0x15b] sm:$0xff]
      %v653 = vld [vmem:[#allocation2 + $0x16b] sm:$0xff]
      %v654 = vld [vmem:[#allocation2 + $0x173] sm:$0xff]
      %v655 = vlaneseq
      %v656 = vshrl.u32 %v655, 7
      %v657 = vsub.s32 3, %v656
      %v658 = vrot.slane %v319, %v657
      %v659 = vmul.f32 %v623, %v658
      %v660 = vmul.f32 %v624, %v658
      %v661 = vmul.f32 %v625, %v658
      %v662 = vmul.f32 %v626, %v658
      %v663 = vmul.f32 %v627, %v658
      %v664 = vmul.f32 %v628, %v658
      %v665 = vmul.f32 %v629, %v658
      %v666 = vmul.f32 %v630, %v658
      %v667 = vmul.f32 %v631, %v658
      %v668 = vmul.f32 %v632, %v658
      %v669 = vmul.f32 %v633, %v658
      %v670 = vmul.f32 %v634, %v658
      %v671 = vmul.f32 %v635, %v658
      %v672 = vmul.f32 %v636, %v658
      %v673 = vmul.f32 %v637, %v658
      %v674 = vmul.f32 %v638, %v658
      %v675 = vmul.f32 %v639, %v658
      %v676 = vmul.f32 %v640, %v658
      %v677 = vmul.f32 %v641, %v658
      %v678 = vmul.f32 %v642, %v658
      %v679 = vmul.f32 %v643, %v658
      %v680 = vmul.f32 %v644, %v658
      %v681 = vmul.f32 %v645, %v658
      %v682 = vmul.f32 %v646, %v658
      %v683 = vmul.f32 %v647, %v658
      %v684 = vmul.f32 %v648, %v658
      %v685 = vmul.f32 %v649, %v658
      %v686 = vmul.f32 %v650, %v658
      %v687 = vmul.f32 %v651, %v658
      %v688 = vmul.f32 %v652, %v658
      %v689 = vmul.f32 %v653, %v658
      %v690 = vmul.f32 %v654, %v658
      %v691 = vadd.f32 %v591, %v659
      %v692 = vadd.f32 %v592, %v660
      %v693 = vadd.f32 %v593, %v661
      %v694 = vadd.f32 %v594, %v662
      %v695 = vadd.f32 %v595, %v663
      %v696 = vadd.f32 %v596, %v664
      %v697 = vadd.f32 %v597, %v665
      %v698 = vadd.f32 %v598, %v666
      %v699 = vadd.f32 %v599, %v667
      %v700 = vadd.f32 %v600, %v668
      %v701 = vadd.f32 %v601, %v669
      %v702 = vadd.f32 %v602, %v670
      %v703 = vadd.f32 %v603, %v671
      %v704 = vadd.f32 %v604, %v672
      %v705 = vadd.f32 %v605, %v673
      %v706 = vadd.f32 %v606, %v674
      %v707 = vadd.f32 %v607, %v675
      %v708 = vadd.f32 %v608, %v676
      %v709 = vadd.f32 %v609, %v677
      %v710 = vadd.f32 %v610, %v678
      %v711 = vadd.f32 %v611, %v679
      %v712 = vadd.f32 %v612, %v680
      %v713 = vadd.f32 %v613, %v681
      %v714 = vadd.f32 %v614, %v682
      %v715 = vadd.f32 %v615, %v683
      %v716 = vadd.f32 %v616, %v684
      %v717 = vadd.f32 %v617, %v685
      %v718 = vadd.f32 %v618, %v686
      %v719 = vadd.f32 %v619, %v687
      %v720 = vadd.f32 %v620, %v688
      %v721 = vadd.f32 %v621, %v689
      %v722 = vadd.f32 %v622, %v690
      %v723 = vld [vmem:[#allocation2 + $0x4] sm:$0xff]
      %v724 = vld [vmem:[#allocation2 + $0xc] sm:$0xff]
      %v725 = vld [vmem:[#allocation2 + $0x1c] sm:$0xff]
      %v726 = vld [vmem:[#allocation2 + $0x24] sm:$0xff]
      %v727 = vld [vmem:[#allocation2 + $0x34] sm:$0xff]
      %v728 = vld [vmem:[#allocation2 + $0x3c] sm:$0xff]
      %v729 = vld [vmem:[#allocation2 + $0x4c] sm:$0xff]
      %v730 = vld [vmem:[#allocation2 + $0x54] sm:$0xff]
      %v731 = vld [vmem:[#allocation2 + $0x64] sm:$0xff]
      %v732 = vld [vmem:[#allocation2 + $0x6c] sm:$0xff]
      %v733 = vld [vmem:[#allocation2 + $0x7c] sm:$0xff]
      %v734 = vld [vmem:[#allocation2 + $0x84] sm:$0xff]
      %v735 = vld [vmem:[#allocation2 + $0x94] sm:$0xff]
      %v736 = vld [vmem:[#allocation2 + $0x9c] sm:$0xff]
      %v737 = vld [vmem:[#allocation2 + $0xac] sm:$0xff]
      %v738 = vld [vmem:[#allocation2 + $0xb4] sm:$0xff]
      %v739 = vld [vmem:[#allocation2 + $0xc4] sm:$0xff]
      %v740 = vld [vmem:[#allocation2 + $0xcc] sm:$0xff]
      %v741 = vld [vmem:[#allocation2 + $0xdc] sm:$0xff]
      %v742 = vld [vmem:[#allocation2 + $0xe4] sm:$0xff]
      %v743 = vld [vmem:[#allocation2 + $0xf4] sm:$0xff]
      %v744 = vld [vmem:[#allocation2 + $0xfc] sm:$0xff]
      %v745 = vld [vmem:[#allocation2 + $0x10c] sm:$0xff]
      %v746 = vld [vmem:[#allocation2 + $0x114] sm:$0xff]
      %v747 = vld [vmem:[#allocation2 + $0x124] sm:$0xff]
      %v748 = vld [vmem:[#allocation2 + $0x12c] sm:$0xff]
      %v749 = vld [vmem:[#allocation2 + $0x13c] sm:$0xff]
      %v750 = vld [vmem:[#allocation2 + $0x144] sm:$0xff]
      %v751 = vld [vmem:[#allocation2 + $0x154] sm:$0xff]
      %v752 = vld [vmem:[#allocation2 + $0x15c] sm:$0xff]
      %v753 = vld [vmem:[#allocation2 + $0x16c] sm:$0xff]
      %v754 = vld [vmem:[#allocation2 + $0x174] sm:$0xff]
      %v755 = vlaneseq
      %v756 = vshrl.u32 %v755, 7
      %v757 = vsub.s32 4, %v756
      %v758 = vrot.slane %v319, %v757
      %v759 = vmul.f32 %v723, %v758
      %v760 = vmul.f32 %v724, %v758
      %v761 = vmul.f32 %v725, %v758
      %v762 = vmul.f32 %v726, %v758
      %v763 = vmul.f32 %v727, %v758
      %v764 = vmul.f32 %v728, %v758
      %v765 = vmul.f32 %v729, %v758
      %v766 = vmul.f32 %v730, %v758
      %v767 = vmul.f32 %v731, %v758
      %v768 = vmul.f32 %v732, %v758
      %v769 = vmul.f32 %v733, %v758
      %v770 = vmul.f32 %v734, %v758
      %v771 = vmul.f32 %v735, %v758
      %v772 = vmul.f32 %v736, %v758
      %v773 = vmul.f32 %v737, %v758
      %v774 = vmul.f32 %v738, %v758
      %v775 = vmul.f32 %v739, %v758
      %v776 = vmul.f32 %v740, %v758
      %v777 = vmul.f32 %v741, %v758
      %v778 = vmul.f32 %v742, %v758
      %v779 = vmul.f32 %v743, %v758
      %v780 = vmul.f32 %v744, %v758
      %v781 = vmul.f32 %v745, %v758
      %v782 = vmul.f32 %v746, %v758
      %v783 = vmul.f32 %v747, %v758
      %v784 = vmul.f32 %v748, %v758
      %v785 = vmul.f32 %v749, %v758
      %v786 = vmul.f32 %v750, %v758
      %v787 = vmul.f32 %v751, %v758
      %v788 = vmul.f32 %v752, %v758
      %v789 = vmul.f32 %v753, %v758
      %v790 = vmul.f32 %v754, %v758
      %v791 = vadd.f32 %v691, %v759
      %v792 = vadd.f32 %v692, %v760
      %v793 = vadd.f32 %v693, %v761
      %v794 = vadd.f32 %v694, %v762
      %v795 = vadd.f32 %v695, %v763
      %v796 = vadd.f32 %v696, %v764
      %v797 = vadd.f32 %v697, %v765
      %v798 = vadd.f32 %v698, %v766
      %v799 = vadd.f32 %v699, %v767
      %v800 = vadd.f32 %v700, %v768
      %v801 = vadd.f32 %v701, %v769
      %v802 = vadd.f32 %v702, %v770
      %v803 = vadd.f32 %v703, %v771
      %v804 = vadd.f32 %v704, %v772
      %v805 = vadd.f32 %v705, %v773
      %v806 = vadd.f32 %v706, %v774
      %v807 = vadd.f32 %v707, %v775
      %v808 = vadd.f32 %v708, %v776
      %v809 = vadd.f32 %v709, %v777
      %v810 = vadd.f32 %v710, %v778
      %v811 = vadd.f32 %v711, %v779
      %v812 = vadd.f32 %v712, %v780
      %v813 = vadd.f32 %v713, %v781
      %v814 = vadd.f32 %v714, %v782
      %v815 = vadd.f32 %v715, %v783
      %v816 = vadd.f32 %v716, %v784
      %v817 = vadd.f32 %v717, %v785
      %v818 = vadd.f32 %v718, %v786
      %v819 = vadd.f32 %v719, %v787
      %v820 = vadd.f32 %v720, %v788
      %v821 = vadd.f32 %v721, %v789
      %v822 = vadd.f32 %v722, %v790
      %s823 = scalar_lea.vmem [#allocation2], 24
      %v824 = vld [vmem:[%s823] sm:$0xff]
      %v825 = vld [vmem:[%s823 + $0x8] sm:$0xff]
      %v826 = vld [vmem:[%s823 + $0x18] sm:$0xff]
      %v827 = vld [vmem:[%s823 + $0x20] sm:$0xff]
      %v828 = vld [vmem:[%s823 + $0x30] sm:$0xff]
      %v829 = vld [vmem:[%s823 + $0x38] sm:$0xff]
      %v830 = vld [vmem:[%s823 + $0x48] sm:$0xff]
      %v831 = vld [vmem:[%s823 + $0x50] sm:$0xff]
      %v832 = vld [vmem:[%s823 + $0x60] sm:$0xff]
      %v833 = vld [vmem:[%s823 + $0x68] sm:$0xff]
      %v834 = vld [vmem:[%s823 + $0x78] sm:$0xff]
      %v835 = vld [vmem:[%s823 + $0x80] sm:$0xff]
      %v836 = vld [vmem:[%s823 + $0x90] sm:$0xff]
      %v837 = vld [vmem:[%s823 + $0x98] sm:$0xff]
      %v838 = vld [vmem:[%s823 + $0xa8] sm:$0xff]
      %v839 = vld [vmem:[%s823 + $0xb0] sm:$0xff]
      %v840 = vld [vmem:[%s823 + $0xc0] sm:$0xff]
      %v841 = vld [vmem:[%s823 + $0xc8] sm:$0xff]
      %v842 = vld [vmem:[%s823 + $0xd8] sm:$0xff]
      %v843 = vld [vmem:[%s823 + $0xe0] sm:$0xff]
      %v844 = vld [vmem:[%s823 + $0xf0] sm:$0xff]
      %v845 = vld [vmem:[%s823 + $0xf8] sm:$0xff]
      %v846 = vld [vmem:[%s823 + $0x108] sm:$0xff]
      %v847 = vld [vmem:[%s823 + $0x110] sm:$0xff]
      %v848 = vld [vmem:[%s823 + $0x120] sm:$0xff]
      %v849 = vld [vmem:[%s823 + $0x128] sm:$0xff]
      %v850 = vld [vmem:[%s823 + $0x138] sm:$0xff]
      %v851 = vld [vmem:[%s823 + $0x140] sm:$0xff]
      %v852 = vld [vmem:[%s823 + $0x150] sm:$0xff]
      %v853 = vld [vmem:[%s823 + $0x158] sm:$0xff]
      %v854 = vld [vmem:[%s823 + $0x168] sm:$0xff]
      %v855 = vld [vmem:[%s823 + $0x170] sm:$0xff]
      %v856 = vlaneseq
      %v857 = vshrl.u32 %v856, 7
      %v858 = vsub.s32 5, %v857
      %v859 = vrot.slane %v319, %v858
      %v860 = vmul.f32 %v824, %v859
      %v861 = vmul.f32 %v825, %v859
      %v862 = vmul.f32 %v826, %v859
      %v863 = vmul.f32 %v827, %v859
      %v864 = vmul.f32 %v828, %v859
      %v865 = vmul.f32 %v829, %v859
      %v866 = vmul.f32 %v830, %v859
      %v867 = vmul.f32 %v831, %v859
      %v868 = vmul.f32 %v832, %v859
      %v869 = vmul.f32 %v833, %v859
      %v870 = vmul.f32 %v834, %v859
      %v871 = vmul.f32 %v835, %v859
      %v872 = vmul.f32 %v836, %v859
      %v873 = vmul.f32 %v837, %v859
      %v874 = vmul.f32 %v838, %v859
      %v875 = vmul.f32 %v839, %v859
      %v876 = vmul.f32 %v840, %v859
      %v877 = vmul.f32 %v841, %v859
      %v878 = vmul.f32 %v842, %v859
      %v879 = vmul.f32 %v843, %v859
      %v880 = vmul.f32 %v844, %v859
      %v881 = vmul.f32 %v845, %v859
      %v882 = vmul.f32 %v846, %v859
      %v883 = vmul.f32 %v847, %v859
      %v884 = vmul.f32 %v848, %v859
      %v885 = vmul.f32 %v849, %v859
      %v886 = vmul.f32 %v850, %v859
      %v887 = vmul.f32 %v851, %v859
      %v888 = vmul.f32 %v852, %v859
      %v889 = vmul.f32 %v853, %v859
      %v890 = vmul.f32 %v854, %v859
      %v891 = vmul.f32 %v855, %v859
      %v892 = vadd.f32 %v791, %v860
      %v893 = vadd.f32 %v792, %v861
      %v894 = vadd.f32 %v793, %v862
      %v895 = vadd.f32 %v794, %v863
      %v896 = vadd.f32 %v795, %v864
      %v897 = vadd.f32 %v796, %v865
      %v898 = vadd.f32 %v797, %v866
      %v899 = vadd.f32 %v798, %v867
      %v900 = vadd.f32 %v799, %v868
      %v901 = vadd.f32 %v800, %v869
      %v902 = vadd.f32 %v801, %v870
      %v903 = vadd.f32 %v802, %v871
      %v904 = vadd.f32 %v803, %v872
      %v905 = vadd.f32 %v804, %v873
      %v906 = vadd.f32 %v805, %v874
      %v907 = vadd.f32 %v806, %v875
      %v908 = vadd.f32 %v807, %v876
      %v909 = vadd.f32 %v808, %v877
      %v910 = vadd.f32 %v809, %v878
      %v911 = vadd.f32 %v810, %v879
      %v912 = vadd.f32 %v811, %v880
      %v913 = vadd.f32 %v812, %v881
      %v914 = vadd.f32 %v813, %v882
      %v915 = vadd.f32 %v814, %v883
      %v916 = vadd.f32 %v815, %v884
      %v917 = vadd.f32 %v816, %v885
      %v918 = vadd.f32 %v817, %v886
      %v919 = vadd.f32 %v818, %v887
      %v920 = vadd.f32 %v819, %v888
      %v921 = vadd.f32 %v820, %v889
      %v922 = vadd.f32 %v821, %v890
      %v923 = vadd.f32 %v822, %v891
      %v924 = vld [vmem:[%s823 + $0x1] sm:$0xff]
      %v925 = vld [vmem:[%s823 + $0x9] sm:$0xff]
      %v926 = vld [vmem:[%s823 + $0x19] sm:$0xff]
      %v927 = vld [vmem:[%s823 + $0x21] sm:$0xff]
      %v928 = vld [vmem:[%s823 + $0x31] sm:$0xff]
      %v929 = vld [vmem:[%s823 + $0x39] sm:$0xff]
      %v930 = vld [vmem:[%s823 + $0x49] sm:$0xff]
      %v931 = vld [vmem:[%s823 + $0x51] sm:$0xff]
      %v932 = vld [vmem:[%s823 + $0x61] sm:$0xff]
      %v933 = vld [vmem:[%s823 + $0x69] sm:$0xff]
      %v934 = vld [vmem:[%s823 + $0x79] sm:$0xff]
      %v935 = vld [vmem:[%s823 + $0x81] sm:$0xff]
      %v936 = vld [vmem:[%s823 + $0x91] sm:$0xff]
      %v937 = vld [vmem:[%s823 + $0x99] sm:$0xff]
      %v938 = vld [vmem:[%s823 + $0xa9] sm:$0xff]
      %v939 = vld [vmem:[%s823 + $0xb1] sm:$0xff]
      %v940 = vld [vmem:[%s823 + $0xc1] sm:$0xff]
      %v941 = vld [vmem:[%s823 + $0xc9] sm:$0xff]
      %v942 = vld [vmem:[%s823 + $0xd9] sm:$0xff]
      %v943 = vld [vmem:[%s823 + $0xe1] sm:$0xff]
      %v944 = vld [vmem:[%s823 + $0xf1] sm:$0xff]
      %v945 = vld [vmem:[%s823 + $0xf9] sm:$0xff]
      %v946 = vld [vmem:[%s823 + $0x109] sm:$0xff]
      %v947 = vld [vmem:[%s823 + $0x111] sm:$0xff]
      %v948 = vld [vmem:[%s823 + $0x121] sm:$0xff]
      %v949 = vld [vmem:[%s823 + $0x129] sm:$0xff]
      %v950 = vld [vmem:[%s823 + $0x139] sm:$0xff]
      %v951 = vld [vmem:[%s823 + $0x141] sm:$0xff]
      %v952 = vld [vmem:[%s823 + $0x151] sm:$0xff]
      %v953 = vld [vmem:[%s823 + $0x159] sm:$0xff]
      %v954 = vld [vmem:[%s823 + $0x169] sm:$0xff]
      %v955 = vld [vmem:[%s823 + $0x171] sm:$0xff]
      %v956 = vlaneseq
      %v957 = vshrl.u32 %v956, 7
      %v958 = vsub.s32 6, %v957
      %v959 = vrot.slane %v319, %v958
      %v960 = vmul.f32 %v924, %v959
      %v961 = vmul.f32 %v925, %v959
      %v962 = vmul.f32 %v926, %v959
      %v963 = vmul.f32 %v927, %v959
      %v964 = vmul.f32 %v928, %v959
      %v965 = vmul.f32 %v929, %v959
      %v966 = vmul.f32 %v930, %v959
      %v967 = vmul.f32 %v931, %v959
      %v968 = vmul.f32 %v932, %v959
      %v969 = vmul.f32 %v933, %v959
      %v970 = vmul.f32 %v934, %v959
      %v971 = vmul.f32 %v935, %v959
      %v972 = vmul.f32 %v936, %v959
      %v973 = vmul.f32 %v937, %v959
      %v974 = vmul.f32 %v938, %v959
      %v975 = vmul.f32 %v939, %v959
      %v976 = vmul.f32 %v940, %v959
      %v977 = vmul.f32 %v941, %v959
      %v978 = vmul.f32 %v942, %v959
      %v979 = vmul.f32 %v943, %v959
      %v980 = vmul.f32 %v944, %v959
      %v981 = vmul.f32 %v945, %v959
      %v982 = vmul.f32 %v946, %v959
      %v983 = vmul.f32 %v947, %v959
      %v984 = vmul.f32 %v948, %v959
      %v985 = vmul.f32 %v949, %v959
      %v986 = vmul.f32 %v950, %v959
      %v987 = vmul.f32 %v951, %v959
      %v988 = vmul.f32 %v952, %v959
      %v989 = vmul.f32 %v953, %v959
      %v990 = vmul.f32 %v954, %v959
      %v991 = vmul.f32 %v955, %v959
      %v992 = vadd.f32 %v892, %v960
      %v993 = vadd.f32 %v893, %v961
      %v994 = vadd.f32 %v894, %v962
      %v995 = vadd.f32 %v895, %v963
      %v996 = vadd.f32 %v896, %v964
      %v997 = vadd.f32 %v897, %v965
      %v998 = vadd.f32 %v898, %v966
      %v999 = vadd.f32 %v899, %v967
      %v1000 = vadd.f32 %v900, %v968
      %v1001 = vadd.f32 %v901, %v969
      %v1002 = vadd.f32 %v902, %v970
      %v1003 = vadd.f32 %v903, %v971
      %v1004 = vadd.f32 %v904, %v972
      %v1005 = vadd.f32 %v905, %v973
      %v1006 = vadd.f32 %v906, %v974
      %v1007 = vadd.f32 %v907, %v975
      %v1008 = vadd.f32 %v908, %v976
      %v1009 = vadd.f32 %v909, %v977
      %v1010 = vadd.f32 %v910, %v978
      %v1011 = vadd.f32 %v911, %v979
      %v1012 = vadd.f32 %v912, %v980
      %v1013 = vadd.f32 %v913, %v981
      %v1014 = vadd.f32 %v914, %v982
      %v1015 = vadd.f32 %v915, %v983
      %v1016 = vadd.f32 %v916, %v984
      %v1017 = vadd.f32 %v917, %v985
      %v1018 = vadd.f32 %v918, %v986
      %v1019 = vadd.f32 %v919, %v987
      %v1020 = vadd.f32 %v920, %v988
      %v1021 = vadd.f32 %v921, %v989
      %v1022 = vadd.f32 %v922, %v990
      %v1023 = vadd.f32 %v923, %v991
      %v1024 = vld [vmem:[%s823 + $0x2] sm:$0xff]
      %v1025 = vld [vmem:[%s823 + $0xa] sm:$0xff]
      %v1026 = vld [vmem:[%s823 + $0x1a] sm:$0xff]
      %v1027 = vld [vmem:[%s823 + $0x22] sm:$0xff]
      %v1028 = vld [vmem:[%s823 + $0x32] sm:$0xff]
      %v1029 = vld [vmem:[%s823 + $0x3a] sm:$0xff]
      %v1030 = vld [vmem:[%s823 + $0x4a] sm:$0xff]
      %v1031 = vld [vmem:[%s823 + $0x52] sm:$0xff]
      %v1032 = vld [vmem:[%s823 + $0x62] sm:$0xff]
      %v1033 = vld [vmem:[%s823 + $0x6a] sm:$0xff]
      %v1034 = vld [vmem:[%s823 + $0x7a] sm:$0xff]
      %v1035 = vld [vmem:[%s823 + $0x82] sm:$0xff]
      %v1036 = vld [vmem:[%s823 + $0x92] sm:$0xff]
      %v1037 = vld [vmem:[%s823 + $0x9a] sm:$0xff]
      %v1038 = vld [vmem:[%s823 + $0xaa] sm:$0xff]
      %v1039 = vld [vmem:[%s823 + $0xb2] sm:$0xff]
      %v1040 = vld [vmem:[%s823 + $0xc2] sm:$0xff]
      %v1041 = vld [vmem:[%s823 + $0xca] sm:$0xff]
      %v1042 = vld [vmem:[%s823 + $0xda] sm:$0xff]
      %v1043 = vld [vmem:[%s823 + $0xe2] sm:$0xff]
      %v1044 = vld [vmem:[%s823 + $0xf2] sm:$0xff]
      %v1045 = vld [vmem:[%s823 + $0xfa] sm:$0xff]
      %v1046 = vld [vmem:[%s823 + $0x10a] sm:$0xff]
      %v1047 = vld [vmem:[%s823 + $0x112] sm:$0xff]
      %v1048 = vld [vmem:[%s823 + $0x122] sm:$0xff]
      %v1049 = vld [vmem:[%s823 + $0x12a] sm:$0xff]
      %v1050 = vld [vmem:[%s823 + $0x13a] sm:$0xff]
      %v1051 = vld [vmem:[%s823 + $0x142] sm:$0xff]
      %v1052 = vld [vmem:[%s823 + $0x152] sm:$0xff]
      %v1053 = vld [vmem:[%s823 + $0x15a] sm:$0xff]
      %v1054 = vld [vmem:[%s823 + $0x16a] sm:$0xff]
      %v1055 = vld [vmem:[%s823 + $0x172] sm:$0xff]
      %v1056 = vlaneseq
      %v1057 = vshrl.u32 %v1056, 7
      %v1058 = vsub.s32 7, %v1057
      %v1059 = vrot.slane %v319, %v1058
      %v1060 = vmul.f32 %v1024, %v1059
      %v1061 = vmul.f32 %v1025, %v1059
      %v1062 = vmul.f32 %v1026, %v1059
      %v1063 = vmul.f32 %v1027, %v1059
      %v1064 = vmul.f32 %v1028, %v1059
      %v1065 = vmul.f32 %v1029, %v1059
      %v1066 = vmul.f32 %v1030, %v1059
      %v1067 = vmul.f32 %v1031, %v1059
      %v1068 = vmul.f32 %v1032, %v1059
      %v1069 = vmul.f32 %v1033, %v1059
      %v1070 = vmul.f32 %v1034, %v1059
      %v1071 = vmul.f32 %v1035, %v1059
      %v1072 = vmul.f32 %v1036, %v1059
      %v1073 = vmul.f32 %v1037, %v1059
      %v1074 = vmul.f32 %v1038, %v1059
      %v1075 = vmul.f32 %v1039, %v1059
      %v1076 = vmul.f32 %v1040, %v1059
      %v1077 = vmul.f32 %v1041, %v1059
      %v1078 = vmul.f32 %v1042, %v1059
      %v1079 = vmul.f32 %v1043, %v1059
      %v1080 = vmul.f32 %v1044, %v1059
      %v1081 = vmul.f32 %v1045, %v1059
      %v1082 = vmul.f32 %v1046, %v1059
      %v1083 = vmul.f32 %v1047, %v1059
      %v1084 = vmul.f32 %v1048, %v1059
      %v1085 = vmul.f32 %v1049, %v1059
      %v1086 = vmul.f32 %v1050, %v1059
      %v1087 = vmul.f32 %v1051, %v1059
      %v1088 = vmul.f32 %v1052, %v1059
      %v1089 = vmul.f32 %v1053, %v1059
      %v1090 = vmul.f32 %v1054, %v1059
      %v1091 = vmul.f32 %v1055, %v1059
      %v1092 = vadd.f32 %v992, %v1060
      %v1093 = vadd.f32 %v993, %v1061
      %v1094 = vadd.f32 %v994, %v1062
      %v1095 = vadd.f32 %v995, %v1063
      %v1096 = vadd.f32 %v996, %v1064
      %v1097 = vadd.f32 %v997, %v1065
      %v1098 = vadd.f32 %v998, %v1066
      %v1099 = vadd.f32 %v999, %v1067
      %v1100 = vadd.f32 %v1000, %v1068
      %v1101 = vadd.f32 %v1001, %v1069
      %v1102 = vadd.f32 %v1002, %v1070
      %v1103 = vadd.f32 %v1003, %v1071
      %v1104 = vadd.f32 %v1004, %v1072
      %v1105 = vadd.f32 %v1005, %v1073
      %v1106 = vadd.f32 %v1006, %v1074
      %v1107 = vadd.f32 %v1007, %v1075
      %v1108 = vadd.f32 %v1008, %v1076
      %v1109 = vadd.f32 %v1009, %v1077
      %v1110 = vadd.f32 %v1010, %v1078
      %v1111 = vadd.f32 %v1011, %v1079
      %v1112 = vadd.f32 %v1012, %v1080
      %v1113 = vadd.f32 %v1013, %v1081
      %v1114 = vadd.f32 %v1014, %v1082
      %v1115 = vadd.f32 %v1015, %v1083
      %v1116 = vadd.f32 %v1016, %v1084
      %v1117 = vadd.f32 %v1017, %v1085
      %v1118 = vadd.f32 %v1018, %v1086
      %v1119 = vadd.f32 %v1019, %v1087
      %v1120 = vadd.f32 %v1020, %v1088
      %v1121 = vadd.f32 %v1021, %v1089
      %v1122 = vadd.f32 %v1022, %v1090
      %v1123 = vadd.f32 %v1023, %v1091
      %v1124 = vld [vmem:[%s823 + $0x3] sm:$0xff]
      %v1125 = vld [vmem:[%s823 + $0xb] sm:$0xff]
      %v1126 = vld [vmem:[%s823 + $0x1b] sm:$0xff]
      %v1127 = vld [vmem:[%s823 + $0x23] sm:$0xff]
      %v1128 = vld [vmem:[%s823 + $0x33] sm:$0xff]
      %v1129 = vld [vmem:[%s823 + $0x3b] sm:$0xff]
      %v1130 = vld [vmem:[%s823 + $0x4b] sm:$0xff]
      %v1131 = vld [vmem:[%s823 + $0x53] sm:$0xff]
      %v1132 = vld [vmem:[%s823 + $0x63] sm:$0xff]
      %v1133 = vld [vmem:[%s823 + $0x6b] sm:$0xff]
      %v1134 = vld [vmem:[%s823 + $0x7b] sm:$0xff]
      %v1135 = vld [vmem:[%s823 + $0x83] sm:$0xff]
      %v1136 = vld [vmem:[%s823 + $0x93] sm:$0xff]
      %v1137 = vld [vmem:[%s823 + $0x9b] sm:$0xff]
      %v1138 = vld [vmem:[%s823 + $0xab] sm:$0xff]
      %v1139 = vld [vmem:[%s823 + $0xb3] sm:$0xff]
      %v1140 = vld [vmem:[%s823 + $0xc3] sm:$0xff]
      %v1141 = vld [vmem:[%s823 + $0xcb] sm:$0xff]
      %v1142 = vld [vmem:[%s823 + $0xdb] sm:$0xff]
      %v1143 = vld [vmem:[%s823 + $0xe3] sm:$0xff]
      %v1144 = vld [vmem:[%s823 + $0xf3] sm:$0xff]
      %v1145 = vld [vmem:[%s823 + $0xfb] sm:$0xff]
      %v1146 = vld [vmem:[%s823 + $0x10b] sm:$0xff]
      %v1147 = vld [vmem:[%s823 + $0x113] sm:$0xff]
      %v1148 = vld [vmem:[%s823 + $0x123] sm:$0xff]
      %v1149 = vld [vmem:[%s823 + $0x12b] sm:$0xff]
      %v1150 = vld [vmem:[%s823 + $0x13b] sm:$0xff]
      %v1151 = vld [vmem:[%s823 + $0x143] sm:$0xff]
      %v1152 = vld [vmem:[%s823 + $0x153] sm:$0xff]
      %v1153 = vld [vmem:[%s823 + $0x15b] sm:$0xff]
      %v1154 = vld [vmem:[%s823 + $0x16b] sm:$0xff]
      %v1155 = vld [vmem:[%s823 + $0x173] sm:$0xff]
      %v1156 = vlaneseq
      %v1157 = vshrl.u32 %v1156, 7
      %v1158 = vsub.s32 0, %v1157
      %v1159 = vrot.slane %v320, %v1158
      %v1160 = vmul.f32 %v1124, %v1159
      %v1161 = vmul.f32 %v1125, %v1159
      %v1162 = vmul.f32 %v1126, %v1159
      %v1163 = vmul.f32 %v1127, %v1159
      %v1164 = vmul.f32 %v1128, %v1159
      %v1165 = vmul.f32 %v1129, %v1159
      %v1166 = vmul.f32 %v1130, %v1159
      %v1167 = vmul.f32 %v1131, %v1159
      %v1168 = vmul.f32 %v1132, %v1159
      %v1169 = vmul.f32 %v1133, %v1159
      %v1170 = vmul.f32 %v1134, %v1159
      %v1171 = vmul.f32 %v1135, %v1159
      %v1172 = vmul.f32 %v1136, %v1159
      %v1173 = vmul.f32 %v1137, %v1159
      %v1174 = vmul.f32 %v1138, %v1159
      %v1175 = vmul.f32 %v1139, %v1159
      %v1176 = vmul.f32 %v1140, %v1159
      %v1177 = vmul.f32 %v1141, %v1159
      %v1178 = vmul.f32 %v1142, %v1159
      %v1179 = vmul.f32 %v1143, %v1159
      %v1180 = vmul.f32 %v1144, %v1159
      %v1181 = vmul.f32 %v1145, %v1159
      %v1182 = vmul.f32 %v1146, %v1159
      %v1183 = vmul.f32 %v1147, %v1159
      %v1184 = vmul.f32 %v1148, %v1159
      %v1185 = vmul.f32 %v1149, %v1159
      %v1186 = vmul.f32 %v1150, %v1159
      %v1187 = vmul.f32 %v1151, %v1159
      %v1188 = vmul.f32 %v1152, %v1159
      %v1189 = vmul.f32 %v1153, %v1159
      %v1190 = vmul.f32 %v1154, %v1159
      %v1191 = vmul.f32 %v1155, %v1159
      %v1192 = vadd.f32 %v1092, %v1160
      %v1193 = vadd.f32 %v1093, %v1161
      %v1194 = vadd.f32 %v1094, %v1162
      %v1195 = vadd.f32 %v1095, %v1163
      %v1196 = vadd.f32 %v1096, %v1164
      %v1197 = vadd.f32 %v1097, %v1165
      %v1198 = vadd.f32 %v1098, %v1166
      %v1199 = vadd.f32 %v1099, %v1167
      %v1200 = vadd.f32 %v1100, %v1168
      %v1201 = vadd.f32 %v1101, %v1169
      %v1202 = vadd.f32 %v1102, %v1170
      %v1203 = vadd.f32 %v1103, %v1171
      %v1204 = vadd.f32 %v1104, %v1172
      %v1205 = vadd.f32 %v1105, %v1173
      %v1206 = vadd.f32 %v1106, %v1174
      %v1207 = vadd.f32 %v1107, %v1175
      %v1208 = vadd.f32 %v1108, %v1176
      %v1209 = vadd.f32 %v1109, %v1177
      %v1210 = vadd.f32 %v1110, %v1178
      %v1211 = vadd.f32 %v1111, %v1179
      %v1212 = vadd.f32 %v1112, %v1180
      %v1213 = vadd.f32 %v1113, %v1181
      %v1214 = vadd.f32 %v1114, %v1182
      %v1215 = vadd.f32 %v1115, %v1183
      %v1216 = vadd.f32 %v1116, %v1184
      %v1217 = vadd.f32 %v1117, %v1185
      %v1218 = vadd.f32 %v1118, %v1186
      %v1219 = vadd.f32 %v1119, %v1187
      %v1220 = vadd.f32 %v1120, %v1188
      %v1221 = vadd.f32 %v1121, %v1189
      %v1222 = vadd.f32 %v1122, %v1190
      %v1223 = vadd.f32 %v1123, %v1191
      %v1224 = vld [vmem:[%s823 + $0x4] sm:$0xff]
      %v1225 = vld [vmem:[%s823 + $0xc] sm:$0xff]
      %v1226 = vld [vmem:[%s823 + $0x1c] sm:$0xff]
      %v1227 = vld [vmem:[%s823 + $0x24] sm:$0xff]
      %v1228 = vld [vmem:[%s823 + $0x34] sm:$0xff]
      %v1229 = vld [vmem:[%s823 + $0x3c] sm:$0xff]
      %v1230 = vld [vmem:[%s823 + $0x4c] sm:$0xff]
      %v1231 = vld [vmem:[%s823 + $0x54] sm:$0xff]
      %v1232 = vld [vmem:[%s823 + $0x64] sm:$0xff]
      %v1233 = vld [vmem:[%s823 + $0x6c] sm:$0xff]
      %v1234 = vld [vmem:[%s823 + $0x7c] sm:$0xff]
      %v1235 = vld [vmem:[%s823 + $0x84] sm:$0xff]
      %v1236 = vld [vmem:[%s823 + $0x94] sm:$0xff]
      %v1237 = vld [vmem:[%s823 + $0x9c] sm:$0xff]
      %v1238 = vld [vmem:[%s823 + $0xac] sm:$0xff]
      %v1239 = vld [vmem:[%s823 + $0xb4] sm:$0xff]
      %v1240 = vld [vmem:[%s823 + $0xc4] sm:$0xff]
      %v1241 = vld [vmem:[%s823 + $0xcc] sm:$0xff]
      %v1242 = vld [vmem:[%s823 + $0xdc] sm:$0xff]
      %v1243 = vld [vmem:[%s823 + $0xe4] sm:$0xff]
      %v1244 = vld [vmem:[%s823 + $0xf4] sm:$0xff]
      %v1245 = vld [vmem:[%s823 + $0xfc] sm:$0xff]
      %v1246 = vld [vmem:[%s823 + $0x10c] sm:$0xff]
      %v1247 = vld [vmem:[%s823 + $0x114] sm:$0xff]
      %v1248 = vld [vmem:[%s823 + $0x124] sm:$0xff]
      %v1249 = vld [vmem:[%s823 + $0x12c] sm:$0xff]
      %v1250 = vld [vmem:[%s823 + $0x13c] sm:$0xff]
      %v1251 = vld [vmem:[%s823 + $0x144] sm:$0xff]
      %v1252 = vld [vmem:[%s823 + $0x154] sm:$0xff]
      %v1253 = vld [vmem:[%s823 + $0x15c] sm:$0xff]
      %v1254 = vld [vmem:[%s823 + $0x16c] sm:$0xff]
      %v1255 = vld [vmem:[%s823 + $0x174] sm:$0xff]
      %v1256 = vlaneseq
      %v1257 = vshrl.u32 %v1256, 7
      %v1258 = vsub.s32 1, %v1257
      %v1259 = vrot.slane %v320, %v1258
      %v1260 = vmul.f32 %v1224, %v1259
      %v1261 = vmul.f32 %v1225, %v1259
      %v1262 = vmul.f32 %v1226, %v1259
      %v1263 = vmul.f32 %v1227, %v1259
      %v1264 = vmul.f32 %v1228, %v1259
      %v1265 = vmul.f32 %v1229, %v1259
      %v1266 = vmul.f32 %v1230, %v1259
      %v1267 = vmul.f32 %v1231, %v1259
      %v1268 = vmul.f32 %v1232, %v1259
      %v1269 = vmul.f32 %v1233, %v1259
      %v1270 = vmul.f32 %v1234, %v1259
      %v1271 = vmul.f32 %v1235, %v1259
      %v1272 = vmul.f32 %v1236, %v1259
      %v1273 = vmul.f32 %v1237, %v1259
      %v1274 = vmul.f32 %v1238, %v1259
      %v1275 = vmul.f32 %v1239, %v1259
      %v1276 = vmul.f32 %v1240, %v1259
      %v1277 = vmul.f32 %v1241, %v1259
      %v1278 = vmul.f32 %v1242, %v1259
      %v1279 = vmul.f32 %v1243, %v1259
      %v1280 = vmul.f32 %v1244, %v1259
      %v1281 = vmul.f32 %v1245, %v1259
      %v1282 = vmul.f32 %v1246, %v1259
      %v1283 = vmul.f32 %v1247, %v1259
      %v1284 = vmul.f32 %v1248, %v1259
      %v1285 = vmul.f32 %v1249, %v1259
      %v1286 = vmul.f32 %v1250, %v1259
      %v1287 = vmul.f32 %v1251, %v1259
      %v1288 = vmul.f32 %v1252, %v1259
      %v1289 = vmul.f32 %v1253, %v1259
      %v1290 = vmul.f32 %v1254, %v1259
      %v1291 = vmul.f32 %v1255, %v1259
      %v1292 = vadd.f32 %v1192, %v1260
      %v1293 = vadd.f32 %v1193, %v1261
      %v1294 = vadd.f32 %v1194, %v1262
      %v1295 = vadd.f32 %v1195, %v1263
      %v1296 = vadd.f32 %v1196, %v1264
      %v1297 = vadd.f32 %v1197, %v1265
      %v1298 = vadd.f32 %v1198, %v1266
      %v1299 = vadd.f32 %v1199, %v1267
      %v1300 = vadd.f32 %v1200, %v1268
      %v1301 = vadd.f32 %v1201, %v1269
      %v1302 = vadd.f32 %v1202, %v1270
      %v1303 = vadd.f32 %v1203, %v1271
      %v1304 = vadd.f32 %v1204, %v1272
      %v1305 = vadd.f32 %v1205, %v1273
      %v1306 = vadd.f32 %v1206, %v1274
      %v1307 = vadd.f32 %v1207, %v1275
      %v1308 = vadd.f32 %v1208, %v1276
      %v1309 = vadd.f32 %v1209, %v1277
      %v1310 = vadd.f32 %v1210, %v1278
      %v1311 = vadd.f32 %v1211, %v1279
      %v1312 = vadd.f32 %v1212, %v1280
      %v1313 = vadd.f32 %v1213, %v1281
      %v1314 = vadd.f32 %v1214, %v1282
      %v1315 = vadd.f32 %v1215, %v1283
      %v1316 = vadd.f32 %v1216, %v1284
      %v1317 = vadd.f32 %v1217, %v1285
      %v1318 = vadd.f32 %v1218, %v1286
      %v1319 = vadd.f32 %v1219, %v1287
      %v1320 = vadd.f32 %v1220, %v1288
      %v1321 = vadd.f32 %v1221, %v1289
      %v1322 = vadd.f32 %v1222, %v1290
      %v1323 = vadd.f32 %v1223, %v1291
      %v1324 = vld [vmem:[%s286] sm:$0xff]
      %v1325 = vld [vmem:[%s286 + $0x8] sm:$0xff]
      %v1326 = vld [vmem:[%s286 + $0x18] sm:$0xff]
      %v1327 = vld [vmem:[%s286 + $0x20] sm:$0xff]
      %v1328 = vld [vmem:[%s286 + $0x30] sm:$0xff]
      %v1329 = vld [vmem:[%s286 + $0x38] sm:$0xff]
      %v1330 = vld [vmem:[%s286 + $0x48] sm:$0xff]
      %v1331 = vld [vmem:[%s286 + $0x50] sm:$0xff]
      %v1332 = vld [vmem:[%s286 + $0x60] sm:$0xff]
      %v1333 = vld [vmem:[%s286 + $0x68] sm:$0xff]
      %v1334 = vld [vmem:[%s286 + $0x78] sm:$0xff]
      %v1335 = vld [vmem:[%s286 + $0x80] sm:$0xff]
      %v1336 = vld [vmem:[%s286 + $0x90] sm:$0xff]
      %v1337 = vld [vmem:[%s286 + $0x98] sm:$0xff]
      %v1338 = vld [vmem:[%s286 + $0xa8] sm:$0xff]
      %v1339 = vld [vmem:[%s286 + $0xb0] sm:$0xff]
      %v1340 = vld [vmem:[%s286 + $0xc0] sm:$0xff]
      %v1341 = vld [vmem:[%s286 + $0xc8] sm:$0xff]
      %v1342 = vld [vmem:[%s286 + $0xd8] sm:$0xff]
      %v1343 = vld [vmem:[%s286 + $0xe0] sm:$0xff]
      %v1344 = vld [vmem:[%s286 + $0xf0] sm:$0xff]
      %v1345 = vld [vmem:[%s286 + $0xf8] sm:$0xff]
      %v1346 = vld [vmem:[%s286 + $0x108] sm:$0xff]
      %v1347 = vld [vmem:[%s286 + $0x110] sm:$0xff]
      %v1348 = vld [vmem:[%s286 + $0x120] sm:$0xff]
      %v1349 = vld [vmem:[%s286 + $0x128] sm:$0xff]
      %v1350 = vld [vmem:[%s286 + $0x138] sm:$0xff]
      %v1351 = vld [vmem:[%s286 + $0x140] sm:$0xff]
      %v1352 = vld [vmem:[%s286 + $0x150] sm:$0xff]
      %v1353 = vld [vmem:[%s286 + $0x158] sm:$0xff]
      %v1354 = vld [vmem:[%s286 + $0x168] sm:$0xff]
      %v1355 = vld [vmem:[%s286 + $0x170] sm:$0xff]
      %v1356 = vlaneseq
      %v1357 = vshrl.u32 %v1356, 7
      %v1358 = vsub.s32 2, %v1357
      %v1359 = vrot.slane %v320, %v1358
      %v1360 = vmul.f32 %v1324, %v1359
      %v1361 = vmul.f32 %v1325, %v1359
      %v1362 = vmul.f32 %v1326, %v1359
      %v1363 = vmul.f32 %v1327, %v1359
      %v1364 = vmul.f32 %v1328, %v1359
      %v1365 = vmul.f32 %v1329, %v1359
      %v1366 = vmul.f32 %v1330, %v1359
      %v1367 = vmul.f32 %v1331, %v1359
      %v1368 = vmul.f32 %v1332, %v1359
      %v1369 = vmul.f32 %v1333, %v1359
      %v1370 = vmul.f32 %v1334, %v1359
      %v1371 = vmul.f32 %v1335, %v1359
      %v1372 = vmul.f32 %v1336, %v1359
      %v1373 = vmul.f32 %v1337, %v1359
      %v1374 = vmul.f32 %v1338, %v1359
      %v1375 = vmul.f32 %v1339, %v1359
      %v1376 = vmul.f32 %v1340, %v1359
      %v1377 = vmul.f32 %v1341, %v1359
      %v1378 = vmul.f32 %v1342, %v1359
      %v1379 = vmul.f32 %v1343, %v1359
      %v1380 = vmul.f32 %v1344, %v1359
      %v1381 = vmul.f32 %v1345, %v1359
      %v1382 = vmul.f32 %v1346, %v1359
      %v1383 = vmul.f32 %v1347, %v1359
      %v1384 = vmul.f32 %v1348, %v1359
      %v1385 = vmul.f32 %v1349, %v1359
      %v1386 = vmul.f32 %v1350, %v1359
      %v1387 = vmul.f32 %v1351, %v1359
      %v1388 = vmul.f32 %v1352, %v1359
      %v1389 = vmul.f32 %v1353, %v1359
      %v1390 = vmul.f32 %v1354, %v1359
      %v1391 = vmul.f32 %v1355, %v1359
      %v1392 = vadd.f32 %v1292, %v1360
      %v1393 = vadd.f32 %v1293, %v1361
      %v1394 = vadd.f32 %v1294, %v1362
      %v1395 = vadd.f32 %v1295, %v1363
      %v1396 = vadd.f32 %v1296, %v1364
      %v1397 = vadd.f32 %v1297, %v1365
      %v1398 = vadd.f32 %v1298, %v1366
      %v1399 = vadd.f32 %v1299, %v1367
      %v1400 = vadd.f32 %v1300, %v1368
      %v1401 = vadd.f32 %v1301, %v1369
      %v1402 = vadd.f32 %v1302, %v1370
      %v1403 = vadd.f32 %v1303, %v1371
      %v1404 = vadd.f32 %v1304, %v1372
      %v1405 = vadd.f32 %v1305, %v1373
      %v1406 = vadd.f32 %v1306, %v1374
      %v1407 = vadd.f32 %v1307, %v1375
      %v1408 = vadd.f32 %v1308, %v1376
      %v1409 = vadd.f32 %v1309, %v1377
      %v1410 = vadd.f32 %v1310, %v1378
      %v1411 = vadd.f32 %v1311, %v1379
      %v1412 = vadd.f32 %v1312, %v1380
      %v1413 = vadd.f32 %v1313, %v1381
      %v1414 = vadd.f32 %v1314, %v1382
      %v1415 = vadd.f32 %v1315, %v1383
      %v1416 = vadd.f32 %v1316, %v1384
      %v1417 = vadd.f32 %v1317, %v1385
      %v1418 = vadd.f32 %v1318, %v1386
      %v1419 = vadd.f32 %v1319, %v1387
      %v1420 = vadd.f32 %v1320, %v1388
      %v1421 = vadd.f32 %v1321, %v1389
      %v1422 = vadd.f32 %v1322, %v1390
      %v1423 = vadd.f32 %v1323, %v1391
      %v1424 = vld [vmem:[%s286 + $0x1] sm:$0xff]
      %v1425 = vld [vmem:[%s286 + $0x9] sm:$0xff]
      %v1426 = vld [vmem:[%s286 + $0x19] sm:$0xff]
      %v1427 = vld [vmem:[%s286 + $0x21] sm:$0xff]
      %v1428 = vld [vmem:[%s286 + $0x31] sm:$0xff]
      %v1429 = vld [vmem:[%s286 + $0x39] sm:$0xff]
      %v1430 = vld [vmem:[%s286 + $0x49] sm:$0xff]
      %v1431 = vld [vmem:[%s286 + $0x51] sm:$0xff]
      %v1432 = vld [vmem:[%s286 + $0x61] sm:$0xff]
      %v1433 = vld [vmem:[%s286 + $0x69] sm:$0xff]
      %v1434 = vld [vmem:[%s286 + $0x79] sm:$0xff]
      %v1435 = vld [vmem:[%s286 + $0x81] sm:$0xff]
      %v1436 = vld [vmem:[%s286 + $0x91] sm:$0xff]
      %v1437 = vld [vmem:[%s286 + $0x99] sm:$0xff]
      %v1438 = vld [vmem:[%s286 + $0xa9] sm:$0xff]
      %v1439 = vld [vmem:[%s286 + $0xb1] sm:$0xff]
      %v1440 = vld [vmem:[%s286 + $0xc1] sm:$0xff]
      %v1441 = vld [vmem:[%s286 + $0xc9] sm:$0xff]
      %v1442 = vld [vmem:[%s286 + $0xd9] sm:$0xff]
      %v1443 = vld [vmem:[%s286 + $0xe1] sm:$0xff]
      %v1444 = vld [vmem:[%s286 + $0xf1] sm:$0xff]
      %v1445 = vld [vmem:[%s286 + $0xf9] sm:$0xff]
      %v1446 = vld [vmem:[%s286 + $0x109] sm:$0xff]
      %v1447 = vld [vmem:[%s286 + $0x111] sm:$0xff]
      %v1448 = vld [vmem:[%s286 + $0x121] sm:$0xff]
      %v1449 = vld [vmem:[%s286 + $0x129] sm:$0xff]
      %v1450 = vld [vmem:[%s286 + $0x139] sm:$0xff]
      %v1451 = vld [vmem:[%s286 + $0x141] sm:$0xff]
      %v1452 = vld [vmem:[%s286 + $0x151] sm:$0xff]
      %v1453 = vld [vmem:[%s286 + $0x159] sm:$0xff]
      %v1454 = vld [vmem:[%s286 + $0x169] sm:$0xff]
      %v1455 = vld [vmem:[%s286 + $0x171] sm:$0xff]
      %v1456 = vlaneseq
      %v1457 = vshrl.u32 %v1456, 7
      %v1458 = vsub.s32 3, %v1457
      %v1459 = vrot.slane %v320, %v1458
      %v1460 = vmul.f32 %v1424, %v1459
      %v1461 = vmul.f32 %v1425, %v1459
      %v1462 = vmul.f32 %v1426, %v1459
      %v1463 = vmul.f32 %v1427, %v1459
      %v1464 = vmul.f32 %v1428, %v1459
      %v1465 = vmul.f32 %v1429, %v1459
      %v1466 = vmul.f32 %v1430, %v1459
      %v1467 = vmul.f32 %v1431, %v1459
      %v1468 = vmul.f32 %v1432, %v1459
      %v1469 = vmul.f32 %v1433, %v1459
      %v1470 = vmul.f32 %v1434, %v1459
      %v1471 = vmul.f32 %v1435, %v1459
      %v1472 = vmul.f32 %v1436, %v1459
      %v1473 = vmul.f32 %v1437, %v1459
      %v1474 = vmul.f32 %v1438, %v1459
      %v1475 = vmul.f32 %v1439, %v1459
      %v1476 = vmul.f32 %v1440, %v1459
      %v1477 = vmul.f32 %v1441, %v1459
      %v1478 = vmul.f32 %v1442, %v1459
      %v1479 = vmul.f32 %v1443, %v1459
      %v1480 = vmul.f32 %v1444, %v1459
      %v1481 = vmul.f32 %v1445, %v1459
      %v1482 = vmul.f32 %v1446, %v1459
      %v1483 = vmul.f32 %v1447, %v1459
      %v1484 = vmul.f32 %v1448, %v1459
      %v1485 = vmul.f32 %v1449, %v1459
      %v1486 = vmul.f32 %v1450, %v1459
      %v1487 = vmul.f32 %v1451, %v1459
      %v1488 = vmul.f32 %v1452, %v1459
      %v1489 = vmul.f32 %v1453, %v1459
      %v1490 = vmul.f32 %v1454, %v1459
      %v1491 = vmul.f32 %v1455, %v1459
      %v1492 = vadd.f32 %v1392, %v1460
      %v1493 = vadd.f32 %v1393, %v1461
      %v1494 = vadd.f32 %v1394, %v1462
      %v1495 = vadd.f32 %v1395, %v1463
      %v1496 = vadd.f32 %v1396, %v1464
      %v1497 = vadd.f32 %v1397, %v1465
      %v1498 = vadd.f32 %v1398, %v1466
      %v1499 = vadd.f32 %v1399, %v1467
      %v1500 = vadd.f32 %v1400, %v1468
      %v1501 = vadd.f32 %v1401, %v1469
      %v1502 = vadd.f32 %v1402, %v1470
      %v1503 = vadd.f32 %v1403, %v1471
      %v1504 = vadd.f32 %v1404, %v1472
      %v1505 = vadd.f32 %v1405, %v1473
      %v1506 = vadd.f32 %v1406, %v1474
      %v1507 = vadd.f32 %v1407, %v1475
      %v1508 = vadd.f32 %v1408, %v1476
      %v1509 = vadd.f32 %v1409, %v1477
      %v1510 = vadd.f32 %v1410, %v1478
      %v1511 = vadd.f32 %v1411, %v1479
      %v1512 = vadd.f32 %v1412, %v1480
      %v1513 = vadd.f32 %v1413, %v1481
      %v1514 = vadd.f32 %v1414, %v1482
      %v1515 = vadd.f32 %v1415, %v1483
      %v1516 = vadd.f32 %v1416, %v1484
      %v1517 = vadd.f32 %v1417, %v1485
      %v1518 = vadd.f32 %v1418, %v1486
      %v1519 = vadd.f32 %v1419, %v1487
      %v1520 = vadd.f32 %v1420, %v1488
      %v1521 = vadd.f32 %v1421, %v1489
      %v1522 = vadd.f32 %v1422, %v1490
      %v1523 = vadd.f32 %v1423, %v1491
      %v1524 = vld [vmem:[%s286 + $0x2] sm:$0xff]
      %v1525 = vld [vmem:[%s286 + $0xa] sm:$0xff]
      %v1526 = vld [vmem:[%s286 + $0x1a] sm:$0xff]
      %v1527 = vld [vmem:[%s286 + $0x22] sm:$0xff]
      %v1528 = vld [vmem:[%s286 + $0x32] sm:$0xff]
      %v1529 = vld [vmem:[%s286 + $0x3a] sm:$0xff]
      %v1530 = vld [vmem:[%s286 + $0x4a] sm:$0xff]
      %v1531 = vld [vmem:[%s286 + $0x52] sm:$0xff]
      %v1532 = vld [vmem:[%s286 + $0x62] sm:$0xff]
      %v1533 = vld [vmem:[%s286 + $0x6a] sm:$0xff]
      %v1534 = vld [vmem:[%s286 + $0x7a] sm:$0xff]
      %v1535 = vld [vmem:[%s286 + $0x82] sm:$0xff]
      %v1536 = vld [vmem:[%s286 + $0x92] sm:$0xff]
      %v1537 = vld [vmem:[%s286 + $0x9a] sm:$0xff]
      %v1538 = vld [vmem:[%s286 + $0xaa] sm:$0xff]
      %v1539 = vld [vmem:[%s286 + $0xb2] sm:$0xff]
      %v1540 = vld [vmem:[%s286 + $0xc2] sm:$0xff]
      %v1541 = vld [vmem:[%s286 + $0xca] sm:$0xff]
      %v1542 = vld [vmem:[%s286 + $0xda] sm:$0xff]
      %v1543 = vld [vmem:[%s286 + $0xe2] sm:$0xff]
      %v1544 = vld [vmem:[%s286 + $0xf2] sm:$0xff]
      %v1545 = vld [vmem:[%s286 + $0xfa] sm:$0xff]
      %v1546 = vld [vmem:[%s286 + $0x10a] sm:$0xff]
      %v1547 = vld [vmem:[%s286 + $0x112] sm:$0xff]
      %v1548 = vld [vmem:[%s286 + $0x122] sm:$0xff]
      %v1549 = vld [vmem:[%s286 + $0x12a] sm:$0xff]
      %v1550 = vld [vmem:[%s286 + $0x13a] sm:$0xff]
      %v1551 = vld [vmem:[%s286 + $0x142] sm:$0xff]
      %v1552 = vld [vmem:[%s286 + $0x152] sm:$0xff]
      %v1553 = vld [vmem:[%s286 + $0x15a] sm:$0xff]
      %v1554 = vld [vmem:[%s286 + $0x16a] sm:$0xff]
      %v1555 = vld [vmem:[%s286 + $0x172] sm:$0xff]
      %v1556 = vlaneseq
      %v1557 = vshrl.u32 %v1556, 7
      %v1558 = vsub.s32 4, %v1557
      %v1559 = vrot.slane %v320, %v1558
      %v1560 = vmul.f32 %v1524, %v1559
      %v1561 = vmul.f32 %v1525, %v1559
      %v1562 = vmul.f32 %v1526, %v1559
      %v1563 = vmul.f32 %v1527, %v1559
      %v1564 = vmul.f32 %v1528, %v1559
      %v1565 = vmul.f32 %v1529, %v1559
      %v1566 = vmul.f32 %v1530, %v1559
      %v1567 = vmul.f32 %v1531, %v1559
      %v1568 = vmul.f32 %v1532, %v1559
      %v1569 = vmul.f32 %v1533, %v1559
      %v1570 = vmul.f32 %v1534, %v1559
      %v1571 = vmul.f32 %v1535, %v1559
      %v1572 = vmul.f32 %v1536, %v1559
      %v1573 = vmul.f32 %v1537, %v1559
      %v1574 = vmul.f32 %v1538, %v1559
      %v1575 = vmul.f32 %v1539, %v1559
      %v1576 = vmul.f32 %v1540, %v1559
      %v1577 = vmul.f32 %v1541, %v1559
      %v1578 = vmul.f32 %v1542, %v1559
      %v1579 = vmul.f32 %v1543, %v1559
      %v1580 = vmul.f32 %v1544, %v1559
      %v1581 = vmul.f32 %v1545, %v1559
      %v1582 = vmul.f32 %v1546, %v1559
      %v1583 = vmul.f32 %v1547, %v1559
      %v1584 = vmul.f32 %v1548, %v1559
      %v1585 = vmul.f32 %v1549, %v1559
      %v1586 = vmul.f32 %v1550, %v1559
      %v1587 = vmul.f32 %v1551, %v1559
      %v1588 = vmul.f32 %v1552, %v1559
      %v1589 = vmul.f32 %v1553, %v1559
      %v1590 = vmul.f32 %v1554, %v1559
      %v1591 = vmul.f32 %v1555, %v1559
      %v1592 = vadd.f32 %v1492, %v1560
      %v1593 = vadd.f32 %v1493, %v1561
      %v1594 = vadd.f32 %v1494, %v1562
      %v1595 = vadd.f32 %v1495, %v1563
      %v1596 = vadd.f32 %v1496, %v1564
      %v1597 = vadd.f32 %v1497, %v1565
      %v1598 = vadd.f32 %v1498, %v1566
      %v1599 = vadd.f32 %v1499, %v1567
      %v1600 = vadd.f32 %v1500, %v1568
      %v1601 = vadd.f32 %v1501, %v1569
      %v1602 = vadd.f32 %v1502, %v1570
      %v1603 = vadd.f32 %v1503, %v1571
      %v1604 = vadd.f32 %v1504, %v1572
      %v1605 = vadd.f32 %v1505, %v1573
      %v1606 = vadd.f32 %v1506, %v1574
      %v1607 = vadd.f32 %v1507, %v1575
      %v1608 = vadd.f32 %v1508, %v1576
      %v1609 = vadd.f32 %v1509, %v1577
      %v1610 = vadd.f32 %v1510, %v1578
      %v1611 = vadd.f32 %v1511, %v1579
      %v1612 = vadd.f32 %v1512, %v1580
      %v1613 = vadd.f32 %v1513, %v1581
      %v1614 = vadd.f32 %v1514, %v1582
      %v1615 = vadd.f32 %v1515, %v1583
      %v1616 = vadd.f32 %v1516, %v1584
      %v1617 = vadd.f32 %v1517, %v1585
      %v1618 = vadd.f32 %v1518, %v1586
      %v1619 = vadd.f32 %v1519, %v1587
      %v1620 = vadd.f32 %v1520, %v1588
      %v1621 = vadd.f32 %v1521, %v1589
      %v1622 = vadd.f32 %v1522, %v1590
      %v1623 = vadd.f32 %v1523, %v1591
      %v1624 = vld [vmem:[%s286 + $0x3] sm:$0xff]
      %v1625 = vld [vmem:[%s286 + $0xb] sm:$0xff]
      %v1626 = vld [vmem:[%s286 + $0x1b] sm:$0xff]
      %v1627 = vld [vmem:[%s286 + $0x23] sm:$0xff]
      %v1628 = vld [vmem:[%s286 + $0x33] sm:$0xff]
      %v1629 = vld [vmem:[%s286 + $0x3b] sm:$0xff]
      %v1630 = vld [vmem:[%s286 + $0x4b] sm:$0xff]
      %v1631 = vld [vmem:[%s286 + $0x53] sm:$0xff]
      %v1632 = vld [vmem:[%s286 + $0x63] sm:$0xff]
      %v1633 = vld [vmem:[%s286 + $0x6b] sm:$0xff]
      %v1634 = vld [vmem:[%s286 + $0x7b] sm:$0xff]
      %v1635 = vld [vmem:[%s286 + $0x83] sm:$0xff]
      %v1636 = vld [vmem:[%s286 + $0x93] sm:$0xff]
      %v1637 = vld [vmem:[%s286 + $0x9b] sm:$0xff]
      %v1638 = vld [vmem:[%s286 + $0xab] sm:$0xff]
      %v1639 = vld [vmem:[%s286 + $0xb3] sm:$0xff]
      %v1640 = vld [vmem:[%s286 + $0xc3] sm:$0xff]
      %v1641 = vld [vmem:[%s286 + $0xcb] sm:$0xff]
      %v1642 = vld [vmem:[%s286 + $0xdb] sm:$0xff]
      %v1643 = vld [vmem:[%s286 + $0xe3] sm:$0xff]
      %v1644 = vld [vmem:[%s286 + $0xf3] sm:$0xff]
      %v1645 = vld [vmem:[%s286 + $0xfb] sm:$0xff]
      %v1646 = vld [vmem:[%s286 + $0x10b] sm:$0xff]
      %v1647 = vld [vmem:[%s286 + $0x113] sm:$0xff]
      %v1648 = vld [vmem:[%s286 + $0x123] sm:$0xff]
      %v1649 = vld [vmem:[%s286 + $0x12b] sm:$0xff]
      %v1650 = vld [vmem:[%s286 + $0x13b] sm:$0xff]
      %v1651 = vld [vmem:[%s286 + $0x143] sm:$0xff]
      %v1652 = vld [vmem:[%s286 + $0x153] sm:$0xff]
      %v1653 = vld [vmem:[%s286 + $0x15b] sm:$0xff]
      %v1654 = vld [vmem:[%s286 + $0x16b] sm:$0xff]
      %v1655 = vld [vmem:[%s286 + $0x173] sm:$0xff]
      %v1656 = vlaneseq
      %v1657 = vshrl.u32 %v1656, 7
      %v1658 = vsub.s32 5, %v1657
      %v1659 = vrot.slane %v320, %v1658
      %v1660 = vmul.f32 %v1624, %v1659
      %v1661 = vmul.f32 %v1625, %v1659
      %v1662 = vmul.f32 %v1626, %v1659
      %v1663 = vmul.f32 %v1627, %v1659
      %v1664 = vmul.f32 %v1628, %v1659
      %v1665 = vmul.f32 %v1629, %v1659
      %v1666 = vmul.f32 %v1630, %v1659
      %v1667 = vmul.f32 %v1631, %v1659
      %v1668 = vmul.f32 %v1632, %v1659
      %v1669 = vmul.f32 %v1633, %v1659
      %v1670 = vmul.f32 %v1634, %v1659
      %v1671 = vmul.f32 %v1635, %v1659
      %v1672 = vmul.f32 %v1636, %v1659
      %v1673 = vmul.f32 %v1637, %v1659
      %v1674 = vmul.f32 %v1638, %v1659
      %v1675 = vmul.f32 %v1639, %v1659
      %v1676 = vmul.f32 %v1640, %v1659
      %v1677 = vmul.f32 %v1641, %v1659
      %v1678 = vmul.f32 %v1642, %v1659
      %v1679 = vmul.f32 %v1643, %v1659
      %v1680 = vmul.f32 %v1644, %v1659
      %v1681 = vmul.f32 %v1645, %v1659
      %v1682 = vmul.f32 %v1646, %v1659
      %v1683 = vmul.f32 %v1647, %v1659
      %v1684 = vmul.f32 %v1648, %v1659
      %v1685 = vmul.f32 %v1649, %v1659
      %v1686 = vmul.f32 %v1650, %v1659
      %v1687 = vmul.f32 %v1651, %v1659
      %v1688 = vmul.f32 %v1652, %v1659
      %v1689 = vmul.f32 %v1653, %v1659
      %v1690 = vmul.f32 %v1654, %v1659
      %v1691 = vmul.f32 %v1655, %v1659
      %v1692 = vadd.f32 %v1592, %v1660
      %v1693 = vadd.f32 %v1593, %v1661
      %v1694 = vadd.f32 %v1594, %v1662
      %v1695 = vadd.f32 %v1595, %v1663
      %v1696 = vadd.f32 %v1596, %v1664
      %v1697 = vadd.f32 %v1597, %v1665
      %v1698 = vadd.f32 %v1598, %v1666
      %v1699 = vadd.f32 %v1599, %v1667
      %v1700 = vadd.f32 %v1600, %v1668
      %v1701 = vadd.f32 %v1601, %v1669
      %v1702 = vadd.f32 %v1602, %v1670
      %v1703 = vadd.f32 %v1603, %v1671
      %v1704 = vadd.f32 %v1604, %v1672
      %v1705 = vadd.f32 %v1605, %v1673
      %v1706 = vadd.f32 %v1606, %v1674
      %v1707 = vadd.f32 %v1607, %v1675
      %v1708 = vadd.f32 %v1608, %v1676
      %v1709 = vadd.f32 %v1609, %v1677
      %v1710 = vadd.f32 %v1610, %v1678
      %v1711 = vadd.f32 %v1611, %v1679
      %v1712 = vadd.f32 %v1612, %v1680
      %v1713 = vadd.f32 %v1613, %v1681
      %v1714 = vadd.f32 %v1614, %v1682
      %v1715 = vadd.f32 %v1615, %v1683
      %v1716 = vadd.f32 %v1616, %v1684
      %v1717 = vadd.f32 %v1617, %v1685
      %v1718 = vadd.f32 %v1618, %v1686
      %v1719 = vadd.f32 %v1619, %v1687
      %v1720 = vadd.f32 %v1620, %v1688
      %v1721 = vadd.f32 %v1621, %v1689
      %v1722 = vadd.f32 %v1622, %v1690
      %v1723 = vadd.f32 %v1623, %v1691
      %v1724 = vld [vmem:[%s286 + $0x4] sm:$0xff]
      %v1725 = vld [vmem:[%s286 + $0xc] sm:$0xff]
      %v1726 = vld [vmem:[%s286 + $0x1c] sm:$0xff]
      %v1727 = vld [vmem:[%s286 + $0x24] sm:$0xff]
      %v1728 = vld [vmem:[%s286 + $0x34] sm:$0xff]
      %v1729 = vld [vmem:[%s286 + $0x3c] sm:$0xff]
      %v1730 = vld [vmem:[%s286 + $0x4c] sm:$0xff]
      %v1731 = vld [vmem:[%s286 + $0x54] sm:$0xff]
      %v1732 = vld [vmem:[%s286 + $0x64] sm:$0xff]
      %v1733 = vld [vmem:[%s286 + $0x6c] sm:$0xff]
      %v1734 = vld [vmem:[%s286 + $0x7c] sm:$0xff]
      %v1735 = vld [vmem:[%s286 + $0x84] sm:$0xff]
      %v1736 = vld [vmem:[%s286 + $0x94] sm:$0xff]
      %v1737 = vld [vmem:[%s286 + $0x9c] sm:$0xff]
      %v1738 = vld [vmem:[%s286 + $0xac] sm:$0xff]
      %v1739 = vld [vmem:[%s286 + $0xb4] sm:$0xff]
      %v1740 = vld [vmem:[%s286 + $0xc4] sm:$0xff]
      %v1741 = vld [vmem:[%s286 + $0xcc] sm:$0xff]
      %v1742 = vld [vmem:[%s286 + $0xdc] sm:$0xff]
      %v1743 = vld [vmem:[%s286 + $0xe4] sm:$0xff]
      %v1744 = vld [vmem:[%s286 + $0xf4] sm:$0xff]
      %v1745 = vld [vmem:[%s286 + $0xfc] sm:$0xff]
      %v1746 = vld [vmem:[%s286 + $0x10c] sm:$0xff]
      %v1747 = vld [vmem:[%s286 + $0x114] sm:$0xff]
      %v1748 = vld [vmem:[%s286 + $0x124] sm:$0xff]
      %v1749 = vld [vmem:[%s286 + $0x12c] sm:$0xff]
      %v1750 = vld [vmem:[%s286 + $0x13c] sm:$0xff]
      %v1751 = vld [vmem:[%s286 + $0x144] sm:$0xff]
      %v1752 = vld [vmem:[%s286 + $0x154] sm:$0xff]
      %v1753 = vld [vmem:[%s286 + $0x15c] sm:$0xff]
      %v1754 = vld [vmem:[%s286 + $0x16c] sm:$0xff]
      %v1755 = vld [vmem:[%s286 + $0x174] sm:$0xff]
      %v1756 = vlaneseq
      %v1757 = vshrl.u32 %v1756, 7
      %v1758 = vsub.s32 6, %v1757
      %v1759 = vrot.slane %v320, %v1758
      %v1760 = vmul.f32 %v1724, %v1759
      %v1761 = vmul.f32 %v1725, %v1759
      %v1762 = vmul.f32 %v1726, %v1759
      %v1763 = vmul.f32 %v1727, %v1759
      %v1764 = vmul.f32 %v1728, %v1759
      %v1765 = vmul.f32 %v1729, %v1759
      %v1766 = vmul.f32 %v1730, %v1759
      %v1767 = vmul.f32 %v1731, %v1759
      %v1768 = vmul.f32 %v1732, %v1759
      %v1769 = vmul.f32 %v1733, %v1759
      %v1770 = vmul.f32 %v1734, %v1759
      %v1771 = vmul.f32 %v1735, %v1759
      %v1772 = vmul.f32 %v1736, %v1759
      %v1773 = vmul.f32 %v1737, %v1759
      %v1774 = vmul.f32 %v1738, %v1759
      %v1775 = vmul.f32 %v1739, %v1759
      %v1776 = vmul.f32 %v1740, %v1759
      %v1777 = vmul.f32 %v1741, %v1759
      %v1778 = vmul.f32 %v1742, %v1759
      %v1779 = vmul.f32 %v1743, %v1759
      %v1780 = vmul.f32 %v1744, %v1759
      %v1781 = vmul.f32 %v1745, %v1759
      %v1782 = vmul.f32 %v1746, %v1759
      %v1783 = vmul.f32 %v1747, %v1759
      %v1784 = vmul.f32 %v1748, %v1759
      %v1785 = vmul.f32 %v1749, %v1759
      %v1786 = vmul.f32 %v1750, %v1759
      %v1787 = vmul.f32 %v1751, %v1759
      %v1788 = vmul.f32 %v1752, %v1759
      %v1789 = vmul.f32 %v1753, %v1759
      %v1790 = vmul.f32 %v1754, %v1759
      %v1791 = vmul.f32 %v1755, %v1759
      %v1792 = vadd.f32 %v1692, %v1760
      %v1793 = vadd.f32 %v1693, %v1761
      %v1794 = vadd.f32 %v1694, %v1762
      %v1795 = vadd.f32 %v1695, %v1763
      %v1796 = vadd.f32 %v1696, %v1764
      %v1797 = vadd.f32 %v1697, %v1765
      %v1798 = vadd.f32 %v1698, %v1766
      %v1799 = vadd.f32 %v1699, %v1767
      %v1800 = vadd.f32 %v1700, %v1768
      %v1801 = vadd.f32 %v1701, %v1769
      %v1802 = vadd.f32 %v1702, %v1770
      %v1803 = vadd.f32 %v1703, %v1771
      %v1804 = vadd.f32 %v1704, %v1772
      %v1805 = vadd.f32 %v1705, %v1773
      %v1806 = vadd.f32 %v1706, %v1774
      %v1807 = vadd.f32 %v1707, %v1775
      %v1808 = vadd.f32 %v1708, %v1776
      %v1809 = vadd.f32 %v1709, %v1777
      %v1810 = vadd.f32 %v1710, %v1778
      %v1811 = vadd.f32 %v1711, %v1779
      %v1812 = vadd.f32 %v1712, %v1780
      %v1813 = vadd.f32 %v1713, %v1781
      %v1814 = vadd.f32 %v1714, %v1782
      %v1815 = vadd.f32 %v1715, %v1783
      %v1816 = vadd.f32 %v1716, %v1784
      %v1817 = vadd.f32 %v1717, %v1785
      %v1818 = vadd.f32 %v1718, %v1786
      %v1819 = vadd.f32 %v1719, %v1787
      %v1820 = vadd.f32 %v1720, %v1788
      %v1821 = vadd.f32 %v1721, %v1789
      %v1822 = vadd.f32 %v1722, %v1790
      %v1823 = vadd.f32 %v1723, %v1791
      %s1824 = scalar_lea.vmem [#allocation2], 72
      %v1825 = vld [vmem:[%s1824] sm:$0xff]
      %v1826 = vld [vmem:[%s1824 + $0x8] sm:$0xff]
      %v1827 = vld [vmem:[%s1824 + $0x18] sm:$0xff]
      %v1828 = vld [vmem:[%s1824 + $0x20] sm:$0xff]
      %v1829 = vld [vmem:[%s1824 + $0x30] sm:$0xff]
      %v1830 = vld [vmem:[%s1824 + $0x38] sm:$0xff]
      %v1831 = vld [vmem:[%s1824 + $0x48] sm:$0xff]
      %v1832 = vld [vmem:[%s1824 + $0x50] sm:$0xff]
      %v1833 = vld [vmem:[%s1824 + $0x60] sm:$0xff]
      %v1834 = vld [vmem:[%s1824 + $0x68] sm:$0xff]
      %v1835 = vld [vmem:[%s1824 + $0x78] sm:$0xff]
      %v1836 = vld [vmem:[%s1824 + $0x80] sm:$0xff]
      %v1837 = vld [vmem:[%s1824 + $0x90] sm:$0xff]
      %v1838 = vld [vmem:[%s1824 + $0x98] sm:$0xff]
      %v1839 = vld [vmem:[%s1824 + $0xa8] sm:$0xff]
      %v1840 = vld [vmem:[%s1824 + $0xb0] sm:$0xff]
      %v1841 = vld [vmem:[%s1824 + $0xc0] sm:$0xff]
      %v1842 = vld [vmem:[%s1824 + $0xc8] sm:$0xff]
      %v1843 = vld [vmem:[%s1824 + $0xd8] sm:$0xff]
      %v1844 = vld [vmem:[%s1824 + $0xe0] sm:$0xff]
      %v1845 = vld [vmem:[%s1824 + $0xf0] sm:$0xff]
      %v1846 = vld [vmem:[%s1824 + $0xf8] sm:$0xff]
      %v1847 = vld [vmem:[%s1824 + $0x108] sm:$0xff]
      %v1848 = vld [vmem:[%s1824 + $0x110] sm:$0xff]
      %v1849 = vld [vmem:[%s1824 + $0x120] sm:$0xff]
      %v1850 = vld [vmem:[%s1824 + $0x128] sm:$0xff]
      %v1851 = vld [vmem:[%s1824 + $0x138] sm:$0xff]
      %v1852 = vld [vmem:[%s1824 + $0x140] sm:$0xff]
      %v1853 = vld [vmem:[%s1824 + $0x150] sm:$0xff]
      %v1854 = vld [vmem:[%s1824 + $0x158] sm:$0xff]
      %v1855 = vld [vmem:[%s1824 + $0x168] sm:$0xff]
      %v1856 = vld [vmem:[%s1824 + $0x170] sm:$0xff]
      %v1857 = vlaneseq
      %v1858 = vshrl.u32 %v1857, 7
      %v1859 = vsub.s32 7, %v1858
      %v1860 = vrot.slane %v320, %v1859
      %v1861 = vmul.f32 %v1825, %v1860
      %v1862 = vmul.f32 %v1826, %v1860
      %v1863 = vmul.f32 %v1827, %v1860
      %v1864 = vmul.f32 %v1828, %v1860
      %v1865 = vmul.f32 %v1829, %v1860
      %v1866 = vmul.f32 %v1830, %v1860
      %v1867 = vmul.f32 %v1831, %v1860
      %v1868 = vmul.f32 %v1832, %v1860
      %v1869 = vmul.f32 %v1833, %v1860
      %v1870 = vmul.f32 %v1834, %v1860
      %v1871 = vmul.f32 %v1835, %v1860
      %v1872 = vmul.f32 %v1836, %v1860
      %v1873 = vmul.f32 %v1837, %v1860
      %v1874 = vmul.f32 %v1838, %v1860
      %v1875 = vmul.f32 %v1839, %v1860
      %v1876 = vmul.f32 %v1840, %v1860
      %v1877 = vmul.f32 %v1841, %v1860
      %v1878 = vmul.f32 %v1842, %v1860
      %v1879 = vmul.f32 %v1843, %v1860
      %v1880 = vmul.f32 %v1844, %v1860
      %v1881 = vmul.f32 %v1845, %v1860
      %v1882 = vmul.f32 %v1846, %v1860
      %v1883 = vmul.f32 %v1847, %v1860
      %v1884 = vmul.f32 %v1848, %v1860
      %v1885 = vmul.f32 %v1849, %v1860
      %v1886 = vmul.f32 %v1850, %v1860
      %v1887 = vmul.f32 %v1851, %v1860
      %v1888 = vmul.f32 %v1852, %v1860
      %v1889 = vmul.f32 %v1853, %v1860
      %v1890 = vmul.f32 %v1854, %v1860
      %v1891 = vmul.f32 %v1855, %v1860
      %v1892 = vmul.f32 %v1856, %v1860
      %v1893 = vadd.f32 %v1792, %v1861
      %v1894 = vadd.f32 %v1793, %v1862
      %v1895 = vadd.f32 %v1794, %v1863
      %v1896 = vadd.f32 %v1795, %v1864
      %v1897 = vadd.f32 %v1796, %v1865
      %v1898 = vadd.f32 %v1797, %v1866
      %v1899 = vadd.f32 %v1798, %v1867
      %v1900 = vadd.f32 %v1799, %v1868
      %v1901 = vadd.f32 %v1800, %v1869
      %v1902 = vadd.f32 %v1801, %v1870
      %v1903 = vadd.f32 %v1802, %v1871
      %v1904 = vadd.f32 %v1803, %v1872
      %v1905 = vadd.f32 %v1804, %v1873
      %v1906 = vadd.f32 %v1805, %v1874
      %v1907 = vadd.f32 %v1806, %v1875
      %v1908 = vadd.f32 %v1807, %v1876
      %v1909 = vadd.f32 %v1808, %v1877
      %v1910 = vadd.f32 %v1809, %v1878
      %v1911 = vadd.f32 %v1810, %v1879
      %v1912 = vadd.f32 %v1811, %v1880
      %v1913 = vadd.f32 %v1812, %v1881
      %v1914 = vadd.f32 %v1813, %v1882
      %v1915 = vadd.f32 %v1814, %v1883
      %v1916 = vadd.f32 %v1815, %v1884
      %v1917 = vadd.f32 %v1816, %v1885
      %v1918 = vadd.f32 %v1817, %v1886
      %v1919 = vadd.f32 %v1818, %v1887
      %v1920 = vadd.f32 %v1819, %v1888
      %v1921 = vadd.f32 %v1820, %v1889
      %v1922 = vadd.f32 %v1821, %v1890
      %v1923 = vadd.f32 %v1822, %v1891
      %v1924 = vadd.f32 %v1823, %v1892
      %v1925 = vld [vmem:[%s1824 + $0x1] sm:$0xff]
      %v1926 = vld [vmem:[%s1824 + $0x9] sm:$0xff]
      %v1927 = vld [vmem:[%s1824 + $0x19] sm:$0xff]
      %v1928 = vld [vmem:[%s1824 + $0x21] sm:$0xff]
      %v1929 = vld [vmem:[%s1824 + $0x31] sm:$0xff]
      %v1930 = vld [vmem:[%s1824 + $0x39] sm:$0xff]
      %v1931 = vld [vmem:[%s1824 + $0x49] sm:$0xff]
      %v1932 = vld [vmem:[%s1824 + $0x51] sm:$0xff]
      %v1933 = vld [vmem:[%s1824 + $0x61] sm:$0xff]
      %v1934 = vld [vmem:[%s1824 + $0x69] sm:$0xff]
      %v1935 = vld [vmem:[%s1824 + $0x79] sm:$0xff]
      %v1936 = vld [vmem:[%s1824 + $0x81] sm:$0xff]
      %v1937 = vld [vmem:[%s1824 + $0x91] sm:$0xff]
      %v1938 = vld [vmem:[%s1824 + $0x99] sm:$0xff]
      %v1939 = vld [vmem:[%s1824 + $0xa9] sm:$0xff]
      %v1940 = vld [vmem:[%s1824 + $0xb1] sm:$0xff]
      %v1941 = vld [vmem:[%s1824 + $0xc1] sm:$0xff]
      %v1942 = vld [vmem:[%s1824 + $0xc9] sm:$0xff]
      %v1943 = vld [vmem:[%s1824 + $0xd9] sm:$0xff]
      %v1944 = vld [vmem:[%s1824 + $0xe1] sm:$0xff]
      %v1945 = vld [vmem:[%s1824 + $0xf1] sm:$0xff]
      %v1946 = vld [vmem:[%s1824 + $0xf9] sm:$0xff]
      %v1947 = vld [vmem:[%s1824 + $0x109] sm:$0xff]
      %v1948 = vld [vmem:[%s1824 + $0x111] sm:$0xff]
      %v1949 = vld [vmem:[%s1824 + $0x121] sm:$0xff]
      %v1950 = vld [vmem:[%s1824 + $0x129] sm:$0xff]
      %v1951 = vld [vmem:[%s1824 + $0x139] sm:$0xff]
      %v1952 = vld [vmem:[%s1824 + $0x141] sm:$0xff]
      %v1953 = vld [vmem:[%s1824 + $0x151] sm:$0xff]
      %v1954 = vld [vmem:[%s1824 + $0x159] sm:$0xff]
      %v1955 = vld [vmem:[%s1824 + $0x169] sm:$0xff]
      %v1956 = vld [vmem:[%s1824 + $0x171] sm:$0xff]
      %v1957 = vlaneseq
      %v1958 = vshrl.u32 %v1957, 7
      %v1959 = vsub.s32 0, %v1958
      %v1960 = vrot.slane %v321, %v1959
      %v1961 = vmul.f32 %v1925, %v1960
      %v1962 = vmul.f32 %v1926, %v1960
      %v1963 = vmul.f32 %v1927, %v1960
      %v1964 = vmul.f32 %v1928, %v1960
      %v1965 = vmul.f32 %v1929, %v1960
      %v1966 = vmul.f32 %v1930, %v1960
      %v1967 = vmul.f32 %v1931, %v1960
      %v1968 = vmul.f32 %v1932, %v1960
      %v1969 = vmul.f32 %v1933, %v1960
      %v1970 = vmul.f32 %v1934, %v1960
      %v1971 = vmul.f32 %v1935, %v1960
      %v1972 = vmul.f32 %v1936, %v1960
      %v1973 = vmul.f32 %v1937, %v1960
      %v1974 = vmul.f32 %v1938, %v1960
      %v1975 = vmul.f32 %v1939, %v1960
      %v1976 = vmul.f32 %v1940, %v1960
      %v1977 = vmul.f32 %v1941, %v1960
      %v1978 = vmul.f32 %v1942, %v1960
      %v1979 = vmul.f32 %v1943, %v1960
      %v1980 = vmul.f32 %v1944, %v1960
      %v1981 = vmul.f32 %v1945, %v1960
      %v1982 = vmul.f32 %v1946, %v1960
      %v1983 = vmul.f32 %v1947, %v1960
      %v1984 = vmul.f32 %v1948, %v1960
      %v1985 = vmul.f32 %v1949, %v1960
      %v1986 = vmul.f32 %v1950, %v1960
      %v1987 = vmul.f32 %v1951, %v1960
      %v1988 = vmul.f32 %v1952, %v1960
      %v1989 = vmul.f32 %v1953, %v1960
      %v1990 = vmul.f32 %v1954, %v1960
      %v1991 = vmul.f32 %v1955, %v1960
      %v1992 = vmul.f32 %v1956, %v1960
      %v1993 = vadd.f32 %v1893, %v1961
      %v1994 = vadd.f32 %v1894, %v1962
      %v1995 = vadd.f32 %v1895, %v1963
      %v1996 = vadd.f32 %v1896, %v1964
      %v1997 = vadd.f32 %v1897, %v1965
      %v1998 = vadd.f32 %v1898, %v1966
      %v1999 = vadd.f32 %v1899, %v1967
      %v2000 = vadd.f32 %v1900, %v1968
      %v2001 = vadd.f32 %v1901, %v1969
      %v2002 = vadd.f32 %v1902, %v1970
      %v2003 = vadd.f32 %v1903, %v1971
      %v2004 = vadd.f32 %v1904, %v1972
      %v2005 = vadd.f32 %v1905, %v1973
      %v2006 = vadd.f32 %v1906, %v1974
      %v2007 = vadd.f32 %v1907, %v1975
      %v2008 = vadd.f32 %v1908, %v1976
      %v2009 = vadd.f32 %v1909, %v1977
      %v2010 = vadd.f32 %v1910, %v1978
      %v2011 = vadd.f32 %v1911, %v1979
      %v2012 = vadd.f32 %v1912, %v1980
      %v2013 = vadd.f32 %v1913, %v1981
      %v2014 = vadd.f32 %v1914, %v1982
      %v2015 = vadd.f32 %v1915, %v1983
      %v2016 = vadd.f32 %v1916, %v1984
      %v2017 = vadd.f32 %v1917, %v1985
      %v2018 = vadd.f32 %v1918, %v1986
      %v2019 = vadd.f32 %v1919, %v1987
      %v2020 = vadd.f32 %v1920, %v1988
      %v2021 = vadd.f32 %v1921, %v1989
      %v2022 = vadd.f32 %v1922, %v1990
      %v2023 = vadd.f32 %v1923, %v1991
      %v2024 = vadd.f32 %v1924, %v1992
      %v2025 = vld [vmem:[%s1824 + $0x2] sm:$0xff]
      %v2026 = vld [vmem:[%s1824 + $0xa] sm:$0xff]
      %v2027 = vld [vmem:[%s1824 + $0x1a] sm:$0xff]
      %v2028 = vld [vmem:[%s1824 + $0x22] sm:$0xff]
      %v2029 = vld [vmem:[%s1824 + $0x32] sm:$0xff]
      %v2030 = vld [vmem:[%s1824 + $0x3a] sm:$0xff]
      %v2031 = vld [vmem:[%s1824 + $0x4a] sm:$0xff]
      %v2032 = vld [vmem:[%s1824 + $0x52] sm:$0xff]
      %v2033 = vld [vmem:[%s1824 + $0x62] sm:$0xff]
      %v2034 = vld [vmem:[%s1824 + $0x6a] sm:$0xff]
      %v2035 = vld [vmem:[%s1824 + $0x7a] sm:$0xff]
      %v2036 = vld [vmem:[%s1824 + $0x82] sm:$0xff]
      %v2037 = vld [vmem:[%s1824 + $0x92] sm:$0xff]
      %v2038 = vld [vmem:[%s1824 + $0x9a] sm:$0xff]
      %v2039 = vld [vmem:[%s1824 + $0xaa] sm:$0xff]
      %v2040 = vld [vmem:[%s1824 + $0xb2] sm:$0xff]
      %v2041 = vld [vmem:[%s1824 + $0xc2] sm:$0xff]
      %v2042 = vld [vmem:[%s1824 + $0xca] sm:$0xff]
      %v2043 = vld [vmem:[%s1824 + $0xda] sm:$0xff]
      %v2044 = vld [vmem:[%s1824 + $0xe2] sm:$0xff]
      %v2045 = vld [vmem:[%s1824 + $0xf2] sm:$0xff]
      %v2046 = vld [vmem:[%s1824 + $0xfa] sm:$0xff]
      %v2047 = vld [vmem:[%s1824 + $0x10a] sm:$0xff]
      %v2048 = vld [vmem:[%s1824 + $0x112] sm:$0xff]
      %v2049 = vld [vmem:[%s1824 + $0x122] sm:$0xff]
      %v2050 = vld [vmem:[%s1824 + $0x12a] sm:$0xff]
      %v2051 = vld [vmem:[%s1824 + $0x13a] sm:$0xff]
      %v2052 = vld [vmem:[%s1824 + $0x142] sm:$0xff]
      %v2053 = vld [vmem:[%s1824 + $0x152] sm:$0xff]
      %v2054 = vld [vmem:[%s1824 + $0x15a] sm:$0xff]
      %v2055 = vld [vmem:[%s1824 + $0x16a] sm:$0xff]
      %v2056 = vld [vmem:[%s1824 + $0x172] sm:$0xff]
      %v2057 = vlaneseq
      %v2058 = vshrl.u32 %v2057, 7
      %v2059 = vsub.s32 1, %v2058
      %v2060 = vrot.slane %v321, %v2059
      %v2061 = vmul.f32 %v2025, %v2060
      %v2062 = vmul.f32 %v2026, %v2060
      %v2063 = vmul.f32 %v2027, %v2060
      %v2064 = vmul.f32 %v2028, %v2060
      %v2065 = vmul.f32 %v2029, %v2060
      %v2066 = vmul.f32 %v2030, %v2060
      %v2067 = vmul.f32 %v2031, %v2060
      %v2068 = vmul.f32 %v2032, %v2060
      %v2069 = vmul.f32 %v2033, %v2060
      %v2070 = vmul.f32 %v2034, %v2060
      %v2071 = vmul.f32 %v2035, %v2060
      %v2072 = vmul.f32 %v2036, %v2060
      %v2073 = vmul.f32 %v2037, %v2060
      %v2074 = vmul.f32 %v2038, %v2060
      %v2075 = vmul.f32 %v2039, %v2060
      %v2076 = vmul.f32 %v2040, %v2060
      %v2077 = vmul.f32 %v2041, %v2060
      %v2078 = vmul.f32 %v2042, %v2060
      %v2079 = vmul.f32 %v2043, %v2060
      %v2080 = vmul.f32 %v2044, %v2060
      %v2081 = vmul.f32 %v2045, %v2060
      %v2082 = vmul.f32 %v2046, %v2060
      %v2083 = vmul.f32 %v2047, %v2060
      %v2084 = vmul.f32 %v2048, %v2060
      %v2085 = vmul.f32 %v2049, %v2060
      %v2086 = vmul.f32 %v2050, %v2060
      %v2087 = vmul.f32 %v2051, %v2060
      %v2088 = vmul.f32 %v2052, %v2060
      %v2089 = vmul.f32 %v2053, %v2060
      %v2090 = vmul.f32 %v2054, %v2060
      %v2091 = vmul.f32 %v2055, %v2060
      %v2092 = vmul.f32 %v2056, %v2060
      %v2093 = vadd.f32 %v1993, %v2061
      %v2094 = vadd.f32 %v1994, %v2062
      %v2095 = vadd.f32 %v1995, %v2063
      %v2096 = vadd.f32 %v1996, %v2064
      %v2097 = vadd.f32 %v1997, %v2065
      %v2098 = vadd.f32 %v1998, %v2066
      %v2099 = vadd.f32 %v1999, %v2067
      %v2100 = vadd.f32 %v2000, %v2068
      %v2101 = vadd.f32 %v2001, %v2069
      %v2102 = vadd.f32 %v2002, %v2070
      %v2103 = vadd.f32 %v2003, %v2071
      %v2104 = vadd.f32 %v2004, %v2072
      %v2105 = vadd.f32 %v2005, %v2073
      %v2106 = vadd.f32 %v2006, %v2074
      %v2107 = vadd.f32 %v2007, %v2075
      %v2108 = vadd.f32 %v2008, %v2076
      %v2109 = vadd.f32 %v2009, %v2077
      %v2110 = vadd.f32 %v2010, %v2078
      %v2111 = vadd.f32 %v2011, %v2079
      %v2112 = vadd.f32 %v2012, %v2080
      %v2113 = vadd.f32 %v2013, %v2081
      %v2114 = vadd.f32 %v2014, %v2082
      %v2115 = vadd.f32 %v2015, %v2083
      %v2116 = vadd.f32 %v2016, %v2084
      %v2117 = vadd.f32 %v2017, %v2085
      %v2118 = vadd.f32 %v2018, %v2086
      %v2119 = vadd.f32 %v2019, %v2087
      %v2120 = vadd.f32 %v2020, %v2088
      %v2121 = vadd.f32 %v2021, %v2089
      %v2122 = vadd.f32 %v2022, %v2090
      %v2123 = vadd.f32 %v2023, %v2091
      %v2124 = vadd.f32 %v2024, %v2092
      %v2125 = vld [vmem:[%s1824 + $0x3] sm:$0xff]
      %v2126 = vld [vmem:[%s1824 + $0xb] sm:$0xff]
      %v2127 = vld [vmem:[%s1824 + $0x1b] sm:$0xff]
      %v2128 = vld [vmem:[%s1824 + $0x23] sm:$0xff]
      %v2129 = vld [vmem:[%s1824 + $0x33] sm:$0xff]
      %v2130 = vld [vmem:[%s1824 + $0x3b] sm:$0xff]
      %v2131 = vld [vmem:[%s1824 + $0x4b] sm:$0xff]
      %v2132 = vld [vmem:[%s1824 + $0x53] sm:$0xff]
      %v2133 = vld [vmem:[%s1824 + $0x63] sm:$0xff]
      %v2134 = vld [vmem:[%s1824 + $0x6b] sm:$0xff]
      %v2135 = vld [vmem:[%s1824 + $0x7b] sm:$0xff]
      %v2136 = vld [vmem:[%s1824 + $0x83] sm:$0xff]
      %v2137 = vld [vmem:[%s1824 + $0x93] sm:$0xff]
      %v2138 = vld [vmem:[%s1824 + $0x9b] sm:$0xff]
      %v2139 = vld [vmem:[%s1824 + $0xab] sm:$0xff]
      %v2140 = vld [vmem:[%s1824 + $0xb3] sm:$0xff]
      %v2141 = vld [vmem:[%s1824 + $0xc3] sm:$0xff]
      %v2142 = vld [vmem:[%s1824 + $0xcb] sm:$0xff]
      %v2143 = vld [vmem:[%s1824 + $0xdb] sm:$0xff]
      %v2144 = vld [vmem:[%s1824 + $0xe3] sm:$0xff]
      %v2145 = vld [vmem:[%s1824 + $0xf3] sm:$0xff]
      %v2146 = vld [vmem:[%s1824 + $0xfb] sm:$0xff]
      %v2147 = vld [vmem:[%s1824 + $0x10b] sm:$0xff]
      %v2148 = vld [vmem:[%s1824 + $0x113] sm:$0xff]
      %v2149 = vld [vmem:[%s1824 + $0x123] sm:$0xff]
      %v2150 = vld [vmem:[%s1824 + $0x12b] sm:$0xff]
      %v2151 = vld [vmem:[%s1824 + $0x13b] sm:$0xff]
      %v2152 = vld [vmem:[%s1824 + $0x143] sm:$0xff]
      %v2153 = vld [vmem:[%s1824 + $0x153] sm:$0xff]
      %v2154 = vld [vmem:[%s1824 + $0x15b] sm:$0xff]
      %v2155 = vld [vmem:[%s1824 + $0x16b] sm:$0xff]
      %v2156 = vld [vmem:[%s1824 + $0x173] sm:$0xff]
      %v2157 = vlaneseq
      %v2158 = vshrl.u32 %v2157, 7
      %v2159 = vsub.s32 2, %v2158
      %v2160 = vrot.slane %v321, %v2159
      %v2161 = vmul.f32 %v2125, %v2160
      %v2162 = vmul.f32 %v2126, %v2160
      %v2163 = vmul.f32 %v2127, %v2160
      %v2164 = vmul.f32 %v2128, %v2160
      %v2165 = vmul.f32 %v2129, %v2160
      %v2166 = vmul.f32 %v2130, %v2160
      %v2167 = vmul.f32 %v2131, %v2160
      %v2168 = vmul.f32 %v2132, %v2160
      %v2169 = vmul.f32 %v2133, %v2160
      %v2170 = vmul.f32 %v2134, %v2160
      %v2171 = vmul.f32 %v2135, %v2160
      %v2172 = vmul.f32 %v2136, %v2160
      %v2173 = vmul.f32 %v2137, %v2160
      %v2174 = vmul.f32 %v2138, %v2160
      %v2175 = vmul.f32 %v2139, %v2160
      %v2176 = vmul.f32 %v2140, %v2160
      %v2177 = vmul.f32 %v2141, %v2160
      %v2178 = vmul.f32 %v2142, %v2160
      %v2179 = vmul.f32 %v2143, %v2160
      %v2180 = vmul.f32 %v2144, %v2160
      %v2181 = vmul.f32 %v2145, %v2160
      %v2182 = vmul.f32 %v2146, %v2160
      %v2183 = vmul.f32 %v2147, %v2160
      %v2184 = vmul.f32 %v2148, %v2160
      %v2185 = vmul.f32 %v2149, %v2160
      %v2186 = vmul.f32 %v2150, %v2160
      %v2187 = vmul.f32 %v2151, %v2160
      %v2188 = vmul.f32 %v2152, %v2160
      %v2189 = vmul.f32 %v2153, %v2160
      %v2190 = vmul.f32 %v2154, %v2160
      %v2191 = vmul.f32 %v2155, %v2160
      %v2192 = vmul.f32 %v2156, %v2160
      %v2193 = vadd.f32 %v2093, %v2161
      %v2194 = vadd.f32 %v2094, %v2162
      %v2195 = vadd.f32 %v2095, %v2163
      %v2196 = vadd.f32 %v2096, %v2164
      %v2197 = vadd.f32 %v2097, %v2165
      %v2198 = vadd.f32 %v2098, %v2166
      %v2199 = vadd.f32 %v2099, %v2167
      %v2200 = vadd.f32 %v2100, %v2168
      %v2201 = vadd.f32 %v2101, %v2169
      %v2202 = vadd.f32 %v2102, %v2170
      %v2203 = vadd.f32 %v2103, %v2171
      %v2204 = vadd.f32 %v2104, %v2172
      %v2205 = vadd.f32 %v2105, %v2173
      %v2206 = vadd.f32 %v2106, %v2174
      %v2207 = vadd.f32 %v2107, %v2175
      %v2208 = vadd.f32 %v2108, %v2176
      %v2209 = vadd.f32 %v2109, %v2177
      %v2210 = vadd.f32 %v2110, %v2178
      %v2211 = vadd.f32 %v2111, %v2179
      %v2212 = vadd.f32 %v2112, %v2180
      %v2213 = vadd.f32 %v2113, %v2181
      %v2214 = vadd.f32 %v2114, %v2182
      %v2215 = vadd.f32 %v2115, %v2183
      %v2216 = vadd.f32 %v2116, %v2184
      %v2217 = vadd.f32 %v2117, %v2185
      %v2218 = vadd.f32 %v2118, %v2186
      %v2219 = vadd.f32 %v2119, %v2187
      %v2220 = vadd.f32 %v2120, %v2188
      %v2221 = vadd.f32 %v2121, %v2189
      %v2222 = vadd.f32 %v2122, %v2190
      %v2223 = vadd.f32 %v2123, %v2191
      %v2224 = vadd.f32 %v2124, %v2192
      %v2225 = vld [vmem:[%s1824 + $0x4] sm:$0xff]
      %v2226 = vld [vmem:[%s1824 + $0xc] sm:$0xff]
      %v2227 = vld [vmem:[%s1824 + $0x1c] sm:$0xff]
      %v2228 = vld [vmem:[%s1824 + $0x24] sm:$0xff]
      %v2229 = vld [vmem:[%s1824 + $0x34] sm:$0xff]
      %v2230 = vld [vmem:[%s1824 + $0x3c] sm:$0xff]
      %v2231 = vld [vmem:[%s1824 + $0x4c] sm:$0xff]
      %v2232 = vld [vmem:[%s1824 + $0x54] sm:$0xff]
      %v2233 = vld [vmem:[%s1824 + $0x64] sm:$0xff]
      %v2234 = vld [vmem:[%s1824 + $0x6c] sm:$0xff]
      %v2235 = vld [vmem:[%s1824 + $0x7c] sm:$0xff]
      %v2236 = vld [vmem:[%s1824 + $0x84] sm:$0xff]
      %v2237 = vld [vmem:[%s1824 + $0x94] sm:$0xff]
      %v2238 = vld [vmem:[%s1824 + $0x9c] sm:$0xff]
      %v2239 = vld [vmem:[%s1824 + $0xac] sm:$0xff]
      %v2240 = vld [vmem:[%s1824 + $0xb4] sm:$0xff]
      %v2241 = vld [vmem:[%s1824 + $0xc4] sm:$0xff]
      %v2242 = vld [vmem:[%s1824 + $0xcc] sm:$0xff]
      %v2243 = vld [vmem:[%s1824 + $0xdc] sm:$0xff]
      %v2244 = vld [vmem:[%s1824 + $0xe4] sm:$0xff]
      %v2245 = vld [vmem:[%s1824 + $0xf4] sm:$0xff]
      %v2246 = vld [vmem:[%s1824 + $0xfc] sm:$0xff]
      %v2247 = vld [vmem:[%s1824 + $0x10c] sm:$0xff]
      %v2248 = vld [vmem:[%s1824 + $0x114] sm:$0xff]
      %v2249 = vld [vmem:[%s1824 + $0x124] sm:$0xff]
      %v2250 = vld [vmem:[%s1824 + $0x12c] sm:$0xff]
      %v2251 = vld [vmem:[%s1824 + $0x13c] sm:$0xff]
      %v2252 = vld [vmem:[%s1824 + $0x144] sm:$0xff]
      %v2253 = vld [vmem:[%s1824 + $0x154] sm:$0xff]
      %v2254 = vld [vmem:[%s1824 + $0x15c] sm:$0xff]
      %v2255 = vld [vmem:[%s1824 + $0x16c] sm:$0xff]
      %v2256 = vld [vmem:[%s1824 + $0x174] sm:$0xff]
      %v2257 = vlaneseq
      %v2258 = vshrl.u32 %v2257, 7
      %v2259 = vsub.s32 3, %v2258
      %v2260 = vrot.slane %v321, %v2259
      %v2261 = vmul.f32 %v2225, %v2260
      %v2262 = vmul.f32 %v2226, %v2260
      %v2263 = vmul.f32 %v2227, %v2260
      %v2264 = vmul.f32 %v2228, %v2260
      %v2265 = vmul.f32 %v2229, %v2260
      %v2266 = vmul.f32 %v2230, %v2260
      %v2267 = vmul.f32 %v2231, %v2260
      %v2268 = vmul.f32 %v2232, %v2260
      %v2269 = vmul.f32 %v2233, %v2260
      %v2270 = vmul.f32 %v2234, %v2260
      %v2271 = vmul.f32 %v2235, %v2260
      %v2272 = vmul.f32 %v2236, %v2260
      %v2273 = vmul.f32 %v2237, %v2260
      %v2274 = vmul.f32 %v2238, %v2260
      %v2275 = vmul.f32 %v2239, %v2260
      %v2276 = vmul.f32 %v2240, %v2260
      %v2277 = vmul.f32 %v2241, %v2260
      %v2278 = vmul.f32 %v2242, %v2260
      %v2279 = vmul.f32 %v2243, %v2260
      %v2280 = vmul.f32 %v2244, %v2260
      %v2281 = vmul.f32 %v2245, %v2260
      %v2282 = vmul.f32 %v2246, %v2260
      %v2283 = vmul.f32 %v2247, %v2260
      %v2284 = vmul.f32 %v2248, %v2260
      %v2285 = vmul.f32 %v2249, %v2260
      %v2286 = vmul.f32 %v2250, %v2260
      %v2287 = vmul.f32 %v2251, %v2260
      %v2288 = vmul.f32 %v2252, %v2260
      %v2289 = vmul.f32 %v2253, %v2260
      %v2290 = vmul.f32 %v2254, %v2260
      %v2291 = vmul.f32 %v2255, %v2260
      %v2292 = vmul.f32 %v2256, %v2260
      %v2293 = vadd.f32 %v2193, %v2261
      %v2294 = vadd.f32 %v2194, %v2262
      %v2295 = vadd.f32 %v2195, %v2263
      %v2296 = vadd.f32 %v2196, %v2264
      %v2297 = vadd.f32 %v2197, %v2265
      %v2298 = vadd.f32 %v2198, %v2266
      %v2299 = vadd.f32 %v2199, %v2267
      %v2300 = vadd.f32 %v2200, %v2268
      %v2301 = vadd.f32 %v2201, %v2269
      %v2302 = vadd.f32 %v2202, %v2270
      %v2303 = vadd.f32 %v2203, %v2271
      %v2304 = vadd.f32 %v2204, %v2272
      %v2305 = vadd.f32 %v2205, %v2273
      %v2306 = vadd.f32 %v2206, %v2274
      %v2307 = vadd.f32 %v2207, %v2275
      %v2308 = vadd.f32 %v2208, %v2276
      %v2309 = vadd.f32 %v2209, %v2277
      %v2310 = vadd.f32 %v2210, %v2278
      %v2311 = vadd.f32 %v2211, %v2279
      %v2312 = vadd.f32 %v2212, %v2280
      %v2313 = vadd.f32 %v2213, %v2281
      %v2314 = vadd.f32 %v2214, %v2282
      %v2315 = vadd.f32 %v2215, %v2283
      %v2316 = vadd.f32 %v2216, %v2284
      %v2317 = vadd.f32 %v2217, %v2285
      %v2318 = vadd.f32 %v2218, %v2286
      %v2319 = vadd.f32 %v2219, %v2287
      %v2320 = vadd.f32 %v2220, %v2288
      %v2321 = vadd.f32 %v2221, %v2289
      %v2322 = vadd.f32 %v2222, %v2290
      %v2323 = vadd.f32 %v2223, %v2291
      %v2324 = vadd.f32 %v2224, %v2292
      %s2325 = scalar_lea.vmem [#allocation2], 96
      %v2326 = vld [vmem:[%s2325] sm:$0xff]
      %v2327 = vld [vmem:[%s2325 + $0x8] sm:$0xff]
      %v2328 = vld [vmem:[%s2325 + $0x18] sm:$0xff]
      %v2329 = vld [vmem:[%s2325 + $0x20] sm:$0xff]
      %v2330 = vld [vmem:[%s2325 + $0x30] sm:$0xff]
      %v2331 = vld [vmem:[%s2325 + $0x38] sm:$0xff]
      %v2332 = vld [vmem:[%s2325 + $0x48] sm:$0xff]
      %v2333 = vld [vmem:[%s2325 + $0x50] sm:$0xff]
      %v2334 = vld [vmem:[%s2325 + $0x60] sm:$0xff]
      %v2335 = vld [vmem:[%s2325 + $0x68] sm:$0xff]
      %v2336 = vld [vmem:[%s2325 + $0x78] sm:$0xff]
      %v2337 = vld [vmem:[%s2325 + $0x80] sm:$0xff]
      %v2338 = vld [vmem:[%s2325 + $0x90] sm:$0xff]
      %v2339 = vld [vmem:[%s2325 + $0x98] sm:$0xff]
      %v2340 = vld [vmem:[%s2325 + $0xa8] sm:$0xff]
      %v2341 = vld [vmem:[%s2325 + $0xb0] sm:$0xff]
      %v2342 = vld [vmem:[%s2325 + $0xc0] sm:$0xff]
      %v2343 = vld [vmem:[%s2325 + $0xc8] sm:$0xff]
      %v2344 = vld [vmem:[%s2325 + $0xd8] sm:$0xff]
      %v2345 = vld [vmem:[%s2325 + $0xe0] sm:$0xff]
      %v2346 = vld [vmem:[%s2325 + $0xf0] sm:$0xff]
      %v2347 = vld [vmem:[%s2325 + $0xf8] sm:$0xff]
      %v2348 = vld [vmem:[%s2325 + $0x108] sm:$0xff]
      %v2349 = vld [vmem:[%s2325 + $0x110] sm:$0xff]
      %v2350 = vld [vmem:[%s2325 + $0x120] sm:$0xff]
      %v2351 = vld [vmem:[%s2325 + $0x128] sm:$0xff]
      %v2352 = vld [vmem:[%s2325 + $0x138] sm:$0xff]
      %v2353 = vld [vmem:[%s2325 + $0x140] sm:$0xff]
      %v2354 = vld [vmem:[%s2325 + $0x150] sm:$0xff]
      %v2355 = vld [vmem:[%s2325 + $0x158] sm:$0xff]
      %v2356 = vld [vmem:[%s2325 + $0x168] sm:$0xff]
      %v2357 = vld [vmem:[%s2325 + $0x170] sm:$0xff]
      %v2358 = vlaneseq
      %v2359 = vshrl.u32 %v2358, 7
      %v2360 = vsub.s32 4, %v2359
      %v2361 = vrot.slane %v321, %v2360
      %v2362 = vmul.f32 %v2326, %v2361
      %v2363 = vmul.f32 %v2327, %v2361
      %v2364 = vmul.f32 %v2328, %v2361
      %v2365 = vmul.f32 %v2329, %v2361
      %v2366 = vmul.f32 %v2330, %v2361
      %v2367 = vmul.f32 %v2331, %v2361
      %v2368 = vmul.f32 %v2332, %v2361
      %v2369 = vmul.f32 %v2333, %v2361
      %v2370 = vmul.f32 %v2334, %v2361
      %v2371 = vmul.f32 %v2335, %v2361
      %v2372 = vmul.f32 %v2336, %v2361
      %v2373 = vmul.f32 %v2337, %v2361
      %v2374 = vmul.f32 %v2338, %v2361
      %v2375 = vmul.f32 %v2339, %v2361
      %v2376 = vmul.f32 %v2340, %v2361
      %v2377 = vmul.f32 %v2341, %v2361
      %v2378 = vmul.f32 %v2342, %v2361
      %v2379 = vmul.f32 %v2343, %v2361
      %v2380 = vmul.f32 %v2344, %v2361
      %v2381 = vmul.f32 %v2345, %v2361
      %v2382 = vmul.f32 %v2346, %v2361
      %v2383 = vmul.f32 %v2347, %v2361
      %v2384 = vmul.f32 %v2348, %v2361
      %v2385 = vmul.f32 %v2349, %v2361
      %v2386 = vmul.f32 %v2350, %v2361
      %v2387 = vmul.f32 %v2351, %v2361
      %v2388 = vmul.f32 %v2352, %v2361
      %v2389 = vmul.f32 %v2353, %v2361
      %v2390 = vmul.f32 %v2354, %v2361
      %v2391 = vmul.f32 %v2355, %v2361
      %v2392 = vmul.f32 %v2356, %v2361
      %v2393 = vmul.f32 %v2357, %v2361
      %v2394 = vadd.f32 %v2293, %v2362
      %v2395 = vadd.f32 %v2294, %v2363
      %v2396 = vadd.f32 %v2295, %v2364
      %v2397 = vadd.f32 %v2296, %v2365
      %v2398 = vadd.f32 %v2297, %v2366
      %v2399 = vadd.f32 %v2298, %v2367
      %v2400 = vadd.f32 %v2299, %v2368
      %v2401 = vadd.f32 %v2300, %v2369
      %v2402 = vadd.f32 %v2301, %v2370
      %v2403 = vadd.f32 %v2302, %v2371
      %v2404 = vadd.f32 %v2303, %v2372
      %v2405 = vadd.f32 %v2304, %v2373
      %v2406 = vadd.f32 %v2305, %v2374
      %v2407 = vadd.f32 %v2306, %v2375
      %v2408 = vadd.f32 %v2307, %v2376
      %v2409 = vadd.f32 %v2308, %v2377
      %v2410 = vadd.f32 %v2309, %v2378
      %v2411 = vadd.f32 %v2310, %v2379
      %v2412 = vadd.f32 %v2311, %v2380
      %v2413 = vadd.f32 %v2312, %v2381
      %v2414 = vadd.f32 %v2313, %v2382
      %v2415 = vadd.f32 %v2314, %v2383
      %v2416 = vadd.f32 %v2315, %v2384
      %v2417 = vadd.f32 %v2316, %v2385
      %v2418 = vadd.f32 %v2317, %v2386
      %v2419 = vadd.f32 %v2318, %v2387
      %v2420 = vadd.f32 %v2319, %v2388
      %v2421 = vadd.f32 %v2320, %v2389
      %v2422 = vadd.f32 %v2321, %v2390
      %v2423 = vadd.f32 %v2322, %v2391
      %v2424 = vadd.f32 %v2323, %v2392
      %v2425 = vadd.f32 %v2324, %v2393
      %v2426 = vld [vmem:[%s2325 + $0x1] sm:$0xff]
      %v2427 = vld [vmem:[%s2325 + $0x9] sm:$0xff]
      %v2428 = vld [vmem:[%s2325 + $0x19] sm:$0xff]
      %v2429 = vld [vmem:[%s2325 + $0x21] sm:$0xff]
      %v2430 = vld [vmem:[%s2325 + $0x31] sm:$0xff]
      %v2431 = vld [vmem:[%s2325 + $0x39] sm:$0xff]
      %v2432 = vld [vmem:[%s2325 + $0x49] sm:$0xff]
      %v2433 = vld [vmem:[%s2325 + $0x51] sm:$0xff]
      %v2434 = vld [vmem:[%s2325 + $0x61] sm:$0xff]
      %v2435 = vld [vmem:[%s2325 + $0x69] sm:$0xff]
      %v2436 = vld [vmem:[%s2325 + $0x79] sm:$0xff]
      %v2437 = vld [vmem:[%s2325 + $0x81] sm:$0xff]
      %v2438 = vld [vmem:[%s2325 + $0x91] sm:$0xff]
      %v2439 = vld [vmem:[%s2325 + $0x99] sm:$0xff]
      %v2440 = vld [vmem:[%s2325 + $0xa9] sm:$0xff]
      %v2441 = vld [vmem:[%s2325 + $0xb1] sm:$0xff]
      %v2442 = vld [vmem:[%s2325 + $0xc1] sm:$0xff]
      %v2443 = vld [vmem:[%s2325 + $0xc9] sm:$0xff]
      %v2444 = vld [vmem:[%s2325 + $0xd9] sm:$0xff]
      %v2445 = vld [vmem:[%s2325 + $0xe1] sm:$0xff]
      %v2446 = vld [vmem:[%s2325 + $0xf1] sm:$0xff]
      %v2447 = vld [vmem:[%s2325 + $0xf9] sm:$0xff]
      %v2448 = vld [vmem:[%s2325 + $0x109] sm:$0xff]
      %v2449 = vld [vmem:[%s2325 + $0x111] sm:$0xff]
      %v2450 = vld [vmem:[%s2325 + $0x121] sm:$0xff]
      %v2451 = vld [vmem:[%s2325 + $0x129] sm:$0xff]
      %v2452 = vld [vmem:[%s2325 + $0x139] sm:$0xff]
      %v2453 = vld [vmem:[%s2325 + $0x141] sm:$0xff]
      %v2454 = vld [vmem:[%s2325 + $0x151] sm:$0xff]
      %v2455 = vld [vmem:[%s2325 + $0x159] sm:$0xff]
      %v2456 = vld [vmem:[%s2325 + $0x169] sm:$0xff]
      %v2457 = vld [vmem:[%s2325 + $0x171] sm:$0xff]
      %v2458 = vlaneseq
      %v2459 = vshrl.u32 %v2458, 7
      %v2460 = vsub.s32 5, %v2459
      %v2461 = vrot.slane %v321, %v2460
      %v2462 = vmul.f32 %v2426, %v2461
      %v2463 = vmul.f32 %v2427, %v2461
      %v2464 = vmul.f32 %v2428, %v2461
      %v2465 = vmul.f32 %v2429, %v2461
      %v2466 = vmul.f32 %v2430, %v2461
      %v2467 = vmul.f32 %v2431, %v2461
      %v2468 = vmul.f32 %v2432, %v2461
      %v2469 = vmul.f32 %v2433, %v2461
      %v2470 = vmul.f32 %v2434, %v2461
      %v2471 = vmul.f32 %v2435, %v2461
      %v2472 = vmul.f32 %v2436, %v2461
      %v2473 = vmul.f32 %v2437, %v2461
      %v2474 = vmul.f32 %v2438, %v2461
      %v2475 = vmul.f32 %v2439, %v2461
      %v2476 = vmul.f32 %v2440, %v2461
      %v2477 = vmul.f32 %v2441, %v2461
      %v2478 = vmul.f32 %v2442, %v2461
      %v2479 = vmul.f32 %v2443, %v2461
      %v2480 = vmul.f32 %v2444, %v2461
      %v2481 = vmul.f32 %v2445, %v2461
      %v2482 = vmul.f32 %v2446, %v2461
      %v2483 = vmul.f32 %v2447, %v2461
      %v2484 = vmul.f32 %v2448, %v2461
      %v2485 = vmul.f32 %v2449, %v2461
      %v2486 = vmul.f32 %v2450, %v2461
      %v2487 = vmul.f32 %v2451, %v2461
      %v2488 = vmul.f32 %v2452, %v2461
      %v2489 = vmul.f32 %v2453, %v2461
      %v2490 = vmul.f32 %v2454, %v2461
      %v2491 = vmul.f32 %v2455, %v2461
      %v2492 = vmul.f32 %v2456, %v2461
      %v2493 = vmul.f32 %v2457, %v2461
      %v2494 = vadd.f32 %v2394, %v2462
      %v2495 = vadd.f32 %v2395, %v2463
      %v2496 = vadd.f32 %v2396, %v2464
      %v2497 = vadd.f32 %v2397, %v2465
      %v2498 = vadd.f32 %v2398, %v2466
      %v2499 = vadd.f32 %v2399, %v2467
      %v2500 = vadd.f32 %v2400, %v2468
      %v2501 = vadd.f32 %v2401, %v2469
      %v2502 = vadd.f32 %v2402, %v2470
      %v2503 = vadd.f32 %v2403, %v2471
      %v2504 = vadd.f32 %v2404, %v2472
      %v2505 = vadd.f32 %v2405, %v2473
      %v2506 = vadd.f32 %v2406, %v2474
      %v2507 = vadd.f32 %v2407, %v2475
      %v2508 = vadd.f32 %v2408, %v2476
      %v2509 = vadd.f32 %v2409, %v2477
      %v2510 = vadd.f32 %v2410, %v2478
      %v2511 = vadd.f32 %v2411, %v2479
      %v2512 = vadd.f32 %v2412, %v2480
      %v2513 = vadd.f32 %v2413, %v2481
      %v2514 = vadd.f32 %v2414, %v2482
      %v2515 = vadd.f32 %v2415, %v2483
      %v2516 = vadd.f32 %v2416, %v2484
      %v2517 = vadd.f32 %v2417, %v2485
      %v2518 = vadd.f32 %v2418, %v2486
      %v2519 = vadd.f32 %v2419, %v2487
      %v2520 = vadd.f32 %v2420, %v2488
      %v2521 = vadd.f32 %v2421, %v2489
      %v2522 = vadd.f32 %v2422, %v2490
      %v2523 = vadd.f32 %v2423, %v2491
      %v2524 = vadd.f32 %v2424, %v2492
      %v2525 = vadd.f32 %v2425, %v2493
      %v2526 = vld [vmem:[%s2325 + $0x2] sm:$0xff]
      %v2527 = vld [vmem:[%s2325 + $0xa] sm:$0xff]
      %v2528 = vld [vmem:[%s2325 + $0x1a] sm:$0xff]
      %v2529 = vld [vmem:[%s2325 + $0x22] sm:$0xff]
      %v2530 = vld [vmem:[%s2325 + $0x32] sm:$0xff]
      %v2531 = vld [vmem:[%s2325 + $0x3a] sm:$0xff]
      %v2532 = vld [vmem:[%s2325 + $0x4a] sm:$0xff]
      %v2533 = vld [vmem:[%s2325 + $0x52] sm:$0xff]
      %v2534 = vld [vmem:[%s2325 + $0x62] sm:$0xff]
      %v2535 = vld [vmem:[%s2325 + $0x6a] sm:$0xff]
      %v2536 = vld [vmem:[%s2325 + $0x7a] sm:$0xff]
      %v2537 = vld [vmem:[%s2325 + $0x82] sm:$0xff]
      %v2538 = vld [vmem:[%s2325 + $0x92] sm:$0xff]
      %v2539 = vld [vmem:[%s2325 + $0x9a] sm:$0xff]
      %v2540 = vld [vmem:[%s2325 + $0xaa] sm:$0xff]
      %v2541 = vld [vmem:[%s2325 + $0xb2] sm:$0xff]
      %v2542 = vld [vmem:[%s2325 + $0xc2] sm:$0xff]
      %v2543 = vld [vmem:[%s2325 + $0xca] sm:$0xff]
      %v2544 = vld [vmem:[%s2325 + $0xda] sm:$0xff]
      %v2545 = vld [vmem:[%s2325 + $0xe2] sm:$0xff]
      %v2546 = vld [vmem:[%s2325 + $0xf2] sm:$0xff]
      %v2547 = vld [vmem:[%s2325 + $0xfa] sm:$0xff]
      %v2548 = vld [vmem:[%s2325 + $0x10a] sm:$0xff]
      %v2549 = vld [vmem:[%s2325 + $0x112] sm:$0xff]
      %v2550 = vld [vmem:[%s2325 + $0x122] sm:$0xff]
      %v2551 = vld [vmem:[%s2325 + $0x12a] sm:$0xff]
      %v2552 = vld [vmem:[%s2325 + $0x13a] sm:$0xff]
      %v2553 = vld [vmem:[%s2325 + $0x142] sm:$0xff]
      %v2554 = vld [vmem:[%s2325 + $0x152] sm:$0xff]
      %v2555 = vld [vmem:[%s2325 + $0x15a] sm:$0xff]
      %v2556 = vld [vmem:[%s2325 + $0x16a] sm:$0xff]
      %v2557 = vld [vmem:[%s2325 + $0x172] sm:$0xff]
      %v2558 = vlaneseq
      %v2559 = vshrl.u32 %v2558, 7
      %v2560 = vsub.s32 6, %v2559
      %v2561 = vrot.slane %v321, %v2560
      %v2562 = vmul.f32 %v2526, %v2561
      %v2563 = vmul.f32 %v2527, %v2561
      %v2564 = vmul.f32 %v2528, %v2561
      %v2565 = vmul.f32 %v2529, %v2561
      %v2566 = vmul.f32 %v2530, %v2561
      %v2567 = vmul.f32 %v2531, %v2561
      %v2568 = vmul.f32 %v2532, %v2561
      %v2569 = vmul.f32 %v2533, %v2561
      %v2570 = vmul.f32 %v2534, %v2561
      %v2571 = vmul.f32 %v2535, %v2561
      %v2572 = vmul.f32 %v2536, %v2561
      %v2573 = vmul.f32 %v2537, %v2561
      %v2574 = vmul.f32 %v2538, %v2561
      %v2575 = vmul.f32 %v2539, %v2561
      %v2576 = vmul.f32 %v2540, %v2561
      %v2577 = vmul.f32 %v2541, %v2561
      %v2578 = vmul.f32 %v2542, %v2561
      %v2579 = vmul.f32 %v2543, %v2561
      %v2580 = vmul.f32 %v2544, %v2561
      %v2581 = vmul.f32 %v2545, %v2561
      %v2582 = vmul.f32 %v2546, %v2561
      %v2583 = vmul.f32 %v2547, %v2561
      %v2584 = vmul.f32 %v2548, %v2561
      %v2585 = vmul.f32 %v2549, %v2561
      %v2586 = vmul.f32 %v2550, %v2561
      %v2587 = vmul.f32 %v2551, %v2561
      %v2588 = vmul.f32 %v2552, %v2561
      %v2589 = vmul.f32 %v2553, %v2561
      %v2590 = vmul.f32 %v2554, %v2561
      %v2591 = vmul.f32 %v2555, %v2561
      %v2592 = vmul.f32 %v2556, %v2561
      %v2593 = vmul.f32 %v2557, %v2561
      %v2594 = vadd.f32 %v2494, %v2562
      %v2595 = vadd.f32 %v2495, %v2563
      %v2596 = vadd.f32 %v2496, %v2564
      %v2597 = vadd.f32 %v2497, %v2565
      %v2598 = vadd.f32 %v2498, %v2566
      %v2599 = vadd.f32 %v2499, %v2567
      %v2600 = vadd.f32 %v2500, %v2568
      %v2601 = vadd.f32 %v2501, %v2569
      %v2602 = vadd.f32 %v2502, %v2570
      %v2603 = vadd.f32 %v2503, %v2571
      %v2604 = vadd.f32 %v2504, %v2572
      %v2605 = vadd.f32 %v2505, %v2573
      %v2606 = vadd.f32 %v2506, %v2574
      %v2607 = vadd.f32 %v2507, %v2575
      %v2608 = vadd.f32 %v2508, %v2576
      %v2609 = vadd.f32 %v2509, %v2577
      %v2610 = vadd.f32 %v2510, %v2578
      %v2611 = vadd.f32 %v2511, %v2579
      %v2612 = vadd.f32 %v2512, %v2580
      %v2613 = vadd.f32 %v2513, %v2581
      %v2614 = vadd.f32 %v2514, %v2582
      %v2615 = vadd.f32 %v2515, %v2583
      %v2616 = vadd.f32 %v2516, %v2584
      %v2617 = vadd.f32 %v2517, %v2585
      %v2618 = vadd.f32 %v2518, %v2586
      %v2619 = vadd.f32 %v2519, %v2587
      %v2620 = vadd.f32 %v2520, %v2588
      %v2621 = vadd.f32 %v2521, %v2589
      %v2622 = vadd.f32 %v2522, %v2590
      %v2623 = vadd.f32 %v2523, %v2591
      %v2624 = vadd.f32 %v2524, %v2592
      %v2625 = vadd.f32 %v2525, %v2593
      %v2626 = vld [vmem:[%s2325 + $0x3] sm:$0xff]
      %v2627 = vld [vmem:[%s2325 + $0xb] sm:$0xff]
      %v2628 = vld [vmem:[%s2325 + $0x1b] sm:$0xff]
      %v2629 = vld [vmem:[%s2325 + $0x23] sm:$0xff]
      %v2630 = vld [vmem:[%s2325 + $0x33] sm:$0xff]
      %v2631 = vld [vmem:[%s2325 + $0x3b] sm:$0xff]
      %v2632 = vld [vmem:[%s2325 + $0x4b] sm:$0xff]
      %v2633 = vld [vmem:[%s2325 + $0x53] sm:$0xff]
      %v2634 = vld [vmem:[%s2325 + $0x63] sm:$0xff]
      %v2635 = vld [vmem:[%s2325 + $0x6b] sm:$0xff]
      %v2636 = vld [vmem:[%s2325 + $0x7b] sm:$0xff]
      %v2637 = vld [vmem:[%s2325 + $0x83] sm:$0xff]
      %v2638 = vld [vmem:[%s2325 + $0x93] sm:$0xff]
      %v2639 = vld [vmem:[%s2325 + $0x9b] sm:$0xff]
      %v2640 = vld [vmem:[%s2325 + $0xab] sm:$0xff]
      %v2641 = vld [vmem:[%s2325 + $0xb3] sm:$0xff]
      %v2642 = vld [vmem:[%s2325 + $0xc3] sm:$0xff]
      %v2643 = vld [vmem:[%s2325 + $0xcb] sm:$0xff]
      %v2644 = vld [vmem:[%s2325 + $0xdb] sm:$0xff]
      %v2645 = vld [vmem:[%s2325 + $0xe3] sm:$0xff]
      %v2646 = vld [vmem:[%s2325 + $0xf3] sm:$0xff]
      %v2647 = vld [vmem:[%s2325 + $0xfb] sm:$0xff]
      %v2648 = vld [vmem:[%s2325 + $0x10b] sm:$0xff]
      %v2649 = vld [vmem:[%s2325 + $0x113] sm:$0xff]
      %v2650 = vld [vmem:[%s2325 + $0x123] sm:$0xff]
      %v2651 = vld [vmem:[%s2325 + $0x12b] sm:$0xff]
      %v2652 = vld [vmem:[%s2325 + $0x13b] sm:$0xff]
      %v2653 = vld [vmem:[%s2325 + $0x143] sm:$0xff]
      %v2654 = vld [vmem:[%s2325 + $0x153] sm:$0xff]
      %v2655 = vld [vmem:[%s2325 + $0x15b] sm:$0xff]
      %v2656 = vld [vmem:[%s2325 + $0x16b] sm:$0xff]
      %v2657 = vld [vmem:[%s2325 + $0x173] sm:$0xff]
      %v2658 = vlaneseq
      %v2659 = vshrl.u32 %v2658, 7
      %v2660 = vsub.s32 7, %v2659
      %v2661 = vrot.slane %v321, %v2660
      %v2662 = vmul.f32 %v2626, %v2661
      %v2663 = vmul.f32 %v2627, %v2661
      %v2664 = vmul.f32 %v2628, %v2661
      %v2665 = vmul.f32 %v2629, %v2661
      %v2666 = vmul.f32 %v2630, %v2661
      %v2667 = vmul.f32 %v2631, %v2661
      %v2668 = vmul.f32 %v2632, %v2661
      %v2669 = vmul.f32 %v2633, %v2661
      %v2670 = vmul.f32 %v2634, %v2661
      %v2671 = vmul.f32 %v2635, %v2661
      %v2672 = vmul.f32 %v2636, %v2661
      %v2673 = vmul.f32 %v2637, %v2661
      %v2674 = vmul.f32 %v2638, %v2661
      %v2675 = vmul.f32 %v2639, %v2661
      %v2676 = vmul.f32 %v2640, %v2661
      %v2677 = vmul.f32 %v2641, %v2661
      %v2678 = vmul.f32 %v2642, %v2661
      %v2679 = vmul.f32 %v2643, %v2661
      %v2680 = vmul.f32 %v2644, %v2661
      %v2681 = vmul.f32 %v2645, %v2661
      %v2682 = vmul.f32 %v2646, %v2661
      %v2683 = vmul.f32 %v2647, %v2661
      %v2684 = vmul.f32 %v2648, %v2661
      %v2685 = vmul.f32 %v2649, %v2661
      %v2686 = vmul.f32 %v2650, %v2661
      %v2687 = vmul.f32 %v2651, %v2661
      %v2688 = vmul.f32 %v2652, %v2661
      %v2689 = vmul.f32 %v2653, %v2661
      %v2690 = vmul.f32 %v2654, %v2661
      %v2691 = vmul.f32 %v2655, %v2661
      %v2692 = vmul.f32 %v2656, %v2661
      %v2693 = vmul.f32 %v2657, %v2661
      %v2694 = vadd.f32 %v2594, %v2662
      %v2695 = vadd.f32 %v2595, %v2663
      %v2696 = vadd.f32 %v2596, %v2664
      %v2697 = vadd.f32 %v2597, %v2665
      %v2698 = vadd.f32 %v2598, %v2666
      %v2699 = vadd.f32 %v2599, %v2667
      %v2700 = vadd.f32 %v2600, %v2668
      %v2701 = vadd.f32 %v2601, %v2669
      %v2702 = vadd.f32 %v2602, %v2670
      %v2703 = vadd.f32 %v2603, %v2671
      %v2704 = vadd.f32 %v2604, %v2672
      %v2705 = vadd.f32 %v2605, %v2673
      %v2706 = vadd.f32 %v2606, %v2674
      %v2707 = vadd.f32 %v2607, %v2675
      %v2708 = vadd.f32 %v2608, %v2676
      %v2709 = vadd.f32 %v2609, %v2677
      %v2710 = vadd.f32 %v2610, %v2678
      %v2711 = vadd.f32 %v2611, %v2679
      %v2712 = vadd.f32 %v2612, %v2680
      %v2713 = vadd.f32 %v2613, %v2681
      %v2714 = vadd.f32 %v2614, %v2682
      %v2715 = vadd.f32 %v2615, %v2683
      %v2716 = vadd.f32 %v2616, %v2684
      %v2717 = vadd.f32 %v2617, %v2685
      %v2718 = vadd.f32 %v2618, %v2686
      %v2719 = vadd.f32 %v2619, %v2687
      %v2720 = vadd.f32 %v2620, %v2688
      %v2721 = vadd.f32 %v2621, %v2689
      %v2722 = vadd.f32 %v2622, %v2690
      %v2723 = vadd.f32 %v2623, %v2691
      %v2724 = vadd.f32 %v2624, %v2692
      %v2725 = vadd.f32 %v2625, %v2693
      %v2726 = vld [vmem:[%s2325 + $0x4] sm:$0xff]
      %v2727 = vld [vmem:[%s2325 + $0xc] sm:$0xff]
      %v2728 = vld [vmem:[%s2325 + $0x1c] sm:$0xff]
      %v2729 = vld [vmem:[%s2325 + $0x24] sm:$0xff]
      %v2730 = vld [vmem:[%s2325 + $0x34] sm:$0xff]
      %v2731 = vld [vmem:[%s2325 + $0x3c] sm:$0xff]
      %v2732 = vld [vmem:[%s2325 + $0x4c] sm:$0xff]
      %v2733 = vld [vmem:[%s2325 + $0x54] sm:$0xff]
      %v2734 = vld [vmem:[%s2325 + $0x64] sm:$0xff]
      %v2735 = vld [vmem:[%s2325 + $0x6c] sm:$0xff]
      %v2736 = vld [vmem:[%s2325 + $0x7c] sm:$0xff]
      %v2737 = vld [vmem:[%s2325 + $0x84] sm:$0xff]
      %v2738 = vld [vmem:[%s2325 + $0x94] sm:$0xff]
      %v2739 = vld [vmem:[%s2325 + $0x9c] sm:$0xff]
      %v2740 = vld [vmem:[%s2325 + $0xac] sm:$0xff]
      %v2741 = vld [vmem:[%s2325 + $0xb4] sm:$0xff]
      %v2742 = vld [vmem:[%s2325 + $0xc4] sm:$0xff]
      %v2743 = vld [vmem:[%s2325 + $0xcc] sm:$0xff]
      %v2744 = vld [vmem:[%s2325 + $0xdc] sm:$0xff]
      %v2745 = vld [vmem:[%s2325 + $0xe4] sm:$0xff]
      %v2746 = vld [vmem:[%s2325 + $0xf4] sm:$0xff]
      %v2747 = vld [vmem:[%s2325 + $0xfc] sm:$0xff]
      %v2748 = vld [vmem:[%s2325 + $0x10c] sm:$0xff]
      %v2749 = vld [vmem:[%s2325 + $0x114] sm:$0xff]
      %v2750 = vld [vmem:[%s2325 + $0x124] sm:$0xff]
      %v2751 = vld [vmem:[%s2325 + $0x12c] sm:$0xff]
      %v2752 = vld [vmem:[%s2325 + $0x13c] sm:$0xff]
      %v2753 = vld [vmem:[%s2325 + $0x144] sm:$0xff]
      %v2754 = vld [vmem:[%s2325 + $0x154] sm:$0xff]
      %v2755 = vld [vmem:[%s2325 + $0x15c] sm:$0xff]
      %v2756 = vld [vmem:[%s2325 + $0x16c] sm:$0xff]
      %v2757 = vld [vmem:[%s2325 + $0x174] sm:$0xff]
      %v2758 = vlaneseq
      %v2759 = vshrl.u32 %v2758, 7
      %v2760 = vsub.s32 0, %v2759
      %v2761 = vrot.slane %v322, %v2760
      %v2762 = vmul.f32 %v2726, %v2761
      %v2763 = vmul.f32 %v2727, %v2761
      %v2764 = vmul.f32 %v2728, %v2761
      %v2765 = vmul.f32 %v2729, %v2761
      %v2766 = vmul.f32 %v2730, %v2761
      %v2767 = vmul.f32 %v2731, %v2761
      %v2768 = vmul.f32 %v2732, %v2761
      %v2769 = vmul.f32 %v2733, %v2761
      %v2770 = vmul.f32 %v2734, %v2761
      %v2771 = vmul.f32 %v2735, %v2761
      %v2772 = vmul.f32 %v2736, %v2761
      %v2773 = vmul.f32 %v2737, %v2761
      %v2774 = vmul.f32 %v2738, %v2761
      %v2775 = vmul.f32 %v2739, %v2761
      %v2776 = vmul.f32 %v2740, %v2761
      %v2777 = vmul.f32 %v2741, %v2761
      %v2778 = vmul.f32 %v2742, %v2761
      %v2779 = vmul.f32 %v2743, %v2761
      %v2780 = vmul.f32 %v2744, %v2761
      %v2781 = vmul.f32 %v2745, %v2761
      %v2782 = vmul.f32 %v2746, %v2761
      %v2783 = vmul.f32 %v2747, %v2761
      %v2784 = vmul.f32 %v2748, %v2761
      %v2785 = vmul.f32 %v2749, %v2761
      %v2786 = vmul.f32 %v2750, %v2761
      %v2787 = vmul.f32 %v2751, %v2761
      %v2788 = vmul.f32 %v2752, %v2761
      %v2789 = vmul.f32 %v2753, %v2761
      %v2790 = vmul.f32 %v2754, %v2761
      %v2791 = vmul.f32 %v2755, %v2761
      %v2792 = vmul.f32 %v2756, %v2761
      %v2793 = vmul.f32 %v2757, %v2761
      %v2794 = vadd.f32 %v2694, %v2762
      %v2795 = vadd.f32 %v2695, %v2763
      %v2796 = vadd.f32 %v2696, %v2764
      %v2797 = vadd.f32 %v2697, %v2765
      %v2798 = vadd.f32 %v2698, %v2766
      %v2799 = vadd.f32 %v2699, %v2767
      %v2800 = vadd.f32 %v2700, %v2768
      %v2801 = vadd.f32 %v2701, %v2769
      %v2802 = vadd.f32 %v2702, %v2770
      %v2803 = vadd.f32 %v2703, %v2771
      %v2804 = vadd.f32 %v2704, %v2772
      %v2805 = vadd.f32 %v2705, %v2773
      %v2806 = vadd.f32 %v2706, %v2774
      %v2807 = vadd.f32 %v2707, %v2775
      %v2808 = vadd.f32 %v2708, %v2776
      %v2809 = vadd.f32 %v2709, %v2777
      %v2810 = vadd.f32 %v2710, %v2778
      %v2811 = vadd.f32 %v2711, %v2779
      %v2812 = vadd.f32 %v2712, %v2780
      %v2813 = vadd.f32 %v2713, %v2781
      %v2814 = vadd.f32 %v2714, %v2782
      %v2815 = vadd.f32 %v2715, %v2783
      %v2816 = vadd.f32 %v2716, %v2784
      %v2817 = vadd.f32 %v2717, %v2785
      %v2818 = vadd.f32 %v2718, %v2786
      %v2819 = vadd.f32 %v2719, %v2787
      %v2820 = vadd.f32 %v2720, %v2788
      %v2821 = vadd.f32 %v2721, %v2789
      %v2822 = vadd.f32 %v2722, %v2790
      %v2823 = vadd.f32 %v2723, %v2791
      %v2824 = vadd.f32 %v2724, %v2792
      %v2825 = vadd.f32 %v2725, %v2793
      %2826 = vst.msk [vmem:[%s191] sm:$0xff] %vm192, %v2794
      %2827 = vst.msk [vmem:[%s191 + $0x8] sm:$0xff] %vm192, %v2795
      %2828 = vst.msk [vmem:[%s191 + $0x10] sm:$0xff] %vm192, %v2796
      %2829 = vst.msk [vmem:[%s191 + $0x18] sm:$0xff] %vm192, %v2797
      %2830 = vst.msk [vmem:[%s191 + $0x20] sm:$0xff] %vm192, %v2798
      %2831 = vst.msk [vmem:[%s191 + $0x28] sm:$0xff] %vm192, %v2799
      %2832 = vst.msk [vmem:[%s191 + $0x30] sm:$0xff] %vm192, %v2800
      %2833 = vst.msk [vmem:[%s191 + $0x38] sm:$0xff] %vm192, %v2801
      %2834 = vst.msk [vmem:[%s191 + $0x40] sm:$0xff] %vm192, %v2802
      %2835 = vst.msk [vmem:[%s191 + $0x48] sm:$0xff] %vm192, %v2803
      %2836 = vst.msk [vmem:[%s191 + $0x50] sm:$0xff] %vm192, %v2804
      %2837 = vst.msk [vmem:[%s191 + $0x58] sm:$0xff] %vm192, %v2805
      %2838 = vst.msk [vmem:[%s191 + $0x60] sm:$0xff] %vm192, %v2806
      %2839 = vst.msk [vmem:[%s191 + $0x68] sm:$0xff] %vm192, %v2807
      %2840 = vst.msk [vmem:[%s191 + $0x70] sm:$0xff] %vm192, %v2808
      %2841 = vst.msk [vmem:[%s191 + $0x78] sm:$0xff] %vm192, %v2809
      %2842 = vst.msk [vmem:[%s191 + $0x80] sm:$0xff] %vm192, %v2810
      %2843 = vst.msk [vmem:[%s191 + $0x88] sm:$0xff] %vm192, %v2811
      %2844 = vst.msk [vmem:[%s191 + $0x90] sm:$0xff] %vm192, %v2812
      %2845 = vst.msk [vmem:[%s191 + $0x98] sm:$0xff] %vm192, %v2813
      %2846 = vst.msk [vmem:[%s191 + $0xa0] sm:$0xff] %vm192, %v2814
      %2847 = vst.msk [vmem:[%s191 + $0xa8] sm:$0xff] %vm192, %v2815
      %2848 = vst.msk [vmem:[%s191 + $0xb0] sm:$0xff] %vm192, %v2816
      %2849 = vst.msk [vmem:[%s191 + $0xb8] sm:$0xff] %vm192, %v2817
      %2850 = vst.msk [vmem:[%s191 + $0xc0] sm:$0xff] %vm192, %v2818
      %2851 = vst.msk [vmem:[%s191 + $0xc8] sm:$0xff] %vm192, %v2819
      %2852 = vst.msk [vmem:[%s191 + $0xd0] sm:$0xff] %vm192, %v2820
      %2853 = vst.msk [vmem:[%s191 + $0xd8] sm:$0xff] %vm192, %v2821
      %2854 = vst.msk [vmem:[%s191 + $0xe0] sm:$0xff] %vm192, %v2822
      %2855 = vst.msk [vmem:[%s191 + $0xe8] sm:$0xff] %vm192, %v2823
      %2856 = vst.msk [vmem:[%s191 + $0xf0] sm:$0xff] %vm192, %v2824
      %2857 = vst.msk [vmem:[%s191 + $0xf8] sm:$0xff] %vm192, %v2825
      %p2858 = scmp.lt.s32.totalorder %s17, 1
      %s2859 = scalar_select %p2858, %s17, 1
      %p2860 = scmp.lt.s32.totalorder %s18, 0
      %s2861 = scalar_select %p2860, %s18, 0
      %s2862 = smul.addr %s2859, 32
      %s2863 = sadd.s32 %s2861, %s2862
      %s2864 = smul.addr %s2863, 8
      %s2865 = scalar_lea.vmem %s2, %s2864
      // Predicated region
      $region29: #{flexible_lite_mla_forward.6} parent=27 // pred_check
        %p2866 = pneg %p99
      $region30: #{flexible_lite_mla_forward.6} parent=27 // pred_check_branch
        %2868 = sbr.rel (%p2866) target = $region32
      $region31: #{flexible_lite_mla_forward.6} parent=27 // pred_region
        _
      $region32: #{flexible_lite_mla_forward.6} parent=27 // pred_fallthru
        _
    $region28: #{flexible_lite_mla_forward.6} parent=5 // pred_fallthru
      _
    %p2869 = scmp.le.s32.totalorder 2, %s8
    // Predicated region
    $region33: #{flexible_lite_mla_forward.6} parent=5 // pred_check
      %p2870 = pneg %p2869
    $region34: #{flexible_lite_mla_forward.6} parent=5 // pred_check_branch
      %2872 = sbr.rel (%p2870) target = $region36
    $region35: #{flexible_lite_mla_forward.6} parent=5 // pred_region
      %s2873 = ssub.s32 %s8, 2
      // Predicated region
      $region37: #{flexible_lite_mla_forward.6} parent=35 // pred_check
        %p2874 = pneg %p105
      $region38: #{flexible_lite_mla_forward.6} parent=35 // pred_check_branch
        %2876 = sbr.rel (%p2874) target = $region40
      $region39: #{flexible_lite_mla_forward.6} parent=35 // pred_region
        %p2877 = scmp.lt.s32.totalorder %s19, 1
        %s2878 = scalar_select %p2877, %s19, 1
        %p2879 = scmp.lt.s32.totalorder %s20, 0
        %s2880 = scalar_select %p2879, %s20, 0
        %s2881 = smul.addr %s2878, 32
        %s2882 = sadd.s32 %s2880, %s2881
        %s2883 = smul.addr %s2882, 8
        %s2884 = scalar_lea.vmem %s2, %s2883
      $region40: #{flexible_lite_mla_forward.6} parent=35 // pred_fallthru
        _
    $region36: #{flexible_lite_mla_forward.6} parent=5 // pred_fallthru
      _
  $region6: #{flexible_lite_mla_forward.6} parent=0 // loop_footer
    %s12 = sadd.s32 1, %s8
  $region7: #{flexible_lite_mla_forward.6} parent=0 // loop_footer_branch
    %7 = sbr.rel target = $region3
  $region8: #{flexible_lite_mla_forward.6} parent=0 // loop_exit
    _

</llo_original>
